<compile_context>
chip_gen: v5e
topology: v5e:2x2
jax: 0.10.0
libtpu: 0.0.40
codegen_flags: <defaults>
</compile_context>

<pallas_src>
import functools

import jax
import jax.numpy as jnp
from jax.experimental import pallas as pl
from jax.experimental.pallas import tpu as pltpu

NEG_SLOPE = 0.2
BN_EPS = 1e-5
LANE = 128
VMEM_LIMIT = 48 * 1024 * 1024   # explicit scoped-VMEM budget (fits v5e/v6e/v7x)


def _round_up(x, m):
    return (x + m - 1) // m * m


def _pick_tm(m, target=512):
    """Largest M-tile <= target that divides m and keeps sublane alignment."""
    if m <= target:
        return m
    for tm in range(target, 7, -1):
        if tm % 8 == 0 and m % tm == 0:
            return tm
    return m


# ----------------------------- Pallas kernels ------------------------------ #
def _mm_act_kernel(a_ref, w_ref, o_ref, *, act):
    """(TM, K) x (K, C) on the MXU, f32 accumulate, fused activation."""
    acc = jnp.dot(a_ref[...], w_ref[...], preferred_element_type=jnp.float32)
    if act == "leaky_relu":
        acc = jnp.where(acc >= 0, acc, NEG_SLOPE * acc)
    elif act == "sigmoid":
        acc = jax.nn.sigmoid(acc)
    o_ref[...] = acc.astype(o_ref.dtype)


def _mm_stats_kernel(a_ref, w_ref, o_ref, sum_ref, sq_ref):
    """Conv matmul + per-tile per-channel partial sum / sum-of-squares (f32)."""
    acc = jnp.dot(a_ref[...], w_ref[...], preferred_element_type=jnp.float32)
    o_ref[...] = acc.astype(o_ref.dtype)
    sum_ref[...] = jnp.sum(acc, axis=0, keepdims=True)[None]
    sq_ref[...] = jnp.sum(acc * acc, axis=0, keepdims=True)[None]


def _bn_leaky_kernel(x_ref, scale_ref, shift_ref, o_ref):
    """y = x*scale + shift then LeakyReLU(0.2); math in f32, store bf16."""
    x = x_ref[...].astype(jnp.float32)
    y = x * scale_ref[...] + shift_ref[...]
    o_ref[...] = jnp.where(y >= 0, y, NEG_SLOPE * y).astype(o_ref.dtype)


def pallas_conv_matmul(patches, wm, *, act=None, want_stats=False,
                       out_dtype=jnp.bfloat16):
    M, K = patches.shape
    K2, C = wm.shape
    assert K == K2
    tm = _pick_tm(M)
    t = M // tm
    cp = pltpu.CompilerParams(dimension_semantics=("parallel",),
                              vmem_limit_bytes=VMEM_LIMIT)
    in_specs = [pl.BlockSpec((tm, K), lambda i: (i, 0)),
                pl.BlockSpec((K, C), lambda i: (0, 0))]
    if want_stats:
        return pl.pallas_call(
            _mm_stats_kernel,
            out_shape=(jax.ShapeDtypeStruct((M, C), out_dtype),
                       jax.ShapeDtypeStruct((t, 1, C), jnp.float32),
                       jax.ShapeDtypeStruct((t, 1, C), jnp.float32)),
            grid=(t,),
            in_specs=in_specs,
            out_specs=(pl.BlockSpec((tm, C), lambda i: (i, 0)),
                       pl.BlockSpec((1, 1, C), lambda i: (i, 0, 0)),
                       pl.BlockSpec((1, 1, C), lambda i: (i, 0, 0))),
            compiler_params=cp,
        )(patches, wm)
    return pl.pallas_call(
        functools.partial(_mm_act_kernel, act=act),
        out_shape=jax.ShapeDtypeStruct((M, C), out_dtype),
        grid=(t,),
        in_specs=in_specs,
        out_specs=pl.BlockSpec((tm, C), lambda i: (i, 0)),
        compiler_params=cp,
    )(patches, wm)


def pallas_bn_leaky(x, scale, shift):
    M, C = x.shape
    tm = _pick_tm(M)
    return pl.pallas_call(
        _bn_leaky_kernel,
        out_shape=jax.ShapeDtypeStruct((M, C), x.dtype),
        grid=(M // tm,),
        in_specs=[pl.BlockSpec((tm, C), lambda i: (i, 0)),
                  pl.BlockSpec((1, C), lambda i: (0, 0)),
                  pl.BlockSpec((1, C), lambda i: (0, 0))],
        out_specs=pl.BlockSpec((tm, C), lambda i: (i, 0)),
        compiler_params=pltpu.CompilerParams(dimension_semantics=("parallel",),
                                             vmem_limit_bytes=VMEM_LIMIT),
    )(x, scale, shift)


# ------------------------------- JAX glue ---------------------------------- #
def im2col_nhwc(x, kh, kw, stride, pad):
    """x: (N, H, W, C) -> (N*Ho*Wo, kh*kw*C), feature order (kh, kw, c).

    Channels-last: no activation transposes, C stays the lane dimension.
    """
    N, H, W, C = x.shape
    if pad:
        x = jnp.pad(x, ((0, 0), (pad, pad), (pad, pad), (0, 0)))
    Ho = (H + 2 * pad - kh) // stride + 1
    Wo = (W + 2 * pad - kw) // stride + 1
    cols = []
    for i in range(kh):
        for j in range(kw):
            cols.append(x[:, i:i + stride * Ho:stride, j:j + stride * Wo:stride, :])
    p = jnp.stack(cols, axis=3)                       # (N, Ho, Wo, kh*kw, C)
    return p.reshape(N * Ho * Wo, kh * kw * C), N, Ho, Wo


def prep_weight(w, cin_pad, cout_pad):
    """PyTorch (Cout, Cin, kh, kw) -> bf16 (kh*kw*cin_pad, cout_pad) matrix."""
    cout, cin, kh, kw = w.shape
    wm = jnp.transpose(w, (2, 3, 1, 0))               # (kh, kw, Cin, Cout)
    wm = jnp.pad(wm, ((0, 0), (0, 0), (0, cin_pad - cin), (0, cout_pad - cout)))
    return wm.reshape(kh * kw * cin_pad, cout_pad).astype(jnp.bfloat16)


def conv_layer(h, w, stride, pad, *, act=None, want_stats=False,
               out_dtype=jnp.bfloat16):
    """h: (N, H, W, Cin_pad) bf16 channels-last.  Returns ((M, Cout_pad) [...] , shape)."""
    kh, kw = w.shape[2], w.shape[3]
    cin_pad = h.shape[-1]
    cout_pad = _round_up(w.shape[0], LANE)
    wm = prep_weight(w, cin_pad, cout_pad)
    patches, N, Ho, Wo = im2col_nhwc(h, kh, kw, stride, pad)
    res = pallas_conv_matmul(patches, wm, act=act, want_stats=want_stats,
                             out_dtype=out_dtype)
    return res, (N, Ho, Wo, cout_pad)


def discriminator_forward(x, params):
    (w1, w2, g2, b2, w3, g3, b3, w4, g4, b4, w5) = params
    N, nch, H, W = x.shape

    # One-time layout change NCHW -> NHWC; pad channels so K = 16*Cin is a
    # multiple of 128; bf16 halves HBM traffic and doubles MXU throughput.
    cin_pad = _round_up(nch, 8)
    h = jnp.transpose(x, (0, 2, 3, 1))
    h = jnp.pad(h, ((0, 0), (0, 0), (0, 0), (0, cin_pad - nch)))
    h = h.astype(jnp.bfloat16)

    # Conv(nch, ndf, 4, 2, 1) + LeakyReLU (fused)
    out, shp = conv_layer(h, w1, 2, 1, act="leaky_relu")
    h = out.reshape(shp)

    # Conv + BatchNorm (train mode, batch stats) + LeakyReLU, x3
    for w, g, b in ((w2, g2, b2), (w3, g3, b3), (w4, g4, b4)):
        (out, ssum, ssq), shp = conv_layer(h, w, 2, 1, want_stats=True)
        M, cpad = out.shape
        mean = jnp.sum(ssum, axis=(0, 1)) / M
        ex2 = jnp.sum(ssq, axis=(0, 1)) / M
        var = jnp.maximum(ex2 - mean * mean, 0.0)     # biased var, like PyTorch BN
        gpad = jnp.pad(g, (0, cpad - g.shape[0])).astype(jnp.float32)
        bpad = jnp.pad(b, (0, cpad - b.shape[0])).astype(jnp.float32)
        scale = gpad / jnp.sqrt(var + BN_EPS)
        shift = bpad - mean * scale
        out = pallas_bn_leaky(out, scale[None, :], shift[None, :])
        h = out.reshape(shp)

    # Conv(8ndf, 1, 4, 1, 0) + Sigmoid; Cout padded to 128 for lane-dense stores.
    out, _ = conv_layer(h, w5, 1, 0, act="sigmoid", out_dtype=jnp.float32)
    logits = out[:, 0]                                # true Cout = 1
    return logits.reshape(-1, 1).squeeze()            # == out.view(-1, 1).squeeze()


# -------------------------- params & reference ------------------------------ #
def init_params(key, nch, ndf):
    ks = jax.random.split(key, 5)

    def conv_w(k, cout, cin):
        return jax.random.normal(k, (cout, cin, 4, 4), jnp.float32) * 0.02

    w1 = conv_w(ks[0], ndf, nch)
    w2 = conv_w(ks[1], ndf * 2, ndf)
    w3 = conv_w(ks[2], ndf * 4, ndf * 2)
    w4 = conv_w(ks[3], ndf * 8, ndf * 4)
    w5 = conv_w(ks[4], 1, ndf * 8)
    g2, b2 = jnp.ones((ndf * 2,)), jnp.zeros((ndf * 2,))
    g3, b3 = jnp.ones((ndf * 4,)), jnp.zeros((ndf * 4,))
    g4, b4 = jnp.ones((ndf * 8,)), jnp.zeros((ndf * 8,))
    return (w1, w2, g2, b2, w3, g3, b3, w4, g4, b4, w5)


def reference_forward(x, params):
    (w1, w2, g2, b2, w3, g3, b3, w4, g4, b4, w5) = params

    def conv(x, w, stride, pad):
        return jax.lax.conv_general_dilated(
            x, w, (stride, stride), [(pad, pad), (pad, pad)],
            dimension_numbers=("NCHW", "OIHW", "NCHW"),
            precision=jax.lax.Precision.HIGHEST)

    def leaky(v):
        return jnp.where(v >= 0, v, NEG_SLOPE * v)

    def bn(v, g, b):
        mu = jnp.mean(v, axis=(0, 2, 3), keepdims=True)
        var = jnp.var(v, axis=(0, 2, 3), keepdims=True)
        return (v - mu) / jnp.sqrt(var + BN_EPS) * g[None, :, None, None] \
            + b[None, :, None, None]

    h = leaky(conv(x, w1, 2, 1))
    h = leaky(bn(conv(h, w2, 2, 1), g2, b2))
    h = leaky(bn(conv(h, w3, 2, 1), g3, b3))
    h = leaky(bn(conv(h, w4, 2, 1), g4, b4))
    h = jax.nn.sigmoid(conv(h, w5, 1, 0))
    return h.reshape(-1, 1).squeeze()


if __name__ == "__main__":
    key = jax.random.PRNGKey(0)
    kx, kp = jax.random.split(key)

    # Small config; spatial must be 64 so the final 4x4 valid conv yields 1x1.
    N, nch, ndf = 2, 3, 8
    x = jax.random.normal(kx, (N, nch, 64, 64), jnp.float32)
    params = init_params(kp, nch, ndf)

    out = jax.jit(discriminator_forward)(x, params)
    out = jax.block_until_ready(out)

    ref = reference_forward(x, params)
    assert out.shape == (N,), out.shape
    assert jnp.allclose(out, ref, rtol=2e-2, atol=2e-3), (out, ref)

    print("KERNEL_OK")
</pallas_src>

<mosaic_0001>
module attributes {stable_mosaic.version = 11 : i64} {
  func.func @_mm_act_kernel(%arg0: i32, %arg1: memref<512x128xbf16, #tpu.memory_space<vmem>>, %arg2: memref<128x128xbf16, #tpu.memory_space<vmem>>, %arg3: memref<512x128xbf16, #tpu.memory_space<vmem>>) attributes {dimension_semantics = [#tpu.dimension_semantics<parallel>], iteration_bounds = array<i64: 4>, scalar_prefetch = 0 : i64, scratch_operands = 0 : i64, tpu.core_type = #tpu.core_type<tc>, window_params = [{transform_indices = @transform_0, window_bounds = array<i64: 512, 128>}, {pipeline_mode = #tpu.pipeline_mode<synchronous>, transform_indices = @transform_1, window_bounds = array<i64: 128, 128>}, {transform_indices = @transform_2, window_bounds = array<i64: 512, 128>}]} {
    %c0 = arith.constant 0 : index
    %c0_0 = arith.constant 0 : index
    %0 = vector.load %arg1[%c0, %c0_0] : memref<512x128xbf16, #tpu.memory_space<vmem>>, vector<512x128xbf16>
    %c0_1 = arith.constant 0 : index
    %c0_2 = arith.constant 0 : index
    %1 = vector.load %arg2[%c0_1, %c0_2] : memref<128x128xbf16, #tpu.memory_space<vmem>>, vector<128x128xbf16>
    %cst = arith.constant dense<0.000000e+00> : vector<512x128xf32>
    %2 = tpu.matmul %0, %1, %cst {dimension_numbers = #tpu.dot_dimension_numbers<[1], [0], [0], [1], [0, 0, 1, 1], [], []>} : vector<512x128xbf16>, vector<128x128xbf16>, vector<512x128xf32> -> vector<512x128xf32>
    %cst_3 = arith.constant 0.000000e+00 : f32
    %3 = vector.broadcast %cst_3 : f32 to vector<512x128xf32>
    %4 = arith.cmpf oge, %2, %3 : vector<512x128xf32>
    %cst_4 = arith.constant 2.000000e-01 : f32
    %5 = vector.broadcast %cst_4 : f32 to vector<512x128xf32>
    %6 = arith.mulf %5, %2 : vector<512x128xf32>
    %7 = arith.select %4, %2, %6 : vector<512x128xi1>, vector<512x128xf32>
    %8 = arith.truncf %7 : vector<512x128xf32> to vector<512x128xbf16>
    %c0_5 = arith.constant 0 : index
    %c0_6 = arith.constant 0 : index
    %9 = vector.load %arg3[%c0_5, %c0_6] : memref<512x128xbf16, #tpu.memory_space<vmem>>, vector<512x128xbf16>
    tpu.vector_store %arg3[%c0_5, %c0_6], %8 {strides = array<i32>} : memref<512x128xbf16, #tpu.memory_space<vmem>>, vector<512x128xbf16>,
    return
  }
  func.func @transform_0(%arg0: i32) -> (i32, i32) {
    %c0_i32 = arith.constant 0 : i32
    %c0_i32_0 = arith.constant 0 : i32
    return %arg0, %c0_i32 : i32, i32
  }
  func.func @transform_1(%arg0: i32) -> (i32, i32) {
    %c0_i32 = arith.constant 0 : i32
    %c0_i32_0 = arith.constant 0 : i32
    %c0_i32_1 = arith.constant 0 : i32
    return %c0_i32, %c0_i32_0 : i32, i32
  }
  func.func @transform_2(%arg0: i32) -> (i32, i32) {
    %c0_i32 = arith.constant 0 : i32
    %c0_i32_0 = arith.constant 0 : i32
    return %arg0, %c0_i32 : i32, i32
  }
}

module attributes {stable_mosaic.version = 11 : i64} {
  func.func @_mm_stats_kernel(%arg0: i32, %arg1: memref<512x2048xbf16, #tpu.memory_space<vmem>>, %arg2: memref<2048x128xbf16, #tpu.memory_space<vmem>>, %arg3: memref<512x128xbf16, #tpu.memory_space<vmem>>, %arg4: memref<1x1x128xf32, #tpu.memory_space<vmem>>, %arg5: memref<1x1x128xf32, #tpu.memory_space<vmem>>) attributes {dimension_semantics = [#tpu.dimension_semantics<parallel>], iteration_bounds = array<i64: 1>, scalar_prefetch = 0 : i64, scratch_operands = 0 : i64, tpu.core_type = #tpu.core_type<tc>, window_params = [{transform_indices = @transform_0, window_bounds = array<i64: 512, 2048>}, {pipeline_mode = #tpu.pipeline_mode<synchronous>, transform_indices = @transform_1, window_bounds = array<i64: 2048, 128>}, {transform_indices = @transform_2, window_bounds = array<i64: 512, 128>}, {transform_indices = @transform_3, window_bounds = array<i64: 1, 1, 128>}, {transform_indices = @transform_4, window_bounds = array<i64: 1, 1, 128>}]} {
    %c0 = arith.constant 0 : index
    %c0_0 = arith.constant 0 : index
    %0 = vector.load %arg1[%c0, %c0_0] : memref<512x2048xbf16, #tpu.memory_space<vmem>>, vector<512x2048xbf16>
    %c0_1 = arith.constant 0 : index
    %c0_2 = arith.constant 0 : index
    %1 = vector.load %arg2[%c0_1, %c0_2] : memref<2048x128xbf16, #tpu.memory_space<vmem>>, vector<2048x128xbf16>
    %cst = arith.constant dense<0.000000e+00> : vector<512x128xf32>
    %2 = tpu.matmul %0, %1, %cst {dimension_numbers = #tpu.dot_dimension_numbers<[1], [0], [0], [1], [0, 0, 1, 1], [], []>} : vector<512x2048xbf16>, vector<2048x128xbf16>, vector<512x128xf32> -> vector<512x128xf32>
    %3 = arith.truncf %2 : vector<512x128xf32> to vector<512x128xbf16>
    %c0_3 = arith.constant 0 : index
    %c0_4 = arith.constant 0 : index
    %4 = vector.load %arg3[%c0_3, %c0_4] : memref<512x128xbf16, #tpu.memory_space<vmem>>, vector<512x128xbf16>
    tpu.vector_store %arg3[%c0_3, %c0_4], %3 {strides = array<i32>} : memref<512x128xbf16, #tpu.memory_space<vmem>>, vector<512x128xbf16>,
    %cst_5 = arith.constant dense<0.000000e+00> : vector<128xf32>
    %5 = vector.multi_reduction <add>, %2, %cst_5 [0] : vector<512x128xf32> to vector<128xf32>
    %6 = vector.shape_cast %5 : vector<128xf32> to vector<1x128xf32>
    %7 = vector.shape_cast %6 : vector<1x128xf32> to vector<1x1x128xf32>
    %c0_6 = arith.constant 0 : index
    %c0_7 = arith.constant 0 : index
    %c0_8 = arith.constant 0 : index
    %8 = vector.load %arg4[%c0_6, %c0_7, %c0_8] : memref<1x1x128xf32, #tpu.memory_space<vmem>>, vector<1x1x128xf32>
    tpu.vector_store %arg4[%c0_6, %c0_7, %c0_8], %7 {strides = array<i32>} : memref<1x1x128xf32, #tpu.memory_space<vmem>>, vector<1x1x128xf32>,
    %9 = arith.mulf %2, %2 : vector<512x128xf32>
    %cst_9 = arith.constant dense<0.000000e+00> : vector<128xf32>
    %10 = vector.multi_reduction <add>, %9, %cst_9 [0] : vector<512x128xf32> to vector<128xf32>
    %11 = vector.shape_cast %10 : vector<128xf32> to vector<1x128xf32>
    %12 = vector.shape_cast %11 : vector<1x128xf32> to vector<1x1x128xf32>
    %c0_10 = arith.constant 0 : index
    %c0_11 = arith.constant 0 : index
    %c0_12 = arith.constant 0 : index
    %13 = vector.load %arg5[%c0_10, %c0_11, %c0_12] : memref<1x1x128xf32, #tpu.memory_space<vmem>>, vector<1x1x128xf32>
    tpu.vector_store %arg5[%c0_10, %c0_11, %c0_12], %12 {strides = array<i32>} : memref<1x1x128xf32, #tpu.memory_space<vmem>>, vector<1x1x128xf32>,
    return
  }
  func.func @transform_0(%arg0: i32) -> (i32, i32) {
    %c0_i32 = arith.constant 0 : i32
    %c0_i32_0 = arith.constant 0 : i32
    return %arg0, %c0_i32 : i32, i32
  }
  func.func @transform_1(%arg0: i32) -> (i32, i32) {
    %c0_i32 = arith.constant 0 : i32
    %c0_i32_0 = arith.constant 0 : i32
    %c0_i32_1 = arith.constant 0 : i32
    return %c0_i32, %c0_i32_0 : i32, i32
  }
  func.func @transform_2(%arg0: i32) -> (i32, i32) {
    %c0_i32 = arith.constant 0 : i32
    %c0_i32_0 = arith.constant 0 : i32
    return %arg0, %c0_i32 : i32, i32
  }
  func.func @transform_3(%arg0: i32) -> (i32, i32, i32) {
    %c0_i32 = arith.constant 0 : i32
    %c0_i32_0 = arith.constant 0 : i32
    %c0_i32_1 = arith.constant 0 : i32
    return %arg0, %c0_i32, %c0_i32_0 : i32, i32, i32
  }
  func.func @transform_4(%arg0: i32) -> (i32, i32, i32) {
    %c0_i32 = arith.constant 0 : i32
    %c0_i32_0 = arith.constant 0 : i32
    %c0_i32_1 = arith.constant 0 : i32
    return %arg0, %c0_i32, %c0_i32_0 : i32, i32, i32
  }
}

module attributes {stable_mosaic.version = 11 : i64} {
  func.func @_bn_leaky_kernel(%arg0: i32, %arg1: memref<512x128xbf16, #tpu.memory_space<vmem>>, %arg2: memref<1x128xf32, #tpu.memory_space<vmem>>, %arg3: memref<1x128xf32, #tpu.memory_space<vmem>>, %arg4: memref<512x128xbf16, #tpu.memory_space<vmem>>) attributes {dimension_semantics = [#tpu.dimension_semantics<parallel>], iteration_bounds = array<i64: 1>, scalar_prefetch = 0 : i64, scratch_operands = 0 : i64, tpu.core_type = #tpu.core_type<tc>, window_params = [{transform_indices = @transform_0, window_bounds = array<i64: 512, 128>}, {pipeline_mode = #tpu.pipeline_mode<synchronous>, transform_indices = @transform_1, window_bounds = array<i64: 1, 128>}, {pipeline_mode = #tpu.pipeline_mode<synchronous>, transform_indices = @transform_2, window_bounds = array<i64: 1, 128>}, {transform_indices = @transform_3, window_bounds = array<i64: 512, 128>}]} {
    %c0 = arith.constant 0 : index
    %c0_0 = arith.constant 0 : index
    %0 = vector.load %arg1[%c0, %c0_0] : memref<512x128xbf16, #tpu.memory_space<vmem>>, vector<512x128xbf16>
    %1 = arith.extf %0 : vector<512x128xbf16> to vector<512x128xf32>
    %c0_1 = arith.constant 0 : index
    %c0_2 = arith.constant 0 : index
    %2 = vector.load %arg2[%c0_1, %c0_2] : memref<1x128xf32, #tpu.memory_space<vmem>>, vector<1x128xf32>
    %3 = vector.broadcast %2 : vector<1x128xf32> to vector<512x128xf32>
    %4 = arith.mulf %1, %3 : vector<512x128xf32>
    %c0_3 = arith.constant 0 : index
    %c0_4 = arith.constant 0 : index
    %5 = vector.load %arg3[%c0_3, %c0_4] : memref<1x128xf32, #tpu.memory_space<vmem>>, vector<1x128xf32>
    %6 = vector.broadcast %5 : vector<1x128xf32> to vector<512x128xf32>
    %7 = arith.addf %4, %6 : vector<512x128xf32>
    %cst = arith.constant 0.000000e+00 : f32
    %8 = vector.broadcast %cst : f32 to vector<512x128xf32>
    %9 = arith.cmpf oge, %7, %8 : vector<512x128xf32>
    %cst_5 = arith.constant 2.000000e-01 : f32
    %10 = vector.broadcast %cst_5 : f32 to vector<512x128xf32>
    %11 = arith.mulf %10, %7 : vector<512x128xf32>
    %12 = arith.select %9, %7, %11 : vector<512x128xi1>, vector<512x128xf32>
    %13 = arith.truncf %12 : vector<512x128xf32> to vector<512x128xbf16>
    %c0_6 = arith.constant 0 : index
    %c0_7 = arith.constant 0 : index
    %14 = vector.load %arg4[%c0_6, %c0_7] : memref<512x128xbf16, #tpu.memory_space<vmem>>, vector<512x128xbf16>
    tpu.vector_store %arg4[%c0_6, %c0_7], %13 {strides = array<i32>} : memref<512x128xbf16, #tpu.memory_space<vmem>>, vector<512x128xbf16>,
    return
  }
  func.func @transform_0(%arg0: i32) -> (i32, i32) {
    %c0_i32 = arith.constant 0 : i32
    %c0_i32_0 = arith.constant 0 : i32
    return %arg0, %c0_i32 : i32, i32
  }
  func.func @transform_1(%arg0: i32) -> (i32, i32) {
    %c0_i32 = arith.constant 0 : i32
    %c0_i32_0 = arith.constant 0 : i32
    %c0_i32_1 = arith.constant 0 : i32
    return %c0_i32, %c0_i32_0 : i32, i32
  }
  func.func @transform_2(%arg0: i32) -> (i32, i32) {
    %c0_i32 = arith.constant 0 : i32
    %c0_i32_0 = arith.constant 0 : i32
    %c0_i32_1 = arith.constant 0 : i32
    return %c0_i32, %c0_i32_0 : i32, i32
  }
  func.func @transform_3(%arg0: i32) -> (i32, i32) {
    %c0_i32 = arith.constant 0 : i32
    %c0_i32_0 = arith.constant 0 : i32
    return %arg0, %c0_i32 : i32, i32
  }
}

module attributes {stable_mosaic.version = 11 : i64} {
  func.func @_bn_leaky_kernel(%arg0: i32, %arg1: memref<128x128xbf16, #tpu.memory_space<vmem>>, %arg2: memref<1x128xf32, #tpu.memory_space<vmem>>, %arg3: memref<1x128xf32, #tpu.memory_space<vmem>>, %arg4: memref<128x128xbf16, #tpu.memory_space<vmem>>) attributes {dimension_semantics = [#tpu.dimension_semantics<parallel>], iteration_bounds = array<i64: 1>, scalar_prefetch = 0 : i64, scratch_operands = 0 : i64, tpu.core_type = #tpu.core_type<tc>, window_params = [{transform_indices = @transform_0, window_bounds = array<i64: 128, 128>}, {pipeline_mode = #tpu.pipeline_mode<synchronous>, transform_indices = @transform_1, window_bounds = array<i64: 1, 128>}, {pipeline_mode = #tpu.pipeline_mode<synchronous>, transform_indices = @transform_2, window_bounds = array<i64: 1, 128>}, {transform_indices = @transform_3, window_bounds = array<i64: 128, 128>}]} {
    %c0 = arith.constant 0 : index
    %c0_0 = arith.constant 0 : index
    %0 = vector.load %arg1[%c0, %c0_0] : memref<128x128xbf16, #tpu.memory_space<vmem>>, vector<128x128xbf16>
    %1 = arith.extf %0 : vector<128x128xbf16> to vector<128x128xf32>
    %c0_1 = arith.constant 0 : index
    %c0_2 = arith.constant 0 : index
    %2 = vector.load %arg2[%c0_1, %c0_2] : memref<1x128xf32, #tpu.memory_space<vmem>>, vector<1x128xf32>
    %3 = vector.broadcast %2 : vector<1x128xf32> to vector<128x128xf32>
    %4 = arith.mulf %1, %3 : vector<128x128xf32>
    %c0_3 = arith.constant 0 : index
    %c0_4 = arith.constant 0 : index
    %5 = vector.load %arg3[%c0_3, %c0_4] : memref<1x128xf32, #tpu.memory_space<vmem>>, vector<1x128xf32>
    %6 = vector.broadcast %5 : vector<1x128xf32> to vector<128x128xf32>
    %7 = arith.addf %4, %6 : vector<128x128xf32>
    %cst = arith.constant 0.000000e+00 : f32
    %8 = vector.broadcast %cst : f32 to vector<128x128xf32>
    %9 = arith.cmpf oge, %7, %8 : vector<128x128xf32>
    %cst_5 = arith.constant 2.000000e-01 : f32
    %10 = vector.broadcast %cst_5 : f32 to vector<128x128xf32>
    %11 = arith.mulf %10, %7 : vector<128x128xf32>
    %12 = arith.select %9, %7, %11 : vector<128x128xi1>, vector<128x128xf32>
    %13 = arith.truncf %12 : vector<128x128xf32> to vector<128x128xbf16>
    %c0_6 = arith.constant 0 : index
    %c0_7 = arith.constant 0 : index
    %14 = vector.load %arg4[%c0_6, %c0_7] : memref<128x128xbf16, #tpu.memory_space<vmem>>, vector<128x128xbf16>
    tpu.vector_store %arg4[%c0_6, %c0_7], %13 {strides = array<i32>} : memref<128x128xbf16, #tpu.memory_space<vmem>>, vector<128x128xbf16>,
    return
  }
  func.func @transform_0(%arg0: i32) -> (i32, i32) {
    %c0_i32 = arith.constant 0 : i32
    %c0_i32_0 = arith.constant 0 : i32
    return %arg0, %c0_i32 : i32, i32
  }
  func.func @transform_1(%arg0: i32) -> (i32, i32) {
    %c0_i32 = arith.constant 0 : i32
    %c0_i32_0 = arith.constant 0 : i32
    %c0_i32_1 = arith.constant 0 : i32
    return %c0_i32, %c0_i32_0 : i32, i32
  }
  func.func @transform_2(%arg0: i32) -> (i32, i32) {
    %c0_i32 = arith.constant 0 : i32
    %c0_i32_0 = arith.constant 0 : i32
    %c0_i32_1 = arith.constant 0 : i32
    return %c0_i32, %c0_i32_0 : i32, i32
  }
  func.func @transform_3(%arg0: i32) -> (i32, i32) {
    %c0_i32 = arith.constant 0 : i32
    %c0_i32_0 = arith.constant 0 : i32
    return %arg0, %c0_i32 : i32, i32
  }
}

module attributes {stable_mosaic.version = 11 : i64} {
  func.func @_mm_stats_kernel(%arg0: i32, %arg1: memref<128x2048xbf16, #tpu.memory_space<vmem>>, %arg2: memref<2048x128xbf16, #tpu.memory_space<vmem>>, %arg3: memref<128x128xbf16, #tpu.memory_space<vmem>>, %arg4: memref<1x1x128xf32, #tpu.memory_space<vmem>>, %arg5: memref<1x1x128xf32, #tpu.memory_space<vmem>>) attributes {dimension_semantics = [#tpu.dimension_semantics<parallel>], iteration_bounds = array<i64: 1>, scalar_prefetch = 0 : i64, scratch_operands = 0 : i64, tpu.core_type = #tpu.core_type<tc>, window_params = [{transform_indices = @transform_0, window_bounds = array<i64: 128, 2048>}, {pipeline_mode = #tpu.pipeline_mode<synchronous>, transform_indices = @transform_1, window_bounds = array<i64: 2048, 128>}, {transform_indices = @transform_2, window_bounds = array<i64: 128, 128>}, {transform_indices = @transform_3, window_bounds = array<i64: 1, 1, 128>}, {transform_indices = @transform_4, window_bounds = array<i64: 1, 1, 128>}]} {
    %c0 = arith.constant 0 : index
    %c0_0 = arith.constant 0 : index
    %0 = vector.load %arg1[%c0, %c0_0] : memref<128x2048xbf16, #tpu.memory_space<vmem>>, vector<128x2048xbf16>
    %c0_1 = arith.constant 0 : index
    %c0_2 = arith.constant 0 : index
    %1 = vector.load %arg2[%c0_1, %c0_2] : memref<2048x128xbf16, #tpu.memory_space<vmem>>, vector<2048x128xbf16>
    %cst = arith.constant dense<0.000000e+00> : vector<128x128xf32>
    %2 = tpu.matmul %0, %1, %cst {dimension_numbers = #tpu.dot_dimension_numbers<[1], [0], [0], [1], [0, 0, 1, 1], [], []>} : vector<128x2048xbf16>, vector<2048x128xbf16>, vector<128x128xf32> -> vector<128x128xf32>
    %3 = arith.truncf %2 : vector<128x128xf32> to vector<128x128xbf16>
    %c0_3 = arith.constant 0 : index
    %c0_4 = arith.constant 0 : index
    %4 = vector.load %arg3[%c0_3, %c0_4] : memref<128x128xbf16, #tpu.memory_space<vmem>>, vector<128x128xbf16>
    tpu.vector_store %arg3[%c0_3, %c0_4], %3 {strides = array<i32>} : memref<128x128xbf16, #tpu.memory_space<vmem>>, vector<128x128xbf16>,
    %cst_5 = arith.constant dense<0.000000e+00> : vector<128xf32>
    %5 = vector.multi_reduction <add>, %2, %cst_5 [0] : vector<128x128xf32> to vector<128xf32>
    %6 = vector.shape_cast %5 : vector<128xf32> to vector<1x128xf32>
    %7 = vector.shape_cast %6 : vector<1x128xf32> to vector<1x1x128xf32>
    %c0_6 = arith.constant 0 : index
    %c0_7 = arith.constant 0 : index
    %c0_8 = arith.constant 0 : index
    %8 = vector.load %arg4[%c0_6, %c0_7, %c0_8] : memref<1x1x128xf32, #tpu.memory_space<vmem>>, vector<1x1x128xf32>
    tpu.vector_store %arg4[%c0_6, %c0_7, %c0_8], %7 {strides = array<i32>} : memref<1x1x128xf32, #tpu.memory_space<vmem>>, vector<1x1x128xf32>,
    %9 = arith.mulf %2, %2 : vector<128x128xf32>
    %cst_9 = arith.constant dense<0.000000e+00> : vector<128xf32>
    %10 = vector.multi_reduction <add>, %9, %cst_9 [0] : vector<128x128xf32> to vector<128xf32>
    %11 = vector.shape_cast %10 : vector<128xf32> to vector<1x128xf32>
    %12 = vector.shape_cast %11 : vector<1x128xf32> to vector<1x1x128xf32>
    %c0_10 = arith.constant 0 : index
    %c0_11 = arith.constant 0 : index
    %c0_12 = arith.constant 0 : index
    %13 = vector.load %arg5[%c0_10, %c0_11, %c0_12] : memref<1x1x128xf32, #tpu.memory_space<vmem>>, vector<1x1x128xf32>
    tpu.vector_store %arg5[%c0_10, %c0_11, %c0_12], %12 {strides = array<i32>} : memref<1x1x128xf32, #tpu.memory_space<vmem>>, vector<1x1x128xf32>,
    return
  }
  func.func @transform_0(%arg0: i32) -> (i32, i32) {
    %c0_i32 = arith.constant 0 : i32
    %c0_i32_0 = arith.constant 0 : i32
    return %arg0, %c0_i32 : i32, i32
  }
  func.func @transform_1(%arg0: i32) -> (i32, i32) {
    %c0_i32 = arith.constant 0 : i32
    %c0_i32_0 = arith.constant 0 : i32
    %c0_i32_1 = arith.constant 0 : i32
    return %c0_i32, %c0_i32_0 : i32, i32
  }
  func.func @transform_2(%arg0: i32) -> (i32, i32) {
    %c0_i32 = arith.constant 0 : i32
    %c0_i32_0 = arith.constant 0 : i32
    return %arg0, %c0_i32 : i32, i32
  }
  func.func @transform_3(%arg0: i32) -> (i32, i32, i32) {
    %c0_i32 = arith.constant 0 : i32
    %c0_i32_0 = arith.constant 0 : i32
    %c0_i32_1 = arith.constant 0 : i32
    return %arg0, %c0_i32, %c0_i32_0 : i32, i32, i32
  }
  func.func @transform_4(%arg0: i32) -> (i32, i32, i32) {
    %c0_i32 = arith.constant 0 : i32
    %c0_i32_0 = arith.constant 0 : i32
    %c0_i32_1 = arith.constant 0 : i32
    return %arg0, %c0_i32, %c0_i32_0 : i32, i32, i32
  }
}

module attributes {stable_mosaic.version = 11 : i64} {
  func.func @_mm_stats_kernel(%arg0: i32, %arg1: memref<32x2048xbf16, #tpu.memory_space<vmem>>, %arg2: memref<2048x128xbf16, #tpu.memory_space<vmem>>, %arg3: memref<32x128xbf16, #tpu.memory_space<vmem>>, %arg4: memref<1x1x128xf32, #tpu.memory_space<vmem>>, %arg5: memref<1x1x128xf32, #tpu.memory_space<vmem>>) attributes {dimension_semantics = [#tpu.dimension_semantics<parallel>], iteration_bounds = array<i64: 1>, scalar_prefetch = 0 : i64, scratch_operands = 0 : i64, tpu.core_type = #tpu.core_type<tc>, window_params = [{transform_indices = @transform_0, window_bounds = array<i64: 32, 2048>}, {pipeline_mode = #tpu.pipeline_mode<synchronous>, transform_indices = @transform_1, window_bounds = array<i64: 2048, 128>}, {transform_indices = @transform_2, window_bounds = array<i64: 32, 128>}, {transform_indices = @transform_3, window_bounds = array<i64: 1, 1, 128>}, {transform_indices = @transform_4, window_bounds = array<i64: 1, 1, 128>}]} {
    %c0 = arith.constant 0 : index
    %c0_0 = arith.constant 0 : index
    %0 = vector.load %arg1[%c0, %c0_0] : memref<32x2048xbf16, #tpu.memory_space<vmem>>, vector<32x2048xbf16>
    %c0_1 = arith.constant 0 : index
    %c0_2 = arith.constant 0 : index
    %1 = vector.load %arg2[%c0_1, %c0_2] : memref<2048x128xbf16, #tpu.memory_space<vmem>>, vector<2048x128xbf16>
    %cst = arith.constant dense<0.000000e+00> : vector<32x128xf32>
    %2 = tpu.matmul %0, %1, %cst {dimension_numbers = #tpu.dot_dimension_numbers<[1], [0], [0], [1], [0, 0, 1, 1], [], []>} : vector<32x2048xbf16>, vector<2048x128xbf16>, vector<32x128xf32> -> vector<32x128xf32>
    %3 = arith.truncf %2 : vector<32x128xf32> to vector<32x128xbf16>
    %c0_3 = arith.constant 0 : index
    %c0_4 = arith.constant 0 : index
    %4 = vector.load %arg3[%c0_3, %c0_4] : memref<32x128xbf16, #tpu.memory_space<vmem>>, vector<32x128xbf16>
    tpu.vector_store %arg3[%c0_3, %c0_4], %3 {strides = array<i32>} : memref<32x128xbf16, #tpu.memory_space<vmem>>, vector<32x128xbf16>,
    %cst_5 = arith.constant dense<0.000000e+00> : vector<128xf32>
    %5 = vector.multi_reduction <add>, %2, %cst_5 [0] : vector<32x128xf32> to vector<128xf32>
    %6 = vector.shape_cast %5 : vector<128xf32> to vector<1x128xf32>
    %7 = vector.shape_cast %6 : vector<1x128xf32> to vector<1x1x128xf32>
    %c0_6 = arith.constant 0 : index
    %c0_7 = arith.constant 0 : index
    %c0_8 = arith.constant 0 : index
    %8 = vector.load %arg4[%c0_6, %c0_7, %c0_8] : memref<1x1x128xf32, #tpu.memory_space<vmem>>, vector<1x1x128xf32>
    tpu.vector_store %arg4[%c0_6, %c0_7, %c0_8], %7 {strides = array<i32>} : memref<1x1x128xf32, #tpu.memory_space<vmem>>, vector<1x1x128xf32>,
    %9 = arith.mulf %2, %2 : vector<32x128xf32>
    %cst_9 = arith.constant dense<0.000000e+00> : vector<128xf32>
    %10 = vector.multi_reduction <add>, %9, %cst_9 [0] : vector<32x128xf32> to vector<128xf32>
    %11 = vector.shape_cast %10 : vector<128xf32> to vector<1x128xf32>
    %12 = vector.shape_cast %11 : vector<1x128xf32> to vector<1x1x128xf32>
    %c0_10 = arith.constant 0 : index
    %c0_11 = arith.constant 0 : index
    %c0_12 = arith.constant 0 : index
    %13 = vector.load %arg5[%c0_10, %c0_11, %c0_12] : memref<1x1x128xf32, #tpu.memory_space<vmem>>, vector<1x1x128xf32>
    tpu.vector_store %arg5[%c0_10, %c0_11, %c0_12], %12 {strides = array<i32>} : memref<1x1x128xf32, #tpu.memory_space<vmem>>, vector<1x1x128xf32>,
    return
  }
  func.func @transform_0(%arg0: i32) -> (i32, i32) {
    %c0_i32 = arith.constant 0 : i32
    %c0_i32_0 = arith.constant 0 : i32
    return %arg0, %c0_i32 : i32, i32
  }
  func.func @transform_1(%arg0: i32) -> (i32, i32) {
    %c0_i32 = arith.constant 0 : i32
    %c0_i32_0 = arith.constant 0 : i32
    %c0_i32_1 = arith.constant 0 : i32
    return %c0_i32, %c0_i32_0 : i32, i32
  }
  func.func @transform_2(%arg0: i32) -> (i32, i32) {
    %c0_i32 = arith.constant 0 : i32
    %c0_i32_0 = arith.constant 0 : i32
    return %arg0, %c0_i32 : i32, i32
  }
  func.func @transform_3(%arg0: i32) -> (i32, i32, i32) {
    %c0_i32 = arith.constant 0 : i32
    %c0_i32_0 = arith.constant 0 : i32
    %c0_i32_1 = arith.constant 0 : i32
    return %arg0, %c0_i32, %c0_i32_0 : i32, i32, i32
  }
  func.func @transform_4(%arg0: i32) -> (i32, i32, i32) {
    %c0_i32 = arith.constant 0 : i32
    %c0_i32_0 = arith.constant 0 : i32
    %c0_i32_1 = arith.constant 0 : i32
    return %arg0, %c0_i32, %c0_i32_0 : i32, i32, i32
  }
}

module attributes {stable_mosaic.version = 11 : i64} {
  func.func @_bn_leaky_kernel(%arg0: i32, %arg1: memref<32x128xbf16, #tpu.memory_space<vmem>>, %arg2: memref<1x128xf32, #tpu.memory_space<vmem>>, %arg3: memref<1x128xf32, #tpu.memory_space<vmem>>, %arg4: memref<32x128xbf16, #tpu.memory_space<vmem>>) attributes {dimension_semantics = [#tpu.dimension_semantics<parallel>], iteration_bounds = array<i64: 1>, scalar_prefetch = 0 : i64, scratch_operands = 0 : i64, tpu.core_type = #tpu.core_type<tc>, window_params = [{transform_indices = @transform_0, window_bounds = array<i64: 32, 128>}, {pipeline_mode = #tpu.pipeline_mode<synchronous>, transform_indices = @transform_1, window_bounds = array<i64: 1, 128>}, {pipeline_mode = #tpu.pipeline_mode<synchronous>, transform_indices = @transform_2, window_bounds = array<i64: 1, 128>}, {transform_indices = @transform_3, window_bounds = array<i64: 32, 128>}]} {
    %c0 = arith.constant 0 : index
    %c0_0 = arith.constant 0 : index
    %0 = vector.load %arg1[%c0, %c0_0] : memref<32x128xbf16, #tpu.memory_space<vmem>>, vector<32x128xbf16>
    %1 = arith.extf %0 : vector<32x128xbf16> to vector<32x128xf32>
    %c0_1 = arith.constant 0 : index
    %c0_2 = arith.constant 0 : index
    %2 = vector.load %arg2[%c0_1, %c0_2] : memref<1x128xf32, #tpu.memory_space<vmem>>, vector<1x128xf32>
    %3 = vector.broadcast %2 : vector<1x128xf32> to vector<32x128xf32>
    %4 = arith.mulf %1, %3 : vector<32x128xf32>
    %c0_3 = arith.constant 0 : index
    %c0_4 = arith.constant 0 : index
    %5 = vector.load %arg3[%c0_3, %c0_4] : memref<1x128xf32, #tpu.memory_space<vmem>>, vector<1x128xf32>
    %6 = vector.broadcast %5 : vector<1x128xf32> to vector<32x128xf32>
    %7 = arith.addf %4, %6 : vector<32x128xf32>
    %cst = arith.constant 0.000000e+00 : f32
    %8 = vector.broadcast %cst : f32 to vector<32x128xf32>
    %9 = arith.cmpf oge, %7, %8 : vector<32x128xf32>
    %cst_5 = arith.constant 2.000000e-01 : f32
    %10 = vector.broadcast %cst_5 : f32 to vector<32x128xf32>
    %11 = arith.mulf %10, %7 : vector<32x128xf32>
    %12 = arith.select %9, %7, %11 : vector<32x128xi1>, vector<32x128xf32>
    %13 = arith.truncf %12 : vector<32x128xf32> to vector<32x128xbf16>
    %c0_6 = arith.constant 0 : index
    %c0_7 = arith.constant 0 : index
    %14 = vector.load %arg4[%c0_6, %c0_7] : memref<32x128xbf16, #tpu.memory_space<vmem>>, vector<32x128xbf16>
    tpu.vector_store %arg4[%c0_6, %c0_7], %13 {strides = array<i32>} : memref<32x128xbf16, #tpu.memory_space<vmem>>, vector<32x128xbf16>,
    return
  }
  func.func @transform_0(%arg0: i32) -> (i32, i32) {
    %c0_i32 = arith.constant 0 : i32
    %c0_i32_0 = arith.constant 0 : i32
    return %arg0, %c0_i32 : i32, i32
  }
  func.func @transform_1(%arg0: i32) -> (i32, i32) {
    %c0_i32 = arith.constant 0 : i32
    %c0_i32_0 = arith.constant 0 : i32
    %c0_i32_1 = arith.constant 0 : i32
    return %c0_i32, %c0_i32_0 : i32, i32
  }
  func.func @transform_2(%arg0: i32) -> (i32, i32) {
    %c0_i32 = arith.constant 0 : i32
    %c0_i32_0 = arith.constant 0 : i32
    %c0_i32_1 = arith.constant 0 : i32
    return %c0_i32, %c0_i32_0 : i32, i32
  }
  func.func @transform_3(%arg0: i32) -> (i32, i32) {
    %c0_i32 = arith.constant 0 : i32
    %c0_i32_0 = arith.constant 0 : i32
    return %arg0, %c0_i32 : i32, i32
  }
}

module attributes {stable_mosaic.version = 11 : i64} {
  func.func @_mm_act_kernel(%arg0: i32, %arg1: memref<2x2048xbf16, #tpu.memory_space<vmem>>, %arg2: memref<2048x128xbf16, #tpu.memory_space<vmem>>, %arg3: memref<2x128xf32, #tpu.memory_space<vmem>>) attributes {dimension_semantics = [#tpu.dimension_semantics<parallel>], iteration_bounds = array<i64: 1>, scalar_prefetch = 0 : i64, scratch_operands = 0 : i64, tpu.core_type = #tpu.core_type<tc>, window_params = [{transform_indices = @transform_0, window_bounds = array<i64: 2, 2048>}, {pipeline_mode = #tpu.pipeline_mode<synchronous>, transform_indices = @transform_1, window_bounds = array<i64: 2048, 128>}, {transform_indices = @transform_2, window_bounds = array<i64: 2, 128>}]} {
    %c0 = arith.constant 0 : index
    %c0_0 = arith.constant 0 : index
    %0 = vector.load %arg1[%c0, %c0_0] : memref<2x2048xbf16, #tpu.memory_space<vmem>>, vector<2x2048xbf16>
    %c0_1 = arith.constant 0 : index
    %c0_2 = arith.constant 0 : index
    %1 = vector.load %arg2[%c0_1, %c0_2] : memref<2048x128xbf16, #tpu.memory_space<vmem>>, vector<2048x128xbf16>
    %cst = arith.constant dense<0.000000e+00> : vector<2x128xf32>
    %2 = tpu.matmul %0, %1, %cst {dimension_numbers = #tpu.dot_dimension_numbers<[1], [0], [0], [1], [0, 0, 1, 1], [], []>} : vector<2x2048xbf16>, vector<2048x128xbf16>, vector<2x128xf32> -> vector<2x128xf32>
    %3 = arith.negf %2 : vector<2x128xf32>
    %4 = math.exp %3 : vector<2x128xf32>
    %cst_3 = arith.constant 1.000000e+00 : f32
    %5 = vector.broadcast %cst_3 : f32 to vector<2x128xf32>
    %6 = arith.addf %5, %4 : vector<2x128xf32>
    %7 = arith.divf %5, %6 : vector<2x128xf32>
    %c0_4 = arith.constant 0 : index
    %c0_5 = arith.constant 0 : index
    %8 = vector.load %arg3[%c0_4, %c0_5] : memref<2x128xf32, #tpu.memory_space<vmem>>, vector<2x128xf32>
    tpu.vector_store %arg3[%c0_4, %c0_5], %7 {strides = array<i32>} : memref<2x128xf32, #tpu.memory_space<vmem>>, vector<2x128xf32>,
    return
  }
  func.func @transform_0(%arg0: i32) -> (i32, i32) {
    %c0_i32 = arith.constant 0 : i32
    %c0_i32_0 = arith.constant 0 : i32
    return %arg0, %c0_i32 : i32, i32
  }
  func.func @transform_1(%arg0: i32) -> (i32, i32) {
    %c0_i32 = arith.constant 0 : i32
    %c0_i32_0 = arith.constant 0 : i32
    %c0_i32_1 = arith.constant 0 : i32
    return %c0_i32, %c0_i32_0 : i32, i32
  }
  func.func @transform_2(%arg0: i32) -> (i32, i32) {
    %c0_i32 = arith.constant 0 : i32
    %c0_i32_0 = arith.constant 0 : i32
    return %arg0, %c0_i32 : i32, i32
  }
}

</mosaic_0001>

<llo_original>
// kernel: discriminator_forward.8
$region0: #{discriminator_forward.8}
  #allocation0 [shape = 'u32[]', space=smem, size = 0x4, offset = 0x4, fixed_abs, tag = 'smem constant byte address 0x4 - core index']
  #allocation1 [shape = 'u32[72,128]{1,0:T(1,128)}', space=vmem, size = 0x9000, scoped, tag = 'internal scratch']
  %s0 = inlined_call_operand.vmem [shape: bf16[2048,128], index: 0, kind: input, shape index: {}]
  %s1 = inlined_call_operand.vmem [shape: bf16[128,128], index: 1, kind: input, shape index: {}]
  %s2 = inlined_call_operand.vmem [shape: bf16[2048,128], index: 2, kind: output, shape index: {}]
  %s3 = sld [smem:[#allocation0]]
  $region41: #{discriminator_forward.8} parent=0
    _
  %s5 = ssub.s32 1, %s3
  %s6 = scalar_select 0, %s5, %s3
  loop: start=0, step=1, limit=6
  $region2: #{discriminator_forward.8} parent=0 // loop_pre_header
    _
  $region3: #{discriminator_forward.8} parent=0 // loop_header
    %s8 = sphi 0, %s12
    %p9 = scmp.ge.s32.totalorder %s8, 6
    %s18 = sphi 0, %s20
    %s21 = sphi 0, %s18
    %s22 = sphi 0, %s21
    %s38 = sphi 0, %s22
    %s42 = sphi 0, %s42
    %s44 = sphi 0, %s42
    %s45 = sphi 0, %s44
    %s59 = sphi 0, %s45
    %s65 = sphi 0, %s67
    %s68 = sphi 0, %s65
    %s69 = sphi 0, %s68
    %s85 = sphi 0, %s69
  $region4: #{discriminator_forward.8} parent=0 // loop_header_branch
    %11 = sbr.rel (%p9) target = $region8
  $region5: #{discriminator_forward.8} parent=0 // loop_body
    %s13 = ssub.s32 %s8, 1
    %s14 = ssub.s32 %s8, 2
    %s15 = sadd.s32 %s8, 1
    %s16 = ssub.s32 %s8, %s15
    %p17 = scmp.eq.s32.totalorder %s16, 0
    %s19 = sadd.s32 %s18, 1
    %s20 = scalar_select %p17, %s18, %s19
    %p23 = pneg %p17
    %p24 = scmp.eq.s32.totalorder %s8, 3
    %p25 = por %p23, %p24
    %p26 = scmp.ne.s32.totalorder %s18, %s21
    %p27 = scmp.eq.s32.totalorder %s8, 0
    %p28 = por %p26, %p27
    %p29 = scmp.ne.s32.totalorder %s18, %s21
    %p30 = scmp.eq.s32.totalorder %s13, 3
    %p31 = por %p29, %p30
    %p32 = scmp.ne.s32.totalorder %s21, %s22
    %p33 = scmp.eq.s32.totalorder %s13, 0
    %p34 = por %p32, %p33
    %p35 = scmp.ne.s32.totalorder %s21, %s22
    %p36 = scmp.eq.s32.totalorder %s14, 3
    %p37 = por %p35, %p36
    %p39 = scmp.ne.s32.totalorder %s22, %s38
    %p40 = scmp.eq.s32.totalorder %s14, 0
    %p41 = por %p39, %p40
    %s43 = sadd.s32 %s42, 1
    %p46 = scmp.eq.s32.totalorder %s8, 3
    %p47 = scmp.ne.s32.totalorder %s42, %s44
    %p48 = scmp.eq.s32.totalorder %s8, 0
    %p49 = por %p47, %p48
    %p50 = scmp.ne.s32.totalorder %s42, %s44
    %p51 = scmp.eq.s32.totalorder %s13, 3
    %p52 = por %p50, %p51
    %p53 = scmp.ne.s32.totalorder %s44, %s45
    %p54 = scmp.eq.s32.totalorder %s13, 0
    %p55 = por %p53, %p54
    %p56 = scmp.ne.s32.totalorder %s44, %s45
    %p57 = scmp.eq.s32.totalorder %s14, 3
    %p58 = por %p56, %p57
    %p60 = scmp.ne.s32.totalorder %s45, %s59
    %p61 = scmp.eq.s32.totalorder %s14, 0
    %p62 = por %p60, %p61
    %s63 = ssub.s32 %s8, %s15
    %p64 = scmp.eq.s32.totalorder %s63, 0
    %s66 = sadd.s32 %s65, 1
    %s67 = scalar_select %p64, %s65, %s66
    %p70 = pneg %p64
    %p71 = scmp.eq.s32.totalorder %s8, 3
    %p72 = por %p70, %p71
    %p73 = scmp.ne.s32.totalorder %s65, %s68
    %p74 = scmp.eq.s32.totalorder %s8, 0
    %p75 = por %p73, %p74
    %p76 = scmp.ne.s32.totalorder %s65, %s68
    %p77 = scmp.eq.s32.totalorder %s13, 3
    %p78 = por %p76, %p77
    %p79 = scmp.ne.s32.totalorder %s68, %s69
    %p80 = scmp.eq.s32.totalorder %s13, 0
    %p81 = por %p79, %p80
    %p82 = scmp.ne.s32.totalorder %s68, %s69
    %p83 = scmp.eq.s32.totalorder %s14, 3
    %p84 = por %p82, %p83
    %p86 = scmp.ne.s32.totalorder %s69, %s85
    %p87 = scmp.eq.s32.totalorder %s14, 0
    %p88 = por %p86, %p87
    %p89 = scmp.le.s32.totalorder 1, %s8
    %p90 = scmp.lt.s32.totalorder %s8, 5
    %p91 = pnand %p89, %p90
    %p92 = pneg %p91
    // Predicated region
    $region9: #{discriminator_forward.8} parent=5 // pred_check
      _
    $region10: #{discriminator_forward.8} parent=5 // pred_check_branch
      %94 = sbr.rel (%p91) target = $region12
    $region11: #{discriminator_forward.8} parent=5 // pred_region
      %s95 = ssub.s32 %s8, 1
      // Predicated region
      $region13: #{discriminator_forward.8} parent=11 // pred_check
        %p96 = pneg %p55
      $region14: #{discriminator_forward.8} parent=11 // pred_check_branch
        %98 = sbr.rel (%p96) target = $region16
      $region15: #{discriminator_forward.8} parent=11 // pred_region
        _
      $region16: #{discriminator_forward.8} parent=11 // pred_fallthru
        _
    $region12: #{discriminator_forward.8} parent=5 // pred_fallthru
      _
    %p99 = scmp.lt.s32.totalorder %s8, 4
    // Predicated region
    $region17: #{discriminator_forward.8} parent=5 // pred_check
      %p100 = pneg %p99
    $region18: #{discriminator_forward.8} parent=5 // pred_check_branch
      %102 = sbr.rel (%p100) target = $region20
    $region19: #{discriminator_forward.8} parent=5 // pred_region
      // Predicated region
      $region21: #{discriminator_forward.8} parent=19 // pred_check
        %p103 = pneg %p28
      $region22: #{discriminator_forward.8} parent=19 // pred_check_branch
        %105 = sbr.rel (%p103) target = $region24
      $region23: #{discriminator_forward.8} parent=19 // pred_region
        %s106 = smul.u32 64, %s8
        %p107 = scmp.lt.s32.totalorder %s106, 255
        %s108 = scalar_select %p107, %s106, 255
        %s109 = smul.addr %s108, 4
        %s110 = scalar_lea.vmem %s0, %s109
        %s111 = smul.u32 64, %s8
      $region24: #{discriminator_forward.8} parent=19 // pred_fallthru
        _
    $region20: #{discriminator_forward.8} parent=5 // pred_fallthru
      _
    %p112 = scmp.le.s32.totalorder 1, %s8
    %p113 = scmp.lt.s32.totalorder %s8, 5
    %p114 = pnand %p112, %p113
    %p115 = pneg %p114
    // Predicated region
    $region25: #{discriminator_forward.8} parent=5 // pred_check
      _
    $region26: #{discriminator_forward.8} parent=5 // pred_check_branch
      %117 = sbr.rel (%p114) target = $region28
    $region27: #{discriminator_forward.8} parent=5 // pred_region
      %s118 = ssub.s32 %s8, 1
      %s119 = smul.u32 64, %s13
      %p120 = scmp.lt.s32.totalorder %s119, 255
      %s121 = scalar_select %p120, %s119, 255
      %s122 = smul.addr %s121, 4
      %s123 = scalar_lea.vmem %s0, %s122
      %p124 = pneg %p34
      %p125 = pneg %p31
      %p126 = pneg %p55
      %p127 = pneg %p52
      %p128 = pneg %p81
      %p129 = pneg %p78
      %s130 = smul.u32 64, %s13
      %p131 = scmp.lt.s32.totalorder %s130, 255
      %s132 = scalar_select %p131, %s130, 255
      %s133 = smul.addr %s132, 4
      %s134 = scalar_lea.vmem %s2, %s133
      %s135 = smul.u32 64, %s13
      %p136 = scmp.lt.s32.totalorder %s135, 255
      %s137 = scalar_select %p136, %s135, 255
      %s138 = smul.addr %s137, 4
      %s139 = scalar_lea.vmem %s0, %s138
      %s140 = smul.u32 64, %s13
      %s141 = smul.u32 64, %s13
      %p142 = scmp.lt.s32.totalorder %s141, 255
      %s143 = scalar_select %p142, %s141, 255
      %s144 = smul.addr %s143, 4
      %s145 = scalar_lea.vmem %s2, %s144
      %s146 = smul.u32 64, %s13
      %v147 = vld [vmem:[%s139] sm:$0xf]
      %v148 = vld [vmem:[%s139 + $0x4] sm:$0xf]
      %v149 = vld [vmem:[%s139 + $0x8] sm:$0xf]
      %v150 = vld [vmem:[%s139 + $0xc] sm:$0xf]
      %v151 = vld [vmem:[%s139 + $0x10] sm:$0xf]
      %v152 = vld [vmem:[%s139 + $0x14] sm:$0xf]
      %v153 = vld [vmem:[%s139 + $0x18] sm:$0xf]
      %v154 = vld [vmem:[%s139 + $0x1c] sm:$0xf]
      %v155 = vld [vmem:[%s139 + $0x20] sm:$0xf]
      %v156 = vld [vmem:[%s139 + $0x24] sm:$0xf]
      %v157 = vld [vmem:[%s139 + $0x28] sm:$0xf]
      %v158 = vld [vmem:[%s139 + $0x2c] sm:$0xf]
      %v159 = vld [vmem:[%s139 + $0x30] sm:$0xf]
      %v160 = vld [vmem:[%s139 + $0x34] sm:$0xf]
      %v161 = vld [vmem:[%s139 + $0x38] sm:$0xf]
      %v162 = vld [vmem:[%s139 + $0x3c] sm:$0xf]
      %v163 = vld [vmem:[%s139 + $0x40] sm:$0xf]
      %v164 = vld [vmem:[%s139 + $0x44] sm:$0xf]
      %v165 = vld [vmem:[%s139 + $0x48] sm:$0xf]
      %v166 = vld [vmem:[%s139 + $0x4c] sm:$0xf]
      %v167 = vld [vmem:[%s139 + $0x50] sm:$0xf]
      %v168 = vld [vmem:[%s139 + $0x54] sm:$0xf]
      %v169 = vld [vmem:[%s139 + $0x58] sm:$0xf]
      %v170 = vld [vmem:[%s139 + $0x5c] sm:$0xf]
      %v171 = vld [vmem:[%s139 + $0x60] sm:$0xf]
      %v172 = vld [vmem:[%s139 + $0x64] sm:$0xf]
      %v173 = vld [vmem:[%s139 + $0x68] sm:$0xf]
      %v174 = vld [vmem:[%s139 + $0x6c] sm:$0xf]
      %v175 = vld [vmem:[%s139 + $0x70] sm:$0xf]
      %v176 = vld [vmem:[%s139 + $0x74] sm:$0xf]
      %v177 = vld [vmem:[%s139 + $0x78] sm:$0xf]
      %v178 = vld [vmem:[%s139 + $0x7c] sm:$0xf]
      %v179 = vld [vmem:[%s139 + $0x80] sm:$0xf]
      %v180 = vld [vmem:[%s139 + $0x84] sm:$0xf]
      %v181 = vld [vmem:[%s139 + $0x88] sm:$0xf]
      %v182 = vld [vmem:[%s139 + $0x8c] sm:$0xf]
      %v183 = vld [vmem:[%s139 + $0x90] sm:$0xf]
      %v184 = vld [vmem:[%s139 + $0x94] sm:$0xf]
      %v185 = vld [vmem:[%s139 + $0x98] sm:$0xf]
      %v186 = vld [vmem:[%s139 + $0x9c] sm:$0xf]
      %v187 = vld [vmem:[%s139 + $0xa0] sm:$0xf]
      %v188 = vld [vmem:[%s139 + $0xa4] sm:$0xf]
      %v189 = vld [vmem:[%s139 + $0xa8] sm:$0xf]
      %v190 = vld [vmem:[%s139 + $0xac] sm:$0xf]
      %v191 = vld [vmem:[%s139 + $0xb0] sm:$0xf]
      %v192 = vld [vmem:[%s139 + $0xb4] sm:$0xf]
      %v193 = vld [vmem:[%s139 + $0xb8] sm:$0xf]
      %v194 = vld [vmem:[%s139 + $0xbc] sm:$0xf]
      %v195 = vld [vmem:[%s139 + $0xc0] sm:$0xf]
      %v196 = vld [vmem:[%s139 + $0xc4] sm:$0xf]
      %v197 = vld [vmem:[%s139 + $0xc8] sm:$0xf]
      %v198 = vld [vmem:[%s139 + $0xcc] sm:$0xf]
      %v199 = vld [vmem:[%s139 + $0xd0] sm:$0xf]
      %v200 = vld [vmem:[%s139 + $0xd4] sm:$0xf]
      %v201 = vld [vmem:[%s139 + $0xd8] sm:$0xf]
      %v202 = vld [vmem:[%s139 + $0xdc] sm:$0xf]
      %v203 = vld [vmem:[%s139 + $0xe0] sm:$0xf]
      %v204 = vld [vmem:[%s139 + $0xe4] sm:$0xf]
      %v205 = vld [vmem:[%s139 + $0xe8] sm:$0xf]
      %v206 = vld [vmem:[%s139 + $0xec] sm:$0xf]
      %v207 = vld [vmem:[%s139 + $0xf0] sm:$0xf]
      %v208 = vld [vmem:[%s139 + $0xf4] sm:$0xf]
      %v209 = vld [vmem:[%s139 + $0xf8] sm:$0xf]
      %v210 = vld [vmem:[%s139 + $0xfc] sm:$0xf]
      %v211 = vld [vmem:[%s1] sm:$0xf]
      %v212 = vld [vmem:[%s1 + $0x4] sm:$0xf]
      %v213 = vld [vmem:[%s1 + $0x8] sm:$0xf]
      %v214 = vld [vmem:[%s1 + $0xc] sm:$0xf]
      %v215 = vld [vmem:[%s1 + $0x10] sm:$0xf]
      %v216 = vld [vmem:[%s1 + $0x14] sm:$0xf]
      %v217 = vld [vmem:[%s1 + $0x18] sm:$0xf]
      %v218 = vld [vmem:[%s1 + $0x1c] sm:$0xf]
      %v219 = vld [vmem:[%s1 + $0x20] sm:$0xf]
      %v220 = vld [vmem:[%s1 + $0x24] sm:$0xf]
      %v221 = vld [vmem:[%s1 + $0x28] sm:$0xf]
      %v222 = vld [vmem:[%s1 + $0x2c] sm:$0xf]
      %v223 = vld [vmem:[%s1 + $0x30] sm:$0xf]
      %v224 = vld [vmem:[%s1 + $0x34] sm:$0xf]
      %v225 = vld [vmem:[%s1 + $0x38] sm:$0xf]
      %v226 = vld [vmem:[%s1 + $0x3c] sm:$0xf]
      %v291 = vunpack.c.l.b16 %v147
      %v292 = vunpack.c.l.b16 %v148
      %v293 = vunpack.c.l.b16 %v149
      %v294 = vunpack.c.l.b16 %v150
      %v295 = vunpack.c.l.b16 %v151
      %v296 = vunpack.c.l.b16 %v152
      %v297 = vunpack.c.l.b16 %v153
      %v298 = vunpack.c.l.b16 %v154
      %v299 = vunpack.c.l.b16 %v155
      %v300 = vunpack.c.l.b16 %v156
      %v301 = vunpack.c.l.b16 %v157
      %v302 = vunpack.c.l.b16 %v158
      %v303 = vunpack.c.l.b16 %v159
      %v304 = vunpack.c.l.b16 %v160
      %v305 = vunpack.c.l.b16 %v161
      %v306 = vunpack.c.l.b16 %v162
      %v307 = vunpack.c.l.b16 %v163
      %v308 = vunpack.c.l.b16 %v164
      %v309 = vunpack.c.l.b16 %v165
      %v310 = vunpack.c.l.b16 %v166
      %v311 = vunpack.c.l.b16 %v167
      %v312 = vunpack.c.l.b16 %v168
      %v313 = vunpack.c.l.b16 %v169
      %v314 = vunpack.c.l.b16 %v170
      %v315 = vunpack.c.l.b16 %v171
      %v316 = vunpack.c.l.b16 %v172
      %v317 = vunpack.c.l.b16 %v173
      %v318 = vunpack.c.l.b16 %v174
      %v319 = vunpack.c.l.b16 %v175
      %v320 = vunpack.c.l.b16 %v176
      %v321 = vunpack.c.l.b16 %v177
      %v322 = vunpack.c.l.b16 %v178
      %v323 = vunpack.c.l.b16 %v179
      %v324 = vunpack.c.l.b16 %v180
      %v325 = vunpack.c.l.b16 %v181
      %v326 = vunpack.c.l.b16 %v182
      %v327 = vunpack.c.l.b16 %v183
      %v328 = vunpack.c.l.b16 %v184
      %v329 = vunpack.c.l.b16 %v185
      %v330 = vunpack.c.l.b16 %v186
      %v331 = vunpack.c.l.b16 %v187
      %v332 = vunpack.c.l.b16 %v188
      %v333 = vunpack.c.l.b16 %v189
      %v334 = vunpack.c.l.b16 %v190
      %v335 = vunpack.c.l.b16 %v191
      %v336 = vunpack.c.l.b16 %v192
      %v337 = vunpack.c.l.b16 %v193
      %v338 = vunpack.c.l.b16 %v194
      %v339 = vunpack.c.l.b16 %v195
      %v340 = vunpack.c.l.b16 %v196
      %v341 = vunpack.c.l.b16 %v197
      %v342 = vunpack.c.l.b16 %v198
      %v343 = vunpack.c.l.b16 %v199
      %v344 = vunpack.c.l.b16 %v200
      %v345 = vunpack.c.l.b16 %v201
      %v346 = vunpack.c.l.b16 %v202
      %v347 = vunpack.c.l.b16 %v203
      %v348 = vunpack.c.l.b16 %v204
      %v349 = vunpack.c.l.b16 %v205
      %v350 = vunpack.c.l.b16 %v206
      %v351 = vunpack.c.l.b16 %v207
      %v352 = vunpack.c.l.b16 %v208
      %v353 = vunpack.c.l.b16 %v209
      %v354 = vunpack.c.l.b16 %v210
      %v355 = vpack.c.b16 %v292, %v291
      %v356 = vpack.c.b16 %v294, %v293
      %v357 = vpack.c.b16 %v296, %v295
      %v358 = vpack.c.b16 %v298, %v297
      %v359 = vpack.c.b16 %v300, %v299
      %v360 = vpack.c.b16 %v302, %v301
      %v361 = vpack.c.b16 %v304, %v303
      %v362 = vpack.c.b16 %v306, %v305
      %v363 = vpack.c.b16 %v308, %v307
      %v364 = vpack.c.b16 %v310, %v309
      %v365 = vpack.c.b16 %v312, %v311
      %v366 = vpack.c.b16 %v314, %v313
      %v367 = vpack.c.b16 %v316, %v315
      %v368 = vpack.c.b16 %v318, %v317
      %v369 = vpack.c.b16 %v320, %v319
      %v370 = vpack.c.b16 %v322, %v321
      %v371 = vpack.c.b16 %v324, %v323
      %v372 = vpack.c.b16 %v326, %v325
      %v373 = vpack.c.b16 %v328, %v327
      %v374 = vpack.c.b16 %v330, %v329
      %v375 = vpack.c.b16 %v332, %v331
      %v376 = vpack.c.b16 %v334, %v333
      %v377 = vpack.c.b16 %v336, %v335
      %v378 = vpack.c.b16 %v338, %v337
      %v379 = vpack.c.b16 %v340, %v339
      %v380 = vpack.c.b16 %v342, %v341
      %v381 = vpack.c.b16 %v344, %v343
      %v382 = vpack.c.b16 %v346, %v345
      %v383 = vpack.c.b16 %v348, %v347
      %v384 = vpack.c.b16 %v350, %v349
      %v385 = vpack.c.b16 %v352, %v351
      %v386 = vpack.c.b16 %v354, %v353
      %v435 = vunpack.c.l.b16 %v211
      %v436 = vunpack.c.l.b16 %v212
      %v437 = vunpack.c.l.b16 %v213
      %v438 = vunpack.c.l.b16 %v214
      %v439 = vunpack.c.l.b16 %v215
      %v440 = vunpack.c.l.b16 %v216
      %v441 = vunpack.c.l.b16 %v217
      %v442 = vunpack.c.l.b16 %v218
      %v443 = vunpack.c.l.b16 %v219
      %v444 = vunpack.c.l.b16 %v220
      %v445 = vunpack.c.l.b16 %v221
      %v446 = vunpack.c.l.b16 %v222
      %v447 = vunpack.c.l.b16 %v223
      %v448 = vunpack.c.l.b16 %v224
      %v449 = vunpack.c.l.b16 %v225
      %v450 = vunpack.c.l.b16 %v226
      %v451 = vpack.c.b16 %v436, %v435
      %v452 = vpack.c.b16 %v438, %v437
      %v453 = vpack.c.b16 %v440, %v439
      %v454 = vpack.c.b16 %v442, %v441
      %v455 = vpack.c.b16 %v444, %v443
      %v456 = vpack.c.b16 %v446, %v445
      %v457 = vpack.c.b16 %v448, %v447
      %v458 = vpack.c.b16 %v450, %v449
      %467 = vmatpush.bf16.msra.mxu0 %v458
      %468 = vmatpush.bf16.msra.mxu0 %v457
      %469 = vmatpush.bf16.msra.mxu0 %v456
      %470 = vmatpush.bf16.msra.mxu0 %v455
      %471 = vmatpush.bf16.msra.mxu0 %v454
      %472 = vmatpush.bf16.msra.mxu0 %v453
      %473 = vmatpush.bf16.msra.mxu0 %v452
      %474 = vmatpush.bf16.msra.mxu0 %v451
      %475 = vmatmul.bf16.gmra.mxu0 %v355
      %v476 = vpop.f32.mrf.mxu0
      %v477 = vadd.f32 0.0, %v476
      %v478 = vpop.f32.mrf.mxu0
      %v479 = vadd.f32 0.0, %v478
      %480 = vmatmul.bf16.gmra.mxu0 %v356
      %v481 = vpop.f32.mrf.mxu0
      %v482 = vadd.f32 0.0, %v481
      %v483 = vpop.f32.mrf.mxu0
      %v484 = vadd.f32 0.0, %v483
      %485 = vmatmul.bf16.gmra.mxu0 %v357
      %v486 = vpop.f32.mrf.mxu0
      %v487 = vadd.f32 0.0, %v486
      %v488 = vpop.f32.mrf.mxu0
      %v489 = vadd.f32 0.0, %v488
      %490 = vmatmul.bf16.gmra.mxu0 %v358
      %v491 = vpop.f32.mrf.mxu0
      %v492 = vadd.f32 0.0, %v491
      %v493 = vpop.f32.mrf.mxu0
      %v494 = vadd.f32 0.0, %v493
      %495 = vmatmul.bf16.gmra.mxu0 %v359
      %v496 = vpop.f32.mrf.mxu0
      %v497 = vadd.f32 0.0, %v496
      %v498 = vpop.f32.mrf.mxu0
      %v499 = vadd.f32 0.0, %v498
      %500 = vmatmul.bf16.gmra.mxu0 %v360
      %v501 = vpop.f32.mrf.mxu0
      %v502 = vadd.f32 0.0, %v501
      %v503 = vpop.f32.mrf.mxu0
      %v504 = vadd.f32 0.0, %v503
      %505 = vmatmul.bf16.gmra.mxu0 %v361
      %v506 = vpop.f32.mrf.mxu0
      %v507 = vadd.f32 0.0, %v506
      %v508 = vpop.f32.mrf.mxu0
      %v509 = vadd.f32 0.0, %v508
      %510 = vmatmul.bf16.gmra.mxu0 %v362
      %v511 = vpop.f32.mrf.mxu0
      %v512 = vadd.f32 0.0, %v511
      %v513 = vpop.f32.mrf.mxu0
      %v514 = vadd.f32 0.0, %v513
      %515 = vmatmul.bf16.gmra.mxu0 %v363
      %v516 = vpop.f32.mrf.mxu0
      %v517 = vadd.f32 0.0, %v516
      %v518 = vpop.f32.mrf.mxu0
      %v519 = vadd.f32 0.0, %v518
      %520 = vmatmul.bf16.gmra.mxu0 %v364
      %v521 = vpop.f32.mrf.mxu0
      %v522 = vadd.f32 0.0, %v521
      %v523 = vpop.f32.mrf.mxu0
      %v524 = vadd.f32 0.0, %v523
      %525 = vmatmul.bf16.gmra.mxu0 %v365
      %v526 = vpop.f32.mrf.mxu0
      %v527 = vadd.f32 0.0, %v526
      %v528 = vpop.f32.mrf.mxu0
      %v529 = vadd.f32 0.0, %v528
      %530 = vmatmul.bf16.gmra.mxu0 %v366
      %v531 = vpop.f32.mrf.mxu0
      %v532 = vadd.f32 0.0, %v531
      %v533 = vpop.f32.mrf.mxu0
      %v534 = vadd.f32 0.0, %v533
      %535 = vmatmul.bf16.gmra.mxu0 %v367
      %v536 = vpop.f32.mrf.mxu0
      %v537 = vadd.f32 0.0, %v536
      %v538 = vpop.f32.mrf.mxu0
      %v539 = vadd.f32 0.0, %v538
      %540 = vmatmul.bf16.gmra.mxu0 %v368
      %v541 = vpop.f32.mrf.mxu0
      %v542 = vadd.f32 0.0, %v541
      %v543 = vpop.f32.mrf.mxu0
      %v544 = vadd.f32 0.0, %v543
      %545 = vmatmul.bf16.gmra.mxu0 %v369
      %v546 = vpop.f32.mrf.mxu0
      %v547 = vadd.f32 0.0, %v546
      %v548 = vpop.f32.mrf.mxu0
      %v549 = vadd.f32 0.0, %v548
      %550 = vmatmul.bf16.gmra.mxu0 %v370
      %v551 = vpop.f32.mrf.mxu0
      %v552 = vadd.f32 0.0, %v551
      %v553 = vpop.f32.mrf.mxu0
      %v554 = vadd.f32 0.0, %v553
      %555 = vmatmul.bf16.gmra.mxu0 %v371
      %v556 = vpop.f32.mrf.mxu0
      %v557 = vadd.f32 0.0, %v556
      %v558 = vpop.f32.mrf.mxu0
      %v559 = vadd.f32 0.0, %v558
      %560 = vmatmul.bf16.gmra.mxu0 %v372
      %v561 = vpop.f32.mrf.mxu0
      %v562 = vadd.f32 0.0, %v561
      %v563 = vpop.f32.mrf.mxu0
      %v564 = vadd.f32 0.0, %v563
      %565 = vmatmul.bf16.gmra.mxu0 %v373
      %v566 = vpop.f32.mrf.mxu0
      %v567 = vadd.f32 0.0, %v566
      %v568 = vpop.f32.mrf.mxu0
      %v569 = vadd.f32 0.0, %v568
      %570 = vmatmul.bf16.gmra.mxu0 %v374
      %v571 = vpop.f32.mrf.mxu0
      %v572 = vadd.f32 0.0, %v571
      %v573 = vpop.f32.mrf.mxu0
      %v574 = vadd.f32 0.0, %v573
      %575 = vmatmul.bf16.gmra.mxu0 %v375
      %v576 = vpop.f32.mrf.mxu0
      %v577 = vadd.f32 0.0, %v576
      %v578 = vpop.f32.mrf.mxu0
      %v579 = vadd.f32 0.0, %v578
      %580 = vmatmul.bf16.gmra.mxu0 %v376
      %v581 = vpop.f32.mrf.mxu0
      %v582 = vadd.f32 0.0, %v581
      %v583 = vpop.f32.mrf.mxu0
      %v584 = vadd.f32 0.0, %v583
      %585 = vmatmul.bf16.gmra.mxu0 %v377
      %v586 = vpop.f32.mrf.mxu0
      %v587 = vadd.f32 0.0, %v586
      %v588 = vpop.f32.mrf.mxu0
      %v589 = vadd.f32 0.0, %v588
      %590 = vmatmul.bf16.gmra.mxu0 %v378
      %v591 = vpop.f32.mrf.mxu0
      %v592 = vadd.f32 0.0, %v591
      %v593 = vpop.f32.mrf.mxu0
      %v594 = vadd.f32 0.0, %v593
      %595 = vmatmul.bf16.gmra.mxu0 %v379
      %v596 = vpop.f32.mrf.mxu0
      %v597 = vadd.f32 0.0, %v596
      %v598 = vpop.f32.mrf.mxu0
      %v599 = vadd.f32 0.0, %v598
      %600 = vmatmul.bf16.gmra.mxu0 %v380
      %v601 = vpop.f32.mrf.mxu0
      %v602 = vadd.f32 0.0, %v601
      %v603 = vpop.f32.mrf.mxu0
      %v604 = vadd.f32 0.0, %v603
      %605 = vmatmul.bf16.gmra.mxu0 %v381
      %v606 = vpop.f32.mrf.mxu0
      %v607 = vadd.f32 0.0, %v606
      %v608 = vpop.f32.mrf.mxu0
      %v609 = vadd.f32 0.0, %v608
      %610 = vmatmul.bf16.gmra.mxu0 %v382
      %v611 = vpop.f32.mrf.mxu0
      %v612 = vadd.f32 0.0, %v611
      %v613 = vpop.f32.mrf.mxu0
      %v614 = vadd.f32 0.0, %v613
      %615 = vmatmul.bf16.gmra.mxu0 %v383
      %v616 = vpop.f32.mrf.mxu0
      %v617 = vadd.f32 0.0, %v616
      %v618 = vpop.f32.mrf.mxu0
      %v619 = vadd.f32 0.0, %v618
      %620 = vmatmul.bf16.gmra.mxu0 %v384
      %v621 = vpop.f32.mrf.mxu0
      %v622 = vadd.f32 0.0, %v621
      %v623 = vpop.f32.mrf.mxu0
      %v624 = vadd.f32 0.0, %v623
      %625 = vmatmul.bf16.gmra.mxu0 %v385
      %v626 = vpop.f32.mrf.mxu0
      %v627 = vadd.f32 0.0, %v626
      %v628 = vpop.f32.mrf.mxu0
      %v629 = vadd.f32 0.0, %v628
      %630 = vmatmul.bf16.gmra.mxu0 %v386
      %v631 = vpop.f32.mrf.mxu0
      %v632 = vadd.f32 0.0, %v631
      %v633 = vpop.f32.mrf.mxu0
      %v634 = vadd.f32 0.0, %v633
      %635 = vdwg.mxu0
      %vm636 = vcmp.ge.f32.partialorder %v477, 0.0
      %vm637 = vcmp.ge.f32.partialorder %v479, 0.0
      %vm638 = vcmp.ge.f32.partialorder %v482, 0.0
      %vm639 = vcmp.ge.f32.partialorder %v484, 0.0
      %vm640 = vcmp.ge.f32.partialorder %v487, 0.0
      %vm641 = vcmp.ge.f32.partialorder %v489, 0.0
      %vm642 = vcmp.ge.f32.partialorder %v492, 0.0
      %vm643 = vcmp.ge.f32.partialorder %v494, 0.0
      %vm644 = vcmp.ge.f32.partialorder %v497, 0.0
      %vm645 = vcmp.ge.f32.partialorder %v499, 0.0
      %vm646 = vcmp.ge.f32.partialorder %v502, 0.0
      %vm647 = vcmp.ge.f32.partialorder %v504, 0.0
      %vm648 = vcmp.ge.f32.partialorder %v507, 0.0
      %vm649 = vcmp.ge.f32.partialorder %v509, 0.0
      %vm650 = vcmp.ge.f32.partialorder %v512, 0.0
      %vm651 = vcmp.ge.f32.partialorder %v514, 0.0
      %vm652 = vcmp.ge.f32.partialorder %v517, 0.0
      %vm653 = vcmp.ge.f32.partialorder %v519, 0.0
      %vm654 = vcmp.ge.f32.partialorder %v522, 0.0
      %vm655 = vcmp.ge.f32.partialorder %v524, 0.0
      %vm656 = vcmp.ge.f32.partialorder %v527, 0.0
      %vm657 = vcmp.ge.f32.partialorder %v529, 0.0
      %vm658 = vcmp.ge.f32.partialorder %v532, 0.0
      %vm659 = vcmp.ge.f32.partialorder %v534, 0.0
      %vm660 = vcmp.ge.f32.partialorder %v537, 0.0
      %vm661 = vcmp.ge.f32.partialorder %v539, 0.0
      %vm662 = vcmp.ge.f32.partialorder %v542, 0.0
      %vm663 = vcmp.ge.f32.partialorder %v544, 0.0
      %vm664 = vcmp.ge.f32.partialorder %v547, 0.0
      %vm665 = vcmp.ge.f32.partialorder %v549, 0.0
      %vm666 = vcmp.ge.f32.partialorder %v552, 0.0
      %vm667 = vcmp.ge.f32.partialorder %v554, 0.0
      %vm668 = vcmp.ge.f32.partialorder %v557, 0.0
      %vm669 = vcmp.ge.f32.partialorder %v559, 0.0
      %vm670 = vcmp.ge.f32.partialorder %v562, 0.0
      %vm671 = vcmp.ge.f32.partialorder %v564, 0.0
      %vm672 = vcmp.ge.f32.partialorder %v567, 0.0
      %vm673 = vcmp.ge.f32.partialorder %v569, 0.0
      %vm674 = vcmp.ge.f32.partialorder %v572, 0.0
      %vm675 = vcmp.ge.f32.partialorder %v574, 0.0
      %vm676 = vcmp.ge.f32.partialorder %v577, 0.0
      %vm677 = vcmp.ge.f32.partialorder %v579, 0.0
      %vm678 = vcmp.ge.f32.partialorder %v582, 0.0
      %vm679 = vcmp.ge.f32.partialorder %v584, 0.0
      %vm680 = vcmp.ge.f32.partialorder %v587, 0.0
      %vm681 = vcmp.ge.f32.partialorder %v589, 0.0
      %vm682 = vcmp.ge.f32.partialorder %v592, 0.0
      %vm683 = vcmp.ge.f32.partialorder %v594, 0.0
      %vm684 = vcmp.ge.f32.partialorder %v597, 0.0
      %vm685 = vcmp.ge.f32.partialorder %v599, 0.0
      %vm686 = vcmp.ge.f32.partialorder %v602, 0.0
      %vm687 = vcmp.ge.f32.partialorder %v604, 0.0
      %vm688 = vcmp.ge.f32.partialorder %v607, 0.0
      %vm689 = vcmp.ge.f32.partialorder %v609, 0.0
      %vm690 = vcmp.ge.f32.partialorder %v612, 0.0
      %vm691 = vcmp.ge.f32.partialorder %v614, 0.0
      %vm692 = vcmp.ge.f32.partialorder %v617, 0.0
      %vm693 = vcmp.ge.f32.partialorder %v619, 0.0
      %vm694 = vcmp.ge.f32.partialorder %v622, 0.0
      %vm695 = vcmp.ge.f32.partialorder %v624, 0.0
      %vm696 = vcmp.ge.f32.partialorder %v627, 0.0
      %vm697 = vcmp.ge.f32.partialorder %v629, 0.0
      %vm698 = vcmp.ge.f32.partialorder %v632, 0.0
      %vm699 = vcmp.ge.f32.partialorder %v634, 0.0
      %v700 = vmul.f32 %v477, 0.2
      %v701 = vmul.f32 %v479, 0.2
      %v702 = vmul.f32 %v482, 0.2
      %v703 = vmul.f32 %v484, 0.2
      %v704 = vmul.f32 %v487, 0.2
      %v705 = vmul.f32 %v489, 0.2
      %v706 = vmul.f32 %v492, 0.2
      %v707 = vmul.f32 %v494, 0.2
      %v708 = vmul.f32 %v497, 0.2
      %v709 = vmul.f32 %v499, 0.2
      %v710 = vmul.f32 %v502, 0.2
      %v711 = vmul.f32 %v504, 0.2
      %v712 = vmul.f32 %v507, 0.2
      %v713 = vmul.f32 %v509, 0.2
      %v714 = vmul.f32 %v512, 0.2
      %v715 = vmul.f32 %v514, 0.2
      %v716 = vmul.f32 %v517, 0.2
      %v717 = vmul.f32 %v519, 0.2
      %v718 = vmul.f32 %v522, 0.2
      %v719 = vmul.f32 %v524, 0.2
      %v720 = vmul.f32 %v527, 0.2
      %v721 = vmul.f32 %v529, 0.2
      %v722 = vmul.f32 %v532, 0.2
      %v723 = vmul.f32 %v534, 0.2
      %v724 = vmul.f32 %v537, 0.2
      %v725 = vmul.f32 %v539, 0.2
      %v726 = vmul.f32 %v542, 0.2
      %v727 = vmul.f32 %v544, 0.2
      %v728 = vmul.f32 %v547, 0.2
      %v729 = vmul.f32 %v549, 0.2
      %v730 = vmul.f32 %v552, 0.2
      %v731 = vmul.f32 %v554, 0.2
      %v732 = vmul.f32 %v557, 0.2
      %v733 = vmul.f32 %v559, 0.2
      %v734 = vmul.f32 %v562, 0.2
      %v735 = vmul.f32 %v564, 0.2
      %v736 = vmul.f32 %v567, 0.2
      %v737 = vmul.f32 %v569, 0.2
      %v738 = vmul.f32 %v572, 0.2
      %v739 = vmul.f32 %v574, 0.2
      %v740 = vmul.f32 %v577, 0.2
      %v741 = vmul.f32 %v579, 0.2
      %v742 = vmul.f32 %v582, 0.2
      %v743 = vmul.f32 %v584, 0.2
      %v744 = vmul.f32 %v587, 0.2
      %v745 = vmul.f32 %v589, 0.2
      %v746 = vmul.f32 %v592, 0.2
      %v747 = vmul.f32 %v594, 0.2
      %v748 = vmul.f32 %v597, 0.2
      %v749 = vmul.f32 %v599, 0.2
      %v750 = vmul.f32 %v602, 0.2
      %v751 = vmul.f32 %v604, 0.2
      %v752 = vmul.f32 %v607, 0.2
      %v753 = vmul.f32 %v609, 0.2
      %v754 = vmul.f32 %v612, 0.2
      %v755 = vmul.f32 %v614, 0.2
      %v756 = vmul.f32 %v617, 0.2
      %v757 = vmul.f32 %v619, 0.2
      %v758 = vmul.f32 %v622, 0.2
      %v759 = vmul.f32 %v624, 0.2
      %v760 = vmul.f32 %v627, 0.2
      %v761 = vmul.f32 %v629, 0.2
      %v762 = vmul.f32 %v632, 0.2
      %v763 = vmul.f32 %v634, 0.2
      %v764 = vsel %vm636, %v477, %v700
      %v765 = vsel %vm637, %v479, %v701
      %v766 = vsel %vm638, %v482, %v702
      %v767 = vsel %vm639, %v484, %v703
      %v768 = vsel %vm640, %v487, %v704
      %v769 = vsel %vm641, %v489, %v705
      %v770 = vsel %vm642, %v492, %v706
      %v771 = vsel %vm643, %v494, %v707
      %v772 = vsel %vm644, %v497, %v708
      %v773 = vsel %vm645, %v499, %v709
      %v774 = vsel %vm646, %v502, %v710
      %v775 = vsel %vm647, %v504, %v711
      %v776 = vsel %vm648, %v507, %v712
      %v777 = vsel %vm649, %v509, %v713
      %v778 = vsel %vm650, %v512, %v714
      %v779 = vsel %vm651, %v514, %v715
      %v780 = vsel %vm652, %v517, %v716
      %v781 = vsel %vm653, %v519, %v717
      %v782 = vsel %vm654, %v522, %v718
      %v783 = vsel %vm655, %v524, %v719
      %v784 = vsel %vm656, %v527, %v720
      %v785 = vsel %vm657, %v529, %v721
      %v786 = vsel %vm658, %v532, %v722
      %v787 = vsel %vm659, %v534, %v723
      %v788 = vsel %vm660, %v537, %v724
      %v789 = vsel %vm661, %v539, %v725
      %v790 = vsel %vm662, %v542, %v726
      %v791 = vsel %vm663, %v544, %v727
      %v792 = vsel %vm664, %v547, %v728
      %v793 = vsel %vm665, %v549, %v729
      %v794 = vsel %vm666, %v552, %v730
      %v795 = vsel %vm667, %v554, %v731
      %v796 = vsel %vm668, %v557, %v732
      %v797 = vsel %vm669, %v559, %v733
      %v798 = vsel %vm670, %v562, %v734
      %v799 = vsel %vm671, %v564, %v735
      %v800 = vsel %vm672, %v567, %v736
      %v801 = vsel %vm673, %v569, %v737
      %v802 = vsel %vm674, %v572, %v738
      %v803 = vsel %vm675, %v574, %v739
      %v804 = vsel %vm676, %v577, %v740
      %v805 = vsel %vm677, %v579, %v741
      %v806 = vsel %vm678, %v582, %v742
      %v807 = vsel %vm679, %v584, %v743
      %v808 = vsel %vm680, %v587, %v744
      %v809 = vsel %vm681, %v589, %v745
      %v810 = vsel %vm682, %v592, %v746
      %v811 = vsel %vm683, %v594, %v747
      %v812 = vsel %vm684, %v597, %v748
      %v813 = vsel %vm685, %v599, %v749
      %v814 = vsel %vm686, %v602, %v750
      %v815 = vsel %vm687, %v604, %v751
      %v816 = vsel %vm688, %v607, %v752
      %v817 = vsel %vm689, %v609, %v753
      %v818 = vsel %vm690, %v612, %v754
      %v819 = vsel %vm691, %v614, %v755
      %v820 = vsel %vm692, %v617, %v756
      %v821 = vsel %vm693, %v619, %v757
      %v822 = vsel %vm694, %v622, %v758
      %v823 = vsel %vm695, %v624, %v759
      %v824 = vsel %vm696, %v627, %v760
      %v825 = vsel %vm697, %v629, %v761
      %v826 = vsel %vm698, %v632, %v762
      %v827 = vsel %vm699, %v634, %v763
      %v828 = vpack.c.bf16 %v764, %v764
      %v829 = vpack.c.bf16 %v765, %v765
      %v830 = vpack.c.bf16 %v766, %v766
      %v831 = vpack.c.bf16 %v767, %v767
      %v832 = vpack.c.bf16 %v768, %v768
      %v833 = vpack.c.bf16 %v769, %v769
      %v834 = vpack.c.bf16 %v770, %v770
      %v835 = vpack.c.bf16 %v771, %v771
      %v836 = vpack.c.bf16 %v772, %v772
      %v837 = vpack.c.bf16 %v773, %v773
      %v838 = vpack.c.bf16 %v774, %v774
      %v839 = vpack.c.bf16 %v775, %v775
      %v840 = vpack.c.bf16 %v776, %v776
      %v841 = vpack.c.bf16 %v777, %v777
      %v842 = vpack.c.bf16 %v778, %v778
      %v843 = vpack.c.bf16 %v779, %v779
      %v844 = vpack.c.bf16 %v780, %v780
      %v845 = vpack.c.bf16 %v781, %v781
      %v846 = vpack.c.bf16 %v782, %v782
      %v847 = vpack.c.bf16 %v783, %v783
      %v848 = vpack.c.bf16 %v784, %v784
      %v849 = vpack.c.bf16 %v785, %v785
      %v850 = vpack.c.bf16 %v786, %v786
      %v851 = vpack.c.bf16 %v787, %v787
      %v852 = vpack.c.bf16 %v788, %v788
      %v853 = vpack.c.bf16 %v789, %v789
      %v854 = vpack.c.bf16 %v790, %v790
      %v855 = vpack.c.bf16 %v791, %v791
      %v856 = vpack.c.bf16 %v792, %v792
      %v857 = vpack.c.bf16 %v793, %v793
      %v858 = vpack.c.bf16 %v794, %v794
      %v859 = vpack.c.bf16 %v795, %v795
      %v860 = vpack.c.bf16 %v796, %v796
      %v861 = vpack.c.bf16 %v797, %v797
      %v862 = vpack.c.bf16 %v798, %v798
      %v863 = vpack.c.bf16 %v799, %v799
      %v864 = vpack.c.bf16 %v800, %v800
      %v865 = vpack.c.bf16 %v801, %v801
      %v866 = vpack.c.bf16 %v802, %v802
      %v867 = vpack.c.bf16 %v803, %v803
      %v868 = vpack.c.bf16 %v804, %v804
      %v869 = vpack.c.bf16 %v805, %v805
      %v870 = vpack.c.bf16 %v806, %v806
      %v871 = vpack.c.bf16 %v807, %v807
      %v872 = vpack.c.bf16 %v808, %v808
      %v873 = vpack.c.bf16 %v809, %v809
      %v874 = vpack.c.bf16 %v810, %v810
      %v875 = vpack.c.bf16 %v811, %v811
      %v876 = vpack.c.bf16 %v812, %v812
      %v877 = vpack.c.bf16 %v813, %v813
      %v878 = vpack.c.bf16 %v814, %v814
      %v879 = vpack.c.bf16 %v815, %v815
      %v880 = vpack.c.bf16 %v816, %v816
      %v881 = vpack.c.bf16 %v817, %v817
      %v882 = vpack.c.bf16 %v818, %v818
      %v883 = vpack.c.bf16 %v819, %v819
      %v884 = vpack.c.bf16 %v820, %v820
      %v885 = vpack.c.bf16 %v821, %v821
      %v886 = vpack.c.bf16 %v822, %v822
      %v887 = vpack.c.bf16 %v823, %v823
      %v888 = vpack.c.bf16 %v824, %v824
      %v889 = vpack.c.bf16 %v825, %v825
      %v890 = vpack.c.bf16 %v826, %v826
      %v891 = vpack.c.bf16 %v827, %v827
      %892 = vst [vmem:[%s145] sm:$0xf] %v828
      %893 = vst [vmem:[%s145 + $0x4] sm:$0xf] %v829
      %894 = vst [vmem:[%s145 + $0x8] sm:$0xf] %v830
      %895 = vst [vmem:[%s145 + $0xc] sm:$0xf] %v831
      %896 = vst [vmem:[%s145 + $0x10] sm:$0xf] %v832
      %897 = vst [vmem:[%s145 + $0x14] sm:$0xf] %v833
      %898 = vst [vmem:[%s145 + $0x18] sm:$0xf] %v834
      %899 = vst [vmem:[%s145 + $0x1c] sm:$0xf] %v835
      %900 = vst [vmem:[%s145 + $0x20] sm:$0xf] %v836
      %901 = vst [vmem:[%s145 + $0x24] sm:$0xf] %v837
      %902 = vst [vmem:[%s145 + $0x28] sm:$0xf] %v838
      %903 = vst [vmem:[%s145 + $0x2c] sm:$0xf] %v839
      %904 = vst [vmem:[%s145 + $0x30] sm:$0xf] %v840
      %905 = vst [vmem:[%s145 + $0x34] sm:$0xf] %v841
      %906 = vst [vmem:[%s145 + $0x38] sm:$0xf] %v842
      %907 = vst [vmem:[%s145 + $0x3c] sm:$0xf] %v843
      %908 = vst [vmem:[%s145 + $0x40] sm:$0xf] %v844
      %909 = vst [vmem:[%s145 + $0x44] sm:$0xf] %v845
      %910 = vst [vmem:[%s145 + $0x48] sm:$0xf] %v846
      %911 = vst [vmem:[%s145 + $0x4c] sm:$0xf] %v847
      %912 = vst [vmem:[%s145 + $0x50] sm:$0xf] %v848
      %913 = vst [vmem:[%s145 + $0x54] sm:$0xf] %v849
      %914 = vst [vmem:[%s145 + $0x58] sm:$0xf] %v850
      %915 = vst [vmem:[%s145 + $0x5c] sm:$0xf] %v851
      %916 = vst [vmem:[%s145 + $0x60] sm:$0xf] %v852
      %917 = vst [vmem:[%s145 + $0x64] sm:$0xf] %v853
      %918 = vst [vmem:[%s145 + $0x68] sm:$0xf] %v854
      %919 = vst [vmem:[%s145 + $0x6c] sm:$0xf] %v855
      %920 = vst [vmem:[%s145 + $0x70] sm:$0xf] %v856
      %921 = vst [vmem:[%s145 + $0x74] sm:$0xf] %v857
      %922 = vst [vmem:[%s145 + $0x78] sm:$0xf] %v858
      %923 = vst [vmem:[%s145 + $0x7c] sm:$0xf] %v859
      %924 = vst [vmem:[%s145 + $0x80] sm:$0xf] %v860
      %925 = vst [vmem:[%s145 + $0x84] sm:$0xf] %v861
      %926 = vst [vmem:[%s145 + $0x88] sm:$0xf] %v862
      %927 = vst [vmem:[%s145 + $0x8c] sm:$0xf] %v863
      %928 = vst [vmem:[%s145 + $0x90] sm:$0xf] %v864
      %929 = vst [vmem:[%s145 + $0x94] sm:$0xf] %v865
      %930 = vst [vmem:[%s145 + $0x98] sm:$0xf] %v866
      %931 = vst [vmem:[%s145 + $0x9c] sm:$0xf] %v867
      %932 = vst [vmem:[%s145 + $0xa0] sm:$0xf] %v868
      %933 = vst [vmem:[%s145 + $0xa4] sm:$0xf] %v869
      %934 = vst [vmem:[%s145 + $0xa8] sm:$0xf] %v870
      %935 = vst [vmem:[%s145 + $0xac] sm:$0xf] %v871
      %936 = vst [vmem:[%s145 + $0xb0] sm:$0xf] %v872
      %937 = vst [vmem:[%s145 + $0xb4] sm:$0xf] %v873
      %938 = vst [vmem:[%s145 + $0xb8] sm:$0xf] %v874
      %939 = vst [vmem:[%s145 + $0xbc] sm:$0xf] %v875
      %940 = vst [vmem:[%s145 + $0xc0] sm:$0xf] %v876
      %941 = vst [vmem:[%s145 + $0xc4] sm:$0xf] %v877
      %942 = vst [vmem:[%s145 + $0xc8] sm:$0xf] %v878
      %943 = vst [vmem:[%s145 + $0xcc] sm:$0xf] %v879
      %944 = vst [vmem:[%s145 + $0xd0] sm:$0xf] %v880
      %945 = vst [vmem:[%s145 + $0xd4] sm:$0xf] %v881
      %946 = vst [vmem:[%s145 + $0xd8] sm:$0xf] %v882
      %947 = vst [vmem:[%s145 + $0xdc] sm:$0xf] %v883
      %948 = vst [vmem:[%s145 + $0xe0] sm:$0xf] %v884
      %949 = vst [vmem:[%s145 + $0xe4] sm:$0xf] %v885
      %950 = vst [vmem:[%s145 + $0xe8] sm:$0xf] %v886
      %951 = vst [vmem:[%s145 + $0xec] sm:$0xf] %v887
      %952 = vst [vmem:[%s145 + $0xf0] sm:$0xf] %v888
      %953 = vst [vmem:[%s145 + $0xf4] sm:$0xf] %v889
      %954 = vst [vmem:[%s145 + $0xf8] sm:$0xf] %v890
      %955 = vst [vmem:[%s145 + $0xfc] sm:$0xf] %v891
      %s956 = smul.u32 64, %s13
      %p957 = scmp.lt.s32.totalorder %s956, 255
      %s958 = scalar_select %p957, %s956, 255
      %s959 = smul.addr %s958, 4
      %s960 = scalar_lea.vmem %s2, %s959
      // Predicated region
      $region29: #{discriminator_forward.8} parent=27 // pred_check
        %p961 = pneg %p78
      $region30: #{discriminator_forward.8} parent=27 // pred_check_branch
        %963 = sbr.rel (%p961) target = $region32
      $region31: #{discriminator_forward.8} parent=27 // pred_region
        %s964 = smul.u32 64, %s13
      $region32: #{discriminator_forward.8} parent=27 // pred_fallthru
        _
    $region28: #{discriminator_forward.8} parent=5 // pred_fallthru
      _
    %p965 = scmp.le.s32.totalorder 2, %s8
    // Predicated region
    $region33: #{discriminator_forward.8} parent=5 // pred_check
      %p966 = pneg %p965
    $region34: #{discriminator_forward.8} parent=5 // pred_check_branch
      %968 = sbr.rel (%p966) target = $region36
    $region35: #{discriminator_forward.8} parent=5 // pred_region
      %s969 = ssub.s32 %s8, 2
      // Predicated region
      $region37: #{discriminator_forward.8} parent=35 // pred_check
        %p970 = pneg %p84
      $region38: #{discriminator_forward.8} parent=35 // pred_check_branch
        %972 = sbr.rel (%p970) target = $region40
      $region39: #{discriminator_forward.8} parent=35 // pred_region
        %s973 = smul.u32 64, %s14
        %p974 = scmp.lt.s32.totalorder %s973, 255
        %s975 = scalar_select %p974, %s973, 255
        %s976 = smul.addr %s975, 4
        %s977 = scalar_lea.vmem %s2, %s976
      $region40: #{discriminator_forward.8} parent=35 // pred_fallthru
        _
    $region36: #{discriminator_forward.8} parent=5 // pred_fallthru
      _
  $region6: #{discriminator_forward.8} parent=0 // loop_footer
    %s12 = sadd.s32 1, %s8
  $region7: #{discriminator_forward.8} parent=0 // loop_footer_branch
    %7 = sbr.rel target = $region3
  $region8: #{discriminator_forward.8} parent=0 // loop_exit
    _

// kernel: discriminator_forward.9
$region0: #{discriminator_forward.9}
  #allocation0 [shape = 'u32[]', space=smem, size = 0x4, offset = 0x4, fixed_abs, tag = 'smem constant byte address 0x4 - core index']
  #allocation1 [shape = 'u32[72,128]{1,0:T(1,128)}', space=vmem, size = 0x9000, scoped, tag = 'internal scratch']
  %s0 = inlined_call_operand.vmem [shape: bf16[512,2048], index: 0, kind: input, shape index: {}]
  %s1 = inlined_call_operand.vmem [shape: bf16[2048,128], index: 1, kind: input, shape index: {}]
  %s2 = inlined_call_operand.vmem [shape: bf16[512,128], index: 2, kind: output, shape index: {0}]
  %s3 = inlined_call_operand.vmem [shape: f32[1,1,128], index: 3, kind: output, shape index: {1}]
  %s4 = inlined_call_operand.vmem [shape: f32[1,1,128], index: 4, kind: output, shape index: {2}]
  %5 = xla_tuple %s2, %s3, %s4
  %s6 = sld [smem:[#allocation0]]
  $region34: #{discriminator_forward.9} parent=0
    _
  %s8 = ssub.s32 1, %s6
  %s9 = scalar_select 0, %s8, %s6
  // Predicated region
  $region2: #{discriminator_forward.9} parent=0 // pred_check
    _
  $region3: #{discriminator_forward.9} parent=0 // pred_check_branch
    %11 = sbr.rel (0) target = $region5
  $region4: #{discriminator_forward.9} parent=0 // pred_region
    _
  $region5: #{discriminator_forward.9} parent=0 // pred_fallthru
    _
  // Predicated region
  $region6: #{discriminator_forward.9} parent=0 // pred_check
    _
  $region7: #{discriminator_forward.9} parent=0 // pred_check_branch
    %13 = sbr.rel (0) target = $region9
  $region8: #{discriminator_forward.9} parent=0 // pred_region
    _
  $region9: #{discriminator_forward.9} parent=0 // pred_fallthru
    _
  %v14 = vld [vmem:[%s0] sm:$0xff]
  %v15 = vld [vmem:[%s0 + $0x8] sm:$0xff]
  %v16 = vld [vmem:[%s0 + $0x10] sm:$0xff]
  %v17 = vld [vmem:[%s0 + $0x18] sm:$0xff]
  %v18 = vld [vmem:[%s0 + $0x20] sm:$0xff]
  %v19 = vld [vmem:[%s0 + $0x28] sm:$0xff]
  %v20 = vld [vmem:[%s0 + $0x30] sm:$0xff]
  %v21 = vld [vmem:[%s0 + $0x38] sm:$0xff]
  %v22 = vld [vmem:[%s0 + $0x40] sm:$0xff]
  %v23 = vld [vmem:[%s0 + $0x48] sm:$0xff]
  %v24 = vld [vmem:[%s0 + $0x50] sm:$0xff]
  %v25 = vld [vmem:[%s0 + $0x58] sm:$0xff]
  %v26 = vld [vmem:[%s0 + $0x60] sm:$0xff]
  %v27 = vld [vmem:[%s0 + $0x68] sm:$0xff]
  %v28 = vld [vmem:[%s0 + $0x70] sm:$0xff]
  %v29 = vld [vmem:[%s0 + $0x78] sm:$0xff]
  %v30 = vld [vmem:[%s0 + $0x80] sm:$0xff]
  %v31 = vld [vmem:[%s0 + $0x88] sm:$0xff]
  %v32 = vld [vmem:[%s0 + $0x90] sm:$0xff]
  %v33 = vld [vmem:[%s0 + $0x98] sm:$0xff]
  %v34 = vld [vmem:[%s0 + $0xa0] sm:$0xff]
  %v35 = vld [vmem:[%s0 + $0xa8] sm:$0xff]
  %v36 = vld [vmem:[%s0 + $0xb0] sm:$0xff]
  %v37 = vld [vmem:[%s0 + $0xb8] sm:$0xff]
  %v38 = vld [vmem:[%s0 + $0xc0] sm:$0xff]
  %v39 = vld [vmem:[%s0 + $0xc8] sm:$0xff]
  %v40 = vld [vmem:[%s0 + $0xd0] sm:$0xff]
  %v41 = vld [vmem:[%s0 + $0xd8] sm:$0xff]
  %v42 = vld [vmem:[%s0 + $0xe0] sm:$0xff]
  %v43 = vld [vmem:[%s0 + $0xe8] sm:$0xff]
  %v44 = vld [vmem:[%s0 + $0xf0] sm:$0xff]
  %v45 = vld [vmem:[%s0 + $0xf8] sm:$0xff]
  %v46 = vld [vmem:[%s0 + $0x100] sm:$0xff]
  %v47 = vld [vmem:[%s0 + $0x108] sm:$0xff]
  %v48 = vld [vmem:[%s0 + $0x110] sm:$0xff]
  %v49 = vld [vmem:[%s0 + $0x118] sm:$0xff]
  %v50 = vld [vmem:[%s0 + $0x120] sm:$0xff]
  %v51 = vld [vmem:[%s0 + $0x128] sm:$0xff]
  %v52 = vld [vmem:[%s0 + $0x130] sm:$0xff]
  %v53 = vld [vmem:[%s0 + $0x138] sm:$0xff]
  %v54 = vld [vmem:[%s0 + $0x140] sm:$0xff]
  %v55 = vld [vmem:[%s0 + $0x148] sm:$0xff]
  %v56 = vld [vmem:[%s0 + $0x150] sm:$0xff]
  %v57 = vld [vmem:[%s0 + $0x158] sm:$0xff]
  %v58 = vld [vmem:[%s0 + $0x160] sm:$0xff]
  %v59 = vld [vmem:[%s0 + $0x168] sm:$0xff]
  %v60 = vld [vmem:[%s0 + $0x170] sm:$0xff]
  %v61 = vld [vmem:[%s0 + $0x178] sm:$0xff]
  %v62 = vld [vmem:[%s0 + $0x180] sm:$0xff]
  %v63 = vld [vmem:[%s0 + $0x188] sm:$0xff]
  %v64 = vld [vmem:[%s0 + $0x190] sm:$0xff]
  %v65 = vld [vmem:[%s0 + $0x198] sm:$0xff]
  %v66 = vld [vmem:[%s0 + $0x1a0] sm:$0xff]
  %v67 = vld [vmem:[%s0 + $0x1a8] sm:$0xff]
  %v68 = vld [vmem:[%s0 + $0x1b0] sm:$0xff]
  %v69 = vld [vmem:[%s0 + $0x1b8] sm:$0xff]
  %v70 = vld [vmem:[%s0 + $0x1c0] sm:$0xff]
  %v71 = vld [vmem:[%s0 + $0x1c8] sm:$0xff]
  %v72 = vld [vmem:[%s0 + $0x1d0] sm:$0xff]
  %v73 = vld [vmem:[%s0 + $0x1d8] sm:$0xff]
  %v74 = vld [vmem:[%s0 + $0x1e0] sm:$0xff]
  %v75 = vld [vmem:[%s0 + $0x1e8] sm:$0xff]
  %v76 = vld [vmem:[%s0 + $0x1f0] sm:$0xff]
  %v77 = vld [vmem:[%s0 + $0x1f8] sm:$0xff]
  %v78 = vld [vmem:[%s0 + $0x200] sm:$0xff]
  %v79 = vld [vmem:[%s0 + $0x208] sm:$0xff]
  %v80 = vld [vmem:[%s0 + $0x210] sm:$0xff]
  %v81 = vld [vmem:[%s0 + $0x218] sm:$0xff]
  %v82 = vld [vmem:[%s0 + $0x220] sm:$0xff]
  %v83 = vld [vmem:[%s0 + $0x228] sm:$0xff]
  %v84 = vld [vmem:[%s0 + $0x230] sm:$0xff]
  %v85 = vld [vmem:[%s0 + $0x238] sm:$0xff]
  %v86 = vld [vmem:[%s0 + $0x240] sm:$0xff]
  %v87 = vld [vmem:[%s0 + $0x248] sm:$0xff]
  %v88 = vld [vmem:[%s0 + $0x250] sm:$0xff]
  %v89 = vld [vmem:[%s0 + $0x258] sm:$0xff]
  %v90 = vld [vmem:[%s0 + $0x260] sm:$0xff]
  %v91 = vld [vmem:[%s0 + $0x268] sm:$0xff]
  %v92 = vld [vmem:[%s0 + $0x270] sm:$0xff]
  %v93 = vld [vmem:[%s0 + $0x278] sm:$0xff]
  %v94 = vld [vmem:[%s0 + $0x280] sm:$0xff]
  %v95 = vld [vmem:[%s0 + $0x288] sm:$0xff]
  %v96 = vld [vmem:[%s0 + $0x290] sm:$0xff]
  %v97 = vld [vmem:[%s0 + $0x298] sm:$0xff]
  %v98 = vld [vmem:[%s0 + $0x2a0] sm:$0xff]
  %v99 = vld [vmem:[%s0 + $0x2a8] sm:$0xff]
  %v100 = vld [vmem:[%s0 + $0x2b0] sm:$0xff]
  %v101 = vld [vmem:[%s0 + $0x2b8] sm:$0xff]
  %v102 = vld [vmem:[%s0 + $0x2c0] sm:$0xff]
  %v103 = vld [vmem:[%s0 + $0x2c8] sm:$0xff]
  %v104 = vld [vmem:[%s0 + $0x2d0] sm:$0xff]
  %v105 = vld [vmem:[%s0 + $0x2d8] sm:$0xff]
  %v106 = vld [vmem:[%s0 + $0x2e0] sm:$0xff]
  %v107 = vld [vmem:[%s0 + $0x2e8] sm:$0xff]
  %v108 = vld [vmem:[%s0 + $0x2f0] sm:$0xff]
  %v109 = vld [vmem:[%s0 + $0x2f8] sm:$0xff]
  %v110 = vld [vmem:[%s0 + $0x300] sm:$0xff]
  %v111 = vld [vmem:[%s0 + $0x308] sm:$0xff]
  %v112 = vld [vmem:[%s0 + $0x310] sm:$0xff]
  %v113 = vld [vmem:[%s0 + $0x318] sm:$0xff]
  %v114 = vld [vmem:[%s0 + $0x320] sm:$0xff]
  %v115 = vld [vmem:[%s0 + $0x328] sm:$0xff]
  %v116 = vld [vmem:[%s0 + $0x330] sm:$0xff]
  %v117 = vld [vmem:[%s0 + $0x338] sm:$0xff]
  %v118 = vld [vmem:[%s0 + $0x340] sm:$0xff]
  %v119 = vld [vmem:[%s0 + $0x348] sm:$0xff]
  %v120 = vld [vmem:[%s0 + $0x350] sm:$0xff]
  %v121 = vld [vmem:[%s0 + $0x358] sm:$0xff]
  %v122 = vld [vmem:[%s0 + $0x360] sm:$0xff]
  %v123 = vld [vmem:[%s0 + $0x368] sm:$0xff]
  %v124 = vld [vmem:[%s0 + $0x370] sm:$0xff]
  %v125 = vld [vmem:[%s0 + $0x378] sm:$0xff]
  %v126 = vld [vmem:[%s0 + $0x380] sm:$0xff]
  %v127 = vld [vmem:[%s0 + $0x388] sm:$0xff]
  %v128 = vld [vmem:[%s0 + $0x390] sm:$0xff]
  %v129 = vld [vmem:[%s0 + $0x398] sm:$0xff]
  %v130 = vld [vmem:[%s0 + $0x3a0] sm:$0xff]
  %v131 = vld [vmem:[%s0 + $0x3a8] sm:$0xff]
  %v132 = vld [vmem:[%s0 + $0x3b0] sm:$0xff]
  %v133 = vld [vmem:[%s0 + $0x3b8] sm:$0xff]
  %v134 = vld [vmem:[%s0 + $0x3c0] sm:$0xff]
  %v135 = vld [vmem:[%s0 + $0x3c8] sm:$0xff]
  %v136 = vld [vmem:[%s0 + $0x3d0] sm:$0xff]
  %v137 = vld [vmem:[%s0 + $0x3d8] sm:$0xff]
  %v138 = vld [vmem:[%s0 + $0x3e0] sm:$0xff]
  %v139 = vld [vmem:[%s0 + $0x3e8] sm:$0xff]
  %v140 = vld [vmem:[%s0 + $0x3f0] sm:$0xff]
  %v141 = vld [vmem:[%s0 + $0x3f8] sm:$0xff]
  %v142 = vld [vmem:[%s0 + $0x400] sm:$0xff]
  %v143 = vld [vmem:[%s0 + $0x408] sm:$0xff]
  %v144 = vld [vmem:[%s0 + $0x410] sm:$0xff]
  %v145 = vld [vmem:[%s0 + $0x418] sm:$0xff]
  %v146 = vld [vmem:[%s0 + $0x420] sm:$0xff]
  %v147 = vld [vmem:[%s0 + $0x428] sm:$0xff]
  %v148 = vld [vmem:[%s0 + $0x430] sm:$0xff]
  %v149 = vld [vmem:[%s0 + $0x438] sm:$0xff]
  %v150 = vld [vmem:[%s0 + $0x440] sm:$0xff]
  %v151 = vld [vmem:[%s0 + $0x448] sm:$0xff]
  %v152 = vld [vmem:[%s0 + $0x450] sm:$0xff]
  %v153 = vld [vmem:[%s0 + $0x458] sm:$0xff]
  %v154 = vld [vmem:[%s0 + $0x460] sm:$0xff]
  %v155 = vld [vmem:[%s0 + $0x468] sm:$0xff]
  %v156 = vld [vmem:[%s0 + $0x470] sm:$0xff]
  %v157 = vld [vmem:[%s0 + $0x478] sm:$0xff]
  %v158 = vld [vmem:[%s0 + $0x480] sm:$0xff]
  %v159 = vld [vmem:[%s0 + $0x488] sm:$0xff]
  %v160 = vld [vmem:[%s0 + $0x490] sm:$0xff]
  %v161 = vld [vmem:[%s0 + $0x498] sm:$0xff]
  %v162 = vld [vmem:[%s0 + $0x4a0] sm:$0xff]
  %v163 = vld [vmem:[%s0 + $0x4a8] sm:$0xff]
  %v164 = vld [vmem:[%s0 + $0x4b0] sm:$0xff]
  %v165 = vld [vmem:[%s0 + $0x4b8] sm:$0xff]
  %v166 = vld [vmem:[%s0 + $0x4c0] sm:$0xff]
  %v167 = vld [vmem:[%s0 + $0x4c8] sm:$0xff]
  %v168 = vld [vmem:[%s0 + $0x4d0] sm:$0xff]
  %v169 = vld [vmem:[%s0 + $0x4d8] sm:$0xff]
  %v170 = vld [vmem:[%s0 + $0x4e0] sm:$0xff]
  %v171 = vld [vmem:[%s0 + $0x4e8] sm:$0xff]
  %v172 = vld [vmem:[%s0 + $0x4f0] sm:$0xff]
  %v173 = vld [vmem:[%s0 + $0x4f8] sm:$0xff]
  %v174 = vld [vmem:[%s0 + $0x500] sm:$0xff]
  %v175 = vld [vmem:[%s0 + $0x508] sm:$0xff]
  %v176 = vld [vmem:[%s0 + $0x510] sm:$0xff]
  %v177 = vld [vmem:[%s0 + $0x518] sm:$0xff]
  %v178 = vld [vmem:[%s0 + $0x520] sm:$0xff]
  %v179 = vld [vmem:[%s0 + $0x528] sm:$0xff]
  %v180 = vld [vmem:[%s0 + $0x530] sm:$0xff]
  %v181 = vld [vmem:[%s0 + $0x538] sm:$0xff]
  %v182 = vld [vmem:[%s0 + $0x540] sm:$0xff]
  %v183 = vld [vmem:[%s0 + $0x548] sm:$0xff]
  %v184 = vld [vmem:[%s0 + $0x550] sm:$0xff]
  %v185 = vld [vmem:[%s0 + $0x558] sm:$0xff]
  %v186 = vld [vmem:[%s0 + $0x560] sm:$0xff]
  %v187 = vld [vmem:[%s0 + $0x568] sm:$0xff]
  %v188 = vld [vmem:[%s0 + $0x570] sm:$0xff]
  %v189 = vld [vmem:[%s0 + $0x578] sm:$0xff]
  %v190 = vld [vmem:[%s0 + $0x580] sm:$0xff]
  %v191 = vld [vmem:[%s0 + $0x588] sm:$0xff]
  %v192 = vld [vmem:[%s0 + $0x590] sm:$0xff]
  %v193 = vld [vmem:[%s0 + $0x598] sm:$0xff]
  %v194 = vld [vmem:[%s0 + $0x5a0] sm:$0xff]
  %v195 = vld [vmem:[%s0 + $0x5a8] sm:$0xff]
  %v196 = vld [vmem:[%s0 + $0x5b0] sm:$0xff]
  %v197 = vld [vmem:[%s0 + $0x5b8] sm:$0xff]
  %v198 = vld [vmem:[%s0 + $0x5c0] sm:$0xff]
  %v199 = vld [vmem:[%s0 + $0x5c8] sm:$0xff]
  %v200 = vld [vmem:[%s0 + $0x5d0] sm:$0xff]
  %v201 = vld [vmem:[%s0 + $0x5d8] sm:$0xff]
  %v202 = vld [vmem:[%s0 + $0x5e0] sm:$0xff]
  %v203 = vld [vmem:[%s0 + $0x5e8] sm:$0xff]
  %v204 = vld [vmem:[%s0 + $0x5f0] sm:$0xff]
  %v205 = vld [vmem:[%s0 + $0x5f8] sm:$0xff]
  %v206 = vld [vmem:[%s0 + $0x600] sm:$0xff]
  %v207 = vld [vmem:[%s0 + $0x608] sm:$0xff]
  %v208 = vld [vmem:[%s0 + $0x610] sm:$0xff]
  %v209 = vld [vmem:[%s0 + $0x618] sm:$0xff]
  %v210 = vld [vmem:[%s0 + $0x620] sm:$0xff]
  %v211 = vld [vmem:[%s0 + $0x628] sm:$0xff]
  %v212 = vld [vmem:[%s0 + $0x630] sm:$0xff]
  %v213 = vld [vmem:[%s0 + $0x638] sm:$0xff]
  %v214 = vld [vmem:[%s0 + $0x640] sm:$0xff]
  %v215 = vld [vmem:[%s0 + $0x648] sm:$0xff]
  %v216 = vld [vmem:[%s0 + $0x650] sm:$0xff]
  %v217 = vld [vmem:[%s0 + $0x658] sm:$0xff]
  %v218 = vld [vmem:[%s0 + $0x660] sm:$0xff]
  %v219 = vld [vmem:[%s0 + $0x668] sm:$0xff]
  %v220 = vld [vmem:[%s0 + $0x670] sm:$0xff]
  %v221 = vld [vmem:[%s0 + $0x678] sm:$0xff]
  %v222 = vld [vmem:[%s0 + $0x680] sm:$0xff]
  %v223 = vld [vmem:[%s0 + $0x688] sm:$0xff]
  %v224 = vld [vmem:[%s0 + $0x690] sm:$0xff]
  %v225 = vld [vmem:[%s0 + $0x698] sm:$0xff]
  %v226 = vld [vmem:[%s0 + $0x6a0] sm:$0xff]
  %v227 = vld [vmem:[%s0 + $0x6a8] sm:$0xff]
  %v228 = vld [vmem:[%s0 + $0x6b0] sm:$0xff]
  %v229 = vld [vmem:[%s0 + $0x6b8] sm:$0xff]
  %v230 = vld [vmem:[%s0 + $0x6c0] sm:$0xff]
  %v231 = vld [vmem:[%s0 + $0x6c8] sm:$0xff]
  %v232 = vld [vmem:[%s0 + $0x6d0] sm:$0xff]
  %v233 = vld [vmem:[%s0 + $0x6d8] sm:$0xff]
  %v234 = vld [vmem:[%s0 + $0x6e0] sm:$0xff]
  %v235 = vld [vmem:[%s0 + $0x6e8] sm:$0xff]
  %v236 = vld [vmem:[%s0 + $0x6f0] sm:$0xff]
  %v237 = vld [vmem:[%s0 + $0x6f8] sm:$0xff]
  %v238 = vld [vmem:[%s0 + $0x700] sm:$0xff]
  %v239 = vld [vmem:[%s0 + $0x708] sm:$0xff]
  %v240 = vld [vmem:[%s0 + $0x710] sm:$0xff]
  %v241 = vld [vmem:[%s0 + $0x718] sm:$0xff]
  %v242 = vld [vmem:[%s0 + $0x720] sm:$0xff]
  %v243 = vld [vmem:[%s0 + $0x728] sm:$0xff]
  %v244 = vld [vmem:[%s0 + $0x730] sm:$0xff]
  %v245 = vld [vmem:[%s0 + $0x738] sm:$0xff]
  %v246 = vld [vmem:[%s0 + $0x740] sm:$0xff]
  %v247 = vld [vmem:[%s0 + $0x748] sm:$0xff]
  %v248 = vld [vmem:[%s0 + $0x750] sm:$0xff]
  %v249 = vld [vmem:[%s0 + $0x758] sm:$0xff]
  %v250 = vld [vmem:[%s0 + $0x760] sm:$0xff]
  %v251 = vld [vmem:[%s0 + $0x768] sm:$0xff]
  %v252 = vld [vmem:[%s0 + $0x770] sm:$0xff]
  %v253 = vld [vmem:[%s0 + $0x778] sm:$0xff]
  %v254 = vld [vmem:[%s0 + $0x780] sm:$0xff]
  %v255 = vld [vmem:[%s0 + $0x788] sm:$0xff]
  %v256 = vld [vmem:[%s0 + $0x790] sm:$0xff]
  %v257 = vld [vmem:[%s0 + $0x798] sm:$0xff]
  %v258 = vld [vmem:[%s0 + $0x7a0] sm:$0xff]
  %v259 = vld [vmem:[%s0 + $0x7a8] sm:$0xff]
  %v260 = vld [vmem:[%s0 + $0x7b0] sm:$0xff]
  %v261 = vld [vmem:[%s0 + $0x7b8] sm:$0xff]
  %v262 = vld [vmem:[%s0 + $0x7c0] sm:$0xff]
  %v263 = vld [vmem:[%s0 + $0x7c8] sm:$0xff]
  %v264 = vld [vmem:[%s0 + $0x7d0] sm:$0xff]
  %v265 = vld [vmem:[%s0 + $0x7d8] sm:$0xff]
  %v266 = vld [vmem:[%s0 + $0x7e0] sm:$0xff]
  %v267 = vld [vmem:[%s0 + $0x7e8] sm:$0xff]
  %v268 = vld [vmem:[%s0 + $0x7f0] sm:$0xff]
  %v269 = vld [vmem:[%s0 + $0x7f8] sm:$0xff]
  %v270 = vld [vmem:[%s0 + $0x800] sm:$0xff]
  %v271 = vld [vmem:[%s0 + $0x808] sm:$0xff]
  %v272 = vld [vmem:[%s0 + $0x810] sm:$0xff]
  %v273 = vld [vmem:[%s0 + $0x818] sm:$0xff]
  %v274 = vld [vmem:[%s0 + $0x820] sm:$0xff]
  %v275 = vld [vmem:[%s0 + $0x828] sm:$0xff]
  %v276 = vld [vmem:[%s0 + $0x830] sm:$0xff]
  %v277 = vld [vmem:[%s0 + $0x838] sm:$0xff]
  %v278 = vld [vmem:[%s0 + $0x840] sm:$0xff]
  %v279 = vld [vmem:[%s0 + $0x848] sm:$0xff]
  %v280 = vld [vmem:[%s0 + $0x850] sm:$0xff]
  %v281 = vld [vmem:[%s0 + $0x858] sm:$0xff]
  %v282 = vld [vmem:[%s0 + $0x860] sm:$0xff]
  %v283 = vld [vmem:[%s0 + $0x868] sm:$0xff]
  %v284 = vld [vmem:[%s0 + $0x870] sm:$0xff]
  %v285 = vld [vmem:[%s0 + $0x878] sm:$0xff]
  %v286 = vld [vmem:[%s0 + $0x880] sm:$0xff]
  %v287 = vld [vmem:[%s0 + $0x888] sm:$0xff]
  %v288 = vld [vmem:[%s0 + $0x890] sm:$0xff]
  %v289 = vld [vmem:[%s0 + $0x898] sm:$0xff]
  %v290 = vld [vmem:[%s0 + $0x8a0] sm:$0xff]
  %v291 = vld [vmem:[%s0 + $0x8a8] sm:$0xff]
  %v292 = vld [vmem:[%s0 + $0x8b0] sm:$0xff]
  %v293 = vld [vmem:[%s0 + $0x8b8] sm:$0xff]
  %v294 = vld [vmem:[%s0 + $0x8c0] sm:$0xff]
  %v295 = vld [vmem:[%s0 + $0x8c8] sm:$0xff]
  %v296 = vld [vmem:[%s0 + $0x8d0] sm:$0xff]
  %v297 = vld [vmem:[%s0 + $0x8d8] sm:$0xff]
  %v298 = vld [vmem:[%s0 + $0x8e0] sm:$0xff]
  %v299 = vld [vmem:[%s0 + $0x8e8] sm:$0xff]
  %v300 = vld [vmem:[%s0 + $0x8f0] sm:$0xff]
  %v301 = vld [vmem:[%s0 + $0x8f8] sm:$0xff]
  %v302 = vld [vmem:[%s0 + $0x900] sm:$0xff]
  %v303 = vld [vmem:[%s0 + $0x908] sm:$0xff]
  %v304 = vld [vmem:[%s0 + $0x910] sm:$0xff]
  %v305 = vld [vmem:[%s0 + $0x918] sm:$0xff]
  %v306 = vld [vmem:[%s0 + $0x920] sm:$0xff]
  %v307 = vld [vmem:[%s0 + $0x928] sm:$0xff]
  %v308 = vld [vmem:[%s0 + $0x930] sm:$0xff]
  %v309 = vld [vmem:[%s0 + $0x938] sm:$0xff]
  %v310 = vld [vmem:[%s0 + $0x940] sm:$0xff]
  %v311 = vld [vmem:[%s0 + $0x948] sm:$0xff]
  %v312 = vld [vmem:[%s0 + $0x950] sm:$0xff]
  %v313 = vld [vmem:[%s0 + $0x958] sm:$0xff]
  %v314 = vld [vmem:[%s0 + $0x960] sm:$0xff]
  %v315 = vld [vmem:[%s0 + $0x968] sm:$0xff]
  %v316 = vld [vmem:[%s0 + $0x970] sm:$0xff]
  %v317 = vld [vmem:[%s0 + $0x978] sm:$0xff]
  %v318 = vld [vmem:[%s0 + $0x980] sm:$0xff]
  %v319 = vld [vmem:[%s0 + $0x988] sm:$0xff]
  %v320 = vld [vmem:[%s0 + $0x990] sm:$0xff]
  %v321 = vld [vmem:[%s0 + $0x998] sm:$0xff]
  %v322 = vld [vmem:[%s0 + $0x9a0] sm:$0xff]
  %v323 = vld [vmem:[%s0 + $0x9a8] sm:$0xff]
  %v324 = vld [vmem:[%s0 + $0x9b0] sm:$0xff]
  %v325 = vld [vmem:[%s0 + $0x9b8] sm:$0xff]
  %v326 = vld [vmem:[%s0 + $0x9c0] sm:$0xff]
  %v327 = vld [vmem:[%s0 + $0x9c8] sm:$0xff]
  %v328 = vld [vmem:[%s0 + $0x9d0] sm:$0xff]
  %v329 = vld [vmem:[%s0 + $0x9d8] sm:$0xff]
  %v330 = vld [vmem:[%s0 + $0x9e0] sm:$0xff]
  %v331 = vld [vmem:[%s0 + $0x9e8] sm:$0xff]
  %v332 = vld [vmem:[%s0 + $0x9f0] sm:$0xff]
  %v333 = vld [vmem:[%s0 + $0x9f8] sm:$0xff]
  %v334 = vld [vmem:[%s0 + $0xa00] sm:$0xff]
  %v335 = vld [vmem:[%s0 + $0xa08] sm:$0xff]
  %v336 = vld [vmem:[%s0 + $0xa10] sm:$0xff]
  %v337 = vld [vmem:[%s0 + $0xa18] sm:$0xff]
  %v338 = vld [vmem:[%s0 + $0xa20] sm:$0xff]
  %v339 = vld [vmem:[%s0 + $0xa28] sm:$0xff]
  %v340 = vld [vmem:[%s0 + $0xa30] sm:$0xff]
  %v341 = vld [vmem:[%s0 + $0xa38] sm:$0xff]
  %v342 = vld [vmem:[%s0 + $0xa40] sm:$0xff]
  %v343 = vld [vmem:[%s0 + $0xa48] sm:$0xff]
  %v344 = vld [vmem:[%s0 + $0xa50] sm:$0xff]
  %v345 = vld [vmem:[%s0 + $0xa58] sm:$0xff]
  %v346 = vld [vmem:[%s0 + $0xa60] sm:$0xff]
  %v347 = vld [vmem:[%s0 + $0xa68] sm:$0xff]
  %v348 = vld [vmem:[%s0 + $0xa70] sm:$0xff]
  %v349 = vld [vmem:[%s0 + $0xa78] sm:$0xff]
  %v350 = vld [vmem:[%s0 + $0xa80] sm:$0xff]
  %v351 = vld [vmem:[%s0 + $0xa88] sm:$0xff]
  %v352 = vld [vmem:[%s0 + $0xa90] sm:$0xff]
  %v353 = vld [vmem:[%s0 + $0xa98] sm:$0xff]
  %v354 = vld [vmem:[%s0 + $0xaa0] sm:$0xff]
  %v355 = vld [vmem:[%s0 + $0xaa8] sm:$0xff]
  %v356 = vld [vmem:[%s0 + $0xab0] sm:$0xff]
  %v357 = vld [vmem:[%s0 + $0xab8] sm:$0xff]
  %v358 = vld [vmem:[%s0 + $0xac0] sm:$0xff]
  %v359 = vld [vmem:[%s0 + $0xac8] sm:$0xff]
  %v360 = vld [vmem:[%s0 + $0xad0] sm:$0xff]
  %v361 = vld [vmem:[%s0 + $0xad8] sm:$0xff]
  %v362 = vld [vmem:[%s0 + $0xae0] sm:$0xff]
  %v363 = vld [vmem:[%s0 + $0xae8] sm:$0xff]
  %v364 = vld [vmem:[%s0 + $0xaf0] sm:$0xff]
  %v365 = vld [vmem:[%s0 + $0xaf8] sm:$0xff]
  %v366 = vld [vmem:[%s0 + $0xb00] sm:$0xff]
  %v367 = vld [vmem:[%s0 + $0xb08] sm:$0xff]
  %v368 = vld [vmem:[%s0 + $0xb10] sm:$0xff]
  %v369 = vld [vmem:[%s0 + $0xb18] sm:$0xff]
  %v370 = vld [vmem:[%s0 + $0xb20] sm:$0xff]
  %v371 = vld [vmem:[%s0 + $0xb28] sm:$0xff]
  %v372 = vld [vmem:[%s0 + $0xb30] sm:$0xff]
  %v373 = vld [vmem:[%s0 + $0xb38] sm:$0xff]
  %v374 = vld [vmem:[%s0 + $0xb40] sm:$0xff]
  %v375 = vld [vmem:[%s0 + $0xb48] sm:$0xff]
  %v376 = vld [vmem:[%s0 + $0xb50] sm:$0xff]
  %v377 = vld [vmem:[%s0 + $0xb58] sm:$0xff]
  %v378 = vld [vmem:[%s0 + $0xb60] sm:$0xff]
  %v379 = vld [vmem:[%s0 + $0xb68] sm:$0xff]
  %v380 = vld [vmem:[%s0 + $0xb70] sm:$0xff]
  %v381 = vld [vmem:[%s0 + $0xb78] sm:$0xff]
  %v382 = vld [vmem:[%s0 + $0xb80] sm:$0xff]
  %v383 = vld [vmem:[%s0 + $0xb88] sm:$0xff]
  %v384 = vld [vmem:[%s0 + $0xb90] sm:$0xff]
  %v385 = vld [vmem:[%s0 + $0xb98] sm:$0xff]
  %v386 = vld [vmem:[%s0 + $0xba0] sm:$0xff]
  %v387 = vld [vmem:[%s0 + $0xba8] sm:$0xff]
  %v388 = vld [vmem:[%s0 + $0xbb0] sm:$0xff]
  %v389 = vld [vmem:[%s0 + $0xbb8] sm:$0xff]
  %v390 = vld [vmem:[%s0 + $0xbc0] sm:$0xff]
  %v391 = vld [vmem:[%s0 + $0xbc8] sm:$0xff]
  %v392 = vld [vmem:[%s0 + $0xbd0] sm:$0xff]
  %v393 = vld [vmem:[%s0 + $0xbd8] sm:$0xff]
  %v394 = vld [vmem:[%s0 + $0xbe0] sm:$0xff]
  %v395 = vld [vmem:[%s0 + $0xbe8] sm:$0xff]
  %v396 = vld [vmem:[%s0 + $0xbf0] sm:$0xff]
  %v397 = vld [vmem:[%s0 + $0xbf8] sm:$0xff]
  %v398 = vld [vmem:[%s0 + $0xc00] sm:$0xff]
  %v399 = vld [vmem:[%s0 + $0xc08] sm:$0xff]
  %v400 = vld [vmem:[%s0 + $0xc10] sm:$0xff]
  %v401 = vld [vmem:[%s0 + $0xc18] sm:$0xff]
  %v402 = vld [vmem:[%s0 + $0xc20] sm:$0xff]
  %v403 = vld [vmem:[%s0 + $0xc28] sm:$0xff]
  %v404 = vld [vmem:[%s0 + $0xc30] sm:$0xff]
  %v405 = vld [vmem:[%s0 + $0xc38] sm:$0xff]
  %v406 = vld [vmem:[%s0 + $0xc40] sm:$0xff]
  %v407 = vld [vmem:[%s0 + $0xc48] sm:$0xff]
  %v408 = vld [vmem:[%s0 + $0xc50] sm:$0xff]
  %v409 = vld [vmem:[%s0 + $0xc58] sm:$0xff]
  %v410 = vld [vmem:[%s0 + $0xc60] sm:$0xff]
  %v411 = vld [vmem:[%s0 + $0xc68] sm:$0xff]
  %v412 = vld [vmem:[%s0 + $0xc70] sm:$0xff]
  %v413 = vld [vmem:[%s0 + $0xc78] sm:$0xff]
  %v414 = vld [vmem:[%s0 + $0xc80] sm:$0xff]
  %v415 = vld [vmem:[%s0 + $0xc88] sm:$0xff]
  %v416 = vld [vmem:[%s0 + $0xc90] sm:$0xff]
  %v417 = vld [vmem:[%s0 + $0xc98] sm:$0xff]
  %v418 = vld [vmem:[%s0 + $0xca0] sm:$0xff]
  %v419 = vld [vmem:[%s0 + $0xca8] sm:$0xff]
  %v420 = vld [vmem:[%s0 + $0xcb0] sm:$0xff]
  %v421 = vld [vmem:[%s0 + $0xcb8] sm:$0xff]
  %v422 = vld [vmem:[%s0 + $0xcc0] sm:$0xff]
  %v423 = vld [vmem:[%s0 + $0xcc8] sm:$0xff]
  %v424 = vld [vmem:[%s0 + $0xcd0] sm:$0xff]
  %v425 = vld [vmem:[%s0 + $0xcd8] sm:$0xff]
  %v426 = vld [vmem:[%s0 + $0xce0] sm:$0xff]
  %v427 = vld [vmem:[%s0 + $0xce8] sm:$0xff]
  %v428 = vld [vmem:[%s0 + $0xcf0] sm:$0xff]
  %v429 = vld [vmem:[%s0 + $0xcf8] sm:$0xff]
  %v430 = vld [vmem:[%s0 + $0xd00] sm:$0xff]
  %v431 = vld [vmem:[%s0 + $0xd08] sm:$0xff]
  %v432 = vld [vmem:[%s0 + $0xd10] sm:$0xff]
  %v433 = vld [vmem:[%s0 + $0xd18] sm:$0xff]
  %v434 = vld [vmem:[%s0 + $0xd20] sm:$0xff]
  %v435 = vld [vmem:[%s0 + $0xd28] sm:$0xff]
  %v436 = vld [vmem:[%s0 + $0xd30] sm:$0xff]
  %v437 = vld [vmem:[%s0 + $0xd38] sm:$0xff]
  %v438 = vld [vmem:[%s0 + $0xd40] sm:$0xff]
  %v439 = vld [vmem:[%s0 + $0xd48] sm:$0xff]
  %v440 = vld [vmem:[%s0 + $0xd50] sm:$0xff]
  %v441 = vld [vmem:[%s0 + $0xd58] sm:$0xff]
  %v442 = vld [vmem:[%s0 + $0xd60] sm:$0xff]
  %v443 = vld [vmem:[%s0 + $0xd68] sm:$0xff]
  %v444 = vld [vmem:[%s0 + $0xd70] sm:$0xff]
  %v445 = vld [vmem:[%s0 + $0xd78] sm:$0xff]
  %v446 = vld [vmem:[%s0 + $0xd80] sm:$0xff]
  %v447 = vld [vmem:[%s0 + $0xd88] sm:$0xff]
  %v448 = vld [vmem:[%s0 + $0xd90] sm:$0xff]
  %v449 = vld [vmem:[%s0 + $0xd98] sm:$0xff]
  %v450 = vld [vmem:[%s0 + $0xda0] sm:$0xff]
  %v451 = vld [vmem:[%s0 + $0xda8] sm:$0xff]
  %v452 = vld [vmem:[%s0 + $0xdb0] sm:$0xff]
  %v453 = vld [vmem:[%s0 + $0xdb8] sm:$0xff]
  %v454 = vld [vmem:[%s0 + $0xdc0] sm:$0xff]
  %v455 = vld [vmem:[%s0 + $0xdc8] sm:$0xff]
  %v456 = vld [vmem:[%s0 + $0xdd0] sm:$0xff]
  %v457 = vld [vmem:[%s0 + $0xdd8] sm:$0xff]
  %v458 = vld [vmem:[%s0 + $0xde0] sm:$0xff]
  %v459 = vld [vmem:[%s0 + $0xde8] sm:$0xff]
  %v460 = vld [vmem:[%s0 + $0xdf0] sm:$0xff]
  %v461 = vld [vmem:[%s0 + $0xdf8] sm:$0xff]
  %v462 = vld [vmem:[%s0 + $0xe00] sm:$0xff]
  %v463 = vld [vmem:[%s0 + $0xe08] sm:$0xff]
  %v464 = vld [vmem:[%s0 + $0xe10] sm:$0xff]
  %v465 = vld [vmem:[%s0 + $0xe18] sm:$0xff]
  %v466 = vld [vmem:[%s0 + $0xe20] sm:$0xff]
  %v467 = vld [vmem:[%s0 + $0xe28] sm:$0xff]
  %v468 = vld [vmem:[%s0 + $0xe30] sm:$0xff]
  %v469 = vld [vmem:[%s0 + $0xe38] sm:$0xff]
  %v470 = vld [vmem:[%s0 + $0xe40] sm:$0xff]
  %v471 = vld [vmem:[%s0 + $0xe48] sm:$0xff]
  %v472 = vld [vmem:[%s0 + $0xe50] sm:$0xff]
  %v473 = vld [vmem:[%s0 + $0xe58] sm:$0xff]
  %v474 = vld [vmem:[%s0 + $0xe60] sm:$0xff]
  %v475 = vld [vmem:[%s0 + $0xe68] sm:$0xff]
  %v476 = vld [vmem:[%s0 + $0xe70] sm:$0xff]
  %v477 = vld [vmem:[%s0 + $0xe78] sm:$0xff]
  %v478 = vld [vmem:[%s0 + $0xe80] sm:$0xff]
  %v479 = vld [vmem:[%s0 + $0xe88] sm:$0xff]
  %v480 = vld [vmem:[%s0 + $0xe90] sm:$0xff]
  %v481 = vld [vmem:[%s0 + $0xe98] sm:$0xff]
  %v482 = vld [vmem:[%s0 + $0xea0] sm:$0xff]
  %v483 = vld [vmem:[%s0 + $0xea8] sm:$0xff]
  %v484 = vld [vmem:[%s0 + $0xeb0] sm:$0xff]
  %v485 = vld [vmem:[%s0 + $0xeb8] sm:$0xff]
  %v486 = vld [vmem:[%s0 + $0xec0] sm:$0xff]
  %v487 = vld [vmem:[%s0 + $0xec8] sm:$0xff]
  %v488 = vld [vmem:[%s0 + $0xed0] sm:$0xff]
  %v489 = vld [vmem:[%s0 + $0xed8] sm:$0xff]
  %v490 = vld [vmem:[%s0 + $0xee0] sm:$0xff]
  %v491 = vld [vmem:[%s0 + $0xee8] sm:$0xff]
  %v492 = vld [vmem:[%s0 + $0xef0] sm:$0xff]
  %v493 = vld [vmem:[%s0 + $0xef8] sm:$0xff]
  %v494 = vld [vmem:[%s0 + $0xf00] sm:$0xff]
  %v495 = vld [vmem:[%s0 + $0xf08] sm:$0xff]
  %v496 = vld [vmem:[%s0 + $0xf10] sm:$0xff]
  %v497 = vld [vmem:[%s0 + $0xf18] sm:$0xff]
  %v498 = vld [vmem:[%s0 + $0xf20] sm:$0xff]
  %v499 = vld [vmem:[%s0 + $0xf28] sm:$0xff]
  %v500 = vld [vmem:[%s0 + $0xf30] sm:$0xff]
  %v501 = vld [vmem:[%s0 + $0xf38] sm:$0xff]
  %v502 = vld [vmem:[%s0 + $0xf40] sm:$0xff]
  %v503 = vld [vmem:[%s0 + $0xf48] sm:$0xff]
  %v504 = vld [vmem:[%s0 + $0xf50] sm:$0xff]
  %v505 = vld [vmem:[%s0 + $0xf58] sm:$0xff]
  %v506 = vld [vmem:[%s0 + $0xf60] sm:$0xff]
  %v507 = vld [vmem:[%s0 + $0xf68] sm:$0xff]
  %v508 = vld [vmem:[%s0 + $0xf70] sm:$0xff]
  %v509 = vld [vmem:[%s0 + $0xf78] sm:$0xff]
  %v510 = vld [vmem:[%s0 + $0xf80] sm:$0xff]
  %v511 = vld [vmem:[%s0 + $0xf88] sm:$0xff]
  %v512 = vld [vmem:[%s0 + $0xf90] sm:$0xff]
  %v513 = vld [vmem:[%s0 + $0xf98] sm:$0xff]
  %v514 = vld [vmem:[%s0 + $0xfa0] sm:$0xff]
  %v515 = vld [vmem:[%s0 + $0xfa8] sm:$0xff]
  %v516 = vld [vmem:[%s0 + $0xfb0] sm:$0xff]
  %v517 = vld [vmem:[%s0 + $0xfb8] sm:$0xff]
  %v518 = vld [vmem:[%s0 + $0xfc0] sm:$0xff]
  %v519 = vld [vmem:[%s0 + $0xfc8] sm:$0xff]
  %v520 = vld [vmem:[%s0 + $0xfd0] sm:$0xff]
  %v521 = vld [vmem:[%s0 + $0xfd8] sm:$0xff]
  %v522 = vld [vmem:[%s0 + $0xfe0] sm:$0xff]
  %v523 = vld [vmem:[%s0 + $0xfe8] sm:$0xff]
  %v524 = vld [vmem:[%s0 + $0xff0] sm:$0xff]
  %v525 = vld [vmem:[%s0 + $0xff8] sm:$0xff]
  %v526 = vld [vmem:[%s1] sm:$0xf]
  %v527 = vld [vmem:[%s1 + $0x4] sm:$0xf]
  %v528 = vld [vmem:[%s1 + $0x8] sm:$0xf]
  %v529 = vld [vmem:[%s1 + $0xc] sm:$0xf]
  %v530 = vld [vmem:[%s1 + $0x10] sm:$0xf]
  %v531 = vld [vmem:[%s1 + $0x14] sm:$0xf]
  %v532 = vld [vmem:[%s1 + $0x18] sm:$0xf]
  %v533 = vld [vmem:[%s1 + $0x1c] sm:$0xf]
  %v534 = vld [vmem:[%s1 + $0x20] sm:$0xf]
  %v535 = vld [vmem:[%s1 + $0x24] sm:$0xf]
  %v536 = vld [vmem:[%s1 + $0x28] sm:$0xf]
  %v537 = vld [vmem:[%s1 + $0x2c] sm:$0xf]
  %v538 = vld [vmem:[%s1 + $0x30] sm:$0xf]
  %v539 = vld [vmem:[%s1 + $0x34] sm:$0xf]
  %v540 = vld [vmem:[%s1 + $0x38] sm:$0xf]
  %v541 = vld [vmem:[%s1 + $0x3c] sm:$0xf]
  %v542 = vld [vmem:[%s1 + $0x40] sm:$0xf]
  %v543 = vld [vmem:[%s1 + $0x44] sm:$0xf]
  %v544 = vld [vmem:[%s1 + $0x48] sm:$0xf]
  %v545 = vld [vmem:[%s1 + $0x4c] sm:$0xf]
  %v546 = vld [vmem:[%s1 + $0x50] sm:$0xf]
  %v547 = vld [vmem:[%s1 + $0x54] sm:$0xf]
  %v548 = vld [vmem:[%s1 + $0x58] sm:$0xf]
  %v549 = vld [vmem:[%s1 + $0x5c] sm:$0xf]
  %v550 = vld [vmem:[%s1 + $0x60] sm:$0xf]
  %v551 = vld [vmem:[%s1 + $0x64] sm:$0xf]
  %v552 = vld [vmem:[%s1 + $0x68] sm:$0xf]
  %v553 = vld [vmem:[%s1 + $0x6c] sm:$0xf]
  %v554 = vld [vmem:[%s1 + $0x70] sm:$0xf]
  %v555 = vld [vmem:[%s1 + $0x74] sm:$0xf]
  %v556 = vld [vmem:[%s1 + $0x78] sm:$0xf]
  %v557 = vld [vmem:[%s1 + $0x7c] sm:$0xf]
  %v558 = vld [vmem:[%s1 + $0x80] sm:$0xf]
  %v559 = vld [vmem:[%s1 + $0x84] sm:$0xf]
  %v560 = vld [vmem:[%s1 + $0x88] sm:$0xf]
  %v561 = vld [vmem:[%s1 + $0x8c] sm:$0xf]
  %v562 = vld [vmem:[%s1 + $0x90] sm:$0xf]
  %v563 = vld [vmem:[%s1 + $0x94] sm:$0xf]
  %v564 = vld [vmem:[%s1 + $0x98] sm:$0xf]
  %v565 = vld [vmem:[%s1 + $0x9c] sm:$0xf]
  %v566 = vld [vmem:[%s1 + $0xa0] sm:$0xf]
  %v567 = vld [vmem:[%s1 + $0xa4] sm:$0xf]
  %v568 = vld [vmem:[%s1 + $0xa8] sm:$0xf]
  %v569 = vld [vmem:[%s1 + $0xac] sm:$0xf]
  %v570 = vld [vmem:[%s1 + $0xb0] sm:$0xf]
  %v571 = vld [vmem:[%s1 + $0xb4] sm:$0xf]
  %v572 = vld [vmem:[%s1 + $0xb8] sm:$0xf]
  %v573 = vld [vmem:[%s1 + $0xbc] sm:$0xf]
  %v574 = vld [vmem:[%s1 + $0xc0] sm:$0xf]
  %v575 = vld [vmem:[%s1 + $0xc4] sm:$0xf]
  %v576 = vld [vmem:[%s1 + $0xc8] sm:$0xf]
  %v577 = vld [vmem:[%s1 + $0xcc] sm:$0xf]
  %v578 = vld [vmem:[%s1 + $0xd0] sm:$0xf]
  %v579 = vld [vmem:[%s1 + $0xd4] sm:$0xf]
  %v580 = vld [vmem:[%s1 + $0xd8] sm:$0xf]
  %v581 = vld [vmem:[%s1 + $0xdc] sm:$0xf]
  %v582 = vld [vmem:[%s1 + $0xe0] sm:$0xf]
  %v583 = vld [vmem:[%s1 + $0xe4] sm:$0xf]
  %v584 = vld [vmem:[%s1 + $0xe8] sm:$0xf]
  %v585 = vld [vmem:[%s1 + $0xec] sm:$0xf]
  %v586 = vld [vmem:[%s1 + $0xf0] sm:$0xf]
  %v587 = vld [vmem:[%s1 + $0xf4] sm:$0xf]
  %v588 = vld [vmem:[%s1 + $0xf8] sm:$0xf]
  %v589 = vld [vmem:[%s1 + $0xfc] sm:$0xf]
  %v590 = vld [vmem:[%s1 + $0x100] sm:$0xf]
  %v591 = vld [vmem:[%s1 + $0x104] sm:$0xf]
  %v592 = vld [vmem:[%s1 + $0x108] sm:$0xf]
  %v593 = vld [vmem:[%s1 + $0x10c] sm:$0xf]
  %v594 = vld [vmem:[%s1 + $0x110] sm:$0xf]
  %v595 = vld [vmem:[%s1 + $0x114] sm:$0xf]
  %v596 = vld [vmem:[%s1 + $0x118] sm:$0xf]
  %v597 = vld [vmem:[%s1 + $0x11c] sm:$0xf]
  %v598 = vld [vmem:[%s1 + $0x120] sm:$0xf]
  %v599 = vld [vmem:[%s1 + $0x124] sm:$0xf]
  %v600 = vld [vmem:[%s1 + $0x128] sm:$0xf]
  %v601 = vld [vmem:[%s1 + $0x12c] sm:$0xf]
  %v602 = vld [vmem:[%s1 + $0x130] sm:$0xf]
  %v603 = vld [vmem:[%s1 + $0x134] sm:$0xf]
  %v604 = vld [vmem:[%s1 + $0x138] sm:$0xf]
  %v605 = vld [vmem:[%s1 + $0x13c] sm:$0xf]
  %v606 = vld [vmem:[%s1 + $0x140] sm:$0xf]
  %v607 = vld [vmem:[%s1 + $0x144] sm:$0xf]
  %v608 = vld [vmem:[%s1 + $0x148] sm:$0xf]
  %v609 = vld [vmem:[%s1 + $0x14c] sm:$0xf]
  %v610 = vld [vmem:[%s1 + $0x150] sm:$0xf]
  %v611 = vld [vmem:[%s1 + $0x154] sm:$0xf]
  %v612 = vld [vmem:[%s1 + $0x158] sm:$0xf]
  %v613 = vld [vmem:[%s1 + $0x15c] sm:$0xf]
  %v614 = vld [vmem:[%s1 + $0x160] sm:$0xf]
  %v615 = vld [vmem:[%s1 + $0x164] sm:$0xf]
  %v616 = vld [vmem:[%s1 + $0x168] sm:$0xf]
  %v617 = vld [vmem:[%s1 + $0x16c] sm:$0xf]
  %v618 = vld [vmem:[%s1 + $0x170] sm:$0xf]
  %v619 = vld [vmem:[%s1 + $0x174] sm:$0xf]
  %v620 = vld [vmem:[%s1 + $0x178] sm:$0xf]
  %v621 = vld [vmem:[%s1 + $0x17c] sm:$0xf]
  %v622 = vld [vmem:[%s1 + $0x180] sm:$0xf]
  %v623 = vld [vmem:[%s1 + $0x184] sm:$0xf]
  %v624 = vld [vmem:[%s1 + $0x188] sm:$0xf]
  %v625 = vld [vmem:[%s1 + $0x18c] sm:$0xf]
  %v626 = vld [vmem:[%s1 + $0x190] sm:$0xf]
  %v627 = vld [vmem:[%s1 + $0x194] sm:$0xf]
  %v628 = vld [vmem:[%s1 + $0x198] sm:$0xf]
  %v629 = vld [vmem:[%s1 + $0x19c] sm:$0xf]
  %v630 = vld [vmem:[%s1 + $0x1a0] sm:$0xf]
  %v631 = vld [vmem:[%s1 + $0x1a4] sm:$0xf]
  %v632 = vld [vmem:[%s1 + $0x1a8] sm:$0xf]
  %v633 = vld [vmem:[%s1 + $0x1ac] sm:$0xf]
  %v634 = vld [vmem:[%s1 + $0x1b0] sm:$0xf]
  %v635 = vld [vmem:[%s1 + $0x1b4] sm:$0xf]
  %v636 = vld [vmem:[%s1 + $0x1b8] sm:$0xf]
  %v637 = vld [vmem:[%s1 + $0x1bc] sm:$0xf]
  %v638 = vld [vmem:[%s1 + $0x1c0] sm:$0xf]
  %v639 = vld [vmem:[%s1 + $0x1c4] sm:$0xf]
  %v640 = vld [vmem:[%s1 + $0x1c8] sm:$0xf]
  %v641 = vld [vmem:[%s1 + $0x1cc] sm:$0xf]
  %v642 = vld [vmem:[%s1 + $0x1d0] sm:$0xf]
  %v643 = vld [vmem:[%s1 + $0x1d4] sm:$0xf]
  %v644 = vld [vmem:[%s1 + $0x1d8] sm:$0xf]
  %v645 = vld [vmem:[%s1 + $0x1dc] sm:$0xf]
  %v646 = vld [vmem:[%s1 + $0x1e0] sm:$0xf]
  %v647 = vld [vmem:[%s1 + $0x1e4] sm:$0xf]
  %v648 = vld [vmem:[%s1 + $0x1e8] sm:$0xf]
  %v649 = vld [vmem:[%s1 + $0x1ec] sm:$0xf]
  %v650 = vld [vmem:[%s1 + $0x1f0] sm:$0xf]
  %v651 = vld [vmem:[%s1 + $0x1f4] sm:$0xf]
  %v652 = vld [vmem:[%s1 + $0x1f8] sm:$0xf]
  %v653 = vld [vmem:[%s1 + $0x1fc] sm:$0xf]
  %v654 = vld [vmem:[%s1 + $0x200] sm:$0xf]
  %v655 = vld [vmem:[%s1 + $0x204] sm:$0xf]
  %v656 = vld [vmem:[%s1 + $0x208] sm:$0xf]
  %v657 = vld [vmem:[%s1 + $0x20c] sm:$0xf]
  %v658 = vld [vmem:[%s1 + $0x210] sm:$0xf]
  %v659 = vld [vmem:[%s1 + $0x214] sm:$0xf]
  %v660 = vld [vmem:[%s1 + $0x218] sm:$0xf]
  %v661 = vld [vmem:[%s1 + $0x21c] sm:$0xf]
  %v662 = vld [vmem:[%s1 + $0x220] sm:$0xf]
  %v663 = vld [vmem:[%s1 + $0x224] sm:$0xf]
  %v664 = vld [vmem:[%s1 + $0x228] sm:$0xf]
  %v665 = vld [vmem:[%s1 + $0x22c] sm:$0xf]
  %v666 = vld [vmem:[%s1 + $0x230] sm:$0xf]
  %v667 = vld [vmem:[%s1 + $0x234] sm:$0xf]
  %v668 = vld [vmem:[%s1 + $0x238] sm:$0xf]
  %v669 = vld [vmem:[%s1 + $0x23c] sm:$0xf]
  %v670 = vld [vmem:[%s1 + $0x240] sm:$0xf]
  %v671 = vld [vmem:[%s1 + $0x244] sm:$0xf]
  %v672 = vld [vmem:[%s1 + $0x248] sm:$0xf]
  %v673 = vld [vmem:[%s1 + $0x24c] sm:$0xf]
  %v674 = vld [vmem:[%s1 + $0x250] sm:$0xf]
  %v675 = vld [vmem:[%s1 + $0x254] sm:$0xf]
  %v676 = vld [vmem:[%s1 + $0x258] sm:$0xf]
  %v677 = vld [vmem:[%s1 + $0x25c] sm:$0xf]
  %v678 = vld [vmem:[%s1 + $0x260] sm:$0xf]
  %v679 = vld [vmem:[%s1 + $0x264] sm:$0xf]
  %v680 = vld [vmem:[%s1 + $0x268] sm:$0xf]
  %v681 = vld [vmem:[%s1 + $0x26c] sm:$0xf]
  %v682 = vld [vmem:[%s1 + $0x270] sm:$0xf]
  %v683 = vld [vmem:[%s1 + $0x274] sm:$0xf]
  %v684 = vld [vmem:[%s1 + $0x278] sm:$0xf]
  %v685 = vld [vmem:[%s1 + $0x27c] sm:$0xf]
  %v686 = vld [vmem:[%s1 + $0x280] sm:$0xf]
  %v687 = vld [vmem:[%s1 + $0x284] sm:$0xf]
  %v688 = vld [vmem:[%s1 + $0x288] sm:$0xf]
  %v689 = vld [vmem:[%s1 + $0x28c] sm:$0xf]
  %v690 = vld [vmem:[%s1 + $0x290] sm:$0xf]
  %v691 = vld [vmem:[%s1 + $0x294] sm:$0xf]
  %v692 = vld [vmem:[%s1 + $0x298] sm:$0xf]
  %v693 = vld [vmem:[%s1 + $0x29c] sm:$0xf]
  %v694 = vld [vmem:[%s1 + $0x2a0] sm:$0xf]
  %v695 = vld [vmem:[%s1 + $0x2a4] sm:$0xf]
  %v696 = vld [vmem:[%s1 + $0x2a8] sm:$0xf]
  %v697 = vld [vmem:[%s1 + $0x2ac] sm:$0xf]
  %v698 = vld [vmem:[%s1 + $0x2b0] sm:$0xf]
  %v699 = vld [vmem:[%s1 + $0x2b4] sm:$0xf]
  %v700 = vld [vmem:[%s1 + $0x2b8] sm:$0xf]
  %v701 = vld [vmem:[%s1 + $0x2bc] sm:$0xf]
  %v702 = vld [vmem:[%s1 + $0x2c0] sm:$0xf]
  %v703 = vld [vmem:[%s1 + $0x2c4] sm:$0xf]
  %v704 = vld [vmem:[%s1 + $0x2c8] sm:$0xf]
  %v705 = vld [vmem:[%s1 + $0x2cc] sm:$0xf]
  %v706 = vld [vmem:[%s1 + $0x2d0] sm:$0xf]
  %v707 = vld [vmem:[%s1 + $0x2d4] sm:$0xf]
  %v708 = vld [vmem:[%s1 + $0x2d8] sm:$0xf]
  %v709 = vld [vmem:[%s1 + $0x2dc] sm:$0xf]
  %v710 = vld [vmem:[%s1 + $0x2e0] sm:$0xf]
  %v711 = vld [vmem:[%s1 + $0x2e4] sm:$0xf]
  %v712 = vld [vmem:[%s1 + $0x2e8] sm:$0xf]
  %v713 = vld [vmem:[%s1 + $0x2ec] sm:$0xf]
  %v714 = vld [vmem:[%s1 + $0x2f0] sm:$0xf]
  %v715 = vld [vmem:[%s1 + $0x2f4] sm:$0xf]
  %v716 = vld [vmem:[%s1 + $0x2f8] sm:$0xf]
  %v717 = vld [vmem:[%s1 + $0x2fc] sm:$0xf]
  %v718 = vld [vmem:[%s1 + $0x300] sm:$0xf]
  %v719 = vld [vmem:[%s1 + $0x304] sm:$0xf]
  %v720 = vld [vmem:[%s1 + $0x308] sm:$0xf]
  %v721 = vld [vmem:[%s1 + $0x30c] sm:$0xf]
  %v722 = vld [vmem:[%s1 + $0x310] sm:$0xf]
  %v723 = vld [vmem:[%s1 + $0x314] sm:$0xf]
  %v724 = vld [vmem:[%s1 + $0x318] sm:$0xf]
  %v725 = vld [vmem:[%s1 + $0x31c] sm:$0xf]
  %v726 = vld [vmem:[%s1 + $0x320] sm:$0xf]
  %v727 = vld [vmem:[%s1 + $0x324] sm:$0xf]
  %v728 = vld [vmem:[%s1 + $0x328] sm:$0xf]
  %v729 = vld [vmem:[%s1 + $0x32c] sm:$0xf]
  %v730 = vld [vmem:[%s1 + $0x330] sm:$0xf]
  %v731 = vld [vmem:[%s1 + $0x334] sm:$0xf]
  %v732 = vld [vmem:[%s1 + $0x338] sm:$0xf]
  %v733 = vld [vmem:[%s1 + $0x33c] sm:$0xf]
  %v734 = vld [vmem:[%s1 + $0x340] sm:$0xf]
  %v735 = vld [vmem:[%s1 + $0x344] sm:$0xf]
  %v736 = vld [vmem:[%s1 + $0x348] sm:$0xf]
  %v737 = vld [vmem:[%s1 + $0x34c] sm:$0xf]
  %v738 = vld [vmem:[%s1 + $0x350] sm:$0xf]
  %v739 = vld [vmem:[%s1 + $0x354] sm:$0xf]
  %v740 = vld [vmem:[%s1 + $0x358] sm:$0xf]
  %v741 = vld [vmem:[%s1 + $0x35c] sm:$0xf]
  %v742 = vld [vmem:[%s1 + $0x360] sm:$0xf]
  %v743 = vld [vmem:[%s1 + $0x364] sm:$0xf]
  %v744 = vld [vmem:[%s1 + $0x368] sm:$0xf]
  %v745 = vld [vmem:[%s1 + $0x36c] sm:$0xf]
  %v746 = vld [vmem:[%s1 + $0x370] sm:$0xf]
  %v747 = vld [vmem:[%s1 + $0x374] sm:$0xf]
  %v748 = vld [vmem:[%s1 + $0x378] sm:$0xf]
  %v749 = vld [vmem:[%s1 + $0x37c] sm:$0xf]
  %v750 = vld [vmem:[%s1 + $0x380] sm:$0xf]
  %v751 = vld [vmem:[%s1 + $0x384] sm:$0xf]
  %v752 = vld [vmem:[%s1 + $0x388] sm:$0xf]
  %v753 = vld [vmem:[%s1 + $0x38c] sm:$0xf]
  %v754 = vld [vmem:[%s1 + $0x390] sm:$0xf]
  %v755 = vld [vmem:[%s1 + $0x394] sm:$0xf]
  %v756 = vld [vmem:[%s1 + $0x398] sm:$0xf]
  %v757 = vld [vmem:[%s1 + $0x39c] sm:$0xf]
  %v758 = vld [vmem:[%s1 + $0x3a0] sm:$0xf]
  %v759 = vld [vmem:[%s1 + $0x3a4] sm:$0xf]
  %v760 = vld [vmem:[%s1 + $0x3a8] sm:$0xf]
  %v761 = vld [vmem:[%s1 + $0x3ac] sm:$0xf]
  %v762 = vld [vmem:[%s1 + $0x3b0] sm:$0xf]
  %v763 = vld [vmem:[%s1 + $0x3b4] sm:$0xf]
  %v764 = vld [vmem:[%s1 + $0x3b8] sm:$0xf]
  %v765 = vld [vmem:[%s1 + $0x3bc] sm:$0xf]
  %v766 = vld [vmem:[%s1 + $0x3c0] sm:$0xf]
  %v767 = vld [vmem:[%s1 + $0x3c4] sm:$0xf]
  %v768 = vld [vmem:[%s1 + $0x3c8] sm:$0xf]
  %v769 = vld [vmem:[%s1 + $0x3cc] sm:$0xf]
  %v770 = vld [vmem:[%s1 + $0x3d0] sm:$0xf]
  %v771 = vld [vmem:[%s1 + $0x3d4] sm:$0xf]
  %v772 = vld [vmem:[%s1 + $0x3d8] sm:$0xf]
  %v773 = vld [vmem:[%s1 + $0x3dc] sm:$0xf]
  %v774 = vld [vmem:[%s1 + $0x3e0] sm:$0xf]
  %v775 = vld [vmem:[%s1 + $0x3e4] sm:$0xf]
  %v776 = vld [vmem:[%s1 + $0x3e8] sm:$0xf]
  %v777 = vld [vmem:[%s1 + $0x3ec] sm:$0xf]
  %v778 = vld [vmem:[%s1 + $0x3f0] sm:$0xf]
  %v779 = vld [vmem:[%s1 + $0x3f4] sm:$0xf]
  %v780 = vld [vmem:[%s1 + $0x3f8] sm:$0xf]
  %v781 = vld [vmem:[%s1 + $0x3fc] sm:$0xf]
  %v1294 = vunpack.c.l.b16 %v14
  %v1295 = vunpack.c.h.b16 %v14
  %v1296 = vunpack.c.l.b16 %v15
  %v1297 = vunpack.c.h.b16 %v15
  %v1298 = vunpack.c.l.b16 %v16
  %v1299 = vunpack.c.h.b16 %v16
  %v1300 = vunpack.c.l.b16 %v17
  %v1301 = vunpack.c.h.b16 %v17
  %v1302 = vunpack.c.l.b16 %v18
  %v1303 = vunpack.c.h.b16 %v18
  %v1304 = vunpack.c.l.b16 %v19
  %v1305 = vunpack.c.h.b16 %v19
  %v1306 = vunpack.c.l.b16 %v20
  %v1307 = vunpack.c.h.b16 %v20
  %v1308 = vunpack.c.l.b16 %v21
  %v1309 = vunpack.c.h.b16 %v21
  %v1310 = vunpack.c.l.b16 %v22
  %v1311 = vunpack.c.h.b16 %v22
  %v1312 = vunpack.c.l.b16 %v23
  %v1313 = vunpack.c.h.b16 %v23
  %v1314 = vunpack.c.l.b16 %v24
  %v1315 = vunpack.c.h.b16 %v24
  %v1316 = vunpack.c.l.b16 %v25
  %v1317 = vunpack.c.h.b16 %v25
  %v1318 = vunpack.c.l.b16 %v26
  %v1319 = vunpack.c.h.b16 %v26
  %v1320 = vunpack.c.l.b16 %v27
  %v1321 = vunpack.c.h.b16 %v27
  %v1322 = vunpack.c.l.b16 %v28
  %v1323 = vunpack.c.h.b16 %v28
  %v1324 = vunpack.c.l.b16 %v29
  %v1325 = vunpack.c.h.b16 %v29
  %v1326 = vunpack.c.l.b16 %v30
  %v1327 = vunpack.c.h.b16 %v30
  %v1328 = vunpack.c.l.b16 %v31
  %v1329 = vunpack.c.h.b16 %v31
  %v1330 = vunpack.c.l.b16 %v32
  %v1331 = vunpack.c.h.b16 %v32
  %v1332 = vunpack.c.l.b16 %v33
  %v1333 = vunpack.c.h.b16 %v33
  %v1334 = vunpack.c.l.b16 %v34
  %v1335 = vunpack.c.h.b16 %v34
  %v1336 = vunpack.c.l.b16 %v35
  %v1337 = vunpack.c.h.b16 %v35
  %v1338 = vunpack.c.l.b16 %v36
  %v1339 = vunpack.c.h.b16 %v36
  %v1340 = vunpack.c.l.b16 %v37
  %v1341 = vunpack.c.h.b16 %v37
  %v1342 = vunpack.c.l.b16 %v38
  %v1343 = vunpack.c.h.b16 %v38
  %v1344 = vunpack.c.l.b16 %v39
  %v1345 = vunpack.c.h.b16 %v39
  %v1346 = vunpack.c.l.b16 %v40
  %v1347 = vunpack.c.h.b16 %v40
  %v1348 = vunpack.c.l.b16 %v41
  %v1349 = vunpack.c.h.b16 %v41
  %v1350 = vunpack.c.l.b16 %v42
  %v1351 = vunpack.c.h.b16 %v42
  %v1352 = vunpack.c.l.b16 %v43
  %v1353 = vunpack.c.h.b16 %v43
  %v1354 = vunpack.c.l.b16 %v44
  %v1355 = vunpack.c.h.b16 %v44
  %v1356 = vunpack.c.l.b16 %v45
  %v1357 = vunpack.c.h.b16 %v45
  %v1358 = vunpack.c.l.b16 %v46
  %v1359 = vunpack.c.h.b16 %v46
  %v1360 = vunpack.c.l.b16 %v47
  %v1361 = vunpack.c.h.b16 %v47
  %v1362 = vunpack.c.l.b16 %v48
  %v1363 = vunpack.c.h.b16 %v48
  %v1364 = vunpack.c.l.b16 %v49
  %v1365 = vunpack.c.h.b16 %v49
  %v1366 = vunpack.c.l.b16 %v50
  %v1367 = vunpack.c.h.b16 %v50
  %v1368 = vunpack.c.l.b16 %v51
  %v1369 = vunpack.c.h.b16 %v51
  %v1370 = vunpack.c.l.b16 %v52
  %v1371 = vunpack.c.h.b16 %v52
  %v1372 = vunpack.c.l.b16 %v53
  %v1373 = vunpack.c.h.b16 %v53
  %v1374 = vunpack.c.l.b16 %v54
  %v1375 = vunpack.c.h.b16 %v54
  %v1376 = vunpack.c.l.b16 %v55
  %v1377 = vunpack.c.h.b16 %v55
  %v1378 = vunpack.c.l.b16 %v56
  %v1379 = vunpack.c.h.b16 %v56
  %v1380 = vunpack.c.l.b16 %v57
  %v1381 = vunpack.c.h.b16 %v57
  %v1382 = vunpack.c.l.b16 %v58
  %v1383 = vunpack.c.h.b16 %v58
  %v1384 = vunpack.c.l.b16 %v59
  %v1385 = vunpack.c.h.b16 %v59
  %v1386 = vunpack.c.l.b16 %v60
  %v1387 = vunpack.c.h.b16 %v60
  %v1388 = vunpack.c.l.b16 %v61
  %v1389 = vunpack.c.h.b16 %v61
  %v1390 = vunpack.c.l.b16 %v62
  %v1391 = vunpack.c.h.b16 %v62
  %v1392 = vunpack.c.l.b16 %v63
  %v1393 = vunpack.c.h.b16 %v63
  %v1394 = vunpack.c.l.b16 %v64
  %v1395 = vunpack.c.h.b16 %v64
  %v1396 = vunpack.c.l.b16 %v65
  %v1397 = vunpack.c.h.b16 %v65
  %v1398 = vunpack.c.l.b16 %v66
  %v1399 = vunpack.c.h.b16 %v66
  %v1400 = vunpack.c.l.b16 %v67
  %v1401 = vunpack.c.h.b16 %v67
  %v1402 = vunpack.c.l.b16 %v68
  %v1403 = vunpack.c.h.b16 %v68
  %v1404 = vunpack.c.l.b16 %v69
  %v1405 = vunpack.c.h.b16 %v69
  %v1406 = vunpack.c.l.b16 %v70
  %v1407 = vunpack.c.h.b16 %v70
  %v1408 = vunpack.c.l.b16 %v71
  %v1409 = vunpack.c.h.b16 %v71
  %v1410 = vunpack.c.l.b16 %v72
  %v1411 = vunpack.c.h.b16 %v72
  %v1412 = vunpack.c.l.b16 %v73
  %v1413 = vunpack.c.h.b16 %v73
  %v1414 = vunpack.c.l.b16 %v74
  %v1415 = vunpack.c.h.b16 %v74
  %v1416 = vunpack.c.l.b16 %v75
  %v1417 = vunpack.c.h.b16 %v75
  %v1418 = vunpack.c.l.b16 %v76
  %v1419 = vunpack.c.h.b16 %v76
  %v1420 = vunpack.c.l.b16 %v77
  %v1421 = vunpack.c.h.b16 %v77
  %v1422 = vunpack.c.l.b16 %v78
  %v1423 = vunpack.c.h.b16 %v78
  %v1424 = vunpack.c.l.b16 %v79
  %v1425 = vunpack.c.h.b16 %v79
  %v1426 = vunpack.c.l.b16 %v80
  %v1427 = vunpack.c.h.b16 %v80
  %v1428 = vunpack.c.l.b16 %v81
  %v1429 = vunpack.c.h.b16 %v81
  %v1430 = vunpack.c.l.b16 %v82
  %v1431 = vunpack.c.h.b16 %v82
  %v1432 = vunpack.c.l.b16 %v83
  %v1433 = vunpack.c.h.b16 %v83
  %v1434 = vunpack.c.l.b16 %v84
  %v1435 = vunpack.c.h.b16 %v84
  %v1436 = vunpack.c.l.b16 %v85
  %v1437 = vunpack.c.h.b16 %v85
  %v1438 = vunpack.c.l.b16 %v86
  %v1439 = vunpack.c.h.b16 %v86
  %v1440 = vunpack.c.l.b16 %v87
  %v1441 = vunpack.c.h.b16 %v87
  %v1442 = vunpack.c.l.b16 %v88
  %v1443 = vunpack.c.h.b16 %v88
  %v1444 = vunpack.c.l.b16 %v89
  %v1445 = vunpack.c.h.b16 %v89
  %v1446 = vunpack.c.l.b16 %v90
  %v1447 = vunpack.c.h.b16 %v90
  %v1448 = vunpack.c.l.b16 %v91
  %v1449 = vunpack.c.h.b16 %v91
  %v1450 = vunpack.c.l.b16 %v92
  %v1451 = vunpack.c.h.b16 %v92
  %v1452 = vunpack.c.l.b16 %v93
  %v1453 = vunpack.c.h.b16 %v93
  %v1454 = vunpack.c.l.b16 %v94
  %v1455 = vunpack.c.h.b16 %v94
  %v1456 = vunpack.c.l.b16 %v95
  %v1457 = vunpack.c.h.b16 %v95
  %v1458 = vunpack.c.l.b16 %v96
  %v1459 = vunpack.c.h.b16 %v96
  %v1460 = vunpack.c.l.b16 %v97
  %v1461 = vunpack.c.h.b16 %v97
  %v1462 = vunpack.c.l.b16 %v98
  %v1463 = vunpack.c.h.b16 %v98
  %v1464 = vunpack.c.l.b16 %v99
  %v1465 = vunpack.c.h.b16 %v99
  %v1466 = vunpack.c.l.b16 %v100
  %v1467 = vunpack.c.h.b16 %v100
  %v1468 = vunpack.c.l.b16 %v101
  %v1469 = vunpack.c.h.b16 %v101
  %v1470 = vunpack.c.l.b16 %v102
  %v1471 = vunpack.c.h.b16 %v102
  %v1472 = vunpack.c.l.b16 %v103
  %v1473 = vunpack.c.h.b16 %v103
  %v1474 = vunpack.c.l.b16 %v104
  %v1475 = vunpack.c.h.b16 %v104
  %v1476 = vunpack.c.l.b16 %v105
  %v1477 = vunpack.c.h.b16 %v105
  %v1478 = vunpack.c.l.b16 %v106
  %v1479 = vunpack.c.h.b16 %v106
  %v1480 = vunpack.c.l.b16 %v107
  %v1481 = vunpack.c.h.b16 %v107
  %v1482 = vunpack.c.l.b16 %v108
  %v1483 = vunpack.c.h.b16 %v108
  %v1484 = vunpack.c.l.b16 %v109
  %v1485 = vunpack.c.h.b16 %v109
  %v1486 = vunpack.c.l.b16 %v110
  %v1487 = vunpack.c.h.b16 %v110
  %v1488 = vunpack.c.l.b16 %v111
  %v1489 = vunpack.c.h.b16 %v111
  %v1490 = vunpack.c.l.b16 %v112
  %v1491 = vunpack.c.h.b16 %v112
  %v1492 = vunpack.c.l.b16 %v113
  %v1493 = vunpack.c.h.b16 %v113
  %v1494 = vunpack.c.l.b16 %v114
  %v1495 = vunpack.c.h.b16 %v114
  %v1496 = vunpack.c.l.b16 %v115
  %v1497 = vunpack.c.h.b16 %v115
  %v1498 = vunpack.c.l.b16 %v116
  %v1499 = vunpack.c.h.b16 %v116
  %v1500 = vunpack.c.l.b16 %v117
  %v1501 = vunpack.c.h.b16 %v117
  %v1502 = vunpack.c.l.b16 %v118
  %v1503 = vunpack.c.h.b16 %v118
  %v1504 = vunpack.c.l.b16 %v119
  %v1505 = vunpack.c.h.b16 %v119
  %v1506 = vunpack.c.l.b16 %v120
  %v1507 = vunpack.c.h.b16 %v120
  %v1508 = vunpack.c.l.b16 %v121
  %v1509 = vunpack.c.h.b16 %v121
  %v1510 = vunpack.c.l.b16 %v122
  %v1511 = vunpack.c.h.b16 %v122
  %v1512 = vunpack.c.l.b16 %v123
  %v1513 = vunpack.c.h.b16 %v123
  %v1514 = vunpack.c.l.b16 %v124
  %v1515 = vunpack.c.h.b16 %v124
  %v1516 = vunpack.c.l.b16 %v125
  %v1517 = vunpack.c.h.b16 %v125
  %v1518 = vunpack.c.l.b16 %v126
  %v1519 = vunpack.c.h.b16 %v126
  %v1520 = vunpack.c.l.b16 %v127
  %v1521 = vunpack.c.h.b16 %v127
  %v1522 = vunpack.c.l.b16 %v128
  %v1523 = vunpack.c.h.b16 %v128
  %v1524 = vunpack.c.l.b16 %v129
  %v1525 = vunpack.c.h.b16 %v129
  %v1526 = vunpack.c.l.b16 %v130
  %v1527 = vunpack.c.h.b16 %v130
  %v1528 = vunpack.c.l.b16 %v131
  %v1529 = vunpack.c.h.b16 %v131
  %v1530 = vunpack.c.l.b16 %v132
  %v1531 = vunpack.c.h.b16 %v132
  %v1532 = vunpack.c.l.b16 %v133
  %v1533 = vunpack.c.h.b16 %v133
  %v1534 = vunpack.c.l.b16 %v134
  %v1535 = vunpack.c.h.b16 %v134
  %v1536 = vunpack.c.l.b16 %v135
  %v1537 = vunpack.c.h.b16 %v135
  %v1538 = vunpack.c.l.b16 %v136
  %v1539 = vunpack.c.h.b16 %v136
  %v1540 = vunpack.c.l.b16 %v137
  %v1541 = vunpack.c.h.b16 %v137
  %v1542 = vunpack.c.l.b16 %v138
  %v1543 = vunpack.c.h.b16 %v138
  %v1544 = vunpack.c.l.b16 %v139
  %v1545 = vunpack.c.h.b16 %v139
  %v1546 = vunpack.c.l.b16 %v140
  %v1547 = vunpack.c.h.b16 %v140
  %v1548 = vunpack.c.l.b16 %v141
  %v1549 = vunpack.c.h.b16 %v141
  %v1550 = vunpack.c.l.b16 %v142
  %v1551 = vunpack.c.h.b16 %v142
  %v1552 = vunpack.c.l.b16 %v143
  %v1553 = vunpack.c.h.b16 %v143
  %v1554 = vunpack.c.l.b16 %v144
  %v1555 = vunpack.c.h.b16 %v144
  %v1556 = vunpack.c.l.b16 %v145
  %v1557 = vunpack.c.h.b16 %v145
  %v1558 = vunpack.c.l.b16 %v146
  %v1559 = vunpack.c.h.b16 %v146
  %v1560 = vunpack.c.l.b16 %v147
  %v1561 = vunpack.c.h.b16 %v147
  %v1562 = vunpack.c.l.b16 %v148
  %v1563 = vunpack.c.h.b16 %v148
  %v1564 = vunpack.c.l.b16 %v149
  %v1565 = vunpack.c.h.b16 %v149
  %v1566 = vunpack.c.l.b16 %v150
  %v1567 = vunpack.c.h.b16 %v150
  %v1568 = vunpack.c.l.b16 %v151
  %v1569 = vunpack.c.h.b16 %v151
  %v1570 = vunpack.c.l.b16 %v152
  %v1571 = vunpack.c.h.b16 %v152
  %v1572 = vunpack.c.l.b16 %v153
  %v1573 = vunpack.c.h.b16 %v153
  %v1574 = vunpack.c.l.b16 %v154
  %v1575 = vunpack.c.h.b16 %v154
  %v1576 = vunpack.c.l.b16 %v155
  %v1577 = vunpack.c.h.b16 %v155
  %v1578 = vunpack.c.l.b16 %v156
  %v1579 = vunpack.c.h.b16 %v156
  %v1580 = vunpack.c.l.b16 %v157
  %v1581 = vunpack.c.h.b16 %v157
  %v1582 = vunpack.c.l.b16 %v158
  %v1583 = vunpack.c.h.b16 %v158
  %v1584 = vunpack.c.l.b16 %v159
  %v1585 = vunpack.c.h.b16 %v159
  %v1586 = vunpack.c.l.b16 %v160
  %v1587 = vunpack.c.h.b16 %v160
  %v1588 = vunpack.c.l.b16 %v161
  %v1589 = vunpack.c.h.b16 %v161
  %v1590 = vunpack.c.l.b16 %v162
  %v1591 = vunpack.c.h.b16 %v162
  %v1592 = vunpack.c.l.b16 %v163
  %v1593 = vunpack.c.h.b16 %v163
  %v1594 = vunpack.c.l.b16 %v164
  %v1595 = vunpack.c.h.b16 %v164
  %v1596 = vunpack.c.l.b16 %v165
  %v1597 = vunpack.c.h.b16 %v165
  %v1598 = vunpack.c.l.b16 %v166
  %v1599 = vunpack.c.h.b16 %v166
  %v1600 = vunpack.c.l.b16 %v167
  %v1601 = vunpack.c.h.b16 %v167
  %v1602 = vunpack.c.l.b16 %v168
  %v1603 = vunpack.c.h.b16 %v168
  %v1604 = vunpack.c.l.b16 %v169
  %v1605 = vunpack.c.h.b16 %v169
  %v1606 = vunpack.c.l.b16 %v170
  %v1607 = vunpack.c.h.b16 %v170
  %v1608 = vunpack.c.l.b16 %v171
  %v1609 = vunpack.c.h.b16 %v171
  %v1610 = vunpack.c.l.b16 %v172
  %v1611 = vunpack.c.h.b16 %v172
  %v1612 = vunpack.c.l.b16 %v173
  %v1613 = vunpack.c.h.b16 %v173
  %v1614 = vunpack.c.l.b16 %v174
  %v1615 = vunpack.c.h.b16 %v174
  %v1616 = vunpack.c.l.b16 %v175
  %v1617 = vunpack.c.h.b16 %v175
  %v1618 = vunpack.c.l.b16 %v176
  %v1619 = vunpack.c.h.b16 %v176
  %v1620 = vunpack.c.l.b16 %v177
  %v1621 = vunpack.c.h.b16 %v177
  %v1622 = vunpack.c.l.b16 %v178
  %v1623 = vunpack.c.h.b16 %v178
  %v1624 = vunpack.c.l.b16 %v179
  %v1625 = vunpack.c.h.b16 %v179
  %v1626 = vunpack.c.l.b16 %v180
  %v1627 = vunpack.c.h.b16 %v180
  %v1628 = vunpack.c.l.b16 %v181
  %v1629 = vunpack.c.h.b16 %v181
  %v1630 = vunpack.c.l.b16 %v182
  %v1631 = vunpack.c.h.b16 %v182
  %v1632 = vunpack.c.l.b16 %v183
  %v1633 = vunpack.c.h.b16 %v183
  %v1634 = vunpack.c.l.b16 %v184
  %v1635 = vunpack.c.h.b16 %v184
  %v1636 = vunpack.c.l.b16 %v185
  %v1637 = vunpack.c.h.b16 %v185
  %v1638 = vunpack.c.l.b16 %v186
  %v1639 = vunpack.c.h.b16 %v186
  %v1640 = vunpack.c.l.b16 %v187
  %v1641 = vunpack.c.h.b16 %v187
  %v1642 = vunpack.c.l.b16 %v188
  %v1643 = vunpack.c.h.b16 %v188
  %v1644 = vunpack.c.l.b16 %v189
  %v1645 = vunpack.c.h.b16 %v189
  %v1646 = vunpack.c.l.b16 %v190
  %v1647 = vunpack.c.h.b16 %v190
  %v1648 = vunpack.c.l.b16 %v191
  %v1649 = vunpack.c.h.b16 %v191
  %v1650 = vunpack.c.l.b16 %v192
  %v1651 = vunpack.c.h.b16 %v192
  %v1652 = vunpack.c.l.b16 %v193
  %v1653 = vunpack.c.h.b16 %v193
  %v1654 = vunpack.c.l.b16 %v194
  %v1655 = vunpack.c.h.b16 %v194
  %v1656 = vunpack.c.l.b16 %v195
  %v1657 = vunpack.c.h.b16 %v195
  %v1658 = vunpack.c.l.b16 %v196
  %v1659 = vunpack.c.h.b16 %v196
  %v1660 = vunpack.c.l.b16 %v197
  %v1661 = vunpack.c.h.b16 %v197
  %v1662 = vunpack.c.l.b16 %v198
  %v1663 = vunpack.c.h.b16 %v198
  %v1664 = vunpack.c.l.b16 %v199
  %v1665 = vunpack.c.h.b16 %v199
  %v1666 = vunpack.c.l.b16 %v200
  %v1667 = vunpack.c.h.b16 %v200
  %v1668 = vunpack.c.l.b16 %v201
  %v1669 = vunpack.c.h.b16 %v201
  %v1670 = vunpack.c.l.b16 %v202
  %v1671 = vunpack.c.h.b16 %v202
  %v1672 = vunpack.c.l.b16 %v203
  %v1673 = vunpack.c.h.b16 %v203
  %v1674 = vunpack.c.l.b16 %v204
  %v1675 = vunpack.c.h.b16 %v204
  %v1676 = vunpack.c.l.b16 %v205
  %v1677 = vunpack.c.h.b16 %v205
  %v1678 = vunpack.c.l.b16 %v206
  %v1679 = vunpack.c.h.b16 %v206
  %v1680 = vunpack.c.l.b16 %v207
  %v1681 = vunpack.c.h.b16 %v207
  %v1682 = vunpack.c.l.b16 %v208
  %v1683 = vunpack.c.h.b16 %v208
  %v1684 = vunpack.c.l.b16 %v209
  %v1685 = vunpack.c.h.b16 %v209
  %v1686 = vunpack.c.l.b16 %v210
  %v1687 = vunpack.c.h.b16 %v210
  %v1688 = vunpack.c.l.b16 %v211
  %v1689 = vunpack.c.h.b16 %v211
  %v1690 = vunpack.c.l.b16 %v212
  %v1691 = vunpack.c.h.b16 %v212
  %v1692 = vunpack.c.l.b16 %v213
  %v1693 = vunpack.c.h.b16 %v213
  %v1694 = vunpack.c.l.b16 %v214
  %v1695 = vunpack.c.h.b16 %v214
  %v1696 = vunpack.c.l.b16 %v215
  %v1697 = vunpack.c.h.b16 %v215
  %v1698 = vunpack.c.l.b16 %v216
  %v1699 = vunpack.c.h.b16 %v216
  %v1700 = vunpack.c.l.b16 %v217
  %v1701 = vunpack.c.h.b16 %v217
  %v1702 = vunpack.c.l.b16 %v218
  %v1703 = vunpack.c.h.b16 %v218
  %v1704 = vunpack.c.l.b16 %v219
  %v1705 = vunpack.c.h.b16 %v219
  %v1706 = vunpack.c.l.b16 %v220
  %v1707 = vunpack.c.h.b16 %v220
  %v1708 = vunpack.c.l.b16 %v221
  %v1709 = vunpack.c.h.b16 %v221
  %v1710 = vunpack.c.l.b16 %v222
  %v1711 = vunpack.c.h.b16 %v222
  %v1712 = vunpack.c.l.b16 %v223
  %v1713 = vunpack.c.h.b16 %v223
  %v1714 = vunpack.c.l.b16 %v224
  %v1715 = vunpack.c.h.b16 %v224
  %v1716 = vunpack.c.l.b16 %v225
  %v1717 = vunpack.c.h.b16 %v225
  %v1718 = vunpack.c.l.b16 %v226
  %v1719 = vunpack.c.h.b16 %v226
  %v1720 = vunpack.c.l.b16 %v227
  %v1721 = vunpack.c.h.b16 %v227
  %v1722 = vunpack.c.l.b16 %v228
  %v1723 = vunpack.c.h.b16 %v228
  %v1724 = vunpack.c.l.b16 %v229
  %v1725 = vunpack.c.h.b16 %v229
  %v1726 = vunpack.c.l.b16 %v230
  %v1727 = vunpack.c.h.b16 %v230
  %v1728 = vunpack.c.l.b16 %v231
  %v1729 = vunpack.c.h.b16 %v231
  %v1730 = vunpack.c.l.b16 %v232
  %v1731 = vunpack.c.h.b16 %v232
  %v1732 = vunpack.c.l.b16 %v233
  %v1733 = vunpack.c.h.b16 %v233
  %v1734 = vunpack.c.l.b16 %v234
  %v1735 = vunpack.c.h.b16 %v234
  %v1736 = vunpack.c.l.b16 %v235
  %v1737 = vunpack.c.h.b16 %v235
  %v1738 = vunpack.c.l.b16 %v236
  %v1739 = vunpack.c.h.b16 %v236
  %v1740 = vunpack.c.l.b16 %v237
  %v1741 = vunpack.c.h.b16 %v237
  %v1742 = vunpack.c.l.b16 %v238
  %v1743 = vunpack.c.h.b16 %v238
  %v1744 = vunpack.c.l.b16 %v239
  %v1745 = vunpack.c.h.b16 %v239
  %v1746 = vunpack.c.l.b16 %v240
  %v1747 = vunpack.c.h.b16 %v240
  %v1748 = vunpack.c.l.b16 %v241
  %v1749 = vunpack.c.h.b16 %v241
  %v1750 = vunpack.c.l.b16 %v242
  %v1751 = vunpack.c.h.b16 %v242
  %v1752 = vunpack.c.l.b16 %v243
  %v1753 = vunpack.c.h.b16 %v243
  %v1754 = vunpack.c.l.b16 %v244
  %v1755 = vunpack.c.h.b16 %v244
  %v1756 = vunpack.c.l.b16 %v245
  %v1757 = vunpack.c.h.b16 %v245
  %v1758 = vunpack.c.l.b16 %v246
  %v1759 = vunpack.c.h.b16 %v246
  %v1760 = vunpack.c.l.b16 %v247
  %v1761 = vunpack.c.h.b16 %v247
  %v1762 = vunpack.c.l.b16 %v248
  %v1763 = vunpack.c.h.b16 %v248
  %v1764 = vunpack.c.l.b16 %v249
  %v1765 = vunpack.c.h.b16 %v249
  %v1766 = vunpack.c.l.b16 %v250
  %v1767 = vunpack.c.h.b16 %v250
  %v1768 = vunpack.c.l.b16 %v251
  %v1769 = vunpack.c.h.b16 %v251
  %v1770 = vunpack.c.l.b16 %v252
  %v1771 = vunpack.c.h.b16 %v252
  %v1772 = vunpack.c.l.b16 %v253
  %v1773 = vunpack.c.h.b16 %v253
  %v1774 = vunpack.c.l.b16 %v254
  %v1775 = vunpack.c.h.b16 %v254
  %v1776 = vunpack.c.l.b16 %v255
  %v1777 = vunpack.c.h.b16 %v255
  %v1778 = vunpack.c.l.b16 %v256
  %v1779 = vunpack.c.h.b16 %v256
  %v1780 = vunpack.c.l.b16 %v257
  %v1781 = vunpack.c.h.b16 %v257
  %v1782 = vunpack.c.l.b16 %v258
  %v1783 = vunpack.c.h.b16 %v258
  %v1784 = vunpack.c.l.b16 %v259
  %v1785 = vunpack.c.h.b16 %v259
  %v1786 = vunpack.c.l.b16 %v260
  %v1787 = vunpack.c.h.b16 %v260
  %v1788 = vunpack.c.l.b16 %v261
  %v1789 = vunpack.c.h.b16 %v261
  %v1790 = vunpack.c.l.b16 %v262
  %v1791 = vunpack.c.h.b16 %v262
  %v1792 = vunpack.c.l.b16 %v263
  %v1793 = vunpack.c.h.b16 %v263
  %v1794 = vunpack.c.l.b16 %v264
  %v1795 = vunpack.c.h.b16 %v264
  %v1796 = vunpack.c.l.b16 %v265
  %v1797 = vunpack.c.h.b16 %v265
  %v1798 = vunpack.c.l.b16 %v266
  %v1799 = vunpack.c.h.b16 %v266
  %v1800 = vunpack.c.l.b16 %v267
  %v1801 = vunpack.c.h.b16 %v267
  %v1802 = vunpack.c.l.b16 %v268
  %v1803 = vunpack.c.h.b16 %v268
  %v1804 = vunpack.c.l.b16 %v269
  %v1805 = vunpack.c.h.b16 %v269
  %v1806 = vunpack.c.l.b16 %v270
  %v1807 = vunpack.c.h.b16 %v270
  %v1808 = vunpack.c.l.b16 %v271
  %v1809 = vunpack.c.h.b16 %v271
  %v1810 = vunpack.c.l.b16 %v272
  %v1811 = vunpack.c.h.b16 %v272
  %v1812 = vunpack.c.l.b16 %v273
  %v1813 = vunpack.c.h.b16 %v273
  %v1814 = vunpack.c.l.b16 %v274
  %v1815 = vunpack.c.h.b16 %v274
  %v1816 = vunpack.c.l.b16 %v275
  %v1817 = vunpack.c.h.b16 %v275
  %v1818 = vunpack.c.l.b16 %v276
  %v1819 = vunpack.c.h.b16 %v276
  %v1820 = vunpack.c.l.b16 %v277
  %v1821 = vunpack.c.h.b16 %v277
  %v1822 = vunpack.c.l.b16 %v278
  %v1823 = vunpack.c.h.b16 %v278
  %v1824 = vunpack.c.l.b16 %v279
  %v1825 = vunpack.c.h.b16 %v279
  %v1826 = vunpack.c.l.b16 %v280
  %v1827 = vunpack.c.h.b16 %v280
  %v1828 = vunpack.c.l.b16 %v281
  %v1829 = vunpack.c.h.b16 %v281
  %v1830 = vunpack.c.l.b16 %v282
  %v1831 = vunpack.c.h.b16 %v282
  %v1832 = vunpack.c.l.b16 %v283
  %v1833 = vunpack.c.h.b16 %v283
  %v1834 = vunpack.c.l.b16 %v284
  %v1835 = vunpack.c.h.b16 %v284
  %v1836 = vunpack.c.l.b16 %v285
  %v1837 = vunpack.c.h.b16 %v285
  %v1838 = vunpack.c.l.b16 %v286
  %v1839 = vunpack.c.h.b16 %v286
  %v1840 = vunpack.c.l.b16 %v287
  %v1841 = vunpack.c.h.b16 %v287
  %v1842 = vunpack.c.l.b16 %v288
  %v1843 = vunpack.c.h.b16 %v288
  %v1844 = vunpack.c.l.b16 %v289
  %v1845 = vunpack.c.h.b16 %v289
  %v1846 = vunpack.c.l.b16 %v290
  %v1847 = vunpack.c.h.b16 %v290
  %v1848 = vunpack.c.l.b16 %v291
  %v1849 = vunpack.c.h.b16 %v291
  %v1850 = vunpack.c.l.b16 %v292
  %v1851 = vunpack.c.h.b16 %v292
  %v1852 = vunpack.c.l.b16 %v293
  %v1853 = vunpack.c.h.b16 %v293
  %v1854 = vunpack.c.l.b16 %v294
  %v1855 = vunpack.c.h.b16 %v294
  %v1856 = vunpack.c.l.b16 %v295
  %v1857 = vunpack.c.h.b16 %v295
  %v1858 = vunpack.c.l.b16 %v296
  %v1859 = vunpack.c.h.b16 %v296
  %v1860 = vunpack.c.l.b16 %v297
  %v1861 = vunpack.c.h.b16 %v297
  %v1862 = vunpack.c.l.b16 %v298
  %v1863 = vunpack.c.h.b16 %v298
  %v1864 = vunpack.c.l.b16 %v299
  %v1865 = vunpack.c.h.b16 %v299
  %v1866 = vunpack.c.l.b16 %v300
  %v1867 = vunpack.c.h.b16 %v300
  %v1868 = vunpack.c.l.b16 %v301
  %v1869 = vunpack.c.h.b16 %v301
  %v1870 = vunpack.c.l.b16 %v302
  %v1871 = vunpack.c.h.b16 %v302
  %v1872 = vunpack.c.l.b16 %v303
  %v1873 = vunpack.c.h.b16 %v303
  %v1874 = vunpack.c.l.b16 %v304
  %v1875 = vunpack.c.h.b16 %v304
  %v1876 = vunpack.c.l.b16 %v305
  %v1877 = vunpack.c.h.b16 %v305
  %v1878 = vunpack.c.l.b16 %v306
  %v1879 = vunpack.c.h.b16 %v306
  %v1880 = vunpack.c.l.b16 %v307
  %v1881 = vunpack.c.h.b16 %v307
  %v1882 = vunpack.c.l.b16 %v308
  %v1883 = vunpack.c.h.b16 %v308
  %v1884 = vunpack.c.l.b16 %v309
  %v1885 = vunpack.c.h.b16 %v309
  %v1886 = vunpack.c.l.b16 %v310
  %v1887 = vunpack.c.h.b16 %v310
  %v1888 = vunpack.c.l.b16 %v311
  %v1889 = vunpack.c.h.b16 %v311
  %v1890 = vunpack.c.l.b16 %v312
  %v1891 = vunpack.c.h.b16 %v312
  %v1892 = vunpack.c.l.b16 %v313
  %v1893 = vunpack.c.h.b16 %v313
  %v1894 = vunpack.c.l.b16 %v314
  %v1895 = vunpack.c.h.b16 %v314
  %v1896 = vunpack.c.l.b16 %v315
  %v1897 = vunpack.c.h.b16 %v315
  %v1898 = vunpack.c.l.b16 %v316
  %v1899 = vunpack.c.h.b16 %v316
  %v1900 = vunpack.c.l.b16 %v317
  %v1901 = vunpack.c.h.b16 %v317
  %v1902 = vunpack.c.l.b16 %v318
  %v1903 = vunpack.c.h.b16 %v318
  %v1904 = vunpack.c.l.b16 %v319
  %v1905 = vunpack.c.h.b16 %v319
  %v1906 = vunpack.c.l.b16 %v320
  %v1907 = vunpack.c.h.b16 %v320
  %v1908 = vunpack.c.l.b16 %v321
  %v1909 = vunpack.c.h.b16 %v321
  %v1910 = vunpack.c.l.b16 %v322
  %v1911 = vunpack.c.h.b16 %v322
  %v1912 = vunpack.c.l.b16 %v323
  %v1913 = vunpack.c.h.b16 %v323
  %v1914 = vunpack.c.l.b16 %v324
  %v1915 = vunpack.c.h.b16 %v324
  %v1916 = vunpack.c.l.b16 %v325
  %v1917 = vunpack.c.h.b16 %v325
  %v1918 = vunpack.c.l.b16 %v326
  %v1919 = vunpack.c.h.b16 %v326
  %v1920 = vunpack.c.l.b16 %v327
  %v1921 = vunpack.c.h.b16 %v327
  %v1922 = vunpack.c.l.b16 %v328
  %v1923 = vunpack.c.h.b16 %v328
  %v1924 = vunpack.c.l.b16 %v329
  %v1925 = vunpack.c.h.b16 %v329
  %v1926 = vunpack.c.l.b16 %v330
  %v1927 = vunpack.c.h.b16 %v330
  %v1928 = vunpack.c.l.b16 %v331
  %v1929 = vunpack.c.h.b16 %v331
  %v1930 = vunpack.c.l.b16 %v332
  %v1931 = vunpack.c.h.b16 %v332
  %v1932 = vunpack.c.l.b16 %v333
  %v1933 = vunpack.c.h.b16 %v333
  %v1934 = vunpack.c.l.b16 %v334
  %v1935 = vunpack.c.h.b16 %v334
  %v1936 = vunpack.c.l.b16 %v335
  %v1937 = vunpack.c.h.b16 %v335
  %v1938 = vunpack.c.l.b16 %v336
  %v1939 = vunpack.c.h.b16 %v336
  %v1940 = vunpack.c.l.b16 %v337
  %v1941 = vunpack.c.h.b16 %v337
  %v1942 = vunpack.c.l.b16 %v338
  %v1943 = vunpack.c.h.b16 %v338
  %v1944 = vunpack.c.l.b16 %v339
  %v1945 = vunpack.c.h.b16 %v339
  %v1946 = vunpack.c.l.b16 %v340
  %v1947 = vunpack.c.h.b16 %v340
  %v1948 = vunpack.c.l.b16 %v341
  %v1949 = vunpack.c.h.b16 %v341
  %v1950 = vunpack.c.l.b16 %v342
  %v1951 = vunpack.c.h.b16 %v342
  %v1952 = vunpack.c.l.b16 %v343
  %v1953 = vunpack.c.h.b16 %v343
  %v1954 = vunpack.c.l.b16 %v344
  %v1955 = vunpack.c.h.b16 %v344
  %v1956 = vunpack.c.l.b16 %v345
  %v1957 = vunpack.c.h.b16 %v345
  %v1958 = vunpack.c.l.b16 %v346
  %v1959 = vunpack.c.h.b16 %v346
  %v1960 = vunpack.c.l.b16 %v347
  %v1961 = vunpack.c.h.b16 %v347
  %v1962 = vunpack.c.l.b16 %v348
  %v1963 = vunpack.c.h.b16 %v348
  %v1964 = vunpack.c.l.b16 %v349
  %v1965 = vunpack.c.h.b16 %v349
  %v1966 = vunpack.c.l.b16 %v350
  %v1967 = vunpack.c.h.b16 %v350
  %v1968 = vunpack.c.l.b16 %v351
  %v1969 = vunpack.c.h.b16 %v351
  %v1970 = vunpack.c.l.b16 %v352
  %v1971 = vunpack.c.h.b16 %v352
  %v1972 = vunpack.c.l.b16 %v353
  %v1973 = vunpack.c.h.b16 %v353
  %v1974 = vunpack.c.l.b16 %v354
  %v1975 = vunpack.c.h.b16 %v354
  %v1976 = vunpack.c.l.b16 %v355
  %v1977 = vunpack.c.h.b16 %v355
  %v1978 = vunpack.c.l.b16 %v356
  %v1979 = vunpack.c.h.b16 %v356
  %v1980 = vunpack.c.l.b16 %v357
  %v1981 = vunpack.c.h.b16 %v357
  %v1982 = vunpack.c.l.b16 %v358
  %v1983 = vunpack.c.h.b16 %v358
  %v1984 = vunpack.c.l.b16 %v359
  %v1985 = vunpack.c.h.b16 %v359
  %v1986 = vunpack.c.l.b16 %v360
  %v1987 = vunpack.c.h.b16 %v360
  %v1988 = vunpack.c.l.b16 %v361
  %v1989 = vunpack.c.h.b16 %v361
  %v1990 = vunpack.c.l.b16 %v362
  %v1991 = vunpack.c.h.b16 %v362
  %v1992 = vunpack.c.l.b16 %v363
  %v1993 = vunpack.c.h.b16 %v363
  %v1994 = vunpack.c.l.b16 %v364
  %v1995 = vunpack.c.h.b16 %v364
  %v1996 = vunpack.c.l.b16 %v365
  %v1997 = vunpack.c.h.b16 %v365
  %v1998 = vunpack.c.l.b16 %v366
  %v1999 = vunpack.c.h.b16 %v366
  %v2000 = vunpack.c.l.b16 %v367
  %v2001 = vunpack.c.h.b16 %v367
  %v2002 = vunpack.c.l.b16 %v368
  %v2003 = vunpack.c.h.b16 %v368
  %v2004 = vunpack.c.l.b16 %v369
  %v2005 = vunpack.c.h.b16 %v369
  %v2006 = vunpack.c.l.b16 %v370
  %v2007 = vunpack.c.h.b16 %v370
  %v2008 = vunpack.c.l.b16 %v371
  %v2009 = vunpack.c.h.b16 %v371
  %v2010 = vunpack.c.l.b16 %v372
  %v2011 = vunpack.c.h.b16 %v372
  %v2012 = vunpack.c.l.b16 %v373
  %v2013 = vunpack.c.h.b16 %v373
  %v2014 = vunpack.c.l.b16 %v374
  %v2015 = vunpack.c.h.b16 %v374
  %v2016 = vunpack.c.l.b16 %v375
  %v2017 = vunpack.c.h.b16 %v375
  %v2018 = vunpack.c.l.b16 %v376
  %v2019 = vunpack.c.h.b16 %v376
  %v2020 = vunpack.c.l.b16 %v377
  %v2021 = vunpack.c.h.b16 %v377
  %v2022 = vunpack.c.l.b16 %v378
  %v2023 = vunpack.c.h.b16 %v378
  %v2024 = vunpack.c.l.b16 %v379
  %v2025 = vunpack.c.h.b16 %v379
  %v2026 = vunpack.c.l.b16 %v380
  %v2027 = vunpack.c.h.b16 %v380
  %v2028 = vunpack.c.l.b16 %v381
  %v2029 = vunpack.c.h.b16 %v381
  %v2030 = vunpack.c.l.b16 %v382
  %v2031 = vunpack.c.h.b16 %v382
  %v2032 = vunpack.c.l.b16 %v383
  %v2033 = vunpack.c.h.b16 %v383
  %v2034 = vunpack.c.l.b16 %v384
  %v2035 = vunpack.c.h.b16 %v384
  %v2036 = vunpack.c.l.b16 %v385
  %v2037 = vunpack.c.h.b16 %v385
  %v2038 = vunpack.c.l.b16 %v386
  %v2039 = vunpack.c.h.b16 %v386
  %v2040 = vunpack.c.l.b16 %v387
  %v2041 = vunpack.c.h.b16 %v387
  %v2042 = vunpack.c.l.b16 %v388
  %v2043 = vunpack.c.h.b16 %v388
  %v2044 = vunpack.c.l.b16 %v389
  %v2045 = vunpack.c.h.b16 %v389
  %v2046 = vunpack.c.l.b16 %v390
  %v2047 = vunpack.c.h.b16 %v390
  %v2048 = vunpack.c.l.b16 %v391
  %v2049 = vunpack.c.h.b16 %v391
  %v2050 = vunpack.c.l.b16 %v392
  %v2051 = vunpack.c.h.b16 %v392
  %v2052 = vunpack.c.l.b16 %v393
  %v2053 = vunpack.c.h.b16 %v393
  %v2054 = vunpack.c.l.b16 %v394
  %v2055 = vunpack.c.h.b16 %v394
  %v2056 = vunpack.c.l.b16 %v395
  %v2057 = vunpack.c.h.b16 %v395
  %v2058 = vunpack.c.l.b16 %v396
  %v2059 = vunpack.c.h.b16 %v396
  %v2060 = vunpack.c.l.b16 %v397
  %v2061 = vunpack.c.h.b16 %v397
  %v2062 = vunpack.c.l.b16 %v398
  %v2063 = vunpack.c.h.b16 %v398
  %v2064 = vunpack.c.l.b16 %v399
  %v2065 = vunpack.c.h.b16 %v399
  %v2066 = vunpack.c.l.b16 %v400
  %v2067 = vunpack.c.h.b16 %v400
  %v2068 = vunpack.c.l.b16 %v401
  %v2069 = vunpack.c.h.b16 %v401
  %v2070 = vunpack.c.l.b16 %v402
  %v2071 = vunpack.c.h.b16 %v402
  %v2072 = vunpack.c.l.b16 %v403
  %v2073 = vunpack.c.h.b16 %v403
  %v2074 = vunpack.c.l.b16 %v404
  %v2075 = vunpack.c.h.b16 %v404
  %v2076 = vunpack.c.l.b16 %v405
  %v2077 = vunpack.c.h.b16 %v405
  %v2078 = vunpack.c.l.b16 %v406
  %v2079 = vunpack.c.h.b16 %v406
  %v2080 = vunpack.c.l.b16 %v407
  %v2081 = vunpack.c.h.b16 %v407
  %v2082 = vunpack.c.l.b16 %v408
  %v2083 = vunpack.c.h.b16 %v408
  %v2084 = vunpack.c.l.b16 %v409
  %v2085 = vunpack.c.h.b16 %v409
  %v2086 = vunpack.c.l.b16 %v410
  %v2087 = vunpack.c.h.b16 %v410
  %v2088 = vunpack.c.l.b16 %v411
  %v2089 = vunpack.c.h.b16 %v411
  %v2090 = vunpack.c.l.b16 %v412
  %v2091 = vunpack.c.h.b16 %v412
  %v2092 = vunpack.c.l.b16 %v413
  %v2093 = vunpack.c.h.b16 %v413
  %v2094 = vunpack.c.l.b16 %v414
  %v2095 = vunpack.c.h.b16 %v414
  %v2096 = vunpack.c.l.b16 %v415
  %v2097 = vunpack.c.h.b16 %v415
  %v2098 = vunpack.c.l.b16 %v416
  %v2099 = vunpack.c.h.b16 %v416
  %v2100 = vunpack.c.l.b16 %v417
  %v2101 = vunpack.c.h.b16 %v417
  %v2102 = vunpack.c.l.b16 %v418
  %v2103 = vunpack.c.h.b16 %v418
  %v2104 = vunpack.c.l.b16 %v419
  %v2105 = vunpack.c.h.b16 %v419
  %v2106 = vunpack.c.l.b16 %v420
  %v2107 = vunpack.c.h.b16 %v420
  %v2108 = vunpack.c.l.b16 %v421
  %v2109 = vunpack.c.h.b16 %v421
  %v2110 = vunpack.c.l.b16 %v422
  %v2111 = vunpack.c.h.b16 %v422
  %v2112 = vunpack.c.l.b16 %v423
  %v2113 = vunpack.c.h.b16 %v423
  %v2114 = vunpack.c.l.b16 %v424
  %v2115 = vunpack.c.h.b16 %v424
  %v2116 = vunpack.c.l.b16 %v425
  %v2117 = vunpack.c.h.b16 %v425
  %v2118 = vunpack.c.l.b16 %v426
  %v2119 = vunpack.c.h.b16 %v426
  %v2120 = vunpack.c.l.b16 %v427
  %v2121 = vunpack.c.h.b16 %v427
  %v2122 = vunpack.c.l.b16 %v428
  %v2123 = vunpack.c.h.b16 %v428
  %v2124 = vunpack.c.l.b16 %v429
  %v2125 = vunpack.c.h.b16 %v429
  %v2126 = vunpack.c.l.b16 %v430
  %v2127 = vunpack.c.h.b16 %v430
  %v2128 = vunpack.c.l.b16 %v431
  %v2129 = vunpack.c.h.b16 %v431
  %v2130 = vunpack.c.l.b16 %v432
  %v2131 = vunpack.c.h.b16 %v432
  %v2132 = vunpack.c.l.b16 %v433
  %v2133 = vunpack.c.h.b16 %v433
  %v2134 = vunpack.c.l.b16 %v434
  %v2135 = vunpack.c.h.b16 %v434
  %v2136 = vunpack.c.l.b16 %v435
  %v2137 = vunpack.c.h.b16 %v435
  %v2138 = vunpack.c.l.b16 %v436
  %v2139 = vunpack.c.h.b16 %v436
  %v2140 = vunpack.c.l.b16 %v437
  %v2141 = vunpack.c.h.b16 %v437
  %v2142 = vunpack.c.l.b16 %v438
  %v2143 = vunpack.c.h.b16 %v438
  %v2144 = vunpack.c.l.b16 %v439
  %v2145 = vunpack.c.h.b16 %v439
  %v2146 = vunpack.c.l.b16 %v440
  %v2147 = vunpack.c.h.b16 %v440
  %v2148 = vunpack.c.l.b16 %v441
  %v2149 = vunpack.c.h.b16 %v441
  %v2150 = vunpack.c.l.b16 %v442
  %v2151 = vunpack.c.h.b16 %v442
  %v2152 = vunpack.c.l.b16 %v443
  %v2153 = vunpack.c.h.b16 %v443
  %v2154 = vunpack.c.l.b16 %v444
  %v2155 = vunpack.c.h.b16 %v444
  %v2156 = vunpack.c.l.b16 %v445
  %v2157 = vunpack.c.h.b16 %v445
  %v2158 = vunpack.c.l.b16 %v446
  %v2159 = vunpack.c.h.b16 %v446
  %v2160 = vunpack.c.l.b16 %v447
  %v2161 = vunpack.c.h.b16 %v447
  %v2162 = vunpack.c.l.b16 %v448
  %v2163 = vunpack.c.h.b16 %v448
  %v2164 = vunpack.c.l.b16 %v449
  %v2165 = vunpack.c.h.b16 %v449
  %v2166 = vunpack.c.l.b16 %v450
  %v2167 = vunpack.c.h.b16 %v450
  %v2168 = vunpack.c.l.b16 %v451
  %v2169 = vunpack.c.h.b16 %v451
  %v2170 = vunpack.c.l.b16 %v452
  %v2171 = vunpack.c.h.b16 %v452
  %v2172 = vunpack.c.l.b16 %v453
  %v2173 = vunpack.c.h.b16 %v453
  %v2174 = vunpack.c.l.b16 %v454
  %v2175 = vunpack.c.h.b16 %v454
  %v2176 = vunpack.c.l.b16 %v455
  %v2177 = vunpack.c.h.b16 %v455
  %v2178 = vunpack.c.l.b16 %v456
  %v2179 = vunpack.c.h.b16 %v456
  %v2180 = vunpack.c.l.b16 %v457
  %v2181 = vunpack.c.h.b16 %v457
  %v2182 = vunpack.c.l.b16 %v458
  %v2183 = vunpack.c.h.b16 %v458
  %v2184 = vunpack.c.l.b16 %v459
  %v2185 = vunpack.c.h.b16 %v459
  %v2186 = vunpack.c.l.b16 %v460
  %v2187 = vunpack.c.h.b16 %v460
  %v2188 = vunpack.c.l.b16 %v461
  %v2189 = vunpack.c.h.b16 %v461
  %v2190 = vunpack.c.l.b16 %v462
  %v2191 = vunpack.c.h.b16 %v462
  %v2192 = vunpack.c.l.b16 %v463
  %v2193 = vunpack.c.h.b16 %v463
  %v2194 = vunpack.c.l.b16 %v464
  %v2195 = vunpack.c.h.b16 %v464
  %v2196 = vunpack.c.l.b16 %v465
  %v2197 = vunpack.c.h.b16 %v465
  %v2198 = vunpack.c.l.b16 %v466
  %v2199 = vunpack.c.h.b16 %v466
  %v2200 = vunpack.c.l.b16 %v467
  %v2201 = vunpack.c.h.b16 %v467
  %v2202 = vunpack.c.l.b16 %v468
  %v2203 = vunpack.c.h.b16 %v468
  %v2204 = vunpack.c.l.b16 %v469
  %v2205 = vunpack.c.h.b16 %v469
  %v2206 = vunpack.c.l.b16 %v470
  %v2207 = vunpack.c.h.b16 %v470
  %v2208 = vunpack.c.l.b16 %v471
  %v2209 = vunpack.c.h.b16 %v471
  %v2210 = vunpack.c.l.b16 %v472
  %v2211 = vunpack.c.h.b16 %v472
  %v2212 = vunpack.c.l.b16 %v473
  %v2213 = vunpack.c.h.b16 %v473
  %v2214 = vunpack.c.l.b16 %v474
  %v2215 = vunpack.c.h.b16 %v474
  %v2216 = vunpack.c.l.b16 %v475
  %v2217 = vunpack.c.h.b16 %v475
  %v2218 = vunpack.c.l.b16 %v476
  %v2219 = vunpack.c.h.b16 %v476
  %v2220 = vunpack.c.l.b16 %v477
  %v2221 = vunpack.c.h.b16 %v477
  %v2222 = vunpack.c.l.b16 %v478
  %v2223 = vunpack.c.h.b16 %v478
  %v2224 = vunpack.c.l.b16 %v479
  %v2225 = vunpack.c.h.b16 %v479
  %v2226 = vunpack.c.l.b16 %v480
  %v2227 = vunpack.c.h.b16 %v480
  %v2228 = vunpack.c.l.b16 %v481
  %v2229 = vunpack.c.h.b16 %v481
  %v2230 = vunpack.c.l.b16 %v482
  %v2231 = vunpack.c.h.b16 %v482
  %v2232 = vunpack.c.l.b16 %v483
  %v2233 = vunpack.c.h.b16 %v483
  %v2234 = vunpack.c.l.b16 %v484
  %v2235 = vunpack.c.h.b16 %v484
  %v2236 = vunpack.c.l.b16 %v485
  %v2237 = vunpack.c.h.b16 %v485
  %v2238 = vunpack.c.l.b16 %v486
  %v2239 = vunpack.c.h.b16 %v486
  %v2240 = vunpack.c.l.b16 %v487
  %v2241 = vunpack.c.h.b16 %v487
  %v2242 = vunpack.c.l.b16 %v488
  %v2243 = vunpack.c.h.b16 %v488
  %v2244 = vunpack.c.l.b16 %v489
  %v2245 = vunpack.c.h.b16 %v489
  %v2246 = vunpack.c.l.b16 %v490
  %v2247 = vunpack.c.h.b16 %v490
  %v2248 = vunpack.c.l.b16 %v491
  %v2249 = vunpack.c.h.b16 %v491
  %v2250 = vunpack.c.l.b16 %v492
  %v2251 = vunpack.c.h.b16 %v492
  %v2252 = vunpack.c.l.b16 %v493
  %v2253 = vunpack.c.h.b16 %v493
  %v2254 = vunpack.c.l.b16 %v494
  %v2255 = vunpack.c.h.b16 %v494
  %v2256 = vunpack.c.l.b16 %v495
  %v2257 = vunpack.c.h.b16 %v495
  %v2258 = vunpack.c.l.b16 %v496
  %v2259 = vunpack.c.h.b16 %v496
  %v2260 = vunpack.c.l.b16 %v497
  %v2261 = vunpack.c.h.b16 %v497
  %v2262 = vunpack.c.l.b16 %v498
  %v2263 = vunpack.c.h.b16 %v498
  %v2264 = vunpack.c.l.b16 %v499
  %v2265 = vunpack.c.h.b16 %v499
  %v2266 = vunpack.c.l.b16 %v500
  %v2267 = vunpack.c.h.b16 %v500
  %v2268 = vunpack.c.l.b16 %v501
  %v2269 = vunpack.c.h.b16 %v501
  %v2270 = vunpack.c.l.b16 %v502
  %v2271 = vunpack.c.h.b16 %v502
  %v2272 = vunpack.c.l.b16 %v503
  %v2273 = vunpack.c.h.b16 %v503
  %v2274 = vunpack.c.l.b16 %v504
  %v2275 = vunpack.c.h.b16 %v504
  %v2276 = vunpack.c.l.b16 %v505
  %v2277 = vunpack.c.h.b16 %v505
  %v2278 = vunpack.c.l.b16 %v506
  %v2279 = vunpack.c.h.b16 %v506
  %v2280 = vunpack.c.l.b16 %v507
  %v2281 = vunpack.c.h.b16 %v507
  %v2282 = vunpack.c.l.b16 %v508
  %v2283 = vunpack.c.h.b16 %v508
  %v2284 = vunpack.c.l.b16 %v509
  %v2285 = vunpack.c.h.b16 %v509
  %v2286 = vunpack.c.l.b16 %v510
  %v2287 = vunpack.c.h.b16 %v510
  %v2288 = vunpack.c.l.b16 %v511
  %v2289 = vunpack.c.h.b16 %v511
  %v2290 = vunpack.c.l.b16 %v512
  %v2291 = vunpack.c.h.b16 %v512
  %v2292 = vunpack.c.l.b16 %v513
  %v2293 = vunpack.c.h.b16 %v513
  %v2294 = vunpack.c.l.b16 %v514
  %v2295 = vunpack.c.h.b16 %v514
  %v2296 = vunpack.c.l.b16 %v515
  %v2297 = vunpack.c.h.b16 %v515
  %v2298 = vunpack.c.l.b16 %v516
  %v2299 = vunpack.c.h.b16 %v516
  %v2300 = vunpack.c.l.b16 %v517
  %v2301 = vunpack.c.h.b16 %v517
  %v2302 = vunpack.c.l.b16 %v518
  %v2303 = vunpack.c.h.b16 %v518
  %v2304 = vunpack.c.l.b16 %v519
  %v2305 = vunpack.c.h.b16 %v519
  %v2306 = vunpack.c.l.b16 %v520
  %v2307 = vunpack.c.h.b16 %v520
  %v2308 = vunpack.c.l.b16 %v521
  %v2309 = vunpack.c.h.b16 %v521
  %v2310 = vunpack.c.l.b16 %v522
  %v2311 = vunpack.c.h.b16 %v522
  %v2312 = vunpack.c.l.b16 %v523
  %v2313 = vunpack.c.h.b16 %v523
  %v2314 = vunpack.c.l.b16 %v524
  %v2315 = vunpack.c.h.b16 %v524
  %v2316 = vunpack.c.l.b16 %v525
  %v2317 = vunpack.c.h.b16 %v525
  %v2318 = vpack.c.b16 %v1310, %v1294
  %v2319 = vpack.c.b16 %v1311, %v1295
  %v2320 = vpack.c.b16 %v1312, %v1296
  %v2321 = vpack.c.b16 %v1313, %v1297
  %v2322 = vpack.c.b16 %v1314, %v1298
  %v2323 = vpack.c.b16 %v1315, %v1299
  %v2324 = vpack.c.b16 %v1316, %v1300
  %v2325 = vpack.c.b16 %v1317, %v1301
  %v2326 = vpack.c.b16 %v1318, %v1302
  %v2327 = vpack.c.b16 %v1319, %v1303
  %v2328 = vpack.c.b16 %v1320, %v1304
  %v2329 = vpack.c.b16 %v1321, %v1305
  %v2330 = vpack.c.b16 %v1322, %v1306
  %v2331 = vpack.c.b16 %v1323, %v1307
  %v2332 = vpack.c.b16 %v1324, %v1308
  %v2333 = vpack.c.b16 %v1325, %v1309
  %v2334 = vpack.c.b16 %v1342, %v1326
  %v2335 = vpack.c.b16 %v1343, %v1327
  %v2336 = vpack.c.b16 %v1344, %v1328
  %v2337 = vpack.c.b16 %v1345, %v1329
  %v2338 = vpack.c.b16 %v1346, %v1330
  %v2339 = vpack.c.b16 %v1347, %v1331
  %v2340 = vpack.c.b16 %v1348, %v1332
  %v2341 = vpack.c.b16 %v1349, %v1333
  %v2342 = vpack.c.b16 %v1350, %v1334
  %v2343 = vpack.c.b16 %v1351, %v1335
  %v2344 = vpack.c.b16 %v1352, %v1336
  %v2345 = vpack.c.b16 %v1353, %v1337
  %v2346 = vpack.c.b16 %v1354, %v1338
  %v2347 = vpack.c.b16 %v1355, %v1339
  %v2348 = vpack.c.b16 %v1356, %v1340
  %v2349 = vpack.c.b16 %v1357, %v1341
  %v2350 = vpack.c.b16 %v1374, %v1358
  %v2351 = vpack.c.b16 %v1375, %v1359
  %v2352 = vpack.c.b16 %v1376, %v1360
  %v2353 = vpack.c.b16 %v1377, %v1361
  %v2354 = vpack.c.b16 %v1378, %v1362
  %v2355 = vpack.c.b16 %v1379, %v1363
  %v2356 = vpack.c.b16 %v1380, %v1364
  %v2357 = vpack.c.b16 %v1381, %v1365
  %v2358 = vpack.c.b16 %v1382, %v1366
  %v2359 = vpack.c.b16 %v1383, %v1367
  %v2360 = vpack.c.b16 %v1384, %v1368
  %v2361 = vpack.c.b16 %v1385, %v1369
  %v2362 = vpack.c.b16 %v1386, %v1370
  %v2363 = vpack.c.b16 %v1387, %v1371
  %v2364 = vpack.c.b16 %v1388, %v1372
  %v2365 = vpack.c.b16 %v1389, %v1373
  %v2366 = vpack.c.b16 %v1406, %v1390
  %v2367 = vpack.c.b16 %v1407, %v1391
  %v2368 = vpack.c.b16 %v1408, %v1392
  %v2369 = vpack.c.b16 %v1409, %v1393
  %v2370 = vpack.c.b16 %v1410, %v1394
  %v2371 = vpack.c.b16 %v1411, %v1395
  %v2372 = vpack.c.b16 %v1412, %v1396
  %v2373 = vpack.c.b16 %v1413, %v1397
  %v2374 = vpack.c.b16 %v1414, %v1398
  %v2375 = vpack.c.b16 %v1415, %v1399
  %v2376 = vpack.c.b16 %v1416, %v1400
  %v2377 = vpack.c.b16 %v1417, %v1401
  %v2378 = vpack.c.b16 %v1418, %v1402
  %v2379 = vpack.c.b16 %v1419, %v1403
  %v2380 = vpack.c.b16 %v1420, %v1404
  %v2381 = vpack.c.b16 %v1421, %v1405
  %v2382 = vpack.c.b16 %v1438, %v1422
  %v2383 = vpack.c.b16 %v1439, %v1423
  %v2384 = vpack.c.b16 %v1440, %v1424
  %v2385 = vpack.c.b16 %v1441, %v1425
  %v2386 = vpack.c.b16 %v1442, %v1426
  %v2387 = vpack.c.b16 %v1443, %v1427
  %v2388 = vpack.c.b16 %v1444, %v1428
  %v2389 = vpack.c.b16 %v1445, %v1429
  %v2390 = vpack.c.b16 %v1446, %v1430
  %v2391 = vpack.c.b16 %v1447, %v1431
  %v2392 = vpack.c.b16 %v1448, %v1432
  %v2393 = vpack.c.b16 %v1449, %v1433
  %v2394 = vpack.c.b16 %v1450, %v1434
  %v2395 = vpack.c.b16 %v1451, %v1435
  %v2396 = vpack.c.b16 %v1452, %v1436
  %v2397 = vpack.c.b16 %v1453, %v1437
  %v2398 = vpack.c.b16 %v1470, %v1454
  %v2399 = vpack.c.b16 %v1471, %v1455
  %v2400 = vpack.c.b16 %v1472, %v1456
  %v2401 = vpack.c.b16 %v1473, %v1457
  %v2402 = vpack.c.b16 %v1474, %v1458
  %v2403 = vpack.c.b16 %v1475, %v1459
  %v2404 = vpack.c.b16 %v1476, %v1460
  %v2405 = vpack.c.b16 %v1477, %v1461
  %v2406 = vpack.c.b16 %v1478, %v1462
  %v2407 = vpack.c.b16 %v1479, %v1463
  %v2408 = vpack.c.b16 %v1480, %v1464
  %v2409 = vpack.c.b16 %v1481, %v1465
  %v2410 = vpack.c.b16 %v1482, %v1466
  %v2411 = vpack.c.b16 %v1483, %v1467
  %v2412 = vpack.c.b16 %v1484, %v1468
  %v2413 = vpack.c.b16 %v1485, %v1469
  %v2414 = vpack.c.b16 %v1502, %v1486
  %v2415 = vpack.c.b16 %v1503, %v1487
  %v2416 = vpack.c.b16 %v1504, %v1488
  %v2417 = vpack.c.b16 %v1505, %v1489
  %v2418 = vpack.c.b16 %v1506, %v1490
  %v2419 = vpack.c.b16 %v1507, %v1491
  %v2420 = vpack.c.b16 %v1508, %v1492
  %v2421 = vpack.c.b16 %v1509, %v1493
  %v2422 = vpack.c.b16 %v1510, %v1494
  %v2423 = vpack.c.b16 %v1511, %v1495
  %v2424 = vpack.c.b16 %v1512, %v1496
  %v2425 = vpack.c.b16 %v1513, %v1497
  %v2426 = vpack.c.b16 %v1514, %v1498
  %v2427 = vpack.c.b16 %v1515, %v1499
  %v2428 = vpack.c.b16 %v1516, %v1500
  %v2429 = vpack.c.b16 %v1517, %v1501
  %v2430 = vpack.c.b16 %v1534, %v1518
  %v2431 = vpack.c.b16 %v1535, %v1519
  %v2432 = vpack.c.b16 %v1536, %v1520
  %v2433 = vpack.c.b16 %v1537, %v1521
  %v2434 = vpack.c.b16 %v1538, %v1522
  %v2435 = vpack.c.b16 %v1539, %v1523
  %v2436 = vpack.c.b16 %v1540, %v1524
  %v2437 = vpack.c.b16 %v1541, %v1525
  %v2438 = vpack.c.b16 %v1542, %v1526
  %v2439 = vpack.c.b16 %v1543, %v1527
  %v2440 = vpack.c.b16 %v1544, %v1528
  %v2441 = vpack.c.b16 %v1545, %v1529
  %v2442 = vpack.c.b16 %v1546, %v1530
  %v2443 = vpack.c.b16 %v1547, %v1531
  %v2444 = vpack.c.b16 %v1548, %v1532
  %v2445 = vpack.c.b16 %v1549, %v1533
  %v2446 = vpack.c.b16 %v1566, %v1550
  %v2447 = vpack.c.b16 %v1567, %v1551
  %v2448 = vpack.c.b16 %v1568, %v1552
  %v2449 = vpack.c.b16 %v1569, %v1553
  %v2450 = vpack.c.b16 %v1570, %v1554
  %v2451 = vpack.c.b16 %v1571, %v1555
  %v2452 = vpack.c.b16 %v1572, %v1556
  %v2453 = vpack.c.b16 %v1573, %v1557
  %v2454 = vpack.c.b16 %v1574, %v1558
  %v2455 = vpack.c.b16 %v1575, %v1559
  %v2456 = vpack.c.b16 %v1576, %v1560
  %v2457 = vpack.c.b16 %v1577, %v1561
  %v2458 = vpack.c.b16 %v1578, %v1562
  %v2459 = vpack.c.b16 %v1579, %v1563
  %v2460 = vpack.c.b16 %v1580, %v1564
  %v2461 = vpack.c.b16 %v1581, %v1565
  %v2462 = vpack.c.b16 %v1598, %v1582
  %v2463 = vpack.c.b16 %v1599, %v1583
  %v2464 = vpack.c.b16 %v1600, %v1584
  %v2465 = vpack.c.b16 %v1601, %v1585
  %v2466 = vpack.c.b16 %v1602, %v1586
  %v2467 = vpack.c.b16 %v1603, %v1587
  %v2468 = vpack.c.b16 %v1604, %v1588
  %v2469 = vpack.c.b16 %v1605, %v1589
  %v2470 = vpack.c.b16 %v1606, %v1590
  %v2471 = vpack.c.b16 %v1607, %v1591
  %v2472 = vpack.c.b16 %v1608, %v1592
  %v2473 = vpack.c.b16 %v1609, %v1593
  %v2474 = vpack.c.b16 %v1610, %v1594
  %v2475 = vpack.c.b16 %v1611, %v1595
  %v2476 = vpack.c.b16 %v1612, %v1596
  %v2477 = vpack.c.b16 %v1613, %v1597
  %v2478 = vpack.c.b16 %v1630, %v1614
  %v2479 = vpack.c.b16 %v1631, %v1615
  %v2480 = vpack.c.b16 %v1632, %v1616
  %v2481 = vpack.c.b16 %v1633, %v1617
  %v2482 = vpack.c.b16 %v1634, %v1618
  %v2483 = vpack.c.b16 %v1635, %v1619
  %v2484 = vpack.c.b16 %v1636, %v1620
  %v2485 = vpack.c.b16 %v1637, %v1621
  %v2486 = vpack.c.b16 %v1638, %v1622
  %v2487 = vpack.c.b16 %v1639, %v1623
  %v2488 = vpack.c.b16 %v1640, %v1624
  %v2489 = vpack.c.b16 %v1641, %v1625
  %v2490 = vpack.c.b16 %v1642, %v1626
  %v2491 = vpack.c.b16 %v1643, %v1627
  %v2492 = vpack.c.b16 %v1644, %v1628
  %v2493 = vpack.c.b16 %v1645, %v1629
  %v2494 = vpack.c.b16 %v1662, %v1646
  %v2495 = vpack.c.b16 %v1663, %v1647
  %v2496 = vpack.c.b16 %v1664, %v1648
  %v2497 = vpack.c.b16 %v1665, %v1649
  %v2498 = vpack.c.b16 %v1666, %v1650
  %v2499 = vpack.c.b16 %v1667, %v1651
  %v2500 = vpack.c.b16 %v1668, %v1652
  %v2501 = vpack.c.b16 %v1669, %v1653
  %v2502 = vpack.c.b16 %v1670, %v1654
  %v2503 = vpack.c.b16 %v1671, %v1655
  %v2504 = vpack.c.b16 %v1672, %v1656
  %v2505 = vpack.c.b16 %v1673, %v1657
  %v2506 = vpack.c.b16 %v1674, %v1658
  %v2507 = vpack.c.b16 %v1675, %v1659
  %v2508 = vpack.c.b16 %v1676, %v1660
  %v2509 = vpack.c.b16 %v1677, %v1661
  %v2510 = vpack.c.b16 %v1694, %v1678
  %v2511 = vpack.c.b16 %v1695, %v1679
  %v2512 = vpack.c.b16 %v1696, %v1680
  %v2513 = vpack.c.b16 %v1697, %v1681
  %v2514 = vpack.c.b16 %v1698, %v1682
  %v2515 = vpack.c.b16 %v1699, %v1683
  %v2516 = vpack.c.b16 %v1700, %v1684
  %v2517 = vpack.c.b16 %v1701, %v1685
  %v2518 = vpack.c.b16 %v1702, %v1686
  %v2519 = vpack.c.b16 %v1703, %v1687
  %v2520 = vpack.c.b16 %v1704, %v1688
  %v2521 = vpack.c.b16 %v1705, %v1689
  %v2522 = vpack.c.b16 %v1706, %v1690
  %v2523 = vpack.c.b16 %v1707, %v1691
  %v2524 = vpack.c.b16 %v1708, %v1692
  %v2525 = vpack.c.b16 %v1709, %v1693
  %v2526 = vpack.c.b16 %v1726, %v1710
  %v2527 = vpack.c.b16 %v1727, %v1711
  %v2528 = vpack.c.b16 %v1728, %v1712
  %v2529 = vpack.c.b16 %v1729, %v1713
  %v2530 = vpack.c.b16 %v1730, %v1714
  %v2531 = vpack.c.b16 %v1731, %v1715
  %v2532 = vpack.c.b16 %v1732, %v1716
  %v2533 = vpack.c.b16 %v1733, %v1717
  %v2534 = vpack.c.b16 %v1734, %v1718
  %v2535 = vpack.c.b16 %v1735, %v1719
  %v2536 = vpack.c.b16 %v1736, %v1720
  %v2537 = vpack.c.b16 %v1737, %v1721
  %v2538 = vpack.c.b16 %v1738, %v1722
  %v2539 = vpack.c.b16 %v1739, %v1723
  %v2540 = vpack.c.b16 %v1740, %v1724
  %v2541 = vpack.c.b16 %v1741, %v1725
  %v2542 = vpack.c.b16 %v1758, %v1742
  %v2543 = vpack.c.b16 %v1759, %v1743
  %v2544 = vpack.c.b16 %v1760, %v1744
  %v2545 = vpack.c.b16 %v1761, %v1745
  %v2546 = vpack.c.b16 %v1762, %v1746
  %v2547 = vpack.c.b16 %v1763, %v1747
  %v2548 = vpack.c.b16 %v1764, %v1748
  %v2549 = vpack.c.b16 %v1765, %v1749
  %v2550 = vpack.c.b16 %v1766, %v1750
  %v2551 = vpack.c.b16 %v1767, %v1751
  %v2552 = vpack.c.b16 %v1768, %v1752
  %v2553 = vpack.c.b16 %v1769, %v1753
  %v2554 = vpack.c.b16 %v1770, %v1754
  %v2555 = vpack.c.b16 %v1771, %v1755
  %v2556 = vpack.c.b16 %v1772, %v1756
  %v2557 = vpack.c.b16 %v1773, %v1757
  %v2558 = vpack.c.b16 %v1790, %v1774
  %v2559 = vpack.c.b16 %v1791, %v1775
  %v2560 = vpack.c.b16 %v1792, %v1776
  %v2561 = vpack.c.b16 %v1793, %v1777
  %v2562 = vpack.c.b16 %v1794, %v1778
  %v2563 = vpack.c.b16 %v1795, %v1779
  %v2564 = vpack.c.b16 %v1796, %v1780
  %v2565 = vpack.c.b16 %v1797, %v1781
  %v2566 = vpack.c.b16 %v1798, %v1782
  %v2567 = vpack.c.b16 %v1799, %v1783
  %v2568 = vpack.c.b16 %v1800, %v1784
  %v2569 = vpack.c.b16 %v1801, %v1785
  %v2570 = vpack.c.b16 %v1802, %v1786
  %v2571 = vpack.c.b16 %v1803, %v1787
  %v2572 = vpack.c.b16 %v1804, %v1788
  %v2573 = vpack.c.b16 %v1805, %v1789
  %v2574 = vpack.c.b16 %v1822, %v1806
  %v2575 = vpack.c.b16 %v1823, %v1807
  %v2576 = vpack.c.b16 %v1824, %v1808
  %v2577 = vpack.c.b16 %v1825, %v1809
  %v2578 = vpack.c.b16 %v1826, %v1810
  %v2579 = vpack.c.b16 %v1827, %v1811
  %v2580 = vpack.c.b16 %v1828, %v1812
  %v2581 = vpack.c.b16 %v1829, %v1813
  %v2582 = vpack.c.b16 %v1830, %v1814
  %v2583 = vpack.c.b16 %v1831, %v1815
  %v2584 = vpack.c.b16 %v1832, %v1816
  %v2585 = vpack.c.b16 %v1833, %v1817
  %v2586 = vpack.c.b16 %v1834, %v1818
  %v2587 = vpack.c.b16 %v1835, %v1819
  %v2588 = vpack.c.b16 %v1836, %v1820
  %v2589 = vpack.c.b16 %v1837, %v1821
  %v2590 = vpack.c.b16 %v1854, %v1838
  %v2591 = vpack.c.b16 %v1855, %v1839
  %v2592 = vpack.c.b16 %v1856, %v1840
  %v2593 = vpack.c.b16 %v1857, %v1841
  %v2594 = vpack.c.b16 %v1858, %v1842
  %v2595 = vpack.c.b16 %v1859, %v1843
  %v2596 = vpack.c.b16 %v1860, %v1844
  %v2597 = vpack.c.b16 %v1861, %v1845
  %v2598 = vpack.c.b16 %v1862, %v1846
  %v2599 = vpack.c.b16 %v1863, %v1847
  %v2600 = vpack.c.b16 %v1864, %v1848
  %v2601 = vpack.c.b16 %v1865, %v1849
  %v2602 = vpack.c.b16 %v1866, %v1850
  %v2603 = vpack.c.b16 %v1867, %v1851
  %v2604 = vpack.c.b16 %v1868, %v1852
  %v2605 = vpack.c.b16 %v1869, %v1853
  %v2606 = vpack.c.b16 %v1886, %v1870
  %v2607 = vpack.c.b16 %v1887, %v1871
  %v2608 = vpack.c.b16 %v1888, %v1872
  %v2609 = vpack.c.b16 %v1889, %v1873
  %v2610 = vpack.c.b16 %v1890, %v1874
  %v2611 = vpack.c.b16 %v1891, %v1875
  %v2612 = vpack.c.b16 %v1892, %v1876
  %v2613 = vpack.c.b16 %v1893, %v1877
  %v2614 = vpack.c.b16 %v1894, %v1878
  %v2615 = vpack.c.b16 %v1895, %v1879
  %v2616 = vpack.c.b16 %v1896, %v1880
  %v2617 = vpack.c.b16 %v1897, %v1881
  %v2618 = vpack.c.b16 %v1898, %v1882
  %v2619 = vpack.c.b16 %v1899, %v1883
  %v2620 = vpack.c.b16 %v1900, %v1884
  %v2621 = vpack.c.b16 %v1901, %v1885
  %v2622 = vpack.c.b16 %v1918, %v1902
  %v2623 = vpack.c.b16 %v1919, %v1903
  %v2624 = vpack.c.b16 %v1920, %v1904
  %v2625 = vpack.c.b16 %v1921, %v1905
  %v2626 = vpack.c.b16 %v1922, %v1906
  %v2627 = vpack.c.b16 %v1923, %v1907
  %v2628 = vpack.c.b16 %v1924, %v1908
  %v2629 = vpack.c.b16 %v1925, %v1909
  %v2630 = vpack.c.b16 %v1926, %v1910
  %v2631 = vpack.c.b16 %v1927, %v1911
  %v2632 = vpack.c.b16 %v1928, %v1912
  %v2633 = vpack.c.b16 %v1929, %v1913
  %v2634 = vpack.c.b16 %v1930, %v1914
  %v2635 = vpack.c.b16 %v1931, %v1915
  %v2636 = vpack.c.b16 %v1932, %v1916
  %v2637 = vpack.c.b16 %v1933, %v1917
  %v2638 = vpack.c.b16 %v1950, %v1934
  %v2639 = vpack.c.b16 %v1951, %v1935
  %v2640 = vpack.c.b16 %v1952, %v1936
  %v2641 = vpack.c.b16 %v1953, %v1937
  %v2642 = vpack.c.b16 %v1954, %v1938
  %v2643 = vpack.c.b16 %v1955, %v1939
  %v2644 = vpack.c.b16 %v1956, %v1940
  %v2645 = vpack.c.b16 %v1957, %v1941
  %v2646 = vpack.c.b16 %v1958, %v1942
  %v2647 = vpack.c.b16 %v1959, %v1943
  %v2648 = vpack.c.b16 %v1960, %v1944
  %v2649 = vpack.c.b16 %v1961, %v1945
  %v2650 = vpack.c.b16 %v1962, %v1946
  %v2651 = vpack.c.b16 %v1963, %v1947
  %v2652 = vpack.c.b16 %v1964, %v1948
  %v2653 = vpack.c.b16 %v1965, %v1949
  %v2654 = vpack.c.b16 %v1982, %v1966
  %v2655 = vpack.c.b16 %v1983, %v1967
  %v2656 = vpack.c.b16 %v1984, %v1968
  %v2657 = vpack.c.b16 %v1985, %v1969
  %v2658 = vpack.c.b16 %v1986, %v1970
  %v2659 = vpack.c.b16 %v1987, %v1971
  %v2660 = vpack.c.b16 %v1988, %v1972
  %v2661 = vpack.c.b16 %v1989, %v1973
  %v2662 = vpack.c.b16 %v1990, %v1974
  %v2663 = vpack.c.b16 %v1991, %v1975
  %v2664 = vpack.c.b16 %v1992, %v1976
  %v2665 = vpack.c.b16 %v1993, %v1977
  %v2666 = vpack.c.b16 %v1994, %v1978
  %v2667 = vpack.c.b16 %v1995, %v1979
  %v2668 = vpack.c.b16 %v1996, %v1980
  %v2669 = vpack.c.b16 %v1997, %v1981
  %v2670 = vpack.c.b16 %v2014, %v1998
  %v2671 = vpack.c.b16 %v2015, %v1999
  %v2672 = vpack.c.b16 %v2016, %v2000
  %v2673 = vpack.c.b16 %v2017, %v2001
  %v2674 = vpack.c.b16 %v2018, %v2002
  %v2675 = vpack.c.b16 %v2019, %v2003
  %v2676 = vpack.c.b16 %v2020, %v2004
  %v2677 = vpack.c.b16 %v2021, %v2005
  %v2678 = vpack.c.b16 %v2022, %v2006
  %v2679 = vpack.c.b16 %v2023, %v2007
  %v2680 = vpack.c.b16 %v2024, %v2008
  %v2681 = vpack.c.b16 %v2025, %v2009
  %v2682 = vpack.c.b16 %v2026, %v2010
  %v2683 = vpack.c.b16 %v2027, %v2011
  %v2684 = vpack.c.b16 %v2028, %v2012
  %v2685 = vpack.c.b16 %v2029, %v2013
  %v2686 = vpack.c.b16 %v2046, %v2030
  %v2687 = vpack.c.b16 %v2047, %v2031
  %v2688 = vpack.c.b16 %v2048, %v2032
  %v2689 = vpack.c.b16 %v2049, %v2033
  %v2690 = vpack.c.b16 %v2050, %v2034
  %v2691 = vpack.c.b16 %v2051, %v2035
  %v2692 = vpack.c.b16 %v2052, %v2036
  %v2693 = vpack.c.b16 %v2053, %v2037
  %v2694 = vpack.c.b16 %v2054, %v2038
  %v2695 = vpack.c.b16 %v2055, %v2039
  %v2696 = vpack.c.b16 %v2056, %v2040
  %v2697 = vpack.c.b16 %v2057, %v2041
  %v2698 = vpack.c.b16 %v2058, %v2042
  %v2699 = vpack.c.b16 %v2059, %v2043
  %v2700 = vpack.c.b16 %v2060, %v2044
  %v2701 = vpack.c.b16 %v2061, %v2045
  %v2702 = vpack.c.b16 %v2078, %v2062
  %v2703 = vpack.c.b16 %v2079, %v2063
  %v2704 = vpack.c.b16 %v2080, %v2064
  %v2705 = vpack.c.b16 %v2081, %v2065
  %v2706 = vpack.c.b16 %v2082, %v2066
  %v2707 = vpack.c.b16 %v2083, %v2067
  %v2708 = vpack.c.b16 %v2084, %v2068
  %v2709 = vpack.c.b16 %v2085, %v2069
  %v2710 = vpack.c.b16 %v2086, %v2070
  %v2711 = vpack.c.b16 %v2087, %v2071
  %v2712 = vpack.c.b16 %v2088, %v2072
  %v2713 = vpack.c.b16 %v2089, %v2073
  %v2714 = vpack.c.b16 %v2090, %v2074
  %v2715 = vpack.c.b16 %v2091, %v2075
  %v2716 = vpack.c.b16 %v2092, %v2076
  %v2717 = vpack.c.b16 %v2093, %v2077
  %v2718 = vpack.c.b16 %v2110, %v2094
  %v2719 = vpack.c.b16 %v2111, %v2095
  %v2720 = vpack.c.b16 %v2112, %v2096
  %v2721 = vpack.c.b16 %v2113, %v2097
  %v2722 = vpack.c.b16 %v2114, %v2098
  %v2723 = vpack.c.b16 %v2115, %v2099
  %v2724 = vpack.c.b16 %v2116, %v2100
  %v2725 = vpack.c.b16 %v2117, %v2101
  %v2726 = vpack.c.b16 %v2118, %v2102
  %v2727 = vpack.c.b16 %v2119, %v2103
  %v2728 = vpack.c.b16 %v2120, %v2104
  %v2729 = vpack.c.b16 %v2121, %v2105
  %v2730 = vpack.c.b16 %v2122, %v2106
  %v2731 = vpack.c.b16 %v2123, %v2107
  %v2732 = vpack.c.b16 %v2124, %v2108
  %v2733 = vpack.c.b16 %v2125, %v2109
  %v2734 = vpack.c.b16 %v2142, %v2126
  %v2735 = vpack.c.b16 %v2143, %v2127
  %v2736 = vpack.c.b16 %v2144, %v2128
  %v2737 = vpack.c.b16 %v2145, %v2129
  %v2738 = vpack.c.b16 %v2146, %v2130
  %v2739 = vpack.c.b16 %v2147, %v2131
  %v2740 = vpack.c.b16 %v2148, %v2132
  %v2741 = vpack.c.b16 %v2149, %v2133
  %v2742 = vpack.c.b16 %v2150, %v2134
  %v2743 = vpack.c.b16 %v2151, %v2135
  %v2744 = vpack.c.b16 %v2152, %v2136
  %v2745 = vpack.c.b16 %v2153, %v2137
  %v2746 = vpack.c.b16 %v2154, %v2138
  %v2747 = vpack.c.b16 %v2155, %v2139
  %v2748 = vpack.c.b16 %v2156, %v2140
  %v2749 = vpack.c.b16 %v2157, %v2141
  %v2750 = vpack.c.b16 %v2174, %v2158
  %v2751 = vpack.c.b16 %v2175, %v2159
  %v2752 = vpack.c.b16 %v2176, %v2160
  %v2753 = vpack.c.b16 %v2177, %v2161
  %v2754 = vpack.c.b16 %v2178, %v2162
  %v2755 = vpack.c.b16 %v2179, %v2163
  %v2756 = vpack.c.b16 %v2180, %v2164
  %v2757 = vpack.c.b16 %v2181, %v2165
  %v2758 = vpack.c.b16 %v2182, %v2166
  %v2759 = vpack.c.b16 %v2183, %v2167
  %v2760 = vpack.c.b16 %v2184, %v2168
  %v2761 = vpack.c.b16 %v2185, %v2169
  %v2762 = vpack.c.b16 %v2186, %v2170
  %v2763 = vpack.c.b16 %v2187, %v2171
  %v2764 = vpack.c.b16 %v2188, %v2172
  %v2765 = vpack.c.b16 %v2189, %v2173
  %v2766 = vpack.c.b16 %v2206, %v2190
  %v2767 = vpack.c.b16 %v2207, %v2191
  %v2768 = vpack.c.b16 %v2208, %v2192
  %v2769 = vpack.c.b16 %v2209, %v2193
  %v2770 = vpack.c.b16 %v2210, %v2194
  %v2771 = vpack.c.b16 %v2211, %v2195
  %v2772 = vpack.c.b16 %v2212, %v2196
  %v2773 = vpack.c.b16 %v2213, %v2197
  %v2774 = vpack.c.b16 %v2214, %v2198
  %v2775 = vpack.c.b16 %v2215, %v2199
  %v2776 = vpack.c.b16 %v2216, %v2200
  %v2777 = vpack.c.b16 %v2217, %v2201
  %v2778 = vpack.c.b16 %v2218, %v2202
  %v2779 = vpack.c.b16 %v2219, %v2203
  %v2780 = vpack.c.b16 %v2220, %v2204
  %v2781 = vpack.c.b16 %v2221, %v2205
  %v2782 = vpack.c.b16 %v2238, %v2222
  %v2783 = vpack.c.b16 %v2239, %v2223
  %v2784 = vpack.c.b16 %v2240, %v2224
  %v2785 = vpack.c.b16 %v2241, %v2225
  %v2786 = vpack.c.b16 %v2242, %v2226
  %v2787 = vpack.c.b16 %v2243, %v2227
  %v2788 = vpack.c.b16 %v2244, %v2228
  %v2789 = vpack.c.b16 %v2245, %v2229
  %v2790 = vpack.c.b16 %v2246, %v2230
  %v2791 = vpack.c.b16 %v2247, %v2231
  %v2792 = vpack.c.b16 %v2248, %v2232
  %v2793 = vpack.c.b16 %v2249, %v2233
  %v2794 = vpack.c.b16 %v2250, %v2234
  %v2795 = vpack.c.b16 %v2251, %v2235
  %v2796 = vpack.c.b16 %v2252, %v2236
  %v2797 = vpack.c.b16 %v2253, %v2237
  %v2798 = vpack.c.b16 %v2270, %v2254
  %v2799 = vpack.c.b16 %v2271, %v2255
  %v2800 = vpack.c.b16 %v2272, %v2256
  %v2801 = vpack.c.b16 %v2273, %v2257
  %v2802 = vpack.c.b16 %v2274, %v2258
  %v2803 = vpack.c.b16 %v2275, %v2259
  %v2804 = vpack.c.b16 %v2276, %v2260
  %v2805 = vpack.c.b16 %v2277, %v2261
  %v2806 = vpack.c.b16 %v2278, %v2262
  %v2807 = vpack.c.b16 %v2279, %v2263
  %v2808 = vpack.c.b16 %v2280, %v2264
  %v2809 = vpack.c.b16 %v2281, %v2265
  %v2810 = vpack.c.b16 %v2282, %v2266
  %v2811 = vpack.c.b16 %v2283, %v2267
  %v2812 = vpack.c.b16 %v2284, %v2268
  %v2813 = vpack.c.b16 %v2285, %v2269
  %v2814 = vpack.c.b16 %v2302, %v2286
  %v2815 = vpack.c.b16 %v2303, %v2287
  %v2816 = vpack.c.b16 %v2304, %v2288
  %v2817 = vpack.c.b16 %v2305, %v2289
  %v2818 = vpack.c.b16 %v2306, %v2290
  %v2819 = vpack.c.b16 %v2307, %v2291
  %v2820 = vpack.c.b16 %v2308, %v2292
  %v2821 = vpack.c.b16 %v2309, %v2293
  %v2822 = vpack.c.b16 %v2310, %v2294
  %v2823 = vpack.c.b16 %v2311, %v2295
  %v2824 = vpack.c.b16 %v2312, %v2296
  %v2825 = vpack.c.b16 %v2313, %v2297
  %v2826 = vpack.c.b16 %v2314, %v2298
  %v2827 = vpack.c.b16 %v2315, %v2299
  %v2828 = vpack.c.b16 %v2316, %v2300
  %v2829 = vpack.c.b16 %v2317, %v2301
  %v3598 = vunpack.c.l.b16 %v526
  %v3599 = vunpack.c.l.b16 %v527
  %v3600 = vunpack.c.l.b16 %v528
  %v3601 = vunpack.c.l.b16 %v529
  %v3602 = vunpack.c.l.b16 %v530
  %v3603 = vunpack.c.l.b16 %v531
  %v3604 = vunpack.c.l.b16 %v532
  %v3605 = vunpack.c.l.b16 %v533
  %v3606 = vunpack.c.l.b16 %v534
  %v3607 = vunpack.c.l.b16 %v535
  %v3608 = vunpack.c.l.b16 %v536
  %v3609 = vunpack.c.l.b16 %v537
  %v3610 = vunpack.c.l.b16 %v538
  %v3611 = vunpack.c.l.b16 %v539
  %v3612 = vunpack.c.l.b16 %v540
  %v3613 = vunpack.c.l.b16 %v541
  %v3614 = vunpack.c.l.b16 %v542
  %v3615 = vunpack.c.l.b16 %v543
  %v3616 = vunpack.c.l.b16 %v544
  %v3617 = vunpack.c.l.b16 %v545
  %v3618 = vunpack.c.l.b16 %v546
  %v3619 = vunpack.c.l.b16 %v547
  %v3620 = vunpack.c.l.b16 %v548
  %v3621 = vunpack.c.l.b16 %v549
  %v3622 = vunpack.c.l.b16 %v550
  %v3623 = vunpack.c.l.b16 %v551
  %v3624 = vunpack.c.l.b16 %v552
  %v3625 = vunpack.c.l.b16 %v553
  %v3626 = vunpack.c.l.b16 %v554
  %v3627 = vunpack.c.l.b16 %v555
  %v3628 = vunpack.c.l.b16 %v556
  %v3629 = vunpack.c.l.b16 %v557
  %v3630 = vunpack.c.l.b16 %v558
  %v3631 = vunpack.c.l.b16 %v559
  %v3632 = vunpack.c.l.b16 %v560
  %v3633 = vunpack.c.l.b16 %v561
  %v3634 = vunpack.c.l.b16 %v562
  %v3635 = vunpack.c.l.b16 %v563
  %v3636 = vunpack.c.l.b16 %v564
  %v3637 = vunpack.c.l.b16 %v565
  %v3638 = vunpack.c.l.b16 %v566
  %v3639 = vunpack.c.l.b16 %v567
  %v3640 = vunpack.c.l.b16 %v568
  %v3641 = vunpack.c.l.b16 %v569
  %v3642 = vunpack.c.l.b16 %v570
  %v3643 = vunpack.c.l.b16 %v571
  %v3644 = vunpack.c.l.b16 %v572
  %v3645 = vunpack.c.l.b16 %v573
  %v3646 = vunpack.c.l.b16 %v574
  %v3647 = vunpack.c.l.b16 %v575
  %v3648 = vunpack.c.l.b16 %v576
  %v3649 = vunpack.c.l.b16 %v577
  %v3650 = vunpack.c.l.b16 %v578
  %v3651 = vunpack.c.l.b16 %v579
  %v3652 = vunpack.c.l.b16 %v580
  %v3653 = vunpack.c.l.b16 %v581
  %v3654 = vunpack.c.l.b16 %v582
  %v3655 = vunpack.c.l.b16 %v583
  %v3656 = vunpack.c.l.b16 %v584
  %v3657 = vunpack.c.l.b16 %v585
  %v3658 = vunpack.c.l.b16 %v586
  %v3659 = vunpack.c.l.b16 %v587
  %v3660 = vunpack.c.l.b16 %v588
  %v3661 = vunpack.c.l.b16 %v589
  %v3662 = vunpack.c.l.b16 %v590
  %v3663 = vunpack.c.l.b16 %v591
  %v3664 = vunpack.c.l.b16 %v592
  %v3665 = vunpack.c.l.b16 %v593
  %v3666 = vunpack.c.l.b16 %v594
  %v3667 = vunpack.c.l.b16 %v595
  %v3668 = vunpack.c.l.b16 %v596
  %v3669 = vunpack.c.l.b16 %v597
  %v3670 = vunpack.c.l.b16 %v598
  %v3671 = vunpack.c.l.b16 %v599
  %v3672 = vunpack.c.l.b16 %v600
  %v3673 = vunpack.c.l.b16 %v601
  %v3674 = vunpack.c.l.b16 %v602
  %v3675 = vunpack.c.l.b16 %v603
  %v3676 = vunpack.c.l.b16 %v604
  %v3677 = vunpack.c.l.b16 %v605
  %v3678 = vunpack.c.l.b16 %v606
  %v3679 = vunpack.c.l.b16 %v607
  %v3680 = vunpack.c.l.b16 %v608
  %v3681 = vunpack.c.l.b16 %v609
  %v3682 = vunpack.c.l.b16 %v610
  %v3683 = vunpack.c.l.b16 %v611
  %v3684 = vunpack.c.l.b16 %v612
  %v3685 = vunpack.c.l.b16 %v613
  %v3686 = vunpack.c.l.b16 %v614
  %v3687 = vunpack.c.l.b16 %v615
  %v3688 = vunpack.c.l.b16 %v616
  %v3689 = vunpack.c.l.b16 %v617
  %v3690 = vunpack.c.l.b16 %v618
  %v3691 = vunpack.c.l.b16 %v619
  %v3692 = vunpack.c.l.b16 %v620
  %v3693 = vunpack.c.l.b16 %v621
  %v3694 = vunpack.c.l.b16 %v622
  %v3695 = vunpack.c.l.b16 %v623
  %v3696 = vunpack.c.l.b16 %v624
  %v3697 = vunpack.c.l.b16 %v625
  %v3698 = vunpack.c.l.b16 %v626
  %v3699 = vunpack.c.l.b16 %v627
  %v3700 = vunpack.c.l.b16 %v628
  %v3701 = vunpack.c.l.b16 %v629
  %v3702 = vunpack.c.l.b16 %v630
  %v3703 = vunpack.c.l.b16 %v631
  %v3704 = vunpack.c.l.b16 %v632
  %v3705 = vunpack.c.l.b16 %v633
  %v3706 = vunpack.c.l.b16 %v634
  %v3707 = vunpack.c.l.b16 %v635
  %v3708 = vunpack.c.l.b16 %v636
  %v3709 = vunpack.c.l.b16 %v637
  %v3710 = vunpack.c.l.b16 %v638
  %v3711 = vunpack.c.l.b16 %v639
  %v3712 = vunpack.c.l.b16 %v640
  %v3713 = vunpack.c.l.b16 %v641
  %v3714 = vunpack.c.l.b16 %v642
  %v3715 = vunpack.c.l.b16 %v643
  %v3716 = vunpack.c.l.b16 %v644
  %v3717 = vunpack.c.l.b16 %v645
  %v3718 = vunpack.c.l.b16 %v646
  %v3719 = vunpack.c.l.b16 %v647
  %v3720 = vunpack.c.l.b16 %v648
  %v3721 = vunpack.c.l.b16 %v649
  %v3722 = vunpack.c.l.b16 %v650
  %v3723 = vunpack.c.l.b16 %v651
  %v3724 = vunpack.c.l.b16 %v652
  %v3725 = vunpack.c.l.b16 %v653
  %v3726 = vunpack.c.l.b16 %v654
  %v3727 = vunpack.c.l.b16 %v655
  %v3728 = vunpack.c.l.b16 %v656
  %v3729 = vunpack.c.l.b16 %v657
  %v3730 = vunpack.c.l.b16 %v658
  %v3731 = vunpack.c.l.b16 %v659
  %v3732 = vunpack.c.l.b16 %v660
  %v3733 = vunpack.c.l.b16 %v661
  %v3734 = vunpack.c.l.b16 %v662
  %v3735 = vunpack.c.l.b16 %v663
  %v3736 = vunpack.c.l.b16 %v664
  %v3737 = vunpack.c.l.b16 %v665
  %v3738 = vunpack.c.l.b16 %v666
  %v3739 = vunpack.c.l.b16 %v667
  %v3740 = vunpack.c.l.b16 %v668
  %v3741 = vunpack.c.l.b16 %v669
  %v3742 = vunpack.c.l.b16 %v670
  %v3743 = vunpack.c.l.b16 %v671
  %v3744 = vunpack.c.l.b16 %v672
  %v3745 = vunpack.c.l.b16 %v673
  %v3746 = vunpack.c.l.b16 %v674
  %v3747 = vunpack.c.l.b16 %v675
  %v3748 = vunpack.c.l.b16 %v676
  %v3749 = vunpack.c.l.b16 %v677
  %v3750 = vunpack.c.l.b16 %v678
  %v3751 = vunpack.c.l.b16 %v679
  %v3752 = vunpack.c.l.b16 %v680
  %v3753 = vunpack.c.l.b16 %v681
  %v3754 = vunpack.c.l.b16 %v682
  %v3755 = vunpack.c.l.b16 %v683
  %v3756 = vunpack.c.l.b16 %v684
  %v3757 = vunpack.c.l.b16 %v685
  %v3758 = vunpack.c.l.b16 %v686
  %v3759 = vunpack.c.l.b16 %v687
  %v3760 = vunpack.c.l.b16 %v688
  %v3761 = vunpack.c.l.b16 %v689
  %v3762 = vunpack.c.l.b16 %v690
  %v3763 = vunpack.c.l.b16 %v691
  %v3764 = vunpack.c.l.b16 %v692
  %v3765 = vunpack.c.l.b16 %v693
  %v3766 = vunpack.c.l.b16 %v694
  %v3767 = vunpack.c.l.b16 %v695
  %v3768 = vunpack.c.l.b16 %v696
  %v3769 = vunpack.c.l.b16 %v697
  %v3770 = vunpack.c.l.b16 %v698
  %v3771 = vunpack.c.l.b16 %v699
  %v3772 = vunpack.c.l.b16 %v700
  %v3773 = vunpack.c.l.b16 %v701
  %v3774 = vunpack.c.l.b16 %v702
  %v3775 = vunpack.c.l.b16 %v703
  %v3776 = vunpack.c.l.b16 %v704
  %v3777 = vunpack.c.l.b16 %v705
  %v3778 = vunpack.c.l.b16 %v706
  %v3779 = vunpack.c.l.b16 %v707
  %v3780 = vunpack.c.l.b16 %v708
  %v3781 = vunpack.c.l.b16 %v709
  %v3782 = vunpack.c.l.b16 %v710
  %v3783 = vunpack.c.l.b16 %v711
  %v3784 = vunpack.c.l.b16 %v712
  %v3785 = vunpack.c.l.b16 %v713
  %v3786 = vunpack.c.l.b16 %v714
  %v3787 = vunpack.c.l.b16 %v715
  %v3788 = vunpack.c.l.b16 %v716
  %v3789 = vunpack.c.l.b16 %v717
  %v3790 = vunpack.c.l.b16 %v718
  %v3791 = vunpack.c.l.b16 %v719
  %v3792 = vunpack.c.l.b16 %v720
  %v3793 = vunpack.c.l.b16 %v721
  %v3794 = vunpack.c.l.b16 %v722
  %v3795 = vunpack.c.l.b16 %v723
  %v3796 = vunpack.c.l.b16 %v724
  %v3797 = vunpack.c.l.b16 %v725
  %v3798 = vunpack.c.l.b16 %v726
  %v3799 = vunpack.c.l.b16 %v727
  %v3800 = vunpack.c.l.b16 %v728
  %v3801 = vunpack.c.l.b16 %v729
  %v3802 = vunpack.c.l.b16 %v730
  %v3803 = vunpack.c.l.b16 %v731
  %v3804 = vunpack.c.l.b16 %v732
  %v3805 = vunpack.c.l.b16 %v733
  %v3806 = vunpack.c.l.b16 %v734
  %v3807 = vunpack.c.l.b16 %v735
  %v3808 = vunpack.c.l.b16 %v736
  %v3809 = vunpack.c.l.b16 %v737
  %v3810 = vunpack.c.l.b16 %v738
  %v3811 = vunpack.c.l.b16 %v739
  %v3812 = vunpack.c.l.b16 %v740
  %v3813 = vunpack.c.l.b16 %v741
  %v3814 = vunpack.c.l.b16 %v742
  %v3815 = vunpack.c.l.b16 %v743
  %v3816 = vunpack.c.l.b16 %v744
  %v3817 = vunpack.c.l.b16 %v745
  %v3818 = vunpack.c.l.b16 %v746
  %v3819 = vunpack.c.l.b16 %v747
  %v3820 = vunpack.c.l.b16 %v748
  %v3821 = vunpack.c.l.b16 %v749
  %v3822 = vunpack.c.l.b16 %v750
  %v3823 = vunpack.c.l.b16 %v751
  %v3824 = vunpack.c.l.b16 %v752
  %v3825 = vunpack.c.l.b16 %v753
  %v3826 = vunpack.c.l.b16 %v754
  %v3827 = vunpack.c.l.b16 %v755
  %v3828 = vunpack.c.l.b16 %v756
  %v3829 = vunpack.c.l.b16 %v757
  %v3830 = vunpack.c.l.b16 %v758
  %v3831 = vunpack.c.l.b16 %v759
  %v3832 = vunpack.c.l.b16 %v760
  %v3833 = vunpack.c.l.b16 %v761
  %v3834 = vunpack.c.l.b16 %v762
  %v3835 = vunpack.c.l.b16 %v763
  %v3836 = vunpack.c.l.b16 %v764
  %v3837 = vunpack.c.l.b16 %v765
  %v3838 = vunpack.c.l.b16 %v766
  %v3839 = vunpack.c.l.b16 %v767
  %v3840 = vunpack.c.l.b16 %v768
  %v3841 = vunpack.c.l.b16 %v769
  %v3842 = vunpack.c.l.b16 %v770
  %v3843 = vunpack.c.l.b16 %v771
  %v3844 = vunpack.c.l.b16 %v772
  %v3845 = vunpack.c.l.b16 %v773
  %v3846 = vunpack.c.l.b16 %v774
  %v3847 = vunpack.c.l.b16 %v775
  %v3848 = vunpack.c.l.b16 %v776
  %v3849 = vunpack.c.l.b16 %v777
  %v3850 = vunpack.c.l.b16 %v778
  %v3851 = vunpack.c.l.b16 %v779
  %v3852 = vunpack.c.l.b16 %v780
  %v3853 = vunpack.c.l.b16 %v781
  %v3854 = vpack.c.b16 %v3599, %v3598
  %v3855 = vpack.c.b16 %v3601, %v3600
  %v3856 = vpack.c.b16 %v3603, %v3602
  %v3857 = vpack.c.b16 %v3605, %v3604
  %v3858 = vpack.c.b16 %v3607, %v3606
  %v3859 = vpack.c.b16 %v3609, %v3608
  %v3860 = vpack.c.b16 %v3611, %v3610
  %v3861 = vpack.c.b16 %v3613, %v3612
  %v3862 = vpack.c.b16 %v3615, %v3614
  %v3863 = vpack.c.b16 %v3617, %v3616
  %v3864 = vpack.c.b16 %v3619, %v3618
  %v3865 = vpack.c.b16 %v3621, %v3620
  %v3866 = vpack.c.b16 %v3623, %v3622
  %v3867 = vpack.c.b16 %v3625, %v3624
  %v3868 = vpack.c.b16 %v3627, %v3626
  %v3869 = vpack.c.b16 %v3629, %v3628
  %v3870 = vpack.c.b16 %v3631, %v3630
  %v3871 = vpack.c.b16 %v3633, %v3632
  %v3872 = vpack.c.b16 %v3635, %v3634
  %v3873 = vpack.c.b16 %v3637, %v3636
  %v3874 = vpack.c.b16 %v3639, %v3638
  %v3875 = vpack.c.b16 %v3641, %v3640
  %v3876 = vpack.c.b16 %v3643, %v3642
  %v3877 = vpack.c.b16 %v3645, %v3644
  %v3878 = vpack.c.b16 %v3647, %v3646
  %v3879 = vpack.c.b16 %v3649, %v3648
  %v3880 = vpack.c.b16 %v3651, %v3650
  %v3881 = vpack.c.b16 %v3653, %v3652
  %v3882 = vpack.c.b16 %v3655, %v3654
  %v3883 = vpack.c.b16 %v3657, %v3656
  %v3884 = vpack.c.b16 %v3659, %v3658
  %v3885 = vpack.c.b16 %v3661, %v3660
  %v3886 = vpack.c.b16 %v3663, %v3662
  %v3887 = vpack.c.b16 %v3665, %v3664
  %v3888 = vpack.c.b16 %v3667, %v3666
  %v3889 = vpack.c.b16 %v3669, %v3668
  %v3890 = vpack.c.b16 %v3671, %v3670
  %v3891 = vpack.c.b16 %v3673, %v3672
  %v3892 = vpack.c.b16 %v3675, %v3674
  %v3893 = vpack.c.b16 %v3677, %v3676
  %v3894 = vpack.c.b16 %v3679, %v3678
  %v3895 = vpack.c.b16 %v3681, %v3680
  %v3896 = vpack.c.b16 %v3683, %v3682
  %v3897 = vpack.c.b16 %v3685, %v3684
  %v3898 = vpack.c.b16 %v3687, %v3686
  %v3899 = vpack.c.b16 %v3689, %v3688
  %v3900 = vpack.c.b16 %v3691, %v3690
  %v3901 = vpack.c.b16 %v3693, %v3692
  %v3902 = vpack.c.b16 %v3695, %v3694
  %v3903 = vpack.c.b16 %v3697, %v3696
  %v3904 = vpack.c.b16 %v3699, %v3698
  %v3905 = vpack.c.b16 %v3701, %v3700
  %v3906 = vpack.c.b16 %v3703, %v3702
  %v3907 = vpack.c.b16 %v3705, %v3704
  %v3908 = vpack.c.b16 %v3707, %v3706
  %v3909 = vpack.c.b16 %v3709, %v3708
  %v3910 = vpack.c.b16 %v3711, %v3710
  %v3911 = vpack.c.b16 %v3713, %v3712
  %v3912 = vpack.c.b16 %v3715, %v3714
  %v3913 = vpack.c.b16 %v3717, %v3716
  %v3914 = vpack.c.b16 %v3719, %v3718
  %v3915 = vpack.c.b16 %v3721, %v3720
  %v3916 = vpack.c.b16 %v3723, %v3722
  %v3917 = vpack.c.b16 %v3725, %v3724
  %v3918 = vpack.c.b16 %v3727, %v3726
  %v3919 = vpack.c.b16 %v3729, %v3728
  %v3920 = vpack.c.b16 %v3731, %v3730
  %v3921 = vpack.c.b16 %v3733, %v3732
  %v3922 = vpack.c.b16 %v3735, %v3734
  %v3923 = vpack.c.b16 %v3737, %v3736
  %v3924 = vpack.c.b16 %v3739, %v3738
  %v3925 = vpack.c.b16 %v3741, %v3740
  %v3926 = vpack.c.b16 %v3743, %v3742
  %v3927 = vpack.c.b16 %v3745, %v3744
  %v3928 = vpack.c.b16 %v3747, %v3746
  %v3929 = vpack.c.b16 %v3749, %v3748
  %v3930 = vpack.c.b16 %v3751, %v3750
  %v3931 = vpack.c.b16 %v3753, %v3752
  %v3932 = vpack.c.b16 %v3755, %v3754
  %v3933 = vpack.c.b16 %v3757, %v3756
  %v3934 = vpack.c.b16 %v3759, %v3758
  %v3935 = vpack.c.b16 %v3761, %v3760
  %v3936 = vpack.c.b16 %v3763, %v3762
  %v3937 = vpack.c.b16 %v3765, %v3764
  %v3938 = vpack.c.b16 %v3767, %v3766
  %v3939 = vpack.c.b16 %v3769, %v3768
  %v3940 = vpack.c.b16 %v3771, %v3770
  %v3941 = vpack.c.b16 %v3773, %v3772
  %v3942 = vpack.c.b16 %v3775, %v3774
  %v3943 = vpack.c.b16 %v3777, %v3776
  %v3944 = vpack.c.b16 %v3779, %v3778
  %v3945 = vpack.c.b16 %v3781, %v3780
  %v3946 = vpack.c.b16 %v3783, %v3782
  %v3947 = vpack.c.b16 %v3785, %v3784
  %v3948 = vpack.c.b16 %v3787, %v3786
  %v3949 = vpack.c.b16 %v3789, %v3788
  %v3950 = vpack.c.b16 %v3791, %v3790
  %v3951 = vpack.c.b16 %v3793, %v3792
  %v3952 = vpack.c.b16 %v3795, %v3794
  %v3953 = vpack.c.b16 %v3797, %v3796
  %v3954 = vpack.c.b16 %v3799, %v3798
  %v3955 = vpack.c.b16 %v3801, %v3800
  %v3956 = vpack.c.b16 %v3803, %v3802
  %v3957 = vpack.c.b16 %v3805, %v3804
  %v3958 = vpack.c.b16 %v3807, %v3806
  %v3959 = vpack.c.b16 %v3809, %v3808
  %v3960 = vpack.c.b16 %v3811, %v3810
  %v3961 = vpack.c.b16 %v3813, %v3812
  %v3962 = vpack.c.b16 %v3815, %v3814
  %v3963 = vpack.c.b16 %v3817, %v3816
  %v3964 = vpack.c.b16 %v3819, %v3818
  %v3965 = vpack.c.b16 %v3821, %v3820
  %v3966 = vpack.c.b16 %v3823, %v3822
  %v3967 = vpack.c.b16 %v3825, %v3824
  %v3968 = vpack.c.b16 %v3827, %v3826
  %v3969 = vpack.c.b16 %v3829, %v3828
  %v3970 = vpack.c.b16 %v3831, %v3830
  %v3971 = vpack.c.b16 %v3833, %v3832
  %v3972 = vpack.c.b16 %v3835, %v3834
  %v3973 = vpack.c.b16 %v3837, %v3836
  %v3974 = vpack.c.b16 %v3839, %v3838
  %v3975 = vpack.c.b16 %v3841, %v3840
  %v3976 = vpack.c.b16 %v3843, %v3842
  %v3977 = vpack.c.b16 %v3845, %v3844
  %v3978 = vpack.c.b16 %v3847, %v3846
  %v3979 = vpack.c.b16 %v3849, %v3848
  %v3980 = vpack.c.b16 %v3851, %v3850
  %v3981 = vpack.c.b16 %v3853, %v3852
  %4110 = vmatpush.bf16.msra.mxu0 %v3861
  %4111 = vmatpush.bf16.msra.mxu0 %v3860
  %4112 = vmatpush.bf16.msra.mxu0 %v3859
  %4113 = vmatpush.bf16.msra.mxu0 %v3858
  %4114 = vmatpush.bf16.msra.mxu0 %v3857
  %4115 = vmatpush.bf16.msra.mxu0 %v3856
  %4116 = vmatpush.bf16.msra.mxu0 %v3855
  %4117 = vmatpush.bf16.msra.mxu0 %v3854
  %4118 = vmatmul.bf16.gmra.mxu0 %v2318
  %v4119 = vpop.f32.mrf.mxu0
  %v4120 = vadd.f32 0.0, %v4119
  %v4121 = vpop.f32.mrf.mxu0
  %v4122 = vadd.f32 0.0, %v4121
  %4123 = vmatmul.bf16.gmra.mxu0 %v2334
  %v4124 = vpop.f32.mrf.mxu0
  %v4125 = vadd.f32 0.0, %v4124
  %v4126 = vpop.f32.mrf.mxu0
  %v4127 = vadd.f32 0.0, %v4126
  %4128 = vmatmul.bf16.gmra.mxu0 %v2350
  %v4129 = vpop.f32.mrf.mxu0
  %v4130 = vadd.f32 0.0, %v4129
  %v4131 = vpop.f32.mrf.mxu0
  %v4132 = vadd.f32 0.0, %v4131
  %4133 = vmatmul.bf16.gmra.mxu0 %v2366
  %v4134 = vpop.f32.mrf.mxu0
  %v4135 = vadd.f32 0.0, %v4134
  %v4136 = vpop.f32.mrf.mxu0
  %v4137 = vadd.f32 0.0, %v4136
  %4138 = vmatmul.bf16.gmra.mxu0 %v2382
  %v4139 = vpop.f32.mrf.mxu0
  %v4140 = vadd.f32 0.0, %v4139
  %v4141 = vpop.f32.mrf.mxu0
  %v4142 = vadd.f32 0.0, %v4141
  %4143 = vmatmul.bf16.gmra.mxu0 %v2398
  %v4144 = vpop.f32.mrf.mxu0
  %v4145 = vadd.f32 0.0, %v4144
  %v4146 = vpop.f32.mrf.mxu0
  %v4147 = vadd.f32 0.0, %v4146
  %4148 = vmatmul.bf16.gmra.mxu0 %v2414
  %v4149 = vpop.f32.mrf.mxu0
  %v4150 = vadd.f32 0.0, %v4149
  %v4151 = vpop.f32.mrf.mxu0
  %v4152 = vadd.f32 0.0, %v4151
  %4153 = vmatmul.bf16.gmra.mxu0 %v2430
  %v4154 = vpop.f32.mrf.mxu0
  %v4155 = vadd.f32 0.0, %v4154
  %v4156 = vpop.f32.mrf.mxu0
  %v4157 = vadd.f32 0.0, %v4156
  %4158 = vmatmul.bf16.gmra.mxu0 %v2446
  %v4159 = vpop.f32.mrf.mxu0
  %v4160 = vadd.f32 0.0, %v4159
  %v4161 = vpop.f32.mrf.mxu0
  %v4162 = vadd.f32 0.0, %v4161
  %4163 = vmatmul.bf16.gmra.mxu0 %v2462
  %v4164 = vpop.f32.mrf.mxu0
  %v4165 = vadd.f32 0.0, %v4164
  %v4166 = vpop.f32.mrf.mxu0
  %v4167 = vadd.f32 0.0, %v4166
  %4168 = vmatmul.bf16.gmra.mxu0 %v2478
  %v4169 = vpop.f32.mrf.mxu0
  %v4170 = vadd.f32 0.0, %v4169
  %v4171 = vpop.f32.mrf.mxu0
  %v4172 = vadd.f32 0.0, %v4171
  %4173 = vmatmul.bf16.gmra.mxu0 %v2494
  %v4174 = vpop.f32.mrf.mxu0
  %v4175 = vadd.f32 0.0, %v4174
  %v4176 = vpop.f32.mrf.mxu0
  %v4177 = vadd.f32 0.0, %v4176
  %4178 = vmatmul.bf16.gmra.mxu0 %v2510
  %v4179 = vpop.f32.mrf.mxu0
  %v4180 = vadd.f32 0.0, %v4179
  %v4181 = vpop.f32.mrf.mxu0
  %v4182 = vadd.f32 0.0, %v4181
  %4183 = vmatmul.bf16.gmra.mxu0 %v2526
  %v4184 = vpop.f32.mrf.mxu0
  %v4185 = vadd.f32 0.0, %v4184
  %v4186 = vpop.f32.mrf.mxu0
  %v4187 = vadd.f32 0.0, %v4186
  %4188 = vmatmul.bf16.gmra.mxu0 %v2542
  %v4189 = vpop.f32.mrf.mxu0
  %v4190 = vadd.f32 0.0, %v4189
  %v4191 = vpop.f32.mrf.mxu0
  %v4192 = vadd.f32 0.0, %v4191
  %4193 = vmatmul.bf16.gmra.mxu0 %v2558
  %v4194 = vpop.f32.mrf.mxu0
  %v4195 = vadd.f32 0.0, %v4194
  %v4196 = vpop.f32.mrf.mxu0
  %v4197 = vadd.f32 0.0, %v4196
  %4198 = vmatmul.bf16.gmra.mxu0 %v2574
  %v4199 = vpop.f32.mrf.mxu0
  %v4200 = vadd.f32 0.0, %v4199
  %v4201 = vpop.f32.mrf.mxu0
  %v4202 = vadd.f32 0.0, %v4201
  %4203 = vmatmul.bf16.gmra.mxu0 %v2590
  %v4204 = vpop.f32.mrf.mxu0
  %v4205 = vadd.f32 0.0, %v4204
  %v4206 = vpop.f32.mrf.mxu0
  %v4207 = vadd.f32 0.0, %v4206
  %4208 = vmatmul.bf16.gmra.mxu0 %v2606
  %v4209 = vpop.f32.mrf.mxu0
  %v4210 = vadd.f32 0.0, %v4209
  %v4211 = vpop.f32.mrf.mxu0
  %v4212 = vadd.f32 0.0, %v4211
  %4213 = vmatmul.bf16.gmra.mxu0 %v2622
  %v4214 = vpop.f32.mrf.mxu0
  %v4215 = vadd.f32 0.0, %v4214
  %v4216 = vpop.f32.mrf.mxu0
  %v4217 = vadd.f32 0.0, %v4216
  %4218 = vmatmul.bf16.gmra.mxu0 %v2638
  %v4219 = vpop.f32.mrf.mxu0
  %v4220 = vadd.f32 0.0, %v4219
  %v4221 = vpop.f32.mrf.mxu0
  %v4222 = vadd.f32 0.0, %v4221
  %4223 = vmatmul.bf16.gmra.mxu0 %v2654
  %v4224 = vpop.f32.mrf.mxu0
  %v4225 = vadd.f32 0.0, %v4224
  %v4226 = vpop.f32.mrf.mxu0
  %v4227 = vadd.f32 0.0, %v4226
  %4228 = vmatmul.bf16.gmra.mxu0 %v2670
  %v4229 = vpop.f32.mrf.mxu0
  %v4230 = vadd.f32 0.0, %v4229
  %v4231 = vpop.f32.mrf.mxu0
  %v4232 = vadd.f32 0.0, %v4231
  %4233 = vmatmul.bf16.gmra.mxu0 %v2686
  %v4234 = vpop.f32.mrf.mxu0
  %v4235 = vadd.f32 0.0, %v4234
  %v4236 = vpop.f32.mrf.mxu0
  %v4237 = vadd.f32 0.0, %v4236
  %4238 = vmatmul.bf16.gmra.mxu0 %v2702
  %v4239 = vpop.f32.mrf.mxu0
  %v4240 = vadd.f32 0.0, %v4239
  %v4241 = vpop.f32.mrf.mxu0
  %v4242 = vadd.f32 0.0, %v4241
  %4243 = vmatmul.bf16.gmra.mxu0 %v2718
  %v4244 = vpop.f32.mrf.mxu0
  %v4245 = vadd.f32 0.0, %v4244
  %v4246 = vpop.f32.mrf.mxu0
  %v4247 = vadd.f32 0.0, %v4246
  %4248 = vmatmul.bf16.gmra.mxu0 %v2734
  %v4249 = vpop.f32.mrf.mxu0
  %v4250 = vadd.f32 0.0, %v4249
  %v4251 = vpop.f32.mrf.mxu0
  %v4252 = vadd.f32 0.0, %v4251
  %4253 = vmatmul.bf16.gmra.mxu0 %v2750
  %v4254 = vpop.f32.mrf.mxu0
  %v4255 = vadd.f32 0.0, %v4254
  %v4256 = vpop.f32.mrf.mxu0
  %v4257 = vadd.f32 0.0, %v4256
  %4258 = vmatmul.bf16.gmra.mxu0 %v2766
  %v4259 = vpop.f32.mrf.mxu0
  %v4260 = vadd.f32 0.0, %v4259
  %v4261 = vpop.f32.mrf.mxu0
  %v4262 = vadd.f32 0.0, %v4261
  %4263 = vmatmul.bf16.gmra.mxu0 %v2782
  %v4264 = vpop.f32.mrf.mxu0
  %v4265 = vadd.f32 0.0, %v4264
  %v4266 = vpop.f32.mrf.mxu0
  %v4267 = vadd.f32 0.0, %v4266
  %4268 = vmatmul.bf16.gmra.mxu0 %v2798
  %v4269 = vpop.f32.mrf.mxu0
  %v4270 = vadd.f32 0.0, %v4269
  %v4271 = vpop.f32.mrf.mxu0
  %v4272 = vadd.f32 0.0, %v4271
  %4273 = vmatmul.bf16.gmra.mxu0 %v2814
  %v4274 = vpop.f32.mrf.mxu0
  %v4275 = vadd.f32 0.0, %v4274
  %v4276 = vpop.f32.mrf.mxu0
  %v4277 = vadd.f32 0.0, %v4276
  %4278 = vdwg.mxu0
  %4279 = vmatpush.bf16.msra.mxu0 %v3869
  %4280 = vmatpush.bf16.msra.mxu0 %v3868
  %4281 = vmatpush.bf16.msra.mxu0 %v3867
  %4282 = vmatpush.bf16.msra.mxu0 %v3866
  %4283 = vmatpush.bf16.msra.mxu0 %v3865
  %4284 = vmatpush.bf16.msra.mxu0 %v3864
  %4285 = vmatpush.bf16.msra.mxu0 %v3863
  %4286 = vmatpush.bf16.msra.mxu0 %v3862
  %4287 = vmatmul.bf16.gmra.mxu0 %v2319
  %v4288 = vpop.f32.mrf.mxu0
  %v4289 = vadd.f32 %v4120, %v4288
  %v4290 = vpop.f32.mrf.mxu0
  %v4291 = vadd.f32 %v4122, %v4290
  %4292 = vmatmul.bf16.gmra.mxu0 %v2335
  %v4293 = vpop.f32.mrf.mxu0
  %v4294 = vadd.f32 %v4125, %v4293
  %v4295 = vpop.f32.mrf.mxu0
  %v4296 = vadd.f32 %v4127, %v4295
  %4297 = vmatmul.bf16.gmra.mxu0 %v2351
  %v4298 = vpop.f32.mrf.mxu0
  %v4299 = vadd.f32 %v4130, %v4298
  %v4300 = vpop.f32.mrf.mxu0
  %v4301 = vadd.f32 %v4132, %v4300
  %4302 = vmatmul.bf16.gmra.mxu0 %v2367
  %v4303 = vpop.f32.mrf.mxu0
  %v4304 = vadd.f32 %v4135, %v4303
  %v4305 = vpop.f32.mrf.mxu0
  %v4306 = vadd.f32 %v4137, %v4305
  %4307 = vmatmul.bf16.gmra.mxu0 %v2383
  %v4308 = vpop.f32.mrf.mxu0
  %v4309 = vadd.f32 %v4140, %v4308
  %v4310 = vpop.f32.mrf.mxu0
  %v4311 = vadd.f32 %v4142, %v4310
  %4312 = vmatmul.bf16.gmra.mxu0 %v2399
  %v4313 = vpop.f32.mrf.mxu0
  %v4314 = vadd.f32 %v4145, %v4313
  %v4315 = vpop.f32.mrf.mxu0
  %v4316 = vadd.f32 %v4147, %v4315
  %4317 = vmatmul.bf16.gmra.mxu0 %v2415
  %v4318 = vpop.f32.mrf.mxu0
  %v4319 = vadd.f32 %v4150, %v4318
  %v4320 = vpop.f32.mrf.mxu0
  %v4321 = vadd.f32 %v4152, %v4320
  %4322 = vmatmul.bf16.gmra.mxu0 %v2431
  %v4323 = vpop.f32.mrf.mxu0
  %v4324 = vadd.f32 %v4155, %v4323
  %v4325 = vpop.f32.mrf.mxu0
  %v4326 = vadd.f32 %v4157, %v4325
  %4327 = vmatmul.bf16.gmra.mxu0 %v2447
  %v4328 = vpop.f32.mrf.mxu0
  %v4329 = vadd.f32 %v4160, %v4328
  %v4330 = vpop.f32.mrf.mxu0
  %v4331 = vadd.f32 %v4162, %v4330
  %4332 = vmatmul.bf16.gmra.mxu0 %v2463
  %v4333 = vpop.f32.mrf.mxu0
  %v4334 = vadd.f32 %v4165, %v4333
  %v4335 = vpop.f32.mrf.mxu0
  %v4336 = vadd.f32 %v4167, %v4335
  %4337 = vmatmul.bf16.gmra.mxu0 %v2479
  %v4338 = vpop.f32.mrf.mxu0
  %v4339 = vadd.f32 %v4170, %v4338
  %v4340 = vpop.f32.mrf.mxu0
  %v4341 = vadd.f32 %v4172, %v4340
  %4342 = vmatmul.bf16.gmra.mxu0 %v2495
  %v4343 = vpop.f32.mrf.mxu0
  %v4344 = vadd.f32 %v4175, %v4343
  %v4345 = vpop.f32.mrf.mxu0
  %v4346 = vadd.f32 %v4177, %v4345
  %4347 = vmatmul.bf16.gmra.mxu0 %v2511
  %v4348 = vpop.f32.mrf.mxu0
  %v4349 = vadd.f32 %v4180, %v4348
  %v4350 = vpop.f32.mrf.mxu0
  %v4351 = vadd.f32 %v4182, %v4350
  %4352 = vmatmul.bf16.gmra.mxu0 %v2527
  %v4353 = vpop.f32.mrf.mxu0
  %v4354 = vadd.f32 %v4185, %v4353
  %v4355 = vpop.f32.mrf.mxu0
  %v4356 = vadd.f32 %v4187, %v4355
  %4357 = vmatmul.bf16.gmra.mxu0 %v2543
  %v4358 = vpop.f32.mrf.mxu0
  %v4359 = vadd.f32 %v4190, %v4358
  %v4360 = vpop.f32.mrf.mxu0
  %v4361 = vadd.f32 %v4192, %v4360
  %4362 = vmatmul.bf16.gmra.mxu0 %v2559
  %v4363 = vpop.f32.mrf.mxu0
  %v4364 = vadd.f32 %v4195, %v4363
  %v4365 = vpop.f32.mrf.mxu0
  %v4366 = vadd.f32 %v4197, %v4365
  %4367 = vmatmul.bf16.gmra.mxu0 %v2575
  %v4368 = vpop.f32.mrf.mxu0
  %v4369 = vadd.f32 %v4200, %v4368
  %v4370 = vpop.f32.mrf.mxu0
  %v4371 = vadd.f32 %v4202, %v4370
  %4372 = vmatmul.bf16.gmra.mxu0 %v2591
  %v4373 = vpop.f32.mrf.mxu0
  %v4374 = vadd.f32 %v4205, %v4373
  %v4375 = vpop.f32.mrf.mxu0
  %v4376 = vadd.f32 %v4207, %v4375
  %4377 = vmatmul.bf16.gmra.mxu0 %v2607
  %v4378 = vpop.f32.mrf.mxu0
  %v4379 = vadd.f32 %v4210, %v4378
  %v4380 = vpop.f32.mrf.mxu0
  %v4381 = vadd.f32 %v4212, %v4380
  %4382 = vmatmul.bf16.gmra.mxu0 %v2623
  %v4383 = vpop.f32.mrf.mxu0
  %v4384 = vadd.f32 %v4215, %v4383
  %v4385 = vpop.f32.mrf.mxu0
  %v4386 = vadd.f32 %v4217, %v4385
  %4387 = vmatmul.bf16.gmra.mxu0 %v2639
  %v4388 = vpop.f32.mrf.mxu0
  %v4389 = vadd.f32 %v4220, %v4388
  %v4390 = vpop.f32.mrf.mxu0
  %v4391 = vadd.f32 %v4222, %v4390
  %4392 = vmatmul.bf16.gmra.mxu0 %v2655
  %v4393 = vpop.f32.mrf.mxu0
  %v4394 = vadd.f32 %v4225, %v4393
  %v4395 = vpop.f32.mrf.mxu0
  %v4396 = vadd.f32 %v4227, %v4395
  %4397 = vmatmul.bf16.gmra.mxu0 %v2671
  %v4398 = vpop.f32.mrf.mxu0
  %v4399 = vadd.f32 %v4230, %v4398
  %v4400 = vpop.f32.mrf.mxu0
  %v4401 = vadd.f32 %v4232, %v4400
  %4402 = vmatmul.bf16.gmra.mxu0 %v2687
  %v4403 = vpop.f32.mrf.mxu0
  %v4404 = vadd.f32 %v4235, %v4403
  %v4405 = vpop.f32.mrf.mxu0
  %v4406 = vadd.f32 %v4237, %v4405
  %4407 = vmatmul.bf16.gmra.mxu0 %v2703
  %v4408 = vpop.f32.mrf.mxu0
  %v4409 = vadd.f32 %v4240, %v4408
  %v4410 = vpop.f32.mrf.mxu0
  %v4411 = vadd.f32 %v4242, %v4410
  %4412 = vmatmul.bf16.gmra.mxu0 %v2719
  %v4413 = vpop.f32.mrf.mxu0
  %v4414 = vadd.f32 %v4245, %v4413
  %v4415 = vpop.f32.mrf.mxu0
  %v4416 = vadd.f32 %v4247, %v4415
  %4417 = vmatmul.bf16.gmra.mxu0 %v2735
  %v4418 = vpop.f32.mrf.mxu0
  %v4419 = vadd.f32 %v4250, %v4418
  %v4420 = vpop.f32.mrf.mxu0
  %v4421 = vadd.f32 %v4252, %v4420
  %4422 = vmatmul.bf16.gmra.mxu0 %v2751
  %v4423 = vpop.f32.mrf.mxu0
  %v4424 = vadd.f32 %v4255, %v4423
  %v4425 = vpop.f32.mrf.mxu0
  %v4426 = vadd.f32 %v4257, %v4425
  %4427 = vmatmul.bf16.gmra.mxu0 %v2767
  %v4428 = vpop.f32.mrf.mxu0
  %v4429 = vadd.f32 %v4260, %v4428
  %v4430 = vpop.f32.mrf.mxu0
  %v4431 = vadd.f32 %v4262, %v4430
  %4432 = vmatmul.bf16.gmra.mxu0 %v2783
  %v4433 = vpop.f32.mrf.mxu0
  %v4434 = vadd.f32 %v4265, %v4433
  %v4435 = vpop.f32.mrf.mxu0
  %v4436 = vadd.f32 %v4267, %v4435
  %4437 = vmatmul.bf16.gmra.mxu0 %v2799
  %v4438 = vpop.f32.mrf.mxu0
  %v4439 = vadd.f32 %v4270, %v4438
  %v4440 = vpop.f32.mrf.mxu0
  %v4441 = vadd.f32 %v4272, %v4440
  %4442 = vmatmul.bf16.gmra.mxu0 %v2815
  %v4443 = vpop.f32.mrf.mxu0
  %v4444 = vadd.f32 %v4275, %v4443
  %v4445 = vpop.f32.mrf.mxu0
  %v4446 = vadd.f32 %v4277, %v4445
  %4447 = vdwg.mxu0
  %4448 = vmatpush.bf16.msra.mxu0 %v3877
  %4449 = vmatpush.bf16.msra.mxu0 %v3876
  %4450 = vmatpush.bf16.msra.mxu0 %v3875
  %4451 = vmatpush.bf16.msra.mxu0 %v3874
  %4452 = vmatpush.bf16.msra.mxu0 %v3873
  %4453 = vmatpush.bf16.msra.mxu0 %v3872
  %4454 = vmatpush.bf16.msra.mxu0 %v3871
  %4455 = vmatpush.bf16.msra.mxu0 %v3870
  %4456 = vmatmul.bf16.gmra.mxu0 %v2320
  %v4457 = vpop.f32.mrf.mxu0
  %v4458 = vadd.f32 %v4289, %v4457
  %v4459 = vpop.f32.mrf.mxu0
  %v4460 = vadd.f32 %v4291, %v4459
  %4461 = vmatmul.bf16.gmra.mxu0 %v2336
  %v4462 = vpop.f32.mrf.mxu0
  %v4463 = vadd.f32 %v4294, %v4462
  %v4464 = vpop.f32.mrf.mxu0
  %v4465 = vadd.f32 %v4296, %v4464
  %4466 = vmatmul.bf16.gmra.mxu0 %v2352
  %v4467 = vpop.f32.mrf.mxu0
  %v4468 = vadd.f32 %v4299, %v4467
  %v4469 = vpop.f32.mrf.mxu0
  %v4470 = vadd.f32 %v4301, %v4469
  %4471 = vmatmul.bf16.gmra.mxu0 %v2368
  %v4472 = vpop.f32.mrf.mxu0
  %v4473 = vadd.f32 %v4304, %v4472
  %v4474 = vpop.f32.mrf.mxu0
  %v4475 = vadd.f32 %v4306, %v4474
  %4476 = vmatmul.bf16.gmra.mxu0 %v2384
  %v4477 = vpop.f32.mrf.mxu0
  %v4478 = vadd.f32 %v4309, %v4477
  %v4479 = vpop.f32.mrf.mxu0
  %v4480 = vadd.f32 %v4311, %v4479
  %4481 = vmatmul.bf16.gmra.mxu0 %v2400
  %v4482 = vpop.f32.mrf.mxu0
  %v4483 = vadd.f32 %v4314, %v4482
  %v4484 = vpop.f32.mrf.mxu0
  %v4485 = vadd.f32 %v4316, %v4484
  %4486 = vmatmul.bf16.gmra.mxu0 %v2416
  %v4487 = vpop.f32.mrf.mxu0
  %v4488 = vadd.f32 %v4319, %v4487
  %v4489 = vpop.f32.mrf.mxu0
  %v4490 = vadd.f32 %v4321, %v4489
  %4491 = vmatmul.bf16.gmra.mxu0 %v2432
  %v4492 = vpop.f32.mrf.mxu0
  %v4493 = vadd.f32 %v4324, %v4492
  %v4494 = vpop.f32.mrf.mxu0
  %v4495 = vadd.f32 %v4326, %v4494
  %4496 = vmatmul.bf16.gmra.mxu0 %v2448
  %v4497 = vpop.f32.mrf.mxu0
  %v4498 = vadd.f32 %v4329, %v4497
  %v4499 = vpop.f32.mrf.mxu0
  %v4500 = vadd.f32 %v4331, %v4499
  %4501 = vmatmul.bf16.gmra.mxu0 %v2464
  %v4502 = vpop.f32.mrf.mxu0
  %v4503 = vadd.f32 %v4334, %v4502
  %v4504 = vpop.f32.mrf.mxu0
  %v4505 = vadd.f32 %v4336, %v4504
  %4506 = vmatmul.bf16.gmra.mxu0 %v2480
  %v4507 = vpop.f32.mrf.mxu0
  %v4508 = vadd.f32 %v4339, %v4507
  %v4509 = vpop.f32.mrf.mxu0
  %v4510 = vadd.f32 %v4341, %v4509
  %4511 = vmatmul.bf16.gmra.mxu0 %v2496
  %v4512 = vpop.f32.mrf.mxu0
  %v4513 = vadd.f32 %v4344, %v4512
  %v4514 = vpop.f32.mrf.mxu0
  %v4515 = vadd.f32 %v4346, %v4514
  %4516 = vmatmul.bf16.gmra.mxu0 %v2512
  %v4517 = vpop.f32.mrf.mxu0
  %v4518 = vadd.f32 %v4349, %v4517
  %v4519 = vpop.f32.mrf.mxu0
  %v4520 = vadd.f32 %v4351, %v4519
  %4521 = vmatmul.bf16.gmra.mxu0 %v2528
  %v4522 = vpop.f32.mrf.mxu0
  %v4523 = vadd.f32 %v4354, %v4522
  %v4524 = vpop.f32.mrf.mxu0
  %v4525 = vadd.f32 %v4356, %v4524
  %4526 = vmatmul.bf16.gmra.mxu0 %v2544
  %v4527 = vpop.f32.mrf.mxu0
  %v4528 = vadd.f32 %v4359, %v4527
  %v4529 = vpop.f32.mrf.mxu0
  %v4530 = vadd.f32 %v4361, %v4529
  %4531 = vmatmul.bf16.gmra.mxu0 %v2560
  %v4532 = vpop.f32.mrf.mxu0
  %v4533 = vadd.f32 %v4364, %v4532
  %v4534 = vpop.f32.mrf.mxu0
  %v4535 = vadd.f32 %v4366, %v4534
  %4536 = vmatmul.bf16.gmra.mxu0 %v2576
  %v4537 = vpop.f32.mrf.mxu0
  %v4538 = vadd.f32 %v4369, %v4537
  %v4539 = vpop.f32.mrf.mxu0
  %v4540 = vadd.f32 %v4371, %v4539
  %4541 = vmatmul.bf16.gmra.mxu0 %v2592
  %v4542 = vpop.f32.mrf.mxu0
  %v4543 = vadd.f32 %v4374, %v4542
  %v4544 = vpop.f32.mrf.mxu0
  %v4545 = vadd.f32 %v4376, %v4544
  %4546 = vmatmul.bf16.gmra.mxu0 %v2608
  %v4547 = vpop.f32.mrf.mxu0
  %v4548 = vadd.f32 %v4379, %v4547
  %v4549 = vpop.f32.mrf.mxu0
  %v4550 = vadd.f32 %v4381, %v4549
  %4551 = vmatmul.bf16.gmra.mxu0 %v2624
  %v4552 = vpop.f32.mrf.mxu0
  %v4553 = vadd.f32 %v4384, %v4552
  %v4554 = vpop.f32.mrf.mxu0
  %v4555 = vadd.f32 %v4386, %v4554
  %4556 = vmatmul.bf16.gmra.mxu0 %v2640
  %v4557 = vpop.f32.mrf.mxu0
  %v4558 = vadd.f32 %v4389, %v4557
  %v4559 = vpop.f32.mrf.mxu0
  %v4560 = vadd.f32 %v4391, %v4559
  %4561 = vmatmul.bf16.gmra.mxu0 %v2656
  %v4562 = vpop.f32.mrf.mxu0
  %v4563 = vadd.f32 %v4394, %v4562
  %v4564 = vpop.f32.mrf.mxu0
  %v4565 = vadd.f32 %v4396, %v4564
  %4566 = vmatmul.bf16.gmra.mxu0 %v2672
  %v4567 = vpop.f32.mrf.mxu0
  %v4568 = vadd.f32 %v4399, %v4567
  %v4569 = vpop.f32.mrf.mxu0
  %v4570 = vadd.f32 %v4401, %v4569
  %4571 = vmatmul.bf16.gmra.mxu0 %v2688
  %v4572 = vpop.f32.mrf.mxu0
  %v4573 = vadd.f32 %v4404, %v4572
  %v4574 = vpop.f32.mrf.mxu0
  %v4575 = vadd.f32 %v4406, %v4574
  %4576 = vmatmul.bf16.gmra.mxu0 %v2704
  %v4577 = vpop.f32.mrf.mxu0
  %v4578 = vadd.f32 %v4409, %v4577
  %v4579 = vpop.f32.mrf.mxu0
  %v4580 = vadd.f32 %v4411, %v4579
  %4581 = vmatmul.bf16.gmra.mxu0 %v2720
  %v4582 = vpop.f32.mrf.mxu0
  %v4583 = vadd.f32 %v4414, %v4582
  %v4584 = vpop.f32.mrf.mxu0
  %v4585 = vadd.f32 %v4416, %v4584
  %4586 = vmatmul.bf16.gmra.mxu0 %v2736
  %v4587 = vpop.f32.mrf.mxu0
  %v4588 = vadd.f32 %v4419, %v4587
  %v4589 = vpop.f32.mrf.mxu0
  %v4590 = vadd.f32 %v4421, %v4589
  %4591 = vmatmul.bf16.gmra.mxu0 %v2752
  %v4592 = vpop.f32.mrf.mxu0
  %v4593 = vadd.f32 %v4424, %v4592
  %v4594 = vpop.f32.mrf.mxu0
  %v4595 = vadd.f32 %v4426, %v4594
  %4596 = vmatmul.bf16.gmra.mxu0 %v2768
  %v4597 = vpop.f32.mrf.mxu0
  %v4598 = vadd.f32 %v4429, %v4597
  %v4599 = vpop.f32.mrf.mxu0
  %v4600 = vadd.f32 %v4431, %v4599
  %4601 = vmatmul.bf16.gmra.mxu0 %v2784
  %v4602 = vpop.f32.mrf.mxu0
  %v4603 = vadd.f32 %v4434, %v4602
  %v4604 = vpop.f32.mrf.mxu0
  %v4605 = vadd.f32 %v4436, %v4604
  %4606 = vmatmul.bf16.gmra.mxu0 %v2800
  %v4607 = vpop.f32.mrf.mxu0
  %v4608 = vadd.f32 %v4439, %v4607
  %v4609 = vpop.f32.mrf.mxu0
  %v4610 = vadd.f32 %v4441, %v4609
  %4611 = vmatmul.bf16.gmra.mxu0 %v2816
  %v4612 = vpop.f32.mrf.mxu0
  %v4613 = vadd.f32 %v4444, %v4612
  %v4614 = vpop.f32.mrf.mxu0
  %v4615 = vadd.f32 %v4446, %v4614
  %4616 = vdwg.mxu0
  %4617 = vmatpush.bf16.msra.mxu0 %v3885
  %4618 = vmatpush.bf16.msra.mxu0 %v3884
  %4619 = vmatpush.bf16.msra.mxu0 %v3883
  %4620 = vmatpush.bf16.msra.mxu0 %v3882
  %4621 = vmatpush.bf16.msra.mxu0 %v3881
  %4622 = vmatpush.bf16.msra.mxu0 %v3880
  %4623 = vmatpush.bf16.msra.mxu0 %v3879
  %4624 = vmatpush.bf16.msra.mxu0 %v3878
  %4625 = vmatmul.bf16.gmra.mxu0 %v2321
  %v4626 = vpop.f32.mrf.mxu0
  %v4627 = vadd.f32 %v4458, %v4626
  %v4628 = vpop.f32.mrf.mxu0
  %v4629 = vadd.f32 %v4460, %v4628
  %4630 = vmatmul.bf16.gmra.mxu0 %v2337
  %v4631 = vpop.f32.mrf.mxu0
  %v4632 = vadd.f32 %v4463, %v4631
  %v4633 = vpop.f32.mrf.mxu0
  %v4634 = vadd.f32 %v4465, %v4633
  %4635 = vmatmul.bf16.gmra.mxu0 %v2353
  %v4636 = vpop.f32.mrf.mxu0
  %v4637 = vadd.f32 %v4468, %v4636
  %v4638 = vpop.f32.mrf.mxu0
  %v4639 = vadd.f32 %v4470, %v4638
  %4640 = vmatmul.bf16.gmra.mxu0 %v2369
  %v4641 = vpop.f32.mrf.mxu0
  %v4642 = vadd.f32 %v4473, %v4641
  %v4643 = vpop.f32.mrf.mxu0
  %v4644 = vadd.f32 %v4475, %v4643
  %4645 = vmatmul.bf16.gmra.mxu0 %v2385
  %v4646 = vpop.f32.mrf.mxu0
  %v4647 = vadd.f32 %v4478, %v4646
  %v4648 = vpop.f32.mrf.mxu0
  %v4649 = vadd.f32 %v4480, %v4648
  %4650 = vmatmul.bf16.gmra.mxu0 %v2401
  %v4651 = vpop.f32.mrf.mxu0
  %v4652 = vadd.f32 %v4483, %v4651
  %v4653 = vpop.f32.mrf.mxu0
  %v4654 = vadd.f32 %v4485, %v4653
  %4655 = vmatmul.bf16.gmra.mxu0 %v2417
  %v4656 = vpop.f32.mrf.mxu0
  %v4657 = vadd.f32 %v4488, %v4656
  %v4658 = vpop.f32.mrf.mxu0
  %v4659 = vadd.f32 %v4490, %v4658
  %4660 = vmatmul.bf16.gmra.mxu0 %v2433
  %v4661 = vpop.f32.mrf.mxu0
  %v4662 = vadd.f32 %v4493, %v4661
  %v4663 = vpop.f32.mrf.mxu0
  %v4664 = vadd.f32 %v4495, %v4663
  %4665 = vmatmul.bf16.gmra.mxu0 %v2449
  %v4666 = vpop.f32.mrf.mxu0
  %v4667 = vadd.f32 %v4498, %v4666
  %v4668 = vpop.f32.mrf.mxu0
  %v4669 = vadd.f32 %v4500, %v4668
  %4670 = vmatmul.bf16.gmra.mxu0 %v2465
  %v4671 = vpop.f32.mrf.mxu0
  %v4672 = vadd.f32 %v4503, %v4671
  %v4673 = vpop.f32.mrf.mxu0
  %v4674 = vadd.f32 %v4505, %v4673
  %4675 = vmatmul.bf16.gmra.mxu0 %v2481
  %v4676 = vpop.f32.mrf.mxu0
  %v4677 = vadd.f32 %v4508, %v4676
  %v4678 = vpop.f32.mrf.mxu0
  %v4679 = vadd.f32 %v4510, %v4678
  %4680 = vmatmul.bf16.gmra.mxu0 %v2497
  %v4681 = vpop.f32.mrf.mxu0
  %v4682 = vadd.f32 %v4513, %v4681
  %v4683 = vpop.f32.mrf.mxu0
  %v4684 = vadd.f32 %v4515, %v4683
  %4685 = vmatmul.bf16.gmra.mxu0 %v2513
  %v4686 = vpop.f32.mrf.mxu0
  %v4687 = vadd.f32 %v4518, %v4686
  %v4688 = vpop.f32.mrf.mxu0
  %v4689 = vadd.f32 %v4520, %v4688
  %4690 = vmatmul.bf16.gmra.mxu0 %v2529
  %v4691 = vpop.f32.mrf.mxu0
  %v4692 = vadd.f32 %v4523, %v4691
  %v4693 = vpop.f32.mrf.mxu0
  %v4694 = vadd.f32 %v4525, %v4693
  %4695 = vmatmul.bf16.gmra.mxu0 %v2545
  %v4696 = vpop.f32.mrf.mxu0
  %v4697 = vadd.f32 %v4528, %v4696
  %v4698 = vpop.f32.mrf.mxu0
  %v4699 = vadd.f32 %v4530, %v4698
  %4700 = vmatmul.bf16.gmra.mxu0 %v2561
  %v4701 = vpop.f32.mrf.mxu0
  %v4702 = vadd.f32 %v4533, %v4701
  %v4703 = vpop.f32.mrf.mxu0
  %v4704 = vadd.f32 %v4535, %v4703
  %4705 = vmatmul.bf16.gmra.mxu0 %v2577
  %v4706 = vpop.f32.mrf.mxu0
  %v4707 = vadd.f32 %v4538, %v4706
  %v4708 = vpop.f32.mrf.mxu0
  %v4709 = vadd.f32 %v4540, %v4708
  %4710 = vmatmul.bf16.gmra.mxu0 %v2593
  %v4711 = vpop.f32.mrf.mxu0
  %v4712 = vadd.f32 %v4543, %v4711
  %v4713 = vpop.f32.mrf.mxu0
  %v4714 = vadd.f32 %v4545, %v4713
  %4715 = vmatmul.bf16.gmra.mxu0 %v2609
  %v4716 = vpop.f32.mrf.mxu0
  %v4717 = vadd.f32 %v4548, %v4716
  %v4718 = vpop.f32.mrf.mxu0
  %v4719 = vadd.f32 %v4550, %v4718
  %4720 = vmatmul.bf16.gmra.mxu0 %v2625
  %v4721 = vpop.f32.mrf.mxu0
  %v4722 = vadd.f32 %v4553, %v4721
  %v4723 = vpop.f32.mrf.mxu0
  %v4724 = vadd.f32 %v4555, %v4723
  %4725 = vmatmul.bf16.gmra.mxu0 %v2641
  %v4726 = vpop.f32.mrf.mxu0
  %v4727 = vadd.f32 %v4558, %v4726
  %v4728 = vpop.f32.mrf.mxu0
  %v4729 = vadd.f32 %v4560, %v4728
  %4730 = vmatmul.bf16.gmra.mxu0 %v2657
  %v4731 = vpop.f32.mrf.mxu0
  %v4732 = vadd.f32 %v4563, %v4731
  %v4733 = vpop.f32.mrf.mxu0
  %v4734 = vadd.f32 %v4565, %v4733
  %4735 = vmatmul.bf16.gmra.mxu0 %v2673
  %v4736 = vpop.f32.mrf.mxu0
  %v4737 = vadd.f32 %v4568, %v4736
  %v4738 = vpop.f32.mrf.mxu0
  %v4739 = vadd.f32 %v4570, %v4738
  %4740 = vmatmul.bf16.gmra.mxu0 %v2689
  %v4741 = vpop.f32.mrf.mxu0
  %v4742 = vadd.f32 %v4573, %v4741
  %v4743 = vpop.f32.mrf.mxu0
  %v4744 = vadd.f32 %v4575, %v4743
  %4745 = vmatmul.bf16.gmra.mxu0 %v2705
  %v4746 = vpop.f32.mrf.mxu0
  %v4747 = vadd.f32 %v4578, %v4746
  %v4748 = vpop.f32.mrf.mxu0
  %v4749 = vadd.f32 %v4580, %v4748
  %4750 = vmatmul.bf16.gmra.mxu0 %v2721
  %v4751 = vpop.f32.mrf.mxu0
  %v4752 = vadd.f32 %v4583, %v4751
  %v4753 = vpop.f32.mrf.mxu0
  %v4754 = vadd.f32 %v4585, %v4753
  %4755 = vmatmul.bf16.gmra.mxu0 %v2737
  %v4756 = vpop.f32.mrf.mxu0
  %v4757 = vadd.f32 %v4588, %v4756
  %v4758 = vpop.f32.mrf.mxu0
  %v4759 = vadd.f32 %v4590, %v4758
  %4760 = vmatmul.bf16.gmra.mxu0 %v2753
  %v4761 = vpop.f32.mrf.mxu0
  %v4762 = vadd.f32 %v4593, %v4761
  %v4763 = vpop.f32.mrf.mxu0
  %v4764 = vadd.f32 %v4595, %v4763
  %4765 = vmatmul.bf16.gmra.mxu0 %v2769
  %v4766 = vpop.f32.mrf.mxu0
  %v4767 = vadd.f32 %v4598, %v4766
  %v4768 = vpop.f32.mrf.mxu0
  %v4769 = vadd.f32 %v4600, %v4768
  %4770 = vmatmul.bf16.gmra.mxu0 %v2785
  %v4771 = vpop.f32.mrf.mxu0
  %v4772 = vadd.f32 %v4603, %v4771
  %v4773 = vpop.f32.mrf.mxu0
  %v4774 = vadd.f32 %v4605, %v4773
  %4775 = vmatmul.bf16.gmra.mxu0 %v2801
  %v4776 = vpop.f32.mrf.mxu0
  %v4777 = vadd.f32 %v4608, %v4776
  %v4778 = vpop.f32.mrf.mxu0
  %v4779 = vadd.f32 %v4610, %v4778
  %4780 = vmatmul.bf16.gmra.mxu0 %v2817
  %v4781 = vpop.f32.mrf.mxu0
  %v4782 = vadd.f32 %v4613, %v4781
  %v4783 = vpop.f32.mrf.mxu0
  %v4784 = vadd.f32 %v4615, %v4783
  %4785 = vdwg.mxu0
  %4786 = vmatpush.bf16.msra.mxu0 %v3893
  %4787 = vmatpush.bf16.msra.mxu0 %v3892
  %4788 = vmatpush.bf16.msra.mxu0 %v3891
  %4789 = vmatpush.bf16.msra.mxu0 %v3890
  %4790 = vmatpush.bf16.msra.mxu0 %v3889
  %4791 = vmatpush.bf16.msra.mxu0 %v3888
  %4792 = vmatpush.bf16.msra.mxu0 %v3887
  %4793 = vmatpush.bf16.msra.mxu0 %v3886
  %4794 = vmatmul.bf16.gmra.mxu0 %v2322
  %v4795 = vpop.f32.mrf.mxu0
  %v4796 = vadd.f32 %v4627, %v4795
  %v4797 = vpop.f32.mrf.mxu0
  %v4798 = vadd.f32 %v4629, %v4797
  %4799 = vmatmul.bf16.gmra.mxu0 %v2338
  %v4800 = vpop.f32.mrf.mxu0
  %v4801 = vadd.f32 %v4632, %v4800
  %v4802 = vpop.f32.mrf.mxu0
  %v4803 = vadd.f32 %v4634, %v4802
  %4804 = vmatmul.bf16.gmra.mxu0 %v2354
  %v4805 = vpop.f32.mrf.mxu0
  %v4806 = vadd.f32 %v4637, %v4805
  %v4807 = vpop.f32.mrf.mxu0
  %v4808 = vadd.f32 %v4639, %v4807
  %4809 = vmatmul.bf16.gmra.mxu0 %v2370
  %v4810 = vpop.f32.mrf.mxu0
  %v4811 = vadd.f32 %v4642, %v4810
  %v4812 = vpop.f32.mrf.mxu0
  %v4813 = vadd.f32 %v4644, %v4812
  %4814 = vmatmul.bf16.gmra.mxu0 %v2386
  %v4815 = vpop.f32.mrf.mxu0
  %v4816 = vadd.f32 %v4647, %v4815
  %v4817 = vpop.f32.mrf.mxu0
  %v4818 = vadd.f32 %v4649, %v4817
  %4819 = vmatmul.bf16.gmra.mxu0 %v2402
  %v4820 = vpop.f32.mrf.mxu0
  %v4821 = vadd.f32 %v4652, %v4820
  %v4822 = vpop.f32.mrf.mxu0
  %v4823 = vadd.f32 %v4654, %v4822
  %4824 = vmatmul.bf16.gmra.mxu0 %v2418
  %v4825 = vpop.f32.mrf.mxu0
  %v4826 = vadd.f32 %v4657, %v4825
  %v4827 = vpop.f32.mrf.mxu0
  %v4828 = vadd.f32 %v4659, %v4827
  %4829 = vmatmul.bf16.gmra.mxu0 %v2434
  %v4830 = vpop.f32.mrf.mxu0
  %v4831 = vadd.f32 %v4662, %v4830
  %v4832 = vpop.f32.mrf.mxu0
  %v4833 = vadd.f32 %v4664, %v4832
  %4834 = vmatmul.bf16.gmra.mxu0 %v2450
  %v4835 = vpop.f32.mrf.mxu0
  %v4836 = vadd.f32 %v4667, %v4835
  %v4837 = vpop.f32.mrf.mxu0
  %v4838 = vadd.f32 %v4669, %v4837
  %4839 = vmatmul.bf16.gmra.mxu0 %v2466
  %v4840 = vpop.f32.mrf.mxu0
  %v4841 = vadd.f32 %v4672, %v4840
  %v4842 = vpop.f32.mrf.mxu0
  %v4843 = vadd.f32 %v4674, %v4842
  %4844 = vmatmul.bf16.gmra.mxu0 %v2482
  %v4845 = vpop.f32.mrf.mxu0
  %v4846 = vadd.f32 %v4677, %v4845
  %v4847 = vpop.f32.mrf.mxu0
  %v4848 = vadd.f32 %v4679, %v4847
  %4849 = vmatmul.bf16.gmra.mxu0 %v2498
  %v4850 = vpop.f32.mrf.mxu0
  %v4851 = vadd.f32 %v4682, %v4850
  %v4852 = vpop.f32.mrf.mxu0
  %v4853 = vadd.f32 %v4684, %v4852
  %4854 = vmatmul.bf16.gmra.mxu0 %v2514
  %v4855 = vpop.f32.mrf.mxu0
  %v4856 = vadd.f32 %v4687, %v4855
  %v4857 = vpop.f32.mrf.mxu0
  %v4858 = vadd.f32 %v4689, %v4857
  %4859 = vmatmul.bf16.gmra.mxu0 %v2530
  %v4860 = vpop.f32.mrf.mxu0
  %v4861 = vadd.f32 %v4692, %v4860
  %v4862 = vpop.f32.mrf.mxu0
  %v4863 = vadd.f32 %v4694, %v4862
  %4864 = vmatmul.bf16.gmra.mxu0 %v2546
  %v4865 = vpop.f32.mrf.mxu0
  %v4866 = vadd.f32 %v4697, %v4865
  %v4867 = vpop.f32.mrf.mxu0
  %v4868 = vadd.f32 %v4699, %v4867
  %4869 = vmatmul.bf16.gmra.mxu0 %v2562
  %v4870 = vpop.f32.mrf.mxu0
  %v4871 = vadd.f32 %v4702, %v4870
  %v4872 = vpop.f32.mrf.mxu0
  %v4873 = vadd.f32 %v4704, %v4872
  %4874 = vmatmul.bf16.gmra.mxu0 %v2578
  %v4875 = vpop.f32.mrf.mxu0
  %v4876 = vadd.f32 %v4707, %v4875
  %v4877 = vpop.f32.mrf.mxu0
  %v4878 = vadd.f32 %v4709, %v4877
  %4879 = vmatmul.bf16.gmra.mxu0 %v2594
  %v4880 = vpop.f32.mrf.mxu0
  %v4881 = vadd.f32 %v4712, %v4880
  %v4882 = vpop.f32.mrf.mxu0
  %v4883 = vadd.f32 %v4714, %v4882
  %4884 = vmatmul.bf16.gmra.mxu0 %v2610
  %v4885 = vpop.f32.mrf.mxu0
  %v4886 = vadd.f32 %v4717, %v4885
  %v4887 = vpop.f32.mrf.mxu0
  %v4888 = vadd.f32 %v4719, %v4887
  %4889 = vmatmul.bf16.gmra.mxu0 %v2626
  %v4890 = vpop.f32.mrf.mxu0
  %v4891 = vadd.f32 %v4722, %v4890
  %v4892 = vpop.f32.mrf.mxu0
  %v4893 = vadd.f32 %v4724, %v4892
  %4894 = vmatmul.bf16.gmra.mxu0 %v2642
  %v4895 = vpop.f32.mrf.mxu0
  %v4896 = vadd.f32 %v4727, %v4895
  %v4897 = vpop.f32.mrf.mxu0
  %v4898 = vadd.f32 %v4729, %v4897
  %4899 = vmatmul.bf16.gmra.mxu0 %v2658
  %v4900 = vpop.f32.mrf.mxu0
  %v4901 = vadd.f32 %v4732, %v4900
  %v4902 = vpop.f32.mrf.mxu0
  %v4903 = vadd.f32 %v4734, %v4902
  %4904 = vmatmul.bf16.gmra.mxu0 %v2674
  %v4905 = vpop.f32.mrf.mxu0
  %v4906 = vadd.f32 %v4737, %v4905
  %v4907 = vpop.f32.mrf.mxu0
  %v4908 = vadd.f32 %v4739, %v4907
  %4909 = vmatmul.bf16.gmra.mxu0 %v2690
  %v4910 = vpop.f32.mrf.mxu0
  %v4911 = vadd.f32 %v4742, %v4910
  %v4912 = vpop.f32.mrf.mxu0
  %v4913 = vadd.f32 %v4744, %v4912
  %4914 = vmatmul.bf16.gmra.mxu0 %v2706
  %v4915 = vpop.f32.mrf.mxu0
  %v4916 = vadd.f32 %v4747, %v4915
  %v4917 = vpop.f32.mrf.mxu0
  %v4918 = vadd.f32 %v4749, %v4917
  %4919 = vmatmul.bf16.gmra.mxu0 %v2722
  %v4920 = vpop.f32.mrf.mxu0
  %v4921 = vadd.f32 %v4752, %v4920
  %v4922 = vpop.f32.mrf.mxu0
  %v4923 = vadd.f32 %v4754, %v4922
  %4924 = vmatmul.bf16.gmra.mxu0 %v2738
  %v4925 = vpop.f32.mrf.mxu0
  %v4926 = vadd.f32 %v4757, %v4925
  %v4927 = vpop.f32.mrf.mxu0
  %v4928 = vadd.f32 %v4759, %v4927
  %4929 = vmatmul.bf16.gmra.mxu0 %v2754
  %v4930 = vpop.f32.mrf.mxu0
  %v4931 = vadd.f32 %v4762, %v4930
  %v4932 = vpop.f32.mrf.mxu0
  %v4933 = vadd.f32 %v4764, %v4932
  %4934 = vmatmul.bf16.gmra.mxu0 %v2770
  %v4935 = vpop.f32.mrf.mxu0
  %v4936 = vadd.f32 %v4767, %v4935
  %v4937 = vpop.f32.mrf.mxu0
  %v4938 = vadd.f32 %v4769, %v4937
  %4939 = vmatmul.bf16.gmra.mxu0 %v2786
  %v4940 = vpop.f32.mrf.mxu0
  %v4941 = vadd.f32 %v4772, %v4940
  %v4942 = vpop.f32.mrf.mxu0
  %v4943 = vadd.f32 %v4774, %v4942
  %4944 = vmatmul.bf16.gmra.mxu0 %v2802
  %v4945 = vpop.f32.mrf.mxu0
  %v4946 = vadd.f32 %v4777, %v4945
  %v4947 = vpop.f32.mrf.mxu0
  %v4948 = vadd.f32 %v4779, %v4947
  %4949 = vmatmul.bf16.gmra.mxu0 %v2818
  %v4950 = vpop.f32.mrf.mxu0
  %v4951 = vadd.f32 %v4782, %v4950
  %v4952 = vpop.f32.mrf.mxu0
  %v4953 = vadd.f32 %v4784, %v4952
  %4954 = vdwg.mxu0
  %4955 = vmatpush.bf16.msra.mxu0 %v3901
  %4956 = vmatpush.bf16.msra.mxu0 %v3900
  %4957 = vmatpush.bf16.msra.mxu0 %v3899
  %4958 = vmatpush.bf16.msra.mxu0 %v3898
  %4959 = vmatpush.bf16.msra.mxu0 %v3897
  %4960 = vmatpush.bf16.msra.mxu0 %v3896
  %4961 = vmatpush.bf16.msra.mxu0 %v3895
  %4962 = vmatpush.bf16.msra.mxu0 %v3894
  %4963 = vmatmul.bf16.gmra.mxu0 %v2323
  %v4964 = vpop.f32.mrf.mxu0
  %v4965 = vadd.f32 %v4796, %v4964
  %v4966 = vpop.f32.mrf.mxu0
  %v4967 = vadd.f32 %v4798, %v4966
  %4968 = vmatmul.bf16.gmra.mxu0 %v2339
  %v4969 = vpop.f32.mrf.mxu0
  %v4970 = vadd.f32 %v4801, %v4969
  %v4971 = vpop.f32.mrf.mxu0
  %v4972 = vadd.f32 %v4803, %v4971
  %4973 = vmatmul.bf16.gmra.mxu0 %v2355
  %v4974 = vpop.f32.mrf.mxu0
  %v4975 = vadd.f32 %v4806, %v4974
  %v4976 = vpop.f32.mrf.mxu0
  %v4977 = vadd.f32 %v4808, %v4976
  %4978 = vmatmul.bf16.gmra.mxu0 %v2371
  %v4979 = vpop.f32.mrf.mxu0
  %v4980 = vadd.f32 %v4811, %v4979
  %v4981 = vpop.f32.mrf.mxu0
  %v4982 = vadd.f32 %v4813, %v4981
  %4983 = vmatmul.bf16.gmra.mxu0 %v2387
  %v4984 = vpop.f32.mrf.mxu0
  %v4985 = vadd.f32 %v4816, %v4984
  %v4986 = vpop.f32.mrf.mxu0
  %v4987 = vadd.f32 %v4818, %v4986
  %4988 = vmatmul.bf16.gmra.mxu0 %v2403
  %v4989 = vpop.f32.mrf.mxu0
  %v4990 = vadd.f32 %v4821, %v4989
  %v4991 = vpop.f32.mrf.mxu0
  %v4992 = vadd.f32 %v4823, %v4991
  %4993 = vmatmul.bf16.gmra.mxu0 %v2419
  %v4994 = vpop.f32.mrf.mxu0
  %v4995 = vadd.f32 %v4826, %v4994
  %v4996 = vpop.f32.mrf.mxu0
  %v4997 = vadd.f32 %v4828, %v4996
  %4998 = vmatmul.bf16.gmra.mxu0 %v2435
  %v4999 = vpop.f32.mrf.mxu0
  %v5000 = vadd.f32 %v4831, %v4999
  %v5001 = vpop.f32.mrf.mxu0
  %v5002 = vadd.f32 %v4833, %v5001
  %5003 = vmatmul.bf16.gmra.mxu0 %v2451
  %v5004 = vpop.f32.mrf.mxu0
  %v5005 = vadd.f32 %v4836, %v5004
  %v5006 = vpop.f32.mrf.mxu0
  %v5007 = vadd.f32 %v4838, %v5006
  %5008 = vmatmul.bf16.gmra.mxu0 %v2467
  %v5009 = vpop.f32.mrf.mxu0
  %v5010 = vadd.f32 %v4841, %v5009
  %v5011 = vpop.f32.mrf.mxu0
  %v5012 = vadd.f32 %v4843, %v5011
  %5013 = vmatmul.bf16.gmra.mxu0 %v2483
  %v5014 = vpop.f32.mrf.mxu0
  %v5015 = vadd.f32 %v4846, %v5014
  %v5016 = vpop.f32.mrf.mxu0
  %v5017 = vadd.f32 %v4848, %v5016
  %5018 = vmatmul.bf16.gmra.mxu0 %v2499
  %v5019 = vpop.f32.mrf.mxu0
  %v5020 = vadd.f32 %v4851, %v5019
  %v5021 = vpop.f32.mrf.mxu0
  %v5022 = vadd.f32 %v4853, %v5021
  %5023 = vmatmul.bf16.gmra.mxu0 %v2515
  %v5024 = vpop.f32.mrf.mxu0
  %v5025 = vadd.f32 %v4856, %v5024
  %v5026 = vpop.f32.mrf.mxu0
  %v5027 = vadd.f32 %v4858, %v5026
  %5028 = vmatmul.bf16.gmra.mxu0 %v2531
  %v5029 = vpop.f32.mrf.mxu0
  %v5030 = vadd.f32 %v4861, %v5029
  %v5031 = vpop.f32.mrf.mxu0
  %v5032 = vadd.f32 %v4863, %v5031
  %5033 = vmatmul.bf16.gmra.mxu0 %v2547
  %v5034 = vpop.f32.mrf.mxu0
  %v5035 = vadd.f32 %v4866, %v5034
  %v5036 = vpop.f32.mrf.mxu0
  %v5037 = vadd.f32 %v4868, %v5036
  %5038 = vmatmul.bf16.gmra.mxu0 %v2563
  %v5039 = vpop.f32.mrf.mxu0
  %v5040 = vadd.f32 %v4871, %v5039
  %v5041 = vpop.f32.mrf.mxu0
  %v5042 = vadd.f32 %v4873, %v5041
  %5043 = vmatmul.bf16.gmra.mxu0 %v2579
  %v5044 = vpop.f32.mrf.mxu0
  %v5045 = vadd.f32 %v4876, %v5044
  %v5046 = vpop.f32.mrf.mxu0
  %v5047 = vadd.f32 %v4878, %v5046
  %5048 = vmatmul.bf16.gmra.mxu0 %v2595
  %v5049 = vpop.f32.mrf.mxu0
  %v5050 = vadd.f32 %v4881, %v5049
  %v5051 = vpop.f32.mrf.mxu0
  %v5052 = vadd.f32 %v4883, %v5051
  %5053 = vmatmul.bf16.gmra.mxu0 %v2611
  %v5054 = vpop.f32.mrf.mxu0
  %v5055 = vadd.f32 %v4886, %v5054
  %v5056 = vpop.f32.mrf.mxu0
  %v5057 = vadd.f32 %v4888, %v5056
  %5058 = vmatmul.bf16.gmra.mxu0 %v2627
  %v5059 = vpop.f32.mrf.mxu0
  %v5060 = vadd.f32 %v4891, %v5059
  %v5061 = vpop.f32.mrf.mxu0
  %v5062 = vadd.f32 %v4893, %v5061
  %5063 = vmatmul.bf16.gmra.mxu0 %v2643
  %v5064 = vpop.f32.mrf.mxu0
  %v5065 = vadd.f32 %v4896, %v5064
  %v5066 = vpop.f32.mrf.mxu0
  %v5067 = vadd.f32 %v4898, %v5066
  %5068 = vmatmul.bf16.gmra.mxu0 %v2659
  %v5069 = vpop.f32.mrf.mxu0
  %v5070 = vadd.f32 %v4901, %v5069
  %v5071 = vpop.f32.mrf.mxu0
  %v5072 = vadd.f32 %v4903, %v5071
  %5073 = vmatmul.bf16.gmra.mxu0 %v2675
  %v5074 = vpop.f32.mrf.mxu0
  %v5075 = vadd.f32 %v4906, %v5074
  %v5076 = vpop.f32.mrf.mxu0
  %v5077 = vadd.f32 %v4908, %v5076
  %5078 = vmatmul.bf16.gmra.mxu0 %v2691
  %v5079 = vpop.f32.mrf.mxu0
  %v5080 = vadd.f32 %v4911, %v5079
  %v5081 = vpop.f32.mrf.mxu0
  %v5082 = vadd.f32 %v4913, %v5081
  %5083 = vmatmul.bf16.gmra.mxu0 %v2707
  %v5084 = vpop.f32.mrf.mxu0
  %v5085 = vadd.f32 %v4916, %v5084
  %v5086 = vpop.f32.mrf.mxu0
  %v5087 = vadd.f32 %v4918, %v5086
  %5088 = vmatmul.bf16.gmra.mxu0 %v2723
  %v5089 = vpop.f32.mrf.mxu0
  %v5090 = vadd.f32 %v4921, %v5089
  %v5091 = vpop.f32.mrf.mxu0
  %v5092 = vadd.f32 %v4923, %v5091
  %5093 = vmatmul.bf16.gmra.mxu0 %v2739
  %v5094 = vpop.f32.mrf.mxu0
  %v5095 = vadd.f32 %v4926, %v5094
  %v5096 = vpop.f32.mrf.mxu0
  %v5097 = vadd.f32 %v4928, %v5096
  %5098 = vmatmul.bf16.gmra.mxu0 %v2755
  %v5099 = vpop.f32.mrf.mxu0
  %v5100 = vadd.f32 %v4931, %v5099
  %v5101 = vpop.f32.mrf.mxu0
  %v5102 = vadd.f32 %v4933, %v5101
  %5103 = vmatmul.bf16.gmra.mxu0 %v2771
  %v5104 = vpop.f32.mrf.mxu0
  %v5105 = vadd.f32 %v4936, %v5104
  %v5106 = vpop.f32.mrf.mxu0
  %v5107 = vadd.f32 %v4938, %v5106
  %5108 = vmatmul.bf16.gmra.mxu0 %v2787
  %v5109 = vpop.f32.mrf.mxu0
  %v5110 = vadd.f32 %v4941, %v5109
  %v5111 = vpop.f32.mrf.mxu0
  %v5112 = vadd.f32 %v4943, %v5111
  %5113 = vmatmul.bf16.gmra.mxu0 %v2803
  %v5114 = vpop.f32.mrf.mxu0
  %v5115 = vadd.f32 %v4946, %v5114
  %v5116 = vpop.f32.mrf.mxu0
  %v5117 = vadd.f32 %v4948, %v5116
  %5118 = vmatmul.bf16.gmra.mxu0 %v2819
  %v5119 = vpop.f32.mrf.mxu0
  %v5120 = vadd.f32 %v4951, %v5119
  %v5121 = vpop.f32.mrf.mxu0
  %v5122 = vadd.f32 %v4953, %v5121
  %5123 = vdwg.mxu0
  %5124 = vmatpush.bf16.msra.mxu0 %v3909
  %5125 = vmatpush.bf16.msra.mxu0 %v3908
  %5126 = vmatpush.bf16.msra.mxu0 %v3907
  %5127 = vmatpush.bf16.msra.mxu0 %v3906
  %5128 = vmatpush.bf16.msra.mxu0 %v3905
  %5129 = vmatpush.bf16.msra.mxu0 %v3904
  %5130 = vmatpush.bf16.msra.mxu0 %v3903
  %5131 = vmatpush.bf16.msra.mxu0 %v3902
  %5132 = vmatmul.bf16.gmra.mxu0 %v2324
  %v5133 = vpop.f32.mrf.mxu0
  %v5134 = vadd.f32 %v4965, %v5133
  %v5135 = vpop.f32.mrf.mxu0
  %v5136 = vadd.f32 %v4967, %v5135
  %5137 = vmatmul.bf16.gmra.mxu0 %v2340
  %v5138 = vpop.f32.mrf.mxu0
  %v5139 = vadd.f32 %v4970, %v5138
  %v5140 = vpop.f32.mrf.mxu0
  %v5141 = vadd.f32 %v4972, %v5140
  %5142 = vmatmul.bf16.gmra.mxu0 %v2356
  %v5143 = vpop.f32.mrf.mxu0
  %v5144 = vadd.f32 %v4975, %v5143
  %v5145 = vpop.f32.mrf.mxu0
  %v5146 = vadd.f32 %v4977, %v5145
  %5147 = vmatmul.bf16.gmra.mxu0 %v2372
  %v5148 = vpop.f32.mrf.mxu0
  %v5149 = vadd.f32 %v4980, %v5148
  %v5150 = vpop.f32.mrf.mxu0
  %v5151 = vadd.f32 %v4982, %v5150
  %5152 = vmatmul.bf16.gmra.mxu0 %v2388
  %v5153 = vpop.f32.mrf.mxu0
  %v5154 = vadd.f32 %v4985, %v5153
  %v5155 = vpop.f32.mrf.mxu0
  %v5156 = vadd.f32 %v4987, %v5155
  %5157 = vmatmul.bf16.gmra.mxu0 %v2404
  %v5158 = vpop.f32.mrf.mxu0
  %v5159 = vadd.f32 %v4990, %v5158
  %v5160 = vpop.f32.mrf.mxu0
  %v5161 = vadd.f32 %v4992, %v5160
  %5162 = vmatmul.bf16.gmra.mxu0 %v2420
  %v5163 = vpop.f32.mrf.mxu0
  %v5164 = vadd.f32 %v4995, %v5163
  %v5165 = vpop.f32.mrf.mxu0
  %v5166 = vadd.f32 %v4997, %v5165
  %5167 = vmatmul.bf16.gmra.mxu0 %v2436
  %v5168 = vpop.f32.mrf.mxu0
  %v5169 = vadd.f32 %v5000, %v5168
  %v5170 = vpop.f32.mrf.mxu0
  %v5171 = vadd.f32 %v5002, %v5170
  %5172 = vmatmul.bf16.gmra.mxu0 %v2452
  %v5173 = vpop.f32.mrf.mxu0
  %v5174 = vadd.f32 %v5005, %v5173
  %v5175 = vpop.f32.mrf.mxu0
  %v5176 = vadd.f32 %v5007, %v5175
  %5177 = vmatmul.bf16.gmra.mxu0 %v2468
  %v5178 = vpop.f32.mrf.mxu0
  %v5179 = vadd.f32 %v5010, %v5178
  %v5180 = vpop.f32.mrf.mxu0
  %v5181 = vadd.f32 %v5012, %v5180
  %5182 = vmatmul.bf16.gmra.mxu0 %v2484
  %v5183 = vpop.f32.mrf.mxu0
  %v5184 = vadd.f32 %v5015, %v5183
  %v5185 = vpop.f32.mrf.mxu0
  %v5186 = vadd.f32 %v5017, %v5185
  %5187 = vmatmul.bf16.gmra.mxu0 %v2500
  %v5188 = vpop.f32.mrf.mxu0
  %v5189 = vadd.f32 %v5020, %v5188
  %v5190 = vpop.f32.mrf.mxu0
  %v5191 = vadd.f32 %v5022, %v5190
  %5192 = vmatmul.bf16.gmra.mxu0 %v2516
  %v5193 = vpop.f32.mrf.mxu0
  %v5194 = vadd.f32 %v5025, %v5193
  %v5195 = vpop.f32.mrf.mxu0
  %v5196 = vadd.f32 %v5027, %v5195
  %5197 = vmatmul.bf16.gmra.mxu0 %v2532
  %v5198 = vpop.f32.mrf.mxu0
  %v5199 = vadd.f32 %v5030, %v5198
  %v5200 = vpop.f32.mrf.mxu0
  %v5201 = vadd.f32 %v5032, %v5200
  %5202 = vmatmul.bf16.gmra.mxu0 %v2548
  %v5203 = vpop.f32.mrf.mxu0
  %v5204 = vadd.f32 %v5035, %v5203
  %v5205 = vpop.f32.mrf.mxu0
  %v5206 = vadd.f32 %v5037, %v5205
  %5207 = vmatmul.bf16.gmra.mxu0 %v2564
  %v5208 = vpop.f32.mrf.mxu0
  %v5209 = vadd.f32 %v5040, %v5208
  %v5210 = vpop.f32.mrf.mxu0
  %v5211 = vadd.f32 %v5042, %v5210
  %5212 = vmatmul.bf16.gmra.mxu0 %v2580
  %v5213 = vpop.f32.mrf.mxu0
  %v5214 = vadd.f32 %v5045, %v5213
  %v5215 = vpop.f32.mrf.mxu0
  %v5216 = vadd.f32 %v5047, %v5215
  %5217 = vmatmul.bf16.gmra.mxu0 %v2596
  %v5218 = vpop.f32.mrf.mxu0
  %v5219 = vadd.f32 %v5050, %v5218
  %v5220 = vpop.f32.mrf.mxu0
  %v5221 = vadd.f32 %v5052, %v5220
  %5222 = vmatmul.bf16.gmra.mxu0 %v2612
  %v5223 = vpop.f32.mrf.mxu0
  %v5224 = vadd.f32 %v5055, %v5223
  %v5225 = vpop.f32.mrf.mxu0
  %v5226 = vadd.f32 %v5057, %v5225
  %5227 = vmatmul.bf16.gmra.mxu0 %v2628
  %v5228 = vpop.f32.mrf.mxu0
  %v5229 = vadd.f32 %v5060, %v5228
  %v5230 = vpop.f32.mrf.mxu0
  %v5231 = vadd.f32 %v5062, %v5230
  %5232 = vmatmul.bf16.gmra.mxu0 %v2644
  %v5233 = vpop.f32.mrf.mxu0
  %v5234 = vadd.f32 %v5065, %v5233
  %v5235 = vpop.f32.mrf.mxu0
  %v5236 = vadd.f32 %v5067, %v5235
  %5237 = vmatmul.bf16.gmra.mxu0 %v2660
  %v5238 = vpop.f32.mrf.mxu0
  %v5239 = vadd.f32 %v5070, %v5238
  %v5240 = vpop.f32.mrf.mxu0
  %v5241 = vadd.f32 %v5072, %v5240
  %5242 = vmatmul.bf16.gmra.mxu0 %v2676
  %v5243 = vpop.f32.mrf.mxu0
  %v5244 = vadd.f32 %v5075, %v5243
  %v5245 = vpop.f32.mrf.mxu0
  %v5246 = vadd.f32 %v5077, %v5245
  %5247 = vmatmul.bf16.gmra.mxu0 %v2692
  %v5248 = vpop.f32.mrf.mxu0
  %v5249 = vadd.f32 %v5080, %v5248
  %v5250 = vpop.f32.mrf.mxu0
  %v5251 = vadd.f32 %v5082, %v5250
  %5252 = vmatmul.bf16.gmra.mxu0 %v2708
  %v5253 = vpop.f32.mrf.mxu0
  %v5254 = vadd.f32 %v5085, %v5253
  %v5255 = vpop.f32.mrf.mxu0
  %v5256 = vadd.f32 %v5087, %v5255
  %5257 = vmatmul.bf16.gmra.mxu0 %v2724
  %v5258 = vpop.f32.mrf.mxu0
  %v5259 = vadd.f32 %v5090, %v5258
  %v5260 = vpop.f32.mrf.mxu0
  %v5261 = vadd.f32 %v5092, %v5260
  %5262 = vmatmul.bf16.gmra.mxu0 %v2740
  %v5263 = vpop.f32.mrf.mxu0
  %v5264 = vadd.f32 %v5095, %v5263
  %v5265 = vpop.f32.mrf.mxu0
  %v5266 = vadd.f32 %v5097, %v5265
  %5267 = vmatmul.bf16.gmra.mxu0 %v2756
  %v5268 = vpop.f32.mrf.mxu0
  %v5269 = vadd.f32 %v5100, %v5268
  %v5270 = vpop.f32.mrf.mxu0
  %v5271 = vadd.f32 %v5102, %v5270
  %5272 = vmatmul.bf16.gmra.mxu0 %v2772
  %v5273 = vpop.f32.mrf.mxu0
  %v5274 = vadd.f32 %v5105, %v5273
  %v5275 = vpop.f32.mrf.mxu0
  %v5276 = vadd.f32 %v5107, %v5275
  %5277 = vmatmul.bf16.gmra.mxu0 %v2788
  %v5278 = vpop.f32.mrf.mxu0
  %v5279 = vadd.f32 %v5110, %v5278
  %v5280 = vpop.f32.mrf.mxu0
  %v5281 = vadd.f32 %v5112, %v5280
  %5282 = vmatmul.bf16.gmra.mxu0 %v2804
  %v5283 = vpop.f32.mrf.mxu0
  %v5284 = vadd.f32 %v5115, %v5283
  %v5285 = vpop.f32.mrf.mxu0
  %v5286 = vadd.f32 %v5117, %v5285
  %5287 = vmatmul.bf16.gmra.mxu0 %v2820
  %v5288 = vpop.f32.mrf.mxu0
  %v5289 = vadd.f32 %v5120, %v5288
  %v5290 = vpop.f32.mrf.mxu0
  %v5291 = vadd.f32 %v5122, %v5290
  %5292 = vdwg.mxu0
  %5293 = vmatpush.bf16.msra.mxu0 %v3917
  %5294 = vmatpush.bf16.msra.mxu0 %v3916
  %5295 = vmatpush.bf16.msra.mxu0 %v3915
  %5296 = vmatpush.bf16.msra.mxu0 %v3914
  %5297 = vmatpush.bf16.msra.mxu0 %v3913
  %5298 = vmatpush.bf16.msra.mxu0 %v3912
  %5299 = vmatpush.bf16.msra.mxu0 %v3911
  %5300 = vmatpush.bf16.msra.mxu0 %v3910
  %5301 = vmatmul.bf16.gmra.mxu0 %v2325
  %v5302 = vpop.f32.mrf.mxu0
  %v5303 = vadd.f32 %v5134, %v5302
  %v5304 = vpop.f32.mrf.mxu0
  %v5305 = vadd.f32 %v5136, %v5304
  %5306 = vmatmul.bf16.gmra.mxu0 %v2341
  %v5307 = vpop.f32.mrf.mxu0
  %v5308 = vadd.f32 %v5139, %v5307
  %v5309 = vpop.f32.mrf.mxu0
  %v5310 = vadd.f32 %v5141, %v5309
  %5311 = vmatmul.bf16.gmra.mxu0 %v2357
  %v5312 = vpop.f32.mrf.mxu0
  %v5313 = vadd.f32 %v5144, %v5312
  %v5314 = vpop.f32.mrf.mxu0
  %v5315 = vadd.f32 %v5146, %v5314
  %5316 = vmatmul.bf16.gmra.mxu0 %v2373
  %v5317 = vpop.f32.mrf.mxu0
  %v5318 = vadd.f32 %v5149, %v5317
  %v5319 = vpop.f32.mrf.mxu0
  %v5320 = vadd.f32 %v5151, %v5319
  %5321 = vmatmul.bf16.gmra.mxu0 %v2389
  %v5322 = vpop.f32.mrf.mxu0
  %v5323 = vadd.f32 %v5154, %v5322
  %v5324 = vpop.f32.mrf.mxu0
  %v5325 = vadd.f32 %v5156, %v5324
  %5326 = vmatmul.bf16.gmra.mxu0 %v2405
  %v5327 = vpop.f32.mrf.mxu0
  %v5328 = vadd.f32 %v5159, %v5327
  %v5329 = vpop.f32.mrf.mxu0
  %v5330 = vadd.f32 %v5161, %v5329
  %5331 = vmatmul.bf16.gmra.mxu0 %v2421
  %v5332 = vpop.f32.mrf.mxu0
  %v5333 = vadd.f32 %v5164, %v5332
  %v5334 = vpop.f32.mrf.mxu0
  %v5335 = vadd.f32 %v5166, %v5334
  %5336 = vmatmul.bf16.gmra.mxu0 %v2437
  %v5337 = vpop.f32.mrf.mxu0
  %v5338 = vadd.f32 %v5169, %v5337
  %v5339 = vpop.f32.mrf.mxu0
  %v5340 = vadd.f32 %v5171, %v5339
  %5341 = vmatmul.bf16.gmra.mxu0 %v2453
  %v5342 = vpop.f32.mrf.mxu0
  %v5343 = vadd.f32 %v5174, %v5342
  %v5344 = vpop.f32.mrf.mxu0
  %v5345 = vadd.f32 %v5176, %v5344
  %5346 = vmatmul.bf16.gmra.mxu0 %v2469
  %v5347 = vpop.f32.mrf.mxu0
  %v5348 = vadd.f32 %v5179, %v5347
  %v5349 = vpop.f32.mrf.mxu0
  %v5350 = vadd.f32 %v5181, %v5349
  %5351 = vmatmul.bf16.gmra.mxu0 %v2485
  %v5352 = vpop.f32.mrf.mxu0
  %v5353 = vadd.f32 %v5184, %v5352
  %v5354 = vpop.f32.mrf.mxu0
  %v5355 = vadd.f32 %v5186, %v5354
  %5356 = vmatmul.bf16.gmra.mxu0 %v2501
  %v5357 = vpop.f32.mrf.mxu0
  %v5358 = vadd.f32 %v5189, %v5357
  %v5359 = vpop.f32.mrf.mxu0
  %v5360 = vadd.f32 %v5191, %v5359
  %5361 = vmatmul.bf16.gmra.mxu0 %v2517
  %v5362 = vpop.f32.mrf.mxu0
  %v5363 = vadd.f32 %v5194, %v5362
  %v5364 = vpop.f32.mrf.mxu0
  %v5365 = vadd.f32 %v5196, %v5364
  %5366 = vmatmul.bf16.gmra.mxu0 %v2533
  %v5367 = vpop.f32.mrf.mxu0
  %v5368 = vadd.f32 %v5199, %v5367
  %v5369 = vpop.f32.mrf.mxu0
  %v5370 = vadd.f32 %v5201, %v5369
  %5371 = vmatmul.bf16.gmra.mxu0 %v2549
  %v5372 = vpop.f32.mrf.mxu0
  %v5373 = vadd.f32 %v5204, %v5372
  %v5374 = vpop.f32.mrf.mxu0
  %v5375 = vadd.f32 %v5206, %v5374
  %5376 = vmatmul.bf16.gmra.mxu0 %v2565
  %v5377 = vpop.f32.mrf.mxu0
  %v5378 = vadd.f32 %v5209, %v5377
  %v5379 = vpop.f32.mrf.mxu0
  %v5380 = vadd.f32 %v5211, %v5379
  %5381 = vmatmul.bf16.gmra.mxu0 %v2581
  %v5382 = vpop.f32.mrf.mxu0
  %v5383 = vadd.f32 %v5214, %v5382
  %v5384 = vpop.f32.mrf.mxu0
  %v5385 = vadd.f32 %v5216, %v5384
  %5386 = vmatmul.bf16.gmra.mxu0 %v2597
  %v5387 = vpop.f32.mrf.mxu0
  %v5388 = vadd.f32 %v5219, %v5387
  %v5389 = vpop.f32.mrf.mxu0
  %v5390 = vadd.f32 %v5221, %v5389
  %5391 = vmatmul.bf16.gmra.mxu0 %v2613
  %v5392 = vpop.f32.mrf.mxu0
  %v5393 = vadd.f32 %v5224, %v5392
  %v5394 = vpop.f32.mrf.mxu0
  %v5395 = vadd.f32 %v5226, %v5394
  %5396 = vmatmul.bf16.gmra.mxu0 %v2629
  %v5397 = vpop.f32.mrf.mxu0
  %v5398 = vadd.f32 %v5229, %v5397
  %v5399 = vpop.f32.mrf.mxu0
  %v5400 = vadd.f32 %v5231, %v5399
  %5401 = vmatmul.bf16.gmra.mxu0 %v2645
  %v5402 = vpop.f32.mrf.mxu0
  %v5403 = vadd.f32 %v5234, %v5402
  %v5404 = vpop.f32.mrf.mxu0
  %v5405 = vadd.f32 %v5236, %v5404
  %5406 = vmatmul.bf16.gmra.mxu0 %v2661
  %v5407 = vpop.f32.mrf.mxu0
  %v5408 = vadd.f32 %v5239, %v5407
  %v5409 = vpop.f32.mrf.mxu0
  %v5410 = vadd.f32 %v5241, %v5409
  %5411 = vmatmul.bf16.gmra.mxu0 %v2677
  %v5412 = vpop.f32.mrf.mxu0
  %v5413 = vadd.f32 %v5244, %v5412
  %v5414 = vpop.f32.mrf.mxu0
  %v5415 = vadd.f32 %v5246, %v5414
  %5416 = vmatmul.bf16.gmra.mxu0 %v2693
  %v5417 = vpop.f32.mrf.mxu0
  %v5418 = vadd.f32 %v5249, %v5417
  %v5419 = vpop.f32.mrf.mxu0
  %v5420 = vadd.f32 %v5251, %v5419
  %5421 = vmatmul.bf16.gmra.mxu0 %v2709
  %v5422 = vpop.f32.mrf.mxu0
  %v5423 = vadd.f32 %v5254, %v5422
  %v5424 = vpop.f32.mrf.mxu0
  %v5425 = vadd.f32 %v5256, %v5424
  %5426 = vmatmul.bf16.gmra.mxu0 %v2725
  %v5427 = vpop.f32.mrf.mxu0
  %v5428 = vadd.f32 %v5259, %v5427
  %v5429 = vpop.f32.mrf.mxu0
  %v5430 = vadd.f32 %v5261, %v5429
  %5431 = vmatmul.bf16.gmra.mxu0 %v2741
  %v5432 = vpop.f32.mrf.mxu0
  %v5433 = vadd.f32 %v5264, %v5432
  %v5434 = vpop.f32.mrf.mxu0
  %v5435 = vadd.f32 %v5266, %v5434
  %5436 = vmatmul.bf16.gmra.mxu0 %v2757
  %v5437 = vpop.f32.mrf.mxu0
  %v5438 = vadd.f32 %v5269, %v5437
  %v5439 = vpop.f32.mrf.mxu0
  %v5440 = vadd.f32 %v5271, %v5439
  %5441 = vmatmul.bf16.gmra.mxu0 %v2773
  %v5442 = vpop.f32.mrf.mxu0
  %v5443 = vadd.f32 %v5274, %v5442
  %v5444 = vpop.f32.mrf.mxu0
  %v5445 = vadd.f32 %v5276, %v5444
  %5446 = vmatmul.bf16.gmra.mxu0 %v2789
  %v5447 = vpop.f32.mrf.mxu0
  %v5448 = vadd.f32 %v5279, %v5447
  %v5449 = vpop.f32.mrf.mxu0
  %v5450 = vadd.f32 %v5281, %v5449
  %5451 = vmatmul.bf16.gmra.mxu0 %v2805
  %v5452 = vpop.f32.mrf.mxu0
  %v5453 = vadd.f32 %v5284, %v5452
  %v5454 = vpop.f32.mrf.mxu0
  %v5455 = vadd.f32 %v5286, %v5454
  %5456 = vmatmul.bf16.gmra.mxu0 %v2821
  %v5457 = vpop.f32.mrf.mxu0
  %v5458 = vadd.f32 %v5289, %v5457
  %v5459 = vpop.f32.mrf.mxu0
  %v5460 = vadd.f32 %v5291, %v5459
  %5461 = vdwg.mxu0
  %5462 = vmatpush.bf16.msra.mxu0 %v3925
  %5463 = vmatpush.bf16.msra.mxu0 %v3924
  %5464 = vmatpush.bf16.msra.mxu0 %v3923
  %5465 = vmatpush.bf16.msra.mxu0 %v3922
  %5466 = vmatpush.bf16.msra.mxu0 %v3921
  %5467 = vmatpush.bf16.msra.mxu0 %v3920
  %5468 = vmatpush.bf16.msra.mxu0 %v3919
  %5469 = vmatpush.bf16.msra.mxu0 %v3918
  %5470 = vmatmul.bf16.gmra.mxu0 %v2326
  %v5471 = vpop.f32.mrf.mxu0
  %v5472 = vadd.f32 %v5303, %v5471
  %v5473 = vpop.f32.mrf.mxu0
  %v5474 = vadd.f32 %v5305, %v5473
  %5475 = vmatmul.bf16.gmra.mxu0 %v2342
  %v5476 = vpop.f32.mrf.mxu0
  %v5477 = vadd.f32 %v5308, %v5476
  %v5478 = vpop.f32.mrf.mxu0
  %v5479 = vadd.f32 %v5310, %v5478
  %5480 = vmatmul.bf16.gmra.mxu0 %v2358
  %v5481 = vpop.f32.mrf.mxu0
  %v5482 = vadd.f32 %v5313, %v5481
  %v5483 = vpop.f32.mrf.mxu0
  %v5484 = vadd.f32 %v5315, %v5483
  %5485 = vmatmul.bf16.gmra.mxu0 %v2374
  %v5486 = vpop.f32.mrf.mxu0
  %v5487 = vadd.f32 %v5318, %v5486
  %v5488 = vpop.f32.mrf.mxu0
  %v5489 = vadd.f32 %v5320, %v5488
  %5490 = vmatmul.bf16.gmra.mxu0 %v2390
  %v5491 = vpop.f32.mrf.mxu0
  %v5492 = vadd.f32 %v5323, %v5491
  %v5493 = vpop.f32.mrf.mxu0
  %v5494 = vadd.f32 %v5325, %v5493
  %5495 = vmatmul.bf16.gmra.mxu0 %v2406
  %v5496 = vpop.f32.mrf.mxu0
  %v5497 = vadd.f32 %v5328, %v5496
  %v5498 = vpop.f32.mrf.mxu0
  %v5499 = vadd.f32 %v5330, %v5498
  %5500 = vmatmul.bf16.gmra.mxu0 %v2422
  %v5501 = vpop.f32.mrf.mxu0
  %v5502 = vadd.f32 %v5333, %v5501
  %v5503 = vpop.f32.mrf.mxu0
  %v5504 = vadd.f32 %v5335, %v5503
  %5505 = vmatmul.bf16.gmra.mxu0 %v2438
  %v5506 = vpop.f32.mrf.mxu0
  %v5507 = vadd.f32 %v5338, %v5506
  %v5508 = vpop.f32.mrf.mxu0
  %v5509 = vadd.f32 %v5340, %v5508
  %5510 = vmatmul.bf16.gmra.mxu0 %v2454
  %v5511 = vpop.f32.mrf.mxu0
  %v5512 = vadd.f32 %v5343, %v5511
  %v5513 = vpop.f32.mrf.mxu0
  %v5514 = vadd.f32 %v5345, %v5513
  %5515 = vmatmul.bf16.gmra.mxu0 %v2470
  %v5516 = vpop.f32.mrf.mxu0
  %v5517 = vadd.f32 %v5348, %v5516
  %v5518 = vpop.f32.mrf.mxu0
  %v5519 = vadd.f32 %v5350, %v5518
  %5520 = vmatmul.bf16.gmra.mxu0 %v2486
  %v5521 = vpop.f32.mrf.mxu0
  %v5522 = vadd.f32 %v5353, %v5521
  %v5523 = vpop.f32.mrf.mxu0
  %v5524 = vadd.f32 %v5355, %v5523
  %5525 = vmatmul.bf16.gmra.mxu0 %v2502
  %v5526 = vpop.f32.mrf.mxu0
  %v5527 = vadd.f32 %v5358, %v5526
  %v5528 = vpop.f32.mrf.mxu0
  %v5529 = vadd.f32 %v5360, %v5528
  %5530 = vmatmul.bf16.gmra.mxu0 %v2518
  %v5531 = vpop.f32.mrf.mxu0
  %v5532 = vadd.f32 %v5363, %v5531
  %v5533 = vpop.f32.mrf.mxu0
  %v5534 = vadd.f32 %v5365, %v5533
  %5535 = vmatmul.bf16.gmra.mxu0 %v2534
  %v5536 = vpop.f32.mrf.mxu0
  %v5537 = vadd.f32 %v5368, %v5536
  %v5538 = vpop.f32.mrf.mxu0
  %v5539 = vadd.f32 %v5370, %v5538
  %5540 = vmatmul.bf16.gmra.mxu0 %v2550
  %v5541 = vpop.f32.mrf.mxu0
  %v5542 = vadd.f32 %v5373, %v5541
  %v5543 = vpop.f32.mrf.mxu0
  %v5544 = vadd.f32 %v5375, %v5543
  %5545 = vmatmul.bf16.gmra.mxu0 %v2566
  %v5546 = vpop.f32.mrf.mxu0
  %v5547 = vadd.f32 %v5378, %v5546
  %v5548 = vpop.f32.mrf.mxu0
  %v5549 = vadd.f32 %v5380, %v5548
  %5550 = vmatmul.bf16.gmra.mxu0 %v2582
  %v5551 = vpop.f32.mrf.mxu0
  %v5552 = vadd.f32 %v5383, %v5551
  %v5553 = vpop.f32.mrf.mxu0
  %v5554 = vadd.f32 %v5385, %v5553
  %5555 = vmatmul.bf16.gmra.mxu0 %v2598
  %v5556 = vpop.f32.mrf.mxu0
  %v5557 = vadd.f32 %v5388, %v5556
  %v5558 = vpop.f32.mrf.mxu0
  %v5559 = vadd.f32 %v5390, %v5558
  %5560 = vmatmul.bf16.gmra.mxu0 %v2614
  %v5561 = vpop.f32.mrf.mxu0
  %v5562 = vadd.f32 %v5393, %v5561
  %v5563 = vpop.f32.mrf.mxu0
  %v5564 = vadd.f32 %v5395, %v5563
  %5565 = vmatmul.bf16.gmra.mxu0 %v2630
  %v5566 = vpop.f32.mrf.mxu0
  %v5567 = vadd.f32 %v5398, %v5566
  %v5568 = vpop.f32.mrf.mxu0
  %v5569 = vadd.f32 %v5400, %v5568
  %5570 = vmatmul.bf16.gmra.mxu0 %v2646
  %v5571 = vpop.f32.mrf.mxu0
  %v5572 = vadd.f32 %v5403, %v5571
  %v5573 = vpop.f32.mrf.mxu0
  %v5574 = vadd.f32 %v5405, %v5573
  %5575 = vmatmul.bf16.gmra.mxu0 %v2662
  %v5576 = vpop.f32.mrf.mxu0
  %v5577 = vadd.f32 %v5408, %v5576
  %v5578 = vpop.f32.mrf.mxu0
  %v5579 = vadd.f32 %v5410, %v5578
  %5580 = vmatmul.bf16.gmra.mxu0 %v2678
  %v5581 = vpop.f32.mrf.mxu0
  %v5582 = vadd.f32 %v5413, %v5581
  %v5583 = vpop.f32.mrf.mxu0
  %v5584 = vadd.f32 %v5415, %v5583
  %5585 = vmatmul.bf16.gmra.mxu0 %v2694
  %v5586 = vpop.f32.mrf.mxu0
  %v5587 = vadd.f32 %v5418, %v5586
  %v5588 = vpop.f32.mrf.mxu0
  %v5589 = vadd.f32 %v5420, %v5588
  %5590 = vmatmul.bf16.gmra.mxu0 %v2710
  %v5591 = vpop.f32.mrf.mxu0
  %v5592 = vadd.f32 %v5423, %v5591
  %v5593 = vpop.f32.mrf.mxu0
  %v5594 = vadd.f32 %v5425, %v5593
  %5595 = vmatmul.bf16.gmra.mxu0 %v2726
  %v5596 = vpop.f32.mrf.mxu0
  %v5597 = vadd.f32 %v5428, %v5596
  %v5598 = vpop.f32.mrf.mxu0
  %v5599 = vadd.f32 %v5430, %v5598
  %5600 = vmatmul.bf16.gmra.mxu0 %v2742
  %v5601 = vpop.f32.mrf.mxu0
  %v5602 = vadd.f32 %v5433, %v5601
  %v5603 = vpop.f32.mrf.mxu0
  %v5604 = vadd.f32 %v5435, %v5603
  %5605 = vmatmul.bf16.gmra.mxu0 %v2758
  %v5606 = vpop.f32.mrf.mxu0
  %v5607 = vadd.f32 %v5438, %v5606
  %v5608 = vpop.f32.mrf.mxu0
  %v5609 = vadd.f32 %v5440, %v5608
  %5610 = vmatmul.bf16.gmra.mxu0 %v2774
  %v5611 = vpop.f32.mrf.mxu0
  %v5612 = vadd.f32 %v5443, %v5611
  %v5613 = vpop.f32.mrf.mxu0
  %v5614 = vadd.f32 %v5445, %v5613
  %5615 = vmatmul.bf16.gmra.mxu0 %v2790
  %v5616 = vpop.f32.mrf.mxu0
  %v5617 = vadd.f32 %v5448, %v5616
  %v5618 = vpop.f32.mrf.mxu0
  %v5619 = vadd.f32 %v5450, %v5618
  %5620 = vmatmul.bf16.gmra.mxu0 %v2806
  %v5621 = vpop.f32.mrf.mxu0
  %v5622 = vadd.f32 %v5453, %v5621
  %v5623 = vpop.f32.mrf.mxu0
  %v5624 = vadd.f32 %v5455, %v5623
  %5625 = vmatmul.bf16.gmra.mxu0 %v2822
  %v5626 = vpop.f32.mrf.mxu0
  %v5627 = vadd.f32 %v5458, %v5626
  %v5628 = vpop.f32.mrf.mxu0
  %v5629 = vadd.f32 %v5460, %v5628
  %5630 = vdwg.mxu0
  %5631 = vmatpush.bf16.msra.mxu0 %v3933
  %5632 = vmatpush.bf16.msra.mxu0 %v3932
  %5633 = vmatpush.bf16.msra.mxu0 %v3931
  %5634 = vmatpush.bf16.msra.mxu0 %v3930
  %5635 = vmatpush.bf16.msra.mxu0 %v3929
  %5636 = vmatpush.bf16.msra.mxu0 %v3928
  %5637 = vmatpush.bf16.msra.mxu0 %v3927
  %5638 = vmatpush.bf16.msra.mxu0 %v3926
  %5639 = vmatmul.bf16.gmra.mxu0 %v2327
  %v5640 = vpop.f32.mrf.mxu0
  %v5641 = vadd.f32 %v5472, %v5640
  %v5642 = vpop.f32.mrf.mxu0
  %v5643 = vadd.f32 %v5474, %v5642
  %5644 = vmatmul.bf16.gmra.mxu0 %v2343
  %v5645 = vpop.f32.mrf.mxu0
  %v5646 = vadd.f32 %v5477, %v5645
  %v5647 = vpop.f32.mrf.mxu0
  %v5648 = vadd.f32 %v5479, %v5647
  %5649 = vmatmul.bf16.gmra.mxu0 %v2359
  %v5650 = vpop.f32.mrf.mxu0
  %v5651 = vadd.f32 %v5482, %v5650
  %v5652 = vpop.f32.mrf.mxu0
  %v5653 = vadd.f32 %v5484, %v5652
  %5654 = vmatmul.bf16.gmra.mxu0 %v2375
  %v5655 = vpop.f32.mrf.mxu0
  %v5656 = vadd.f32 %v5487, %v5655
  %v5657 = vpop.f32.mrf.mxu0
  %v5658 = vadd.f32 %v5489, %v5657
  %5659 = vmatmul.bf16.gmra.mxu0 %v2391
  %v5660 = vpop.f32.mrf.mxu0
  %v5661 = vadd.f32 %v5492, %v5660
  %v5662 = vpop.f32.mrf.mxu0
  %v5663 = vadd.f32 %v5494, %v5662
  %5664 = vmatmul.bf16.gmra.mxu0 %v2407
  %v5665 = vpop.f32.mrf.mxu0
  %v5666 = vadd.f32 %v5497, %v5665
  %v5667 = vpop.f32.mrf.mxu0
  %v5668 = vadd.f32 %v5499, %v5667
  %5669 = vmatmul.bf16.gmra.mxu0 %v2423
  %v5670 = vpop.f32.mrf.mxu0
  %v5671 = vadd.f32 %v5502, %v5670
  %v5672 = vpop.f32.mrf.mxu0
  %v5673 = vadd.f32 %v5504, %v5672
  %5674 = vmatmul.bf16.gmra.mxu0 %v2439
  %v5675 = vpop.f32.mrf.mxu0
  %v5676 = vadd.f32 %v5507, %v5675
  %v5677 = vpop.f32.mrf.mxu0
  %v5678 = vadd.f32 %v5509, %v5677
  %5679 = vmatmul.bf16.gmra.mxu0 %v2455
  %v5680 = vpop.f32.mrf.mxu0
  %v5681 = vadd.f32 %v5512, %v5680
  %v5682 = vpop.f32.mrf.mxu0
  %v5683 = vadd.f32 %v5514, %v5682
  %5684 = vmatmul.bf16.gmra.mxu0 %v2471
  %v5685 = vpop.f32.mrf.mxu0
  %v5686 = vadd.f32 %v5517, %v5685
  %v5687 = vpop.f32.mrf.mxu0
  %v5688 = vadd.f32 %v5519, %v5687
  %5689 = vmatmul.bf16.gmra.mxu0 %v2487
  %v5690 = vpop.f32.mrf.mxu0
  %v5691 = vadd.f32 %v5522, %v5690
  %v5692 = vpop.f32.mrf.mxu0
  %v5693 = vadd.f32 %v5524, %v5692
  %5694 = vmatmul.bf16.gmra.mxu0 %v2503
  %v5695 = vpop.f32.mrf.mxu0
  %v5696 = vadd.f32 %v5527, %v5695
  %v5697 = vpop.f32.mrf.mxu0
  %v5698 = vadd.f32 %v5529, %v5697
  %5699 = vmatmul.bf16.gmra.mxu0 %v2519
  %v5700 = vpop.f32.mrf.mxu0
  %v5701 = vadd.f32 %v5532, %v5700
  %v5702 = vpop.f32.mrf.mxu0
  %v5703 = vadd.f32 %v5534, %v5702
  %5704 = vmatmul.bf16.gmra.mxu0 %v2535
  %v5705 = vpop.f32.mrf.mxu0
  %v5706 = vadd.f32 %v5537, %v5705
  %v5707 = vpop.f32.mrf.mxu0
  %v5708 = vadd.f32 %v5539, %v5707
  %5709 = vmatmul.bf16.gmra.mxu0 %v2551
  %v5710 = vpop.f32.mrf.mxu0
  %v5711 = vadd.f32 %v5542, %v5710
  %v5712 = vpop.f32.mrf.mxu0
  %v5713 = vadd.f32 %v5544, %v5712
  %5714 = vmatmul.bf16.gmra.mxu0 %v2567
  %v5715 = vpop.f32.mrf.mxu0
  %v5716 = vadd.f32 %v5547, %v5715
  %v5717 = vpop.f32.mrf.mxu0
  %v5718 = vadd.f32 %v5549, %v5717
  %5719 = vmatmul.bf16.gmra.mxu0 %v2583
  %v5720 = vpop.f32.mrf.mxu0
  %v5721 = vadd.f32 %v5552, %v5720
  %v5722 = vpop.f32.mrf.mxu0
  %v5723 = vadd.f32 %v5554, %v5722
  %5724 = vmatmul.bf16.gmra.mxu0 %v2599
  %v5725 = vpop.f32.mrf.mxu0
  %v5726 = vadd.f32 %v5557, %v5725
  %v5727 = vpop.f32.mrf.mxu0
  %v5728 = vadd.f32 %v5559, %v5727
  %5729 = vmatmul.bf16.gmra.mxu0 %v2615
  %v5730 = vpop.f32.mrf.mxu0
  %v5731 = vadd.f32 %v5562, %v5730
  %v5732 = vpop.f32.mrf.mxu0
  %v5733 = vadd.f32 %v5564, %v5732
  %5734 = vmatmul.bf16.gmra.mxu0 %v2631
  %v5735 = vpop.f32.mrf.mxu0
  %v5736 = vadd.f32 %v5567, %v5735
  %v5737 = vpop.f32.mrf.mxu0
  %v5738 = vadd.f32 %v5569, %v5737
  %5739 = vmatmul.bf16.gmra.mxu0 %v2647
  %v5740 = vpop.f32.mrf.mxu0
  %v5741 = vadd.f32 %v5572, %v5740
  %v5742 = vpop.f32.mrf.mxu0
  %v5743 = vadd.f32 %v5574, %v5742
  %5744 = vmatmul.bf16.gmra.mxu0 %v2663
  %v5745 = vpop.f32.mrf.mxu0
  %v5746 = vadd.f32 %v5577, %v5745
  %v5747 = vpop.f32.mrf.mxu0
  %v5748 = vadd.f32 %v5579, %v5747
  %5749 = vmatmul.bf16.gmra.mxu0 %v2679
  %v5750 = vpop.f32.mrf.mxu0
  %v5751 = vadd.f32 %v5582, %v5750
  %v5752 = vpop.f32.mrf.mxu0
  %v5753 = vadd.f32 %v5584, %v5752
  %5754 = vmatmul.bf16.gmra.mxu0 %v2695
  %v5755 = vpop.f32.mrf.mxu0
  %v5756 = vadd.f32 %v5587, %v5755
  %v5757 = vpop.f32.mrf.mxu0
  %v5758 = vadd.f32 %v5589, %v5757
  %5759 = vmatmul.bf16.gmra.mxu0 %v2711
  %v5760 = vpop.f32.mrf.mxu0
  %v5761 = vadd.f32 %v5592, %v5760
  %v5762 = vpop.f32.mrf.mxu0
  %v5763 = vadd.f32 %v5594, %v5762
  %5764 = vmatmul.bf16.gmra.mxu0 %v2727
  %v5765 = vpop.f32.mrf.mxu0
  %v5766 = vadd.f32 %v5597, %v5765
  %v5767 = vpop.f32.mrf.mxu0
  %v5768 = vadd.f32 %v5599, %v5767
  %5769 = vmatmul.bf16.gmra.mxu0 %v2743
  %v5770 = vpop.f32.mrf.mxu0
  %v5771 = vadd.f32 %v5602, %v5770
  %v5772 = vpop.f32.mrf.mxu0
  %v5773 = vadd.f32 %v5604, %v5772
  %5774 = vmatmul.bf16.gmra.mxu0 %v2759
  %v5775 = vpop.f32.mrf.mxu0
  %v5776 = vadd.f32 %v5607, %v5775
  %v5777 = vpop.f32.mrf.mxu0
  %v5778 = vadd.f32 %v5609, %v5777
  %5779 = vmatmul.bf16.gmra.mxu0 %v2775
  %v5780 = vpop.f32.mrf.mxu0
  %v5781 = vadd.f32 %v5612, %v5780
  %v5782 = vpop.f32.mrf.mxu0
  %v5783 = vadd.f32 %v5614, %v5782
  %5784 = vmatmul.bf16.gmra.mxu0 %v2791
  %v5785 = vpop.f32.mrf.mxu0
  %v5786 = vadd.f32 %v5617, %v5785
  %v5787 = vpop.f32.mrf.mxu0
  %v5788 = vadd.f32 %v5619, %v5787
  %5789 = vmatmul.bf16.gmra.mxu0 %v2807
  %v5790 = vpop.f32.mrf.mxu0
  %v5791 = vadd.f32 %v5622, %v5790
  %v5792 = vpop.f32.mrf.mxu0
  %v5793 = vadd.f32 %v5624, %v5792
  %5794 = vmatmul.bf16.gmra.mxu0 %v2823
  %v5795 = vpop.f32.mrf.mxu0
  %v5796 = vadd.f32 %v5627, %v5795
  %v5797 = vpop.f32.mrf.mxu0
  %v5798 = vadd.f32 %v5629, %v5797
  %5799 = vdwg.mxu0
  %5800 = vmatpush.bf16.msra.mxu0 %v3941
  %5801 = vmatpush.bf16.msra.mxu0 %v3940
  %5802 = vmatpush.bf16.msra.mxu0 %v3939
  %5803 = vmatpush.bf16.msra.mxu0 %v3938
  %5804 = vmatpush.bf16.msra.mxu0 %v3937
  %5805 = vmatpush.bf16.msra.mxu0 %v3936
  %5806 = vmatpush.bf16.msra.mxu0 %v3935
  %5807 = vmatpush.bf16.msra.mxu0 %v3934
  %5808 = vmatmul.bf16.gmra.mxu0 %v2328
  %v5809 = vpop.f32.mrf.mxu0
  %v5810 = vadd.f32 %v5641, %v5809
  %v5811 = vpop.f32.mrf.mxu0
  %v5812 = vadd.f32 %v5643, %v5811
  %5813 = vmatmul.bf16.gmra.mxu0 %v2344
  %v5814 = vpop.f32.mrf.mxu0
  %v5815 = vadd.f32 %v5646, %v5814
  %v5816 = vpop.f32.mrf.mxu0
  %v5817 = vadd.f32 %v5648, %v5816
  %5818 = vmatmul.bf16.gmra.mxu0 %v2360
  %v5819 = vpop.f32.mrf.mxu0
  %v5820 = vadd.f32 %v5651, %v5819
  %v5821 = vpop.f32.mrf.mxu0
  %v5822 = vadd.f32 %v5653, %v5821
  %5823 = vmatmul.bf16.gmra.mxu0 %v2376
  %v5824 = vpop.f32.mrf.mxu0
  %v5825 = vadd.f32 %v5656, %v5824
  %v5826 = vpop.f32.mrf.mxu0
  %v5827 = vadd.f32 %v5658, %v5826
  %5828 = vmatmul.bf16.gmra.mxu0 %v2392
  %v5829 = vpop.f32.mrf.mxu0
  %v5830 = vadd.f32 %v5661, %v5829
  %v5831 = vpop.f32.mrf.mxu0
  %v5832 = vadd.f32 %v5663, %v5831
  %5833 = vmatmul.bf16.gmra.mxu0 %v2408
  %v5834 = vpop.f32.mrf.mxu0
  %v5835 = vadd.f32 %v5666, %v5834
  %v5836 = vpop.f32.mrf.mxu0
  %v5837 = vadd.f32 %v5668, %v5836
  %5838 = vmatmul.bf16.gmra.mxu0 %v2424
  %v5839 = vpop.f32.mrf.mxu0
  %v5840 = vadd.f32 %v5671, %v5839
  %v5841 = vpop.f32.mrf.mxu0
  %v5842 = vadd.f32 %v5673, %v5841
  %5843 = vmatmul.bf16.gmra.mxu0 %v2440
  %v5844 = vpop.f32.mrf.mxu0
  %v5845 = vadd.f32 %v5676, %v5844
  %v5846 = vpop.f32.mrf.mxu0
  %v5847 = vadd.f32 %v5678, %v5846
  %5848 = vmatmul.bf16.gmra.mxu0 %v2456
  %v5849 = vpop.f32.mrf.mxu0
  %v5850 = vadd.f32 %v5681, %v5849
  %v5851 = vpop.f32.mrf.mxu0
  %v5852 = vadd.f32 %v5683, %v5851
  %5853 = vmatmul.bf16.gmra.mxu0 %v2472
  %v5854 = vpop.f32.mrf.mxu0
  %v5855 = vadd.f32 %v5686, %v5854
  %v5856 = vpop.f32.mrf.mxu0
  %v5857 = vadd.f32 %v5688, %v5856
  %5858 = vmatmul.bf16.gmra.mxu0 %v2488
  %v5859 = vpop.f32.mrf.mxu0
  %v5860 = vadd.f32 %v5691, %v5859
  %v5861 = vpop.f32.mrf.mxu0
  %v5862 = vadd.f32 %v5693, %v5861
  %5863 = vmatmul.bf16.gmra.mxu0 %v2504
  %v5864 = vpop.f32.mrf.mxu0
  %v5865 = vadd.f32 %v5696, %v5864
  %v5866 = vpop.f32.mrf.mxu0
  %v5867 = vadd.f32 %v5698, %v5866
  %5868 = vmatmul.bf16.gmra.mxu0 %v2520
  %v5869 = vpop.f32.mrf.mxu0
  %v5870 = vadd.f32 %v5701, %v5869
  %v5871 = vpop.f32.mrf.mxu0
  %v5872 = vadd.f32 %v5703, %v5871
  %5873 = vmatmul.bf16.gmra.mxu0 %v2536
  %v5874 = vpop.f32.mrf.mxu0
  %v5875 = vadd.f32 %v5706, %v5874
  %v5876 = vpop.f32.mrf.mxu0
  %v5877 = vadd.f32 %v5708, %v5876
  %5878 = vmatmul.bf16.gmra.mxu0 %v2552
  %v5879 = vpop.f32.mrf.mxu0
  %v5880 = vadd.f32 %v5711, %v5879
  %v5881 = vpop.f32.mrf.mxu0
  %v5882 = vadd.f32 %v5713, %v5881
  %5883 = vmatmul.bf16.gmra.mxu0 %v2568
  %v5884 = vpop.f32.mrf.mxu0
  %v5885 = vadd.f32 %v5716, %v5884
  %v5886 = vpop.f32.mrf.mxu0
  %v5887 = vadd.f32 %v5718, %v5886
  %5888 = vmatmul.bf16.gmra.mxu0 %v2584
  %v5889 = vpop.f32.mrf.mxu0
  %v5890 = vadd.f32 %v5721, %v5889
  %v5891 = vpop.f32.mrf.mxu0
  %v5892 = vadd.f32 %v5723, %v5891
  %5893 = vmatmul.bf16.gmra.mxu0 %v2600
  %v5894 = vpop.f32.mrf.mxu0
  %v5895 = vadd.f32 %v5726, %v5894
  %v5896 = vpop.f32.mrf.mxu0
  %v5897 = vadd.f32 %v5728, %v5896
  %5898 = vmatmul.bf16.gmra.mxu0 %v2616
  %v5899 = vpop.f32.mrf.mxu0
  %v5900 = vadd.f32 %v5731, %v5899
  %v5901 = vpop.f32.mrf.mxu0
  %v5902 = vadd.f32 %v5733, %v5901
  %5903 = vmatmul.bf16.gmra.mxu0 %v2632
  %v5904 = vpop.f32.mrf.mxu0
  %v5905 = vadd.f32 %v5736, %v5904
  %v5906 = vpop.f32.mrf.mxu0
  %v5907 = vadd.f32 %v5738, %v5906
  %5908 = vmatmul.bf16.gmra.mxu0 %v2648
  %v5909 = vpop.f32.mrf.mxu0
  %v5910 = vadd.f32 %v5741, %v5909
  %v5911 = vpop.f32.mrf.mxu0
  %v5912 = vadd.f32 %v5743, %v5911
  %5913 = vmatmul.bf16.gmra.mxu0 %v2664
  %v5914 = vpop.f32.mrf.mxu0
  %v5915 = vadd.f32 %v5746, %v5914
  %v5916 = vpop.f32.mrf.mxu0
  %v5917 = vadd.f32 %v5748, %v5916
  %5918 = vmatmul.bf16.gmra.mxu0 %v2680
  %v5919 = vpop.f32.mrf.mxu0
  %v5920 = vadd.f32 %v5751, %v5919
  %v5921 = vpop.f32.mrf.mxu0
  %v5922 = vadd.f32 %v5753, %v5921
  %5923 = vmatmul.bf16.gmra.mxu0 %v2696
  %v5924 = vpop.f32.mrf.mxu0
  %v5925 = vadd.f32 %v5756, %v5924
  %v5926 = vpop.f32.mrf.mxu0
  %v5927 = vadd.f32 %v5758, %v5926
  %5928 = vmatmul.bf16.gmra.mxu0 %v2712
  %v5929 = vpop.f32.mrf.mxu0
  %v5930 = vadd.f32 %v5761, %v5929
  %v5931 = vpop.f32.mrf.mxu0
  %v5932 = vadd.f32 %v5763, %v5931
  %5933 = vmatmul.bf16.gmra.mxu0 %v2728
  %v5934 = vpop.f32.mrf.mxu0
  %v5935 = vadd.f32 %v5766, %v5934
  %v5936 = vpop.f32.mrf.mxu0
  %v5937 = vadd.f32 %v5768, %v5936
  %5938 = vmatmul.bf16.gmra.mxu0 %v2744
  %v5939 = vpop.f32.mrf.mxu0
  %v5940 = vadd.f32 %v5771, %v5939
  %v5941 = vpop.f32.mrf.mxu0
  %v5942 = vadd.f32 %v5773, %v5941
  %5943 = vmatmul.bf16.gmra.mxu0 %v2760
  %v5944 = vpop.f32.mrf.mxu0
  %v5945 = vadd.f32 %v5776, %v5944
  %v5946 = vpop.f32.mrf.mxu0
  %v5947 = vadd.f32 %v5778, %v5946
  %5948 = vmatmul.bf16.gmra.mxu0 %v2776
  %v5949 = vpop.f32.mrf.mxu0
  %v5950 = vadd.f32 %v5781, %v5949
  %v5951 = vpop.f32.mrf.mxu0
  %v5952 = vadd.f32 %v5783, %v5951
  %5953 = vmatmul.bf16.gmra.mxu0 %v2792
  %v5954 = vpop.f32.mrf.mxu0
  %v5955 = vadd.f32 %v5786, %v5954
  %v5956 = vpop.f32.mrf.mxu0
  %v5957 = vadd.f32 %v5788, %v5956
  %5958 = vmatmul.bf16.gmra.mxu0 %v2808
  %v5959 = vpop.f32.mrf.mxu0
  %v5960 = vadd.f32 %v5791, %v5959
  %v5961 = vpop.f32.mrf.mxu0
  %v5962 = vadd.f32 %v5793, %v5961
  %5963 = vmatmul.bf16.gmra.mxu0 %v2824
  %v5964 = vpop.f32.mrf.mxu0
  %v5965 = vadd.f32 %v5796, %v5964
  %v5966 = vpop.f32.mrf.mxu0
  %v5967 = vadd.f32 %v5798, %v5966
  %5968 = vdwg.mxu0
  %5969 = vmatpush.bf16.msra.mxu0 %v3949
  %5970 = vmatpush.bf16.msra.mxu0 %v3948
  %5971 = vmatpush.bf16.msra.mxu0 %v3947
  %5972 = vmatpush.bf16.msra.mxu0 %v3946
  %5973 = vmatpush.bf16.msra.mxu0 %v3945
  %5974 = vmatpush.bf16.msra.mxu0 %v3944
  %5975 = vmatpush.bf16.msra.mxu0 %v3943
  %5976 = vmatpush.bf16.msra.mxu0 %v3942
  %5977 = vmatmul.bf16.gmra.mxu0 %v2329
  %v5978 = vpop.f32.mrf.mxu0
  %v5979 = vadd.f32 %v5810, %v5978
  %v5980 = vpop.f32.mrf.mxu0
  %v5981 = vadd.f32 %v5812, %v5980
  %5982 = vmatmul.bf16.gmra.mxu0 %v2345
  %v5983 = vpop.f32.mrf.mxu0
  %v5984 = vadd.f32 %v5815, %v5983
  %v5985 = vpop.f32.mrf.mxu0
  %v5986 = vadd.f32 %v5817, %v5985
  %5987 = vmatmul.bf16.gmra.mxu0 %v2361
  %v5988 = vpop.f32.mrf.mxu0
  %v5989 = vadd.f32 %v5820, %v5988
  %v5990 = vpop.f32.mrf.mxu0
  %v5991 = vadd.f32 %v5822, %v5990
  %5992 = vmatmul.bf16.gmra.mxu0 %v2377
  %v5993 = vpop.f32.mrf.mxu0
  %v5994 = vadd.f32 %v5825, %v5993
  %v5995 = vpop.f32.mrf.mxu0
  %v5996 = vadd.f32 %v5827, %v5995
  %5997 = vmatmul.bf16.gmra.mxu0 %v2393
  %v5998 = vpop.f32.mrf.mxu0
  %v5999 = vadd.f32 %v5830, %v5998
  %v6000 = vpop.f32.mrf.mxu0
  %v6001 = vadd.f32 %v5832, %v6000
  %6002 = vmatmul.bf16.gmra.mxu0 %v2409
  %v6003 = vpop.f32.mrf.mxu0
  %v6004 = vadd.f32 %v5835, %v6003
  %v6005 = vpop.f32.mrf.mxu0
  %v6006 = vadd.f32 %v5837, %v6005
  %6007 = vmatmul.bf16.gmra.mxu0 %v2425
  %v6008 = vpop.f32.mrf.mxu0
  %v6009 = vadd.f32 %v5840, %v6008
  %v6010 = vpop.f32.mrf.mxu0
  %v6011 = vadd.f32 %v5842, %v6010
  %6012 = vmatmul.bf16.gmra.mxu0 %v2441
  %v6013 = vpop.f32.mrf.mxu0
  %v6014 = vadd.f32 %v5845, %v6013
  %v6015 = vpop.f32.mrf.mxu0
  %v6016 = vadd.f32 %v5847, %v6015
  %6017 = vmatmul.bf16.gmra.mxu0 %v2457
  %v6018 = vpop.f32.mrf.mxu0
  %v6019 = vadd.f32 %v5850, %v6018
  %v6020 = vpop.f32.mrf.mxu0
  %v6021 = vadd.f32 %v5852, %v6020
  %6022 = vmatmul.bf16.gmra.mxu0 %v2473
  %v6023 = vpop.f32.mrf.mxu0
  %v6024 = vadd.f32 %v5855, %v6023
  %v6025 = vpop.f32.mrf.mxu0
  %v6026 = vadd.f32 %v5857, %v6025
  %6027 = vmatmul.bf16.gmra.mxu0 %v2489
  %v6028 = vpop.f32.mrf.mxu0
  %v6029 = vadd.f32 %v5860, %v6028
  %v6030 = vpop.f32.mrf.mxu0
  %v6031 = vadd.f32 %v5862, %v6030
  %6032 = vmatmul.bf16.gmra.mxu0 %v2505
  %v6033 = vpop.f32.mrf.mxu0
  %v6034 = vadd.f32 %v5865, %v6033
  %v6035 = vpop.f32.mrf.mxu0
  %v6036 = vadd.f32 %v5867, %v6035
  %6037 = vmatmul.bf16.gmra.mxu0 %v2521
  %v6038 = vpop.f32.mrf.mxu0
  %v6039 = vadd.f32 %v5870, %v6038
  %v6040 = vpop.f32.mrf.mxu0
  %v6041 = vadd.f32 %v5872, %v6040
  %6042 = vmatmul.bf16.gmra.mxu0 %v2537
  %v6043 = vpop.f32.mrf.mxu0
  %v6044 = vadd.f32 %v5875, %v6043
  %v6045 = vpop.f32.mrf.mxu0
  %v6046 = vadd.f32 %v5877, %v6045
  %6047 = vmatmul.bf16.gmra.mxu0 %v2553
  %v6048 = vpop.f32.mrf.mxu0
  %v6049 = vadd.f32 %v5880, %v6048
  %v6050 = vpop.f32.mrf.mxu0
  %v6051 = vadd.f32 %v5882, %v6050
  %6052 = vmatmul.bf16.gmra.mxu0 %v2569
  %v6053 = vpop.f32.mrf.mxu0
  %v6054 = vadd.f32 %v5885, %v6053
  %v6055 = vpop.f32.mrf.mxu0
  %v6056 = vadd.f32 %v5887, %v6055
  %6057 = vmatmul.bf16.gmra.mxu0 %v2585
  %v6058 = vpop.f32.mrf.mxu0
  %v6059 = vadd.f32 %v5890, %v6058
  %v6060 = vpop.f32.mrf.mxu0
  %v6061 = vadd.f32 %v5892, %v6060
  %6062 = vmatmul.bf16.gmra.mxu0 %v2601
  %v6063 = vpop.f32.mrf.mxu0
  %v6064 = vadd.f32 %v5895, %v6063
  %v6065 = vpop.f32.mrf.mxu0
  %v6066 = vadd.f32 %v5897, %v6065
  %6067 = vmatmul.bf16.gmra.mxu0 %v2617
  %v6068 = vpop.f32.mrf.mxu0
  %v6069 = vadd.f32 %v5900, %v6068
  %v6070 = vpop.f32.mrf.mxu0
  %v6071 = vadd.f32 %v5902, %v6070
  %6072 = vmatmul.bf16.gmra.mxu0 %v2633
  %v6073 = vpop.f32.mrf.mxu0
  %v6074 = vadd.f32 %v5905, %v6073
  %v6075 = vpop.f32.mrf.mxu0
  %v6076 = vadd.f32 %v5907, %v6075
  %6077 = vmatmul.bf16.gmra.mxu0 %v2649
  %v6078 = vpop.f32.mrf.mxu0
  %v6079 = vadd.f32 %v5910, %v6078
  %v6080 = vpop.f32.mrf.mxu0
  %v6081 = vadd.f32 %v5912, %v6080
  %6082 = vmatmul.bf16.gmra.mxu0 %v2665
  %v6083 = vpop.f32.mrf.mxu0
  %v6084 = vadd.f32 %v5915, %v6083
  %v6085 = vpop.f32.mrf.mxu0
  %v6086 = vadd.f32 %v5917, %v6085
  %6087 = vmatmul.bf16.gmra.mxu0 %v2681
  %v6088 = vpop.f32.mrf.mxu0
  %v6089 = vadd.f32 %v5920, %v6088
  %v6090 = vpop.f32.mrf.mxu0
  %v6091 = vadd.f32 %v5922, %v6090
  %6092 = vmatmul.bf16.gmra.mxu0 %v2697
  %v6093 = vpop.f32.mrf.mxu0
  %v6094 = vadd.f32 %v5925, %v6093
  %v6095 = vpop.f32.mrf.mxu0
  %v6096 = vadd.f32 %v5927, %v6095
  %6097 = vmatmul.bf16.gmra.mxu0 %v2713
  %v6098 = vpop.f32.mrf.mxu0
  %v6099 = vadd.f32 %v5930, %v6098
  %v6100 = vpop.f32.mrf.mxu0
  %v6101 = vadd.f32 %v5932, %v6100
  %6102 = vmatmul.bf16.gmra.mxu0 %v2729
  %v6103 = vpop.f32.mrf.mxu0
  %v6104 = vadd.f32 %v5935, %v6103
  %v6105 = vpop.f32.mrf.mxu0
  %v6106 = vadd.f32 %v5937, %v6105
  %6107 = vmatmul.bf16.gmra.mxu0 %v2745
  %v6108 = vpop.f32.mrf.mxu0
  %v6109 = vadd.f32 %v5940, %v6108
  %v6110 = vpop.f32.mrf.mxu0
  %v6111 = vadd.f32 %v5942, %v6110
  %6112 = vmatmul.bf16.gmra.mxu0 %v2761
  %v6113 = vpop.f32.mrf.mxu0
  %v6114 = vadd.f32 %v5945, %v6113
  %v6115 = vpop.f32.mrf.mxu0
  %v6116 = vadd.f32 %v5947, %v6115
  %6117 = vmatmul.bf16.gmra.mxu0 %v2777
  %v6118 = vpop.f32.mrf.mxu0
  %v6119 = vadd.f32 %v5950, %v6118
  %v6120 = vpop.f32.mrf.mxu0
  %v6121 = vadd.f32 %v5952, %v6120
  %6122 = vmatmul.bf16.gmra.mxu0 %v2793
  %v6123 = vpop.f32.mrf.mxu0
  %v6124 = vadd.f32 %v5955, %v6123
  %v6125 = vpop.f32.mrf.mxu0
  %v6126 = vadd.f32 %v5957, %v6125
  %6127 = vmatmul.bf16.gmra.mxu0 %v2809
  %v6128 = vpop.f32.mrf.mxu0
  %v6129 = vadd.f32 %v5960, %v6128
  %v6130 = vpop.f32.mrf.mxu0
  %v6131 = vadd.f32 %v5962, %v6130
  %6132 = vmatmul.bf16.gmra.mxu0 %v2825
  %v6133 = vpop.f32.mrf.mxu0
  %v6134 = vadd.f32 %v5965, %v6133
  %v6135 = vpop.f32.mrf.mxu0
  %v6136 = vadd.f32 %v5967, %v6135
  %6137 = vdwg.mxu0
  %6138 = vmatpush.bf16.msra.mxu0 %v3957
  %6139 = vmatpush.bf16.msra.mxu0 %v3956
  %6140 = vmatpush.bf16.msra.mxu0 %v3955
  %6141 = vmatpush.bf16.msra.mxu0 %v3954
  %6142 = vmatpush.bf16.msra.mxu0 %v3953
  %6143 = vmatpush.bf16.msra.mxu0 %v3952
  %6144 = vmatpush.bf16.msra.mxu0 %v3951
  %6145 = vmatpush.bf16.msra.mxu0 %v3950
  %6146 = vmatmul.bf16.gmra.mxu0 %v2330
  %v6147 = vpop.f32.mrf.mxu0
  %v6148 = vadd.f32 %v5979, %v6147
  %v6149 = vpop.f32.mrf.mxu0
  %v6150 = vadd.f32 %v5981, %v6149
  %6151 = vmatmul.bf16.gmra.mxu0 %v2346
  %v6152 = vpop.f32.mrf.mxu0
  %v6153 = vadd.f32 %v5984, %v6152
  %v6154 = vpop.f32.mrf.mxu0
  %v6155 = vadd.f32 %v5986, %v6154
  %6156 = vmatmul.bf16.gmra.mxu0 %v2362
  %v6157 = vpop.f32.mrf.mxu0
  %v6158 = vadd.f32 %v5989, %v6157
  %v6159 = vpop.f32.mrf.mxu0
  %v6160 = vadd.f32 %v5991, %v6159
  %6161 = vmatmul.bf16.gmra.mxu0 %v2378
  %v6162 = vpop.f32.mrf.mxu0
  %v6163 = vadd.f32 %v5994, %v6162
  %v6164 = vpop.f32.mrf.mxu0
  %v6165 = vadd.f32 %v5996, %v6164
  %6166 = vmatmul.bf16.gmra.mxu0 %v2394
  %v6167 = vpop.f32.mrf.mxu0
  %v6168 = vadd.f32 %v5999, %v6167
  %v6169 = vpop.f32.mrf.mxu0
  %v6170 = vadd.f32 %v6001, %v6169
  %6171 = vmatmul.bf16.gmra.mxu0 %v2410
  %v6172 = vpop.f32.mrf.mxu0
  %v6173 = vadd.f32 %v6004, %v6172
  %v6174 = vpop.f32.mrf.mxu0
  %v6175 = vadd.f32 %v6006, %v6174
  %6176 = vmatmul.bf16.gmra.mxu0 %v2426
  %v6177 = vpop.f32.mrf.mxu0
  %v6178 = vadd.f32 %v6009, %v6177
  %v6179 = vpop.f32.mrf.mxu0
  %v6180 = vadd.f32 %v6011, %v6179
  %6181 = vmatmul.bf16.gmra.mxu0 %v2442
  %v6182 = vpop.f32.mrf.mxu0
  %v6183 = vadd.f32 %v6014, %v6182
  %v6184 = vpop.f32.mrf.mxu0
  %v6185 = vadd.f32 %v6016, %v6184
  %6186 = vmatmul.bf16.gmra.mxu0 %v2458
  %v6187 = vpop.f32.mrf.mxu0
  %v6188 = vadd.f32 %v6019, %v6187
  %v6189 = vpop.f32.mrf.mxu0
  %v6190 = vadd.f32 %v6021, %v6189
  %6191 = vmatmul.bf16.gmra.mxu0 %v2474
  %v6192 = vpop.f32.mrf.mxu0
  %v6193 = vadd.f32 %v6024, %v6192
  %v6194 = vpop.f32.mrf.mxu0
  %v6195 = vadd.f32 %v6026, %v6194
  %6196 = vmatmul.bf16.gmra.mxu0 %v2490
  %v6197 = vpop.f32.mrf.mxu0
  %v6198 = vadd.f32 %v6029, %v6197
  %v6199 = vpop.f32.mrf.mxu0
  %v6200 = vadd.f32 %v6031, %v6199
  %6201 = vmatmul.bf16.gmra.mxu0 %v2506
  %v6202 = vpop.f32.mrf.mxu0
  %v6203 = vadd.f32 %v6034, %v6202
  %v6204 = vpop.f32.mrf.mxu0
  %v6205 = vadd.f32 %v6036, %v6204
  %6206 = vmatmul.bf16.gmra.mxu0 %v2522
  %v6207 = vpop.f32.mrf.mxu0
  %v6208 = vadd.f32 %v6039, %v6207
  %v6209 = vpop.f32.mrf.mxu0
  %v6210 = vadd.f32 %v6041, %v6209
  %6211 = vmatmul.bf16.gmra.mxu0 %v2538
  %v6212 = vpop.f32.mrf.mxu0
  %v6213 = vadd.f32 %v6044, %v6212
  %v6214 = vpop.f32.mrf.mxu0
  %v6215 = vadd.f32 %v6046, %v6214
  %6216 = vmatmul.bf16.gmra.mxu0 %v2554
  %v6217 = vpop.f32.mrf.mxu0
  %v6218 = vadd.f32 %v6049, %v6217
  %v6219 = vpop.f32.mrf.mxu0
  %v6220 = vadd.f32 %v6051, %v6219
  %6221 = vmatmul.bf16.gmra.mxu0 %v2570
  %v6222 = vpop.f32.mrf.mxu0
  %v6223 = vadd.f32 %v6054, %v6222
  %v6224 = vpop.f32.mrf.mxu0
  %v6225 = vadd.f32 %v6056, %v6224
  %6226 = vmatmul.bf16.gmra.mxu0 %v2586
  %v6227 = vpop.f32.mrf.mxu0
  %v6228 = vadd.f32 %v6059, %v6227
  %v6229 = vpop.f32.mrf.mxu0
  %v6230 = vadd.f32 %v6061, %v6229
  %6231 = vmatmul.bf16.gmra.mxu0 %v2602
  %v6232 = vpop.f32.mrf.mxu0
  %v6233 = vadd.f32 %v6064, %v6232
  %v6234 = vpop.f32.mrf.mxu0
  %v6235 = vadd.f32 %v6066, %v6234
  %6236 = vmatmul.bf16.gmra.mxu0 %v2618
  %v6237 = vpop.f32.mrf.mxu0
  %v6238 = vadd.f32 %v6069, %v6237
  %v6239 = vpop.f32.mrf.mxu0
  %v6240 = vadd.f32 %v6071, %v6239
  %6241 = vmatmul.bf16.gmra.mxu0 %v2634
  %v6242 = vpop.f32.mrf.mxu0
  %v6243 = vadd.f32 %v6074, %v6242
  %v6244 = vpop.f32.mrf.mxu0
  %v6245 = vadd.f32 %v6076, %v6244
  %6246 = vmatmul.bf16.gmra.mxu0 %v2650
  %v6247 = vpop.f32.mrf.mxu0
  %v6248 = vadd.f32 %v6079, %v6247
  %v6249 = vpop.f32.mrf.mxu0
  %v6250 = vadd.f32 %v6081, %v6249
  %6251 = vmatmul.bf16.gmra.mxu0 %v2666
  %v6252 = vpop.f32.mrf.mxu0
  %v6253 = vadd.f32 %v6084, %v6252
  %v6254 = vpop.f32.mrf.mxu0
  %v6255 = vadd.f32 %v6086, %v6254
  %6256 = vmatmul.bf16.gmra.mxu0 %v2682
  %v6257 = vpop.f32.mrf.mxu0
  %v6258 = vadd.f32 %v6089, %v6257
  %v6259 = vpop.f32.mrf.mxu0
  %v6260 = vadd.f32 %v6091, %v6259
  %6261 = vmatmul.bf16.gmra.mxu0 %v2698
  %v6262 = vpop.f32.mrf.mxu0
  %v6263 = vadd.f32 %v6094, %v6262
  %v6264 = vpop.f32.mrf.mxu0
  %v6265 = vadd.f32 %v6096, %v6264
  %6266 = vmatmul.bf16.gmra.mxu0 %v2714
  %v6267 = vpop.f32.mrf.mxu0
  %v6268 = vadd.f32 %v6099, %v6267
  %v6269 = vpop.f32.mrf.mxu0
  %v6270 = vadd.f32 %v6101, %v6269
  %6271 = vmatmul.bf16.gmra.mxu0 %v2730
  %v6272 = vpop.f32.mrf.mxu0
  %v6273 = vadd.f32 %v6104, %v6272
  %v6274 = vpop.f32.mrf.mxu0
  %v6275 = vadd.f32 %v6106, %v6274
  %6276 = vmatmul.bf16.gmra.mxu0 %v2746
  %v6277 = vpop.f32.mrf.mxu0
  %v6278 = vadd.f32 %v6109, %v6277
  %v6279 = vpop.f32.mrf.mxu0
  %v6280 = vadd.f32 %v6111, %v6279
  %6281 = vmatmul.bf16.gmra.mxu0 %v2762
  %v6282 = vpop.f32.mrf.mxu0
  %v6283 = vadd.f32 %v6114, %v6282
  %v6284 = vpop.f32.mrf.mxu0
  %v6285 = vadd.f32 %v6116, %v6284
  %6286 = vmatmul.bf16.gmra.mxu0 %v2778
  %v6287 = vpop.f32.mrf.mxu0
  %v6288 = vadd.f32 %v6119, %v6287
  %v6289 = vpop.f32.mrf.mxu0
  %v6290 = vadd.f32 %v6121, %v6289
  %6291 = vmatmul.bf16.gmra.mxu0 %v2794
  %v6292 = vpop.f32.mrf.mxu0
  %v6293 = vadd.f32 %v6124, %v6292
  %v6294 = vpop.f32.mrf.mxu0
  %v6295 = vadd.f32 %v6126, %v6294
  %6296 = vmatmul.bf16.gmra.mxu0 %v2810
  %v6297 = vpop.f32.mrf.mxu0
  %v6298 = vadd.f32 %v6129, %v6297
  %v6299 = vpop.f32.mrf.mxu0
  %v6300 = vadd.f32 %v6131, %v6299
  %6301 = vmatmul.bf16.gmra.mxu0 %v2826
  %v6302 = vpop.f32.mrf.mxu0
  %v6303 = vadd.f32 %v6134, %v6302
  %v6304 = vpop.f32.mrf.mxu0
  %v6305 = vadd.f32 %v6136, %v6304
  %6306 = vdwg.mxu0
  %6307 = vmatpush.bf16.msra.mxu0 %v3965
  %6308 = vmatpush.bf16.msra.mxu0 %v3964
  %6309 = vmatpush.bf16.msra.mxu0 %v3963
  %6310 = vmatpush.bf16.msra.mxu0 %v3962
  %6311 = vmatpush.bf16.msra.mxu0 %v3961
  %6312 = vmatpush.bf16.msra.mxu0 %v3960
  %6313 = vmatpush.bf16.msra.mxu0 %v3959
  %6314 = vmatpush.bf16.msra.mxu0 %v3958
  %6315 = vmatmul.bf16.gmra.mxu0 %v2331
  %v6316 = vpop.f32.mrf.mxu0
  %v6317 = vadd.f32 %v6148, %v6316
  %v6318 = vpop.f32.mrf.mxu0
  %v6319 = vadd.f32 %v6150, %v6318
  %6320 = vmatmul.bf16.gmra.mxu0 %v2347
  %v6321 = vpop.f32.mrf.mxu0
  %v6322 = vadd.f32 %v6153, %v6321
  %v6323 = vpop.f32.mrf.mxu0
  %v6324 = vadd.f32 %v6155, %v6323
  %6325 = vmatmul.bf16.gmra.mxu0 %v2363
  %v6326 = vpop.f32.mrf.mxu0
  %v6327 = vadd.f32 %v6158, %v6326
  %v6328 = vpop.f32.mrf.mxu0
  %v6329 = vadd.f32 %v6160, %v6328
  %6330 = vmatmul.bf16.gmra.mxu0 %v2379
  %v6331 = vpop.f32.mrf.mxu0
  %v6332 = vadd.f32 %v6163, %v6331
  %v6333 = vpop.f32.mrf.mxu0
  %v6334 = vadd.f32 %v6165, %v6333
  %6335 = vmatmul.bf16.gmra.mxu0 %v2395
  %v6336 = vpop.f32.mrf.mxu0
  %v6337 = vadd.f32 %v6168, %v6336
  %v6338 = vpop.f32.mrf.mxu0
  %v6339 = vadd.f32 %v6170, %v6338
  %6340 = vmatmul.bf16.gmra.mxu0 %v2411
  %v6341 = vpop.f32.mrf.mxu0
  %v6342 = vadd.f32 %v6173, %v6341
  %v6343 = vpop.f32.mrf.mxu0
  %v6344 = vadd.f32 %v6175, %v6343
  %6345 = vmatmul.bf16.gmra.mxu0 %v2427
  %v6346 = vpop.f32.mrf.mxu0
  %v6347 = vadd.f32 %v6178, %v6346
  %v6348 = vpop.f32.mrf.mxu0
  %v6349 = vadd.f32 %v6180, %v6348
  %6350 = vmatmul.bf16.gmra.mxu0 %v2443
  %v6351 = vpop.f32.mrf.mxu0
  %v6352 = vadd.f32 %v6183, %v6351
  %v6353 = vpop.f32.mrf.mxu0
  %v6354 = vadd.f32 %v6185, %v6353
  %6355 = vmatmul.bf16.gmra.mxu0 %v2459
  %v6356 = vpop.f32.mrf.mxu0
  %v6357 = vadd.f32 %v6188, %v6356
  %v6358 = vpop.f32.mrf.mxu0
  %v6359 = vadd.f32 %v6190, %v6358
  %6360 = vmatmul.bf16.gmra.mxu0 %v2475
  %v6361 = vpop.f32.mrf.mxu0
  %v6362 = vadd.f32 %v6193, %v6361
  %v6363 = vpop.f32.mrf.mxu0
  %v6364 = vadd.f32 %v6195, %v6363
  %6365 = vmatmul.bf16.gmra.mxu0 %v2491
  %v6366 = vpop.f32.mrf.mxu0
  %v6367 = vadd.f32 %v6198, %v6366
  %v6368 = vpop.f32.mrf.mxu0
  %v6369 = vadd.f32 %v6200, %v6368
  %6370 = vmatmul.bf16.gmra.mxu0 %v2507
  %v6371 = vpop.f32.mrf.mxu0
  %v6372 = vadd.f32 %v6203, %v6371
  %v6373 = vpop.f32.mrf.mxu0
  %v6374 = vadd.f32 %v6205, %v6373
  %6375 = vmatmul.bf16.gmra.mxu0 %v2523
  %v6376 = vpop.f32.mrf.mxu0
  %v6377 = vadd.f32 %v6208, %v6376
  %v6378 = vpop.f32.mrf.mxu0
  %v6379 = vadd.f32 %v6210, %v6378
  %6380 = vmatmul.bf16.gmra.mxu0 %v2539
  %v6381 = vpop.f32.mrf.mxu0
  %v6382 = vadd.f32 %v6213, %v6381
  %v6383 = vpop.f32.mrf.mxu0
  %v6384 = vadd.f32 %v6215, %v6383
  %6385 = vmatmul.bf16.gmra.mxu0 %v2555
  %v6386 = vpop.f32.mrf.mxu0
  %v6387 = vadd.f32 %v6218, %v6386
  %v6388 = vpop.f32.mrf.mxu0
  %v6389 = vadd.f32 %v6220, %v6388
  %6390 = vmatmul.bf16.gmra.mxu0 %v2571
  %v6391 = vpop.f32.mrf.mxu0
  %v6392 = vadd.f32 %v6223, %v6391
  %v6393 = vpop.f32.mrf.mxu0
  %v6394 = vadd.f32 %v6225, %v6393
  %6395 = vmatmul.bf16.gmra.mxu0 %v2587
  %v6396 = vpop.f32.mrf.mxu0
  %v6397 = vadd.f32 %v6228, %v6396
  %v6398 = vpop.f32.mrf.mxu0
  %v6399 = vadd.f32 %v6230, %v6398
  %6400 = vmatmul.bf16.gmra.mxu0 %v2603
  %v6401 = vpop.f32.mrf.mxu0
  %v6402 = vadd.f32 %v6233, %v6401
  %v6403 = vpop.f32.mrf.mxu0
  %v6404 = vadd.f32 %v6235, %v6403
  %6405 = vmatmul.bf16.gmra.mxu0 %v2619
  %v6406 = vpop.f32.mrf.mxu0
  %v6407 = vadd.f32 %v6238, %v6406
  %v6408 = vpop.f32.mrf.mxu0
  %v6409 = vadd.f32 %v6240, %v6408
  %6410 = vmatmul.bf16.gmra.mxu0 %v2635
  %v6411 = vpop.f32.mrf.mxu0
  %v6412 = vadd.f32 %v6243, %v6411
  %v6413 = vpop.f32.mrf.mxu0
  %v6414 = vadd.f32 %v6245, %v6413
  %6415 = vmatmul.bf16.gmra.mxu0 %v2651
  %v6416 = vpop.f32.mrf.mxu0
  %v6417 = vadd.f32 %v6248, %v6416
  %v6418 = vpop.f32.mrf.mxu0
  %v6419 = vadd.f32 %v6250, %v6418
  %6420 = vmatmul.bf16.gmra.mxu0 %v2667
  %v6421 = vpop.f32.mrf.mxu0
  %v6422 = vadd.f32 %v6253, %v6421
  %v6423 = vpop.f32.mrf.mxu0
  %v6424 = vadd.f32 %v6255, %v6423
  %6425 = vmatmul.bf16.gmra.mxu0 %v2683
  %v6426 = vpop.f32.mrf.mxu0
  %v6427 = vadd.f32 %v6258, %v6426
  %v6428 = vpop.f32.mrf.mxu0
  %v6429 = vadd.f32 %v6260, %v6428
  %6430 = vmatmul.bf16.gmra.mxu0 %v2699
  %v6431 = vpop.f32.mrf.mxu0
  %v6432 = vadd.f32 %v6263, %v6431
  %v6433 = vpop.f32.mrf.mxu0
  %v6434 = vadd.f32 %v6265, %v6433
  %6435 = vmatmul.bf16.gmra.mxu0 %v2715
  %v6436 = vpop.f32.mrf.mxu0
  %v6437 = vadd.f32 %v6268, %v6436
  %v6438 = vpop.f32.mrf.mxu0
  %v6439 = vadd.f32 %v6270, %v6438
  %6440 = vmatmul.bf16.gmra.mxu0 %v2731
  %v6441 = vpop.f32.mrf.mxu0
  %v6442 = vadd.f32 %v6273, %v6441
  %v6443 = vpop.f32.mrf.mxu0
  %v6444 = vadd.f32 %v6275, %v6443
  %6445 = vmatmul.bf16.gmra.mxu0 %v2747
  %v6446 = vpop.f32.mrf.mxu0
  %v6447 = vadd.f32 %v6278, %v6446
  %v6448 = vpop.f32.mrf.mxu0
  %v6449 = vadd.f32 %v6280, %v6448
  %6450 = vmatmul.bf16.gmra.mxu0 %v2763
  %v6451 = vpop.f32.mrf.mxu0
  %v6452 = vadd.f32 %v6283, %v6451
  %v6453 = vpop.f32.mrf.mxu0
  %v6454 = vadd.f32 %v6285, %v6453
  %6455 = vmatmul.bf16.gmra.mxu0 %v2779
  %v6456 = vpop.f32.mrf.mxu0
  %v6457 = vadd.f32 %v6288, %v6456
  %v6458 = vpop.f32.mrf.mxu0
  %v6459 = vadd.f32 %v6290, %v6458
  %6460 = vmatmul.bf16.gmra.mxu0 %v2795
  %v6461 = vpop.f32.mrf.mxu0
  %v6462 = vadd.f32 %v6293, %v6461
  %v6463 = vpop.f32.mrf.mxu0
  %v6464 = vadd.f32 %v6295, %v6463
  %6465 = vmatmul.bf16.gmra.mxu0 %v2811
  %v6466 = vpop.f32.mrf.mxu0
  %v6467 = vadd.f32 %v6298, %v6466
  %v6468 = vpop.f32.mrf.mxu0
  %v6469 = vadd.f32 %v6300, %v6468
  %6470 = vmatmul.bf16.gmra.mxu0 %v2827
  %v6471 = vpop.f32.mrf.mxu0
  %v6472 = vadd.f32 %v6303, %v6471
  %v6473 = vpop.f32.mrf.mxu0
  %v6474 = vadd.f32 %v6305, %v6473
  %6475 = vdwg.mxu0
  %6476 = vmatpush.bf16.msra.mxu0 %v3973
  %6477 = vmatpush.bf16.msra.mxu0 %v3972
  %6478 = vmatpush.bf16.msra.mxu0 %v3971
  %6479 = vmatpush.bf16.msra.mxu0 %v3970
  %6480 = vmatpush.bf16.msra.mxu0 %v3969
  %6481 = vmatpush.bf16.msra.mxu0 %v3968
  %6482 = vmatpush.bf16.msra.mxu0 %v3967
  %6483 = vmatpush.bf16.msra.mxu0 %v3966
  %6484 = vmatmul.bf16.gmra.mxu0 %v2332
  %v6485 = vpop.f32.mrf.mxu0
  %v6486 = vadd.f32 %v6317, %v6485
  %v6487 = vpop.f32.mrf.mxu0
  %v6488 = vadd.f32 %v6319, %v6487
  %6489 = vmatmul.bf16.gmra.mxu0 %v2348
  %v6490 = vpop.f32.mrf.mxu0
  %v6491 = vadd.f32 %v6322, %v6490
  %v6492 = vpop.f32.mrf.mxu0
  %v6493 = vadd.f32 %v6324, %v6492
  %6494 = vmatmul.bf16.gmra.mxu0 %v2364
  %v6495 = vpop.f32.mrf.mxu0
  %v6496 = vadd.f32 %v6327, %v6495
  %v6497 = vpop.f32.mrf.mxu0
  %v6498 = vadd.f32 %v6329, %v6497
  %6499 = vmatmul.bf16.gmra.mxu0 %v2380
  %v6500 = vpop.f32.mrf.mxu0
  %v6501 = vadd.f32 %v6332, %v6500
  %v6502 = vpop.f32.mrf.mxu0
  %v6503 = vadd.f32 %v6334, %v6502
  %6504 = vmatmul.bf16.gmra.mxu0 %v2396
  %v6505 = vpop.f32.mrf.mxu0
  %v6506 = vadd.f32 %v6337, %v6505
  %v6507 = vpop.f32.mrf.mxu0
  %v6508 = vadd.f32 %v6339, %v6507
  %6509 = vmatmul.bf16.gmra.mxu0 %v2412
  %v6510 = vpop.f32.mrf.mxu0
  %v6511 = vadd.f32 %v6342, %v6510
  %v6512 = vpop.f32.mrf.mxu0
  %v6513 = vadd.f32 %v6344, %v6512
  %6514 = vmatmul.bf16.gmra.mxu0 %v2428
  %v6515 = vpop.f32.mrf.mxu0
  %v6516 = vadd.f32 %v6347, %v6515
  %v6517 = vpop.f32.mrf.mxu0
  %v6518 = vadd.f32 %v6349, %v6517
  %6519 = vmatmul.bf16.gmra.mxu0 %v2444
  %v6520 = vpop.f32.mrf.mxu0
  %v6521 = vadd.f32 %v6352, %v6520
  %v6522 = vpop.f32.mrf.mxu0
  %v6523 = vadd.f32 %v6354, %v6522
  %6524 = vmatmul.bf16.gmra.mxu0 %v2460
  %v6525 = vpop.f32.mrf.mxu0
  %v6526 = vadd.f32 %v6357, %v6525
  %v6527 = vpop.f32.mrf.mxu0
  %v6528 = vadd.f32 %v6359, %v6527
  %6529 = vmatmul.bf16.gmra.mxu0 %v2476
  %v6530 = vpop.f32.mrf.mxu0
  %v6531 = vadd.f32 %v6362, %v6530
  %v6532 = vpop.f32.mrf.mxu0
  %v6533 = vadd.f32 %v6364, %v6532
  %6534 = vmatmul.bf16.gmra.mxu0 %v2492
  %v6535 = vpop.f32.mrf.mxu0
  %v6536 = vadd.f32 %v6367, %v6535
  %v6537 = vpop.f32.mrf.mxu0
  %v6538 = vadd.f32 %v6369, %v6537
  %6539 = vmatmul.bf16.gmra.mxu0 %v2508
  %v6540 = vpop.f32.mrf.mxu0
  %v6541 = vadd.f32 %v6372, %v6540
  %v6542 = vpop.f32.mrf.mxu0
  %v6543 = vadd.f32 %v6374, %v6542
  %6544 = vmatmul.bf16.gmra.mxu0 %v2524
  %v6545 = vpop.f32.mrf.mxu0
  %v6546 = vadd.f32 %v6377, %v6545
  %v6547 = vpop.f32.mrf.mxu0
  %v6548 = vadd.f32 %v6379, %v6547
  %6549 = vmatmul.bf16.gmra.mxu0 %v2540
  %v6550 = vpop.f32.mrf.mxu0
  %v6551 = vadd.f32 %v6382, %v6550
  %v6552 = vpop.f32.mrf.mxu0
  %v6553 = vadd.f32 %v6384, %v6552
  %6554 = vmatmul.bf16.gmra.mxu0 %v2556
  %v6555 = vpop.f32.mrf.mxu0
  %v6556 = vadd.f32 %v6387, %v6555
  %v6557 = vpop.f32.mrf.mxu0
  %v6558 = vadd.f32 %v6389, %v6557
  %6559 = vmatmul.bf16.gmra.mxu0 %v2572
  %v6560 = vpop.f32.mrf.mxu0
  %v6561 = vadd.f32 %v6392, %v6560
  %v6562 = vpop.f32.mrf.mxu0
  %v6563 = vadd.f32 %v6394, %v6562
  %6564 = vmatmul.bf16.gmra.mxu0 %v2588
  %v6565 = vpop.f32.mrf.mxu0
  %v6566 = vadd.f32 %v6397, %v6565
  %v6567 = vpop.f32.mrf.mxu0
  %v6568 = vadd.f32 %v6399, %v6567
  %6569 = vmatmul.bf16.gmra.mxu0 %v2604
  %v6570 = vpop.f32.mrf.mxu0
  %v6571 = vadd.f32 %v6402, %v6570
  %v6572 = vpop.f32.mrf.mxu0
  %v6573 = vadd.f32 %v6404, %v6572
  %6574 = vmatmul.bf16.gmra.mxu0 %v2620
  %v6575 = vpop.f32.mrf.mxu0
  %v6576 = vadd.f32 %v6407, %v6575
  %v6577 = vpop.f32.mrf.mxu0
  %v6578 = vadd.f32 %v6409, %v6577
  %6579 = vmatmul.bf16.gmra.mxu0 %v2636
  %v6580 = vpop.f32.mrf.mxu0
  %v6581 = vadd.f32 %v6412, %v6580
  %v6582 = vpop.f32.mrf.mxu0
  %v6583 = vadd.f32 %v6414, %v6582
  %6584 = vmatmul.bf16.gmra.mxu0 %v2652
  %v6585 = vpop.f32.mrf.mxu0
  %v6586 = vadd.f32 %v6417, %v6585
  %v6587 = vpop.f32.mrf.mxu0
  %v6588 = vadd.f32 %v6419, %v6587
  %6589 = vmatmul.bf16.gmra.mxu0 %v2668
  %v6590 = vpop.f32.mrf.mxu0
  %v6591 = vadd.f32 %v6422, %v6590
  %v6592 = vpop.f32.mrf.mxu0
  %v6593 = vadd.f32 %v6424, %v6592
  %6594 = vmatmul.bf16.gmra.mxu0 %v2684
  %v6595 = vpop.f32.mrf.mxu0
  %v6596 = vadd.f32 %v6427, %v6595
  %v6597 = vpop.f32.mrf.mxu0
  %v6598 = vadd.f32 %v6429, %v6597
  %6599 = vmatmul.bf16.gmra.mxu0 %v2700
  %v6600 = vpop.f32.mrf.mxu0
  %v6601 = vadd.f32 %v6432, %v6600
  %v6602 = vpop.f32.mrf.mxu0
  %v6603 = vadd.f32 %v6434, %v6602
  %6604 = vmatmul.bf16.gmra.mxu0 %v2716
  %v6605 = vpop.f32.mrf.mxu0
  %v6606 = vadd.f32 %v6437, %v6605
  %v6607 = vpop.f32.mrf.mxu0
  %v6608 = vadd.f32 %v6439, %v6607
  %6609 = vmatmul.bf16.gmra.mxu0 %v2732
  %v6610 = vpop.f32.mrf.mxu0
  %v6611 = vadd.f32 %v6442, %v6610
  %v6612 = vpop.f32.mrf.mxu0
  %v6613 = vadd.f32 %v6444, %v6612
  %6614 = vmatmul.bf16.gmra.mxu0 %v2748
  %v6615 = vpop.f32.mrf.mxu0
  %v6616 = vadd.f32 %v6447, %v6615
  %v6617 = vpop.f32.mrf.mxu0
  %v6618 = vadd.f32 %v6449, %v6617
  %6619 = vmatmul.bf16.gmra.mxu0 %v2764
  %v6620 = vpop.f32.mrf.mxu0
  %v6621 = vadd.f32 %v6452, %v6620
  %v6622 = vpop.f32.mrf.mxu0
  %v6623 = vadd.f32 %v6454, %v6622
  %6624 = vmatmul.bf16.gmra.mxu0 %v2780
  %v6625 = vpop.f32.mrf.mxu0
  %v6626 = vadd.f32 %v6457, %v6625
  %v6627 = vpop.f32.mrf.mxu0
  %v6628 = vadd.f32 %v6459, %v6627
  %6629 = vmatmul.bf16.gmra.mxu0 %v2796
  %v6630 = vpop.f32.mrf.mxu0
  %v6631 = vadd.f32 %v6462, %v6630
  %v6632 = vpop.f32.mrf.mxu0
  %v6633 = vadd.f32 %v6464, %v6632
  %6634 = vmatmul.bf16.gmra.mxu0 %v2812
  %v6635 = vpop.f32.mrf.mxu0
  %v6636 = vadd.f32 %v6467, %v6635
  %v6637 = vpop.f32.mrf.mxu0
  %v6638 = vadd.f32 %v6469, %v6637
  %6639 = vmatmul.bf16.gmra.mxu0 %v2828
  %v6640 = vpop.f32.mrf.mxu0
  %v6641 = vadd.f32 %v6472, %v6640
  %v6642 = vpop.f32.mrf.mxu0
  %v6643 = vadd.f32 %v6474, %v6642
  %6644 = vdwg.mxu0
  %6645 = vmatpush.bf16.msra.mxu0 %v3981
  %6646 = vmatpush.bf16.msra.mxu0 %v3980
  %6647 = vmatpush.bf16.msra.mxu0 %v3979
  %6648 = vmatpush.bf16.msra.mxu0 %v3978
  %6649 = vmatpush.bf16.msra.mxu0 %v3977
  %6650 = vmatpush.bf16.msra.mxu0 %v3976
  %6651 = vmatpush.bf16.msra.mxu0 %v3975
  %6652 = vmatpush.bf16.msra.mxu0 %v3974
  %6653 = vmatmul.bf16.gmra.mxu0 %v2333
  %v6654 = vpop.f32.mrf.mxu0
  %v6655 = vadd.f32 %v6486, %v6654
  %v6656 = vpop.f32.mrf.mxu0
  %v6657 = vadd.f32 %v6488, %v6656
  %6658 = vmatmul.bf16.gmra.mxu0 %v2349
  %v6659 = vpop.f32.mrf.mxu0
  %v6660 = vadd.f32 %v6491, %v6659
  %v6661 = vpop.f32.mrf.mxu0
  %v6662 = vadd.f32 %v6493, %v6661
  %6663 = vmatmul.bf16.gmra.mxu0 %v2365
  %v6664 = vpop.f32.mrf.mxu0
  %v6665 = vadd.f32 %v6496, %v6664
  %v6666 = vpop.f32.mrf.mxu0
  %v6667 = vadd.f32 %v6498, %v6666
  %6668 = vmatmul.bf16.gmra.mxu0 %v2381
  %v6669 = vpop.f32.mrf.mxu0
  %v6670 = vadd.f32 %v6501, %v6669
  %v6671 = vpop.f32.mrf.mxu0
  %v6672 = vadd.f32 %v6503, %v6671
  %6673 = vmatmul.bf16.gmra.mxu0 %v2397
  %v6674 = vpop.f32.mrf.mxu0
  %v6675 = vadd.f32 %v6506, %v6674
  %v6676 = vpop.f32.mrf.mxu0
  %v6677 = vadd.f32 %v6508, %v6676
  %6678 = vmatmul.bf16.gmra.mxu0 %v2413
  %v6679 = vpop.f32.mrf.mxu0
  %v6680 = vadd.f32 %v6511, %v6679
  %v6681 = vpop.f32.mrf.mxu0
  %v6682 = vadd.f32 %v6513, %v6681
  %6683 = vmatmul.bf16.gmra.mxu0 %v2429
  %v6684 = vpop.f32.mrf.mxu0
  %v6685 = vadd.f32 %v6516, %v6684
  %v6686 = vpop.f32.mrf.mxu0
  %v6687 = vadd.f32 %v6518, %v6686
  %6688 = vmatmul.bf16.gmra.mxu0 %v2445
  %v6689 = vpop.f32.mrf.mxu0
  %v6690 = vadd.f32 %v6521, %v6689
  %v6691 = vpop.f32.mrf.mxu0
  %v6692 = vadd.f32 %v6523, %v6691
  %6693 = vmatmul.bf16.gmra.mxu0 %v2461
  %v6694 = vpop.f32.mrf.mxu0
  %v6695 = vadd.f32 %v6526, %v6694
  %v6696 = vpop.f32.mrf.mxu0
  %v6697 = vadd.f32 %v6528, %v6696
  %6698 = vmatmul.bf16.gmra.mxu0 %v2477
  %v6699 = vpop.f32.mrf.mxu0
  %v6700 = vadd.f32 %v6531, %v6699
  %v6701 = vpop.f32.mrf.mxu0
  %v6702 = vadd.f32 %v6533, %v6701
  %6703 = vmatmul.bf16.gmra.mxu0 %v2493
  %v6704 = vpop.f32.mrf.mxu0
  %v6705 = vadd.f32 %v6536, %v6704
  %v6706 = vpop.f32.mrf.mxu0
  %v6707 = vadd.f32 %v6538, %v6706
  %6708 = vmatmul.bf16.gmra.mxu0 %v2509
  %v6709 = vpop.f32.mrf.mxu0
  %v6710 = vadd.f32 %v6541, %v6709
  %v6711 = vpop.f32.mrf.mxu0
  %v6712 = vadd.f32 %v6543, %v6711
  %6713 = vmatmul.bf16.gmra.mxu0 %v2525
  %v6714 = vpop.f32.mrf.mxu0
  %v6715 = vadd.f32 %v6546, %v6714
  %v6716 = vpop.f32.mrf.mxu0
  %v6717 = vadd.f32 %v6548, %v6716
  %6718 = vmatmul.bf16.gmra.mxu0 %v2541
  %v6719 = vpop.f32.mrf.mxu0
  %v6720 = vadd.f32 %v6551, %v6719
  %v6721 = vpop.f32.mrf.mxu0
  %v6722 = vadd.f32 %v6553, %v6721
  %6723 = vmatmul.bf16.gmra.mxu0 %v2557
  %v6724 = vpop.f32.mrf.mxu0
  %v6725 = vadd.f32 %v6556, %v6724
  %v6726 = vpop.f32.mrf.mxu0
  %v6727 = vadd.f32 %v6558, %v6726
  %6728 = vmatmul.bf16.gmra.mxu0 %v2573
  %v6729 = vpop.f32.mrf.mxu0
  %v6730 = vadd.f32 %v6561, %v6729
  %v6731 = vpop.f32.mrf.mxu0
  %v6732 = vadd.f32 %v6563, %v6731
  %6733 = vmatmul.bf16.gmra.mxu0 %v2589
  %v6734 = vpop.f32.mrf.mxu0
  %v6735 = vadd.f32 %v6566, %v6734
  %v6736 = vpop.f32.mrf.mxu0
  %v6737 = vadd.f32 %v6568, %v6736
  %6738 = vmatmul.bf16.gmra.mxu0 %v2605
  %v6739 = vpop.f32.mrf.mxu0
  %v6740 = vadd.f32 %v6571, %v6739
  %v6741 = vpop.f32.mrf.mxu0
  %v6742 = vadd.f32 %v6573, %v6741
  %6743 = vmatmul.bf16.gmra.mxu0 %v2621
  %v6744 = vpop.f32.mrf.mxu0
  %v6745 = vadd.f32 %v6576, %v6744
  %v6746 = vpop.f32.mrf.mxu0
  %v6747 = vadd.f32 %v6578, %v6746
  %6748 = vmatmul.bf16.gmra.mxu0 %v2637
  %v6749 = vpop.f32.mrf.mxu0
  %v6750 = vadd.f32 %v6581, %v6749
  %v6751 = vpop.f32.mrf.mxu0
  %v6752 = vadd.f32 %v6583, %v6751
  %6753 = vmatmul.bf16.gmra.mxu0 %v2653
  %v6754 = vpop.f32.mrf.mxu0
  %v6755 = vadd.f32 %v6586, %v6754
  %v6756 = vpop.f32.mrf.mxu0
  %v6757 = vadd.f32 %v6588, %v6756
  %6758 = vmatmul.bf16.gmra.mxu0 %v2669
  %v6759 = vpop.f32.mrf.mxu0
  %v6760 = vadd.f32 %v6591, %v6759
  %v6761 = vpop.f32.mrf.mxu0
  %v6762 = vadd.f32 %v6593, %v6761
  %6763 = vmatmul.bf16.gmra.mxu0 %v2685
  %v6764 = vpop.f32.mrf.mxu0
  %v6765 = vadd.f32 %v6596, %v6764
  %v6766 = vpop.f32.mrf.mxu0
  %v6767 = vadd.f32 %v6598, %v6766
  %6768 = vmatmul.bf16.gmra.mxu0 %v2701
  %v6769 = vpop.f32.mrf.mxu0
  %v6770 = vadd.f32 %v6601, %v6769
  %v6771 = vpop.f32.mrf.mxu0
  %v6772 = vadd.f32 %v6603, %v6771
  %6773 = vmatmul.bf16.gmra.mxu0 %v2717
  %v6774 = vpop.f32.mrf.mxu0
  %v6775 = vadd.f32 %v6606, %v6774
  %v6776 = vpop.f32.mrf.mxu0
  %v6777 = vadd.f32 %v6608, %v6776
  %6778 = vmatmul.bf16.gmra.mxu0 %v2733
  %v6779 = vpop.f32.mrf.mxu0
  %v6780 = vadd.f32 %v6611, %v6779
  %v6781 = vpop.f32.mrf.mxu0
  %v6782 = vadd.f32 %v6613, %v6781
  %6783 = vmatmul.bf16.gmra.mxu0 %v2749
  %v6784 = vpop.f32.mrf.mxu0
  %v6785 = vadd.f32 %v6616, %v6784
  %v6786 = vpop.f32.mrf.mxu0
  %v6787 = vadd.f32 %v6618, %v6786
  %6788 = vmatmul.bf16.gmra.mxu0 %v2765
  %v6789 = vpop.f32.mrf.mxu0
  %v6790 = vadd.f32 %v6621, %v6789
  %v6791 = vpop.f32.mrf.mxu0
  %v6792 = vadd.f32 %v6623, %v6791
  %6793 = vmatmul.bf16.gmra.mxu0 %v2781
  %v6794 = vpop.f32.mrf.mxu0
  %v6795 = vadd.f32 %v6626, %v6794
  %v6796 = vpop.f32.mrf.mxu0
  %v6797 = vadd.f32 %v6628, %v6796
  %6798 = vmatmul.bf16.gmra.mxu0 %v2797
  %v6799 = vpop.f32.mrf.mxu0
  %v6800 = vadd.f32 %v6631, %v6799
  %v6801 = vpop.f32.mrf.mxu0
  %v6802 = vadd.f32 %v6633, %v6801
  %6803 = vmatmul.bf16.gmra.mxu0 %v2813
  %v6804 = vpop.f32.mrf.mxu0
  %v6805 = vadd.f32 %v6636, %v6804
  %v6806 = vpop.f32.mrf.mxu0
  %v6807 = vadd.f32 %v6638, %v6806
  %6808 = vmatmul.bf16.gmra.mxu0 %v2829
  %v6809 = vpop.f32.mrf.mxu0
  %v6810 = vadd.f32 %v6641, %v6809
  %v6811 = vpop.f32.mrf.mxu0
  %v6812 = vadd.f32 %v6643, %v6811
  %6813 = vdwg.mxu0
  %v6814 = vpack.c.bf16 %v6655, %v6655
  %v6815 = vpack.c.bf16 %v6657, %v6657
  %v6816 = vpack.c.bf16 %v6660, %v6660
  %v6817 = vpack.c.bf16 %v6662, %v6662
  %v6818 = vpack.c.bf16 %v6665, %v6665
  %v6819 = vpack.c.bf16 %v6667, %v6667
  %v6820 = vpack.c.bf16 %v6670, %v6670
  %v6821 = vpack.c.bf16 %v6672, %v6672
  %v6822 = vpack.c.bf16 %v6675, %v6675
  %v6823 = vpack.c.bf16 %v6677, %v6677
  %v6824 = vpack.c.bf16 %v6680, %v6680
  %v6825 = vpack.c.bf16 %v6682, %v6682
  %v6826 = vpack.c.bf16 %v6685, %v6685
  %v6827 = vpack.c.bf16 %v6687, %v6687
  %v6828 = vpack.c.bf16 %v6690, %v6690
  %v6829 = vpack.c.bf16 %v6692, %v6692
  %v6830 = vpack.c.bf16 %v6695, %v6695
  %v6831 = vpack.c.bf16 %v6697, %v6697
  %v6832 = vpack.c.bf16 %v6700, %v6700
  %v6833 = vpack.c.bf16 %v6702, %v6702
  %v6834 = vpack.c.bf16 %v6705, %v6705
  %v6835 = vpack.c.bf16 %v6707, %v6707
  %v6836 = vpack.c.bf16 %v6710, %v6710
  %v6837 = vpack.c.bf16 %v6712, %v6712
  %v6838 = vpack.c.bf16 %v6715, %v6715
  %v6839 = vpack.c.bf16 %v6717, %v6717
  %v6840 = vpack.c.bf16 %v6720, %v6720
  %v6841 = vpack.c.bf16 %v6722, %v6722
  %v6842 = vpack.c.bf16 %v6725, %v6725
  %v6843 = vpack.c.bf16 %v6727, %v6727
  %v6844 = vpack.c.bf16 %v6730, %v6730
  %v6845 = vpack.c.bf16 %v6732, %v6732
  %v6846 = vpack.c.bf16 %v6735, %v6735
  %v6847 = vpack.c.bf16 %v6737, %v6737
  %v6848 = vpack.c.bf16 %v6740, %v6740
  %v6849 = vpack.c.bf16 %v6742, %v6742
  %v6850 = vpack.c.bf16 %v6745, %v6745
  %v6851 = vpack.c.bf16 %v6747, %v6747
  %v6852 = vpack.c.bf16 %v6750, %v6750
  %v6853 = vpack.c.bf16 %v6752, %v6752
  %v6854 = vpack.c.bf16 %v6755, %v6755
  %v6855 = vpack.c.bf16 %v6757, %v6757
  %v6856 = vpack.c.bf16 %v6760, %v6760
  %v6857 = vpack.c.bf16 %v6762, %v6762
  %v6858 = vpack.c.bf16 %v6765, %v6765
  %v6859 = vpack.c.bf16 %v6767, %v6767
  %v6860 = vpack.c.bf16 %v6770, %v6770
  %v6861 = vpack.c.bf16 %v6772, %v6772
  %v6862 = vpack.c.bf16 %v6775, %v6775
  %v6863 = vpack.c.bf16 %v6777, %v6777
  %v6864 = vpack.c.bf16 %v6780, %v6780
  %v6865 = vpack.c.bf16 %v6782, %v6782
  %v6866 = vpack.c.bf16 %v6785, %v6785
  %v6867 = vpack.c.bf16 %v6787, %v6787
  %v6868 = vpack.c.bf16 %v6790, %v6790
  %v6869 = vpack.c.bf16 %v6792, %v6792
  %v6870 = vpack.c.bf16 %v6795, %v6795
  %v6871 = vpack.c.bf16 %v6797, %v6797
  %v6872 = vpack.c.bf16 %v6800, %v6800
  %v6873 = vpack.c.bf16 %v6802, %v6802
  %v6874 = vpack.c.bf16 %v6805, %v6805
  %v6875 = vpack.c.bf16 %v6807, %v6807
  %v6876 = vpack.c.bf16 %v6810, %v6810
  %v6877 = vpack.c.bf16 %v6812, %v6812
  %6878 = vst [vmem:[%s2] sm:$0xf] %v6814
  %6879 = vst [vmem:[%s2 + $0x4] sm:$0xf] %v6815
  %6880 = vst [vmem:[%s2 + $0x8] sm:$0xf] %v6816
  %6881 = vst [vmem:[%s2 + $0xc] sm:$0xf] %v6817
  %6882 = vst [vmem:[%s2 + $0x10] sm:$0xf] %v6818
  %6883 = vst [vmem:[%s2 + $0x14] sm:$0xf] %v6819
  %6884 = vst [vmem:[%s2 + $0x18] sm:$0xf] %v6820
  %6885 = vst [vmem:[%s2 + $0x1c] sm:$0xf] %v6821
  %6886 = vst [vmem:[%s2 + $0x20] sm:$0xf] %v6822
  %6887 = vst [vmem:[%s2 + $0x24] sm:$0xf] %v6823
  %6888 = vst [vmem:[%s2 + $0x28] sm:$0xf] %v6824
  %6889 = vst [vmem:[%s2 + $0x2c] sm:$0xf] %v6825
  %6890 = vst [vmem:[%s2 + $0x30] sm:$0xf] %v6826
  %6891 = vst [vmem:[%s2 + $0x34] sm:$0xf] %v6827
  %6892 = vst [vmem:[%s2 + $0x38] sm:$0xf] %v6828
  %6893 = vst [vmem:[%s2 + $0x3c] sm:$0xf] %v6829
  %6894 = vst [vmem:[%s2 + $0x40] sm:$0xf] %v6830
  %6895 = vst [vmem:[%s2 + $0x44] sm:$0xf] %v6831
  %6896 = vst [vmem:[%s2 + $0x48] sm:$0xf] %v6832
  %6897 = vst [vmem:[%s2 + $0x4c] sm:$0xf] %v6833
  %6898 = vst [vmem:[%s2 + $0x50] sm:$0xf] %v6834
  %6899 = vst [vmem:[%s2 + $0x54] sm:$0xf] %v6835
  %6900 = vst [vmem:[%s2 + $0x58] sm:$0xf] %v6836
  %6901 = vst [vmem:[%s2 + $0x5c] sm:$0xf] %v6837
  %6902 = vst [vmem:[%s2 + $0x60] sm:$0xf] %v6838
  %6903 = vst [vmem:[%s2 + $0x64] sm:$0xf] %v6839
  %6904 = vst [vmem:[%s2 + $0x68] sm:$0xf] %v6840
  %6905 = vst [vmem:[%s2 + $0x6c] sm:$0xf] %v6841
  %6906 = vst [vmem:[%s2 + $0x70] sm:$0xf] %v6842
  %6907 = vst [vmem:[%s2 + $0x74] sm:$0xf] %v6843
  %6908 = vst [vmem:[%s2 + $0x78] sm:$0xf] %v6844
  %6909 = vst [vmem:[%s2 + $0x7c] sm:$0xf] %v6845
  %6910 = vst [vmem:[%s2 + $0x80] sm:$0xf] %v6846
  %6911 = vst [vmem:[%s2 + $0x84] sm:$0xf] %v6847
  %6912 = vst [vmem:[%s2 + $0x88] sm:$0xf] %v6848
  %6913 = vst [vmem:[%s2 + $0x8c] sm:$0xf] %v6849
  %6914 = vst [vmem:[%s2 + $0x90] sm:$0xf] %v6850
  %6915 = vst [vmem:[%s2 + $0x94] sm:$0xf] %v6851
  %6916 = vst [vmem:[%s2 + $0x98] sm:$0xf] %v6852
  %6917 = vst [vmem:[%s2 + $0x9c] sm:$0xf] %v6853
  %6918 = vst [vmem:[%s2 + $0xa0] sm:$0xf] %v6854
  %6919 = vst [vmem:[%s2 + $0xa4] sm:$0xf] %v6855
  %6920 = vst [vmem:[%s2 + $0xa8] sm:$0xf] %v6856
  %6921 = vst [vmem:[%s2 + $0xac] sm:$0xf] %v6857
  %6922 = vst [vmem:[%s2 + $0xb0] sm:$0xf] %v6858
  %6923 = vst [vmem:[%s2 + $0xb4] sm:$0xf] %v6859
  %6924 = vst [vmem:[%s2 + $0xb8] sm:$0xf] %v6860
  %6925 = vst [vmem:[%s2 + $0xbc] sm:$0xf] %v6861
  %6926 = vst [vmem:[%s2 + $0xc0] sm:$0xf] %v6862
  %6927 = vst [vmem:[%s2 + $0xc4] sm:$0xf] %v6863
  %6928 = vst [vmem:[%s2 + $0xc8] sm:$0xf] %v6864
  %6929 = vst [vmem:[%s2 + $0xcc] sm:$0xf] %v6865
  %6930 = vst [vmem:[%s2 + $0xd0] sm:$0xf] %v6866
  %6931 = vst [vmem:[%s2 + $0xd4] sm:$0xf] %v6867
  %6932 = vst [vmem:[%s2 + $0xd8] sm:$0xf] %v6868
  %6933 = vst [vmem:[%s2 + $0xdc] sm:$0xf] %v6869
  %6934 = vst [vmem:[%s2 + $0xe0] sm:$0xf] %v6870
  %6935 = vst [vmem:[%s2 + $0xe4] sm:$0xf] %v6871
  %6936 = vst [vmem:[%s2 + $0xe8] sm:$0xf] %v6872
  %6937 = vst [vmem:[%s2 + $0xec] sm:$0xf] %v6873
  %6938 = vst [vmem:[%s2 + $0xf0] sm:$0xf] %v6874
  %6939 = vst [vmem:[%s2 + $0xf4] sm:$0xf] %v6875
  %6940 = vst [vmem:[%s2 + $0xf8] sm:$0xf] %v6876
  %6941 = vst [vmem:[%s2 + $0xfc] sm:$0xf] %v6877
  %v6942 = vadd.f32 %v6655, %v6657
  %v6943 = vadd.f32 %v6942, %v6660
  %v6944 = vadd.f32 %v6943, %v6662
  %v6945 = vadd.f32 %v6944, %v6665
  %v6946 = vadd.f32 %v6945, %v6667
  %v6947 = vadd.f32 %v6946, %v6670
  %v6948 = vadd.f32 %v6947, %v6672
  %v6949 = vadd.f32 %v6948, %v6675
  %v6950 = vadd.f32 %v6949, %v6677
  %v6951 = vadd.f32 %v6950, %v6680
  %v6952 = vadd.f32 %v6951, %v6682
  %v6953 = vadd.f32 %v6952, %v6685
  %v6954 = vadd.f32 %v6953, %v6687
  %v6955 = vadd.f32 %v6954, %v6690
  %v6956 = vadd.f32 %v6955, %v6692
  %v6957 = vadd.f32 %v6956, %v6695
  %v6958 = vadd.f32 %v6957, %v6697
  %v6959 = vadd.f32 %v6958, %v6700
  %v6960 = vadd.f32 %v6959, %v6702
  %v6961 = vadd.f32 %v6960, %v6705
  %v6962 = vadd.f32 %v6961, %v6707
  %v6963 = vadd.f32 %v6962, %v6710
  %v6964 = vadd.f32 %v6963, %v6712
  %v6965 = vadd.f32 %v6964, %v6715
  %v6966 = vadd.f32 %v6965, %v6717
  %v6967 = vadd.f32 %v6966, %v6720
  %v6968 = vadd.f32 %v6967, %v6722
  %v6969 = vadd.f32 %v6968, %v6725
  %v6970 = vadd.f32 %v6969, %v6727
  %v6971 = vadd.f32 %v6970, %v6730
  %v6972 = vadd.f32 %v6971, %v6732
  %v6973 = vadd.f32 %v6972, %v6735
  %v6974 = vadd.f32 %v6973, %v6737
  %v6975 = vadd.f32 %v6974, %v6740
  %v6976 = vadd.f32 %v6975, %v6742
  %v6977 = vadd.f32 %v6976, %v6745
  %v6978 = vadd.f32 %v6977, %v6747
  %v6979 = vadd.f32 %v6978, %v6750
  %v6980 = vadd.f32 %v6979, %v6752
  %v6981 = vadd.f32 %v6980, %v6755
  %v6982 = vadd.f32 %v6981, %v6757
  %v6983 = vadd.f32 %v6982, %v6760
  %v6984 = vadd.f32 %v6983, %v6762
  %v6985 = vadd.f32 %v6984, %v6765
  %v6986 = vadd.f32 %v6985, %v6767
  %v6987 = vadd.f32 %v6986, %v6770
  %v6988 = vadd.f32 %v6987, %v6772
  %v6989 = vadd.f32 %v6988, %v6775
  %v6990 = vadd.f32 %v6989, %v6777
  %v6991 = vadd.f32 %v6990, %v6780
  %v6992 = vadd.f32 %v6991, %v6782
  %v6993 = vadd.f32 %v6992, %v6785
  %v6994 = vadd.f32 %v6993, %v6787
  %v6995 = vadd.f32 %v6994, %v6790
  %v6996 = vadd.f32 %v6995, %v6792
  %v6997 = vadd.f32 %v6996, %v6795
  %v6998 = vadd.f32 %v6997, %v6797
  %v6999 = vadd.f32 %v6998, %v6800
  %v7000 = vadd.f32 %v6999, %v6802
  %v7001 = vadd.f32 %v7000, %v6805
  %v7002 = vadd.f32 %v7001, %v6807
  %v7003 = vadd.f32 %v7002, %v6810
  %v7004 = vadd.f32 %v7003, %v6812
  %v7005 = vrot.slane %v7004, 4
  %v7006 = vadd.f32 %v7004, %v7005
  %v7007 = vrot.slane %v7006, 2
  %v7008 = vadd.f32 %v7006, %v7007
  %v7009 = vrot.slane %v7008, 1
  %v7010 = vadd.f32 %v7008, %v7009
  %7011 = vst [vmem:[%s3] sm:$0x1] %v7010
  %v7012 = vmul.f32 %v6655, %v6655
  %v7013 = vmul.f32 %v6657, %v6657
  %v7014 = vmul.f32 %v6660, %v6660
  %v7015 = vmul.f32 %v6662, %v6662
  %v7016 = vmul.f32 %v6665, %v6665
  %v7017 = vmul.f32 %v6667, %v6667
  %v7018 = vmul.f32 %v6670, %v6670
  %v7019 = vmul.f32 %v6672, %v6672
  %v7020 = vmul.f32 %v6675, %v6675
  %v7021 = vmul.f32 %v6677, %v6677
  %v7022 = vmul.f32 %v6680, %v6680
  %v7023 = vmul.f32 %v6682, %v6682
  %v7024 = vmul.f32 %v6685, %v6685
  %v7025 = vmul.f32 %v6687, %v6687
  %v7026 = vmul.f32 %v6690, %v6690
  %v7027 = vmul.f32 %v6692, %v6692
  %v7028 = vmul.f32 %v6695, %v6695
  %v7029 = vmul.f32 %v6697, %v6697
  %v7030 = vmul.f32 %v6700, %v6700
  %v7031 = vmul.f32 %v6702, %v6702
  %v7032 = vmul.f32 %v6705, %v6705
  %v7033 = vmul.f32 %v6707, %v6707
  %v7034 = vmul.f32 %v6710, %v6710
  %v7035 = vmul.f32 %v6712, %v6712
  %v7036 = vmul.f32 %v6715, %v6715
  %v7037 = vmul.f32 %v6717, %v6717
  %v7038 = vmul.f32 %v6720, %v6720
  %v7039 = vmul.f32 %v6722, %v6722
  %v7040 = vmul.f32 %v6725, %v6725
  %v7041 = vmul.f32 %v6727, %v6727
  %v7042 = vmul.f32 %v6730, %v6730
  %v7043 = vmul.f32 %v6732, %v6732
  %v7044 = vmul.f32 %v6735, %v6735
  %v7045 = vmul.f32 %v6737, %v6737
  %v7046 = vmul.f32 %v6740, %v6740
  %v7047 = vmul.f32 %v6742, %v6742
  %v7048 = vmul.f32 %v6745, %v6745
  %v7049 = vmul.f32 %v6747, %v6747
  %v7050 = vmul.f32 %v6750, %v6750
  %v7051 = vmul.f32 %v6752, %v6752
  %v7052 = vmul.f32 %v6755, %v6755
  %v7053 = vmul.f32 %v6757, %v6757
  %v7054 = vmul.f32 %v6760, %v6760
  %v7055 = vmul.f32 %v6762, %v6762
  %v7056 = vmul.f32 %v6765, %v6765
  %v7057 = vmul.f32 %v6767, %v6767
  %v7058 = vmul.f32 %v6770, %v6770
  %v7059 = vmul.f32 %v6772, %v6772
  %v7060 = vmul.f32 %v6775, %v6775
  %v7061 = vmul.f32 %v6777, %v6777
  %v7062 = vmul.f32 %v6780, %v6780
  %v7063 = vmul.f32 %v6782, %v6782
  %v7064 = vmul.f32 %v6785, %v6785
  %v7065 = vmul.f32 %v6787, %v6787
  %v7066 = vmul.f32 %v6790, %v6790
  %v7067 = vmul.f32 %v6792, %v6792
  %v7068 = vmul.f32 %v6795, %v6795
  %v7069 = vmul.f32 %v6797, %v6797
  %v7070 = vmul.f32 %v6800, %v6800
  %v7071 = vmul.f32 %v6802, %v6802
  %v7072 = vmul.f32 %v6805, %v6805
  %v7073 = vmul.f32 %v6807, %v6807
  %v7074 = vmul.f32 %v6810, %v6810
  %v7075 = vmul.f32 %v6812, %v6812
  %v7076 = vadd.f32 %v7012, %v7013
  %v7077 = vadd.f32 %v7076, %v7014
  %v7078 = vadd.f32 %v7077, %v7015
  %v7079 = vadd.f32 %v7078, %v7016
  %v7080 = vadd.f32 %v7079, %v7017
  %v7081 = vadd.f32 %v7080, %v7018
  %v7082 = vadd.f32 %v7081, %v7019
  %v7083 = vadd.f32 %v7082, %v7020
  %v7084 = vadd.f32 %v7083, %v7021
  %v7085 = vadd.f32 %v7084, %v7022
  %v7086 = vadd.f32 %v7085, %v7023
  %v7087 = vadd.f32 %v7086, %v7024
  %v7088 = vadd.f32 %v7087, %v7025
  %v7089 = vadd.f32 %v7088, %v7026
  %v7090 = vadd.f32 %v7089, %v7027
  %v7091 = vadd.f32 %v7090, %v7028
  %v7092 = vadd.f32 %v7091, %v7029
  %v7093 = vadd.f32 %v7092, %v7030
  %v7094 = vadd.f32 %v7093, %v7031
  %v7095 = vadd.f32 %v7094, %v7032
  %v7096 = vadd.f32 %v7095, %v7033
  %v7097 = vadd.f32 %v7096, %v7034
  %v7098 = vadd.f32 %v7097, %v7035
  %v7099 = vadd.f32 %v7098, %v7036
  %v7100 = vadd.f32 %v7099, %v7037
  %v7101 = vadd.f32 %v7100, %v7038
  %v7102 = vadd.f32 %v7101, %v7039
  %v7103 = vadd.f32 %v7102, %v7040
  %v7104 = vadd.f32 %v7103, %v7041
  %v7105 = vadd.f32 %v7104, %v7042
  %v7106 = vadd.f32 %v7105, %v7043
  %v7107 = vadd.f32 %v7106, %v7044
  %v7108 = vadd.f32 %v7107, %v7045
  %v7109 = vadd.f32 %v7108, %v7046
  %v7110 = vadd.f32 %v7109, %v7047
  %v7111 = vadd.f32 %v7110, %v7048
  %v7112 = vadd.f32 %v7111, %v7049
  %v7113 = vadd.f32 %v7112, %v7050
  %v7114 = vadd.f32 %v7113, %v7051
  %v7115 = vadd.f32 %v7114, %v7052
  %v7116 = vadd.f32 %v7115, %v7053
  %v7117 = vadd.f32 %v7116, %v7054
  %v7118 = vadd.f32 %v7117, %v7055
  %v7119 = vadd.f32 %v7118, %v7056
  %v7120 = vadd.f32 %v7119, %v7057
  %v7121 = vadd.f32 %v7120, %v7058
  %v7122 = vadd.f32 %v7121, %v7059
  %v7123 = vadd.f32 %v7122, %v7060
  %v7124 = vadd.f32 %v7123, %v7061
  %v7125 = vadd.f32 %v7124, %v7062
  %v7126 = vadd.f32 %v7125, %v7063
  %v7127 = vadd.f32 %v7126, %v7064
  %v7128 = vadd.f32 %v7127, %v7065
  %v7129 = vadd.f32 %v7128, %v7066
  %v7130 = vadd.f32 %v7129, %v7067
  %v7131 = vadd.f32 %v7130, %v7068
  %v7132 = vadd.f32 %v7131, %v7069
  %v7133 = vadd.f32 %v7132, %v7070
  %v7134 = vadd.f32 %v7133, %v7071
  %v7135 = vadd.f32 %v7134, %v7072
  %v7136 = vadd.f32 %v7135, %v7073
  %v7137 = vadd.f32 %v7136, %v7074
  %v7138 = vadd.f32 %v7137, %v7075
  %v7139 = vrot.slane %v7138, 4
  %v7140 = vadd.f32 %v7138, %v7139
  %v7141 = vrot.slane %v7140, 2
  %v7142 = vadd.f32 %v7140, %v7141
  %v7143 = vrot.slane %v7142, 1
  %v7144 = vadd.f32 %v7142, %v7143
  %7145 = vst [vmem:[%s4] sm:$0x1] %v7144
  // Predicated region
  $region10: #{discriminator_forward.9} parent=0 // pred_check
    _
  $region11: #{discriminator_forward.9} parent=0 // pred_check_branch
    %7147 = sbr.rel (0) target = $region13
  $region12: #{discriminator_forward.9} parent=0 // pred_region
    _
  $region13: #{discriminator_forward.9} parent=0 // pred_fallthru
    _
  // Predicated region
  $region14: #{discriminator_forward.9} parent=0 // pred_check
    _
  $region15: #{discriminator_forward.9} parent=0 // pred_check_branch
    %7149 = sbr.rel (0) target = $region17
  $region16: #{discriminator_forward.9} parent=0 // pred_region
    _
  $region17: #{discriminator_forward.9} parent=0 // pred_fallthru
    _
  // Predicated region
  $region18: #{discriminator_forward.9} parent=0 // pred_check
    _
  $region19: #{discriminator_forward.9} parent=0 // pred_check_branch
    %7151 = sbr.rel (0) target = $region21
  $region20: #{discriminator_forward.9} parent=0 // pred_region
    _
  $region21: #{discriminator_forward.9} parent=0 // pred_fallthru
    _
  // Predicated region
  $region22: #{discriminator_forward.9} parent=0 // pred_check
    _
  $region23: #{discriminator_forward.9} parent=0 // pred_check_branch
    %7153 = sbr.rel (0) target = $region25
  $region24: #{discriminator_forward.9} parent=0 // pred_region
    _
  $region25: #{discriminator_forward.9} parent=0 // pred_fallthru
    _
  // Predicated region
  $region26: #{discriminator_forward.9} parent=0 // pred_check
    _
  $region27: #{discriminator_forward.9} parent=0 // pred_check_branch
    %7155 = sbr.rel (0) target = $region29
  $region28: #{discriminator_forward.9} parent=0 // pred_region
    _
  $region29: #{discriminator_forward.9} parent=0 // pred_fallthru
    _
  // Predicated region
  $region30: #{discriminator_forward.9} parent=0 // pred_check
    _
  $region31: #{discriminator_forward.9} parent=0 // pred_check_branch
    %7157 = sbr.rel (0) target = $region33
  $region32: #{discriminator_forward.9} parent=0 // pred_region
    _
  $region33: #{discriminator_forward.9} parent=0 // pred_fallthru
    _

// kernel: discriminator_forward.10
$region0: #{discriminator_forward.10}
  #allocation0 [shape = 'u32[]', space=smem, size = 0x4, offset = 0x4, fixed_abs, tag = 'smem constant byte address 0x4 - core index']
  #allocation1 [shape = 'u32[72,128]{1,0:T(1,128)}', space=vmem, size = 0x9000, scoped, tag = 'internal scratch']
  %s0 = inlined_call_operand.vmem [shape: bf16[512,128], index: 0, kind: input, shape index: {}]
  %s1 = inlined_call_operand.vmem [shape: f32[1,128], index: 1, kind: input, shape index: {}]
  %s2 = inlined_call_operand.vmem [shape: f32[1,128], index: 2, kind: input, shape index: {}]
  %s3 = inlined_call_operand.vmem [shape: bf16[512,128], index: 3, kind: output, shape index: {}]
  %s4 = sld [smem:[#allocation0]]
  $region22: #{discriminator_forward.10} parent=0
    _
  %s6 = ssub.s32 1, %s4
  %s7 = scalar_select 0, %s6, %s4
  // Predicated region
  $region2: #{discriminator_forward.10} parent=0 // pred_check
    _
  $region3: #{discriminator_forward.10} parent=0 // pred_check_branch
    %9 = sbr.rel (0) target = $region5
  $region4: #{discriminator_forward.10} parent=0 // pred_region
    _
  $region5: #{discriminator_forward.10} parent=0 // pred_fallthru
    _
  // Predicated region
  $region6: #{discriminator_forward.10} parent=0 // pred_check
    _
  $region7: #{discriminator_forward.10} parent=0 // pred_check_branch
    %11 = sbr.rel (0) target = $region9
  $region8: #{discriminator_forward.10} parent=0 // pred_region
    _
  $region9: #{discriminator_forward.10} parent=0 // pred_fallthru
    _
  // Predicated region
  $region10: #{discriminator_forward.10} parent=0 // pred_check
    _
  $region11: #{discriminator_forward.10} parent=0 // pred_check_branch
    %13 = sbr.rel (0) target = $region13
  $region12: #{discriminator_forward.10} parent=0 // pred_region
    _
  $region13: #{discriminator_forward.10} parent=0 // pred_fallthru
    _
  %v14 = vld [vmem:[%s0] sm:$0xf]
  %v15 = vld [vmem:[%s0 + $0x4] sm:$0xf]
  %v16 = vld [vmem:[%s0 + $0x8] sm:$0xf]
  %v17 = vld [vmem:[%s0 + $0xc] sm:$0xf]
  %v18 = vld [vmem:[%s0 + $0x10] sm:$0xf]
  %v19 = vld [vmem:[%s0 + $0x14] sm:$0xf]
  %v20 = vld [vmem:[%s0 + $0x18] sm:$0xf]
  %v21 = vld [vmem:[%s0 + $0x1c] sm:$0xf]
  %v22 = vld [vmem:[%s0 + $0x20] sm:$0xf]
  %v23 = vld [vmem:[%s0 + $0x24] sm:$0xf]
  %v24 = vld [vmem:[%s0 + $0x28] sm:$0xf]
  %v25 = vld [vmem:[%s0 + $0x2c] sm:$0xf]
  %v26 = vld [vmem:[%s0 + $0x30] sm:$0xf]
  %v27 = vld [vmem:[%s0 + $0x34] sm:$0xf]
  %v28 = vld [vmem:[%s0 + $0x38] sm:$0xf]
  %v29 = vld [vmem:[%s0 + $0x3c] sm:$0xf]
  %v30 = vld [vmem:[%s0 + $0x40] sm:$0xf]
  %v31 = vld [vmem:[%s0 + $0x44] sm:$0xf]
  %v32 = vld [vmem:[%s0 + $0x48] sm:$0xf]
  %v33 = vld [vmem:[%s0 + $0x4c] sm:$0xf]
  %v34 = vld [vmem:[%s0 + $0x50] sm:$0xf]
  %v35 = vld [vmem:[%s0 + $0x54] sm:$0xf]
  %v36 = vld [vmem:[%s0 + $0x58] sm:$0xf]
  %v37 = vld [vmem:[%s0 + $0x5c] sm:$0xf]
  %v38 = vld [vmem:[%s0 + $0x60] sm:$0xf]
  %v39 = vld [vmem:[%s0 + $0x64] sm:$0xf]
  %v40 = vld [vmem:[%s0 + $0x68] sm:$0xf]
  %v41 = vld [vmem:[%s0 + $0x6c] sm:$0xf]
  %v42 = vld [vmem:[%s0 + $0x70] sm:$0xf]
  %v43 = vld [vmem:[%s0 + $0x74] sm:$0xf]
  %v44 = vld [vmem:[%s0 + $0x78] sm:$0xf]
  %v45 = vld [vmem:[%s0 + $0x7c] sm:$0xf]
  %v46 = vld [vmem:[%s0 + $0x80] sm:$0xf]
  %v47 = vld [vmem:[%s0 + $0x84] sm:$0xf]
  %v48 = vld [vmem:[%s0 + $0x88] sm:$0xf]
  %v49 = vld [vmem:[%s0 + $0x8c] sm:$0xf]
  %v50 = vld [vmem:[%s0 + $0x90] sm:$0xf]
  %v51 = vld [vmem:[%s0 + $0x94] sm:$0xf]
  %v52 = vld [vmem:[%s0 + $0x98] sm:$0xf]
  %v53 = vld [vmem:[%s0 + $0x9c] sm:$0xf]
  %v54 = vld [vmem:[%s0 + $0xa0] sm:$0xf]
  %v55 = vld [vmem:[%s0 + $0xa4] sm:$0xf]
  %v56 = vld [vmem:[%s0 + $0xa8] sm:$0xf]
  %v57 = vld [vmem:[%s0 + $0xac] sm:$0xf]
  %v58 = vld [vmem:[%s0 + $0xb0] sm:$0xf]
  %v59 = vld [vmem:[%s0 + $0xb4] sm:$0xf]
  %v60 = vld [vmem:[%s0 + $0xb8] sm:$0xf]
  %v61 = vld [vmem:[%s0 + $0xbc] sm:$0xf]
  %v62 = vld [vmem:[%s0 + $0xc0] sm:$0xf]
  %v63 = vld [vmem:[%s0 + $0xc4] sm:$0xf]
  %v64 = vld [vmem:[%s0 + $0xc8] sm:$0xf]
  %v65 = vld [vmem:[%s0 + $0xcc] sm:$0xf]
  %v66 = vld [vmem:[%s0 + $0xd0] sm:$0xf]
  %v67 = vld [vmem:[%s0 + $0xd4] sm:$0xf]
  %v68 = vld [vmem:[%s0 + $0xd8] sm:$0xf]
  %v69 = vld [vmem:[%s0 + $0xdc] sm:$0xf]
  %v70 = vld [vmem:[%s0 + $0xe0] sm:$0xf]
  %v71 = vld [vmem:[%s0 + $0xe4] sm:$0xf]
  %v72 = vld [vmem:[%s0 + $0xe8] sm:$0xf]
  %v73 = vld [vmem:[%s0 + $0xec] sm:$0xf]
  %v74 = vld [vmem:[%s0 + $0xf0] sm:$0xf]
  %v75 = vld [vmem:[%s0 + $0xf4] sm:$0xf]
  %v76 = vld [vmem:[%s0 + $0xf8] sm:$0xf]
  %v77 = vld [vmem:[%s0 + $0xfc] sm:$0xf]
  %v78 = vunpack.c.l.bf16 %v14
  %v79 = vunpack.c.l.bf16 %v15
  %v80 = vunpack.c.l.bf16 %v16
  %v81 = vunpack.c.l.bf16 %v17
  %v82 = vunpack.c.l.bf16 %v18
  %v83 = vunpack.c.l.bf16 %v19
  %v84 = vunpack.c.l.bf16 %v20
  %v85 = vunpack.c.l.bf16 %v21
  %v86 = vunpack.c.l.bf16 %v22
  %v87 = vunpack.c.l.bf16 %v23
  %v88 = vunpack.c.l.bf16 %v24
  %v89 = vunpack.c.l.bf16 %v25
  %v90 = vunpack.c.l.bf16 %v26
  %v91 = vunpack.c.l.bf16 %v27
  %v92 = vunpack.c.l.bf16 %v28
  %v93 = vunpack.c.l.bf16 %v29
  %v94 = vunpack.c.l.bf16 %v30
  %v95 = vunpack.c.l.bf16 %v31
  %v96 = vunpack.c.l.bf16 %v32
  %v97 = vunpack.c.l.bf16 %v33
  %v98 = vunpack.c.l.bf16 %v34
  %v99 = vunpack.c.l.bf16 %v35
  %v100 = vunpack.c.l.bf16 %v36
  %v101 = vunpack.c.l.bf16 %v37
  %v102 = vunpack.c.l.bf16 %v38
  %v103 = vunpack.c.l.bf16 %v39
  %v104 = vunpack.c.l.bf16 %v40
  %v105 = vunpack.c.l.bf16 %v41
  %v106 = vunpack.c.l.bf16 %v42
  %v107 = vunpack.c.l.bf16 %v43
  %v108 = vunpack.c.l.bf16 %v44
  %v109 = vunpack.c.l.bf16 %v45
  %v110 = vunpack.c.l.bf16 %v46
  %v111 = vunpack.c.l.bf16 %v47
  %v112 = vunpack.c.l.bf16 %v48
  %v113 = vunpack.c.l.bf16 %v49
  %v114 = vunpack.c.l.bf16 %v50
  %v115 = vunpack.c.l.bf16 %v51
  %v116 = vunpack.c.l.bf16 %v52
  %v117 = vunpack.c.l.bf16 %v53
  %v118 = vunpack.c.l.bf16 %v54
  %v119 = vunpack.c.l.bf16 %v55
  %v120 = vunpack.c.l.bf16 %v56
  %v121 = vunpack.c.l.bf16 %v57
  %v122 = vunpack.c.l.bf16 %v58
  %v123 = vunpack.c.l.bf16 %v59
  %v124 = vunpack.c.l.bf16 %v60
  %v125 = vunpack.c.l.bf16 %v61
  %v126 = vunpack.c.l.bf16 %v62
  %v127 = vunpack.c.l.bf16 %v63
  %v128 = vunpack.c.l.bf16 %v64
  %v129 = vunpack.c.l.bf16 %v65
  %v130 = vunpack.c.l.bf16 %v66
  %v131 = vunpack.c.l.bf16 %v67
  %v132 = vunpack.c.l.bf16 %v68
  %v133 = vunpack.c.l.bf16 %v69
  %v134 = vunpack.c.l.bf16 %v70
  %v135 = vunpack.c.l.bf16 %v71
  %v136 = vunpack.c.l.bf16 %v72
  %v137 = vunpack.c.l.bf16 %v73
  %v138 = vunpack.c.l.bf16 %v74
  %v139 = vunpack.c.l.bf16 %v75
  %v140 = vunpack.c.l.bf16 %v76
  %v141 = vunpack.c.l.bf16 %v77
  %v142 = vld [vmem:[%s1] sm:$0x1]
  %v144 = vperm.slane %v142, 0
  %v146 = vmul.f32 %v78, %v144
  %v147 = vmul.f32 %v79, %v144
  %v148 = vmul.f32 %v80, %v144
  %v149 = vmul.f32 %v81, %v144
  %v150 = vmul.f32 %v82, %v144
  %v151 = vmul.f32 %v83, %v144
  %v152 = vmul.f32 %v84, %v144
  %v153 = vmul.f32 %v85, %v144
  %v154 = vmul.f32 %v86, %v144
  %v155 = vmul.f32 %v87, %v144
  %v156 = vmul.f32 %v88, %v144
  %v157 = vmul.f32 %v89, %v144
  %v158 = vmul.f32 %v90, %v144
  %v159 = vmul.f32 %v91, %v144
  %v160 = vmul.f32 %v92, %v144
  %v161 = vmul.f32 %v93, %v144
  %v162 = vmul.f32 %v94, %v144
  %v163 = vmul.f32 %v95, %v144
  %v164 = vmul.f32 %v96, %v144
  %v165 = vmul.f32 %v97, %v144
  %v166 = vmul.f32 %v98, %v144
  %v167 = vmul.f32 %v99, %v144
  %v168 = vmul.f32 %v100, %v144
  %v169 = vmul.f32 %v101, %v144
  %v170 = vmul.f32 %v102, %v144
  %v171 = vmul.f32 %v103, %v144
  %v172 = vmul.f32 %v104, %v144
  %v173 = vmul.f32 %v105, %v144
  %v174 = vmul.f32 %v106, %v144
  %v175 = vmul.f32 %v107, %v144
  %v176 = vmul.f32 %v108, %v144
  %v177 = vmul.f32 %v109, %v144
  %v178 = vmul.f32 %v110, %v144
  %v179 = vmul.f32 %v111, %v144
  %v180 = vmul.f32 %v112, %v144
  %v181 = vmul.f32 %v113, %v144
  %v182 = vmul.f32 %v114, %v144
  %v183 = vmul.f32 %v115, %v144
  %v184 = vmul.f32 %v116, %v144
  %v185 = vmul.f32 %v117, %v144
  %v186 = vmul.f32 %v118, %v144
  %v187 = vmul.f32 %v119, %v144
  %v188 = vmul.f32 %v120, %v144
  %v189 = vmul.f32 %v121, %v144
  %v190 = vmul.f32 %v122, %v144
  %v191 = vmul.f32 %v123, %v144
  %v192 = vmul.f32 %v124, %v144
  %v193 = vmul.f32 %v125, %v144
  %v194 = vmul.f32 %v126, %v144
  %v195 = vmul.f32 %v127, %v144
  %v196 = vmul.f32 %v128, %v144
  %v197 = vmul.f32 %v129, %v144
  %v198 = vmul.f32 %v130, %v144
  %v199 = vmul.f32 %v131, %v144
  %v200 = vmul.f32 %v132, %v144
  %v201 = vmul.f32 %v133, %v144
  %v202 = vmul.f32 %v134, %v144
  %v203 = vmul.f32 %v135, %v144
  %v204 = vmul.f32 %v136, %v144
  %v205 = vmul.f32 %v137, %v144
  %v206 = vmul.f32 %v138, %v144
  %v207 = vmul.f32 %v139, %v144
  %v208 = vmul.f32 %v140, %v144
  %v209 = vmul.f32 %v141, %v144
  %v210 = vld [vmem:[%s2] sm:$0x1]
  %v212 = vperm.slane %v210, 0
  %v214 = vadd.f32 %v146, %v212
  %v215 = vadd.f32 %v147, %v212
  %v216 = vadd.f32 %v148, %v212
  %v217 = vadd.f32 %v149, %v212
  %v218 = vadd.f32 %v150, %v212
  %v219 = vadd.f32 %v151, %v212
  %v220 = vadd.f32 %v152, %v212
  %v221 = vadd.f32 %v153, %v212
  %v222 = vadd.f32 %v154, %v212
  %v223 = vadd.f32 %v155, %v212
  %v224 = vadd.f32 %v156, %v212
  %v225 = vadd.f32 %v157, %v212
  %v226 = vadd.f32 %v158, %v212
  %v227 = vadd.f32 %v159, %v212
  %v228 = vadd.f32 %v160, %v212
  %v229 = vadd.f32 %v161, %v212
  %v230 = vadd.f32 %v162, %v212
  %v231 = vadd.f32 %v163, %v212
  %v232 = vadd.f32 %v164, %v212
  %v233 = vadd.f32 %v165, %v212
  %v234 = vadd.f32 %v166, %v212
  %v235 = vadd.f32 %v167, %v212
  %v236 = vadd.f32 %v168, %v212
  %v237 = vadd.f32 %v169, %v212
  %v238 = vadd.f32 %v170, %v212
  %v239 = vadd.f32 %v171, %v212
  %v240 = vadd.f32 %v172, %v212
  %v241 = vadd.f32 %v173, %v212
  %v242 = vadd.f32 %v174, %v212
  %v243 = vadd.f32 %v175, %v212
  %v244 = vadd.f32 %v176, %v212
  %v245 = vadd.f32 %v177, %v212
  %v246 = vadd.f32 %v178, %v212
  %v247 = vadd.f32 %v179, %v212
  %v248 = vadd.f32 %v180, %v212
  %v249 = vadd.f32 %v181, %v212
  %v250 = vadd.f32 %v182, %v212
  %v251 = vadd.f32 %v183, %v212
  %v252 = vadd.f32 %v184, %v212
  %v253 = vadd.f32 %v185, %v212
  %v254 = vadd.f32 %v186, %v212
  %v255 = vadd.f32 %v187, %v212
  %v256 = vadd.f32 %v188, %v212
  %v257 = vadd.f32 %v189, %v212
  %v258 = vadd.f32 %v190, %v212
  %v259 = vadd.f32 %v191, %v212
  %v260 = vadd.f32 %v192, %v212
  %v261 = vadd.f32 %v193, %v212
  %v262 = vadd.f32 %v194, %v212
  %v263 = vadd.f32 %v195, %v212
  %v264 = vadd.f32 %v196, %v212
  %v265 = vadd.f32 %v197, %v212
  %v266 = vadd.f32 %v198, %v212
  %v267 = vadd.f32 %v199, %v212
  %v268 = vadd.f32 %v200, %v212
  %v269 = vadd.f32 %v201, %v212
  %v270 = vadd.f32 %v202, %v212
  %v271 = vadd.f32 %v203, %v212
  %v272 = vadd.f32 %v204, %v212
  %v273 = vadd.f32 %v205, %v212
  %v274 = vadd.f32 %v206, %v212
  %v275 = vadd.f32 %v207, %v212
  %v276 = vadd.f32 %v208, %v212
  %v277 = vadd.f32 %v209, %v212
  %vm278 = vcmp.ge.f32.partialorder %v214, 0.0
  %vm279 = vcmp.ge.f32.partialorder %v215, 0.0
  %vm280 = vcmp.ge.f32.partialorder %v216, 0.0
  %vm281 = vcmp.ge.f32.partialorder %v217, 0.0
  %vm282 = vcmp.ge.f32.partialorder %v218, 0.0
  %vm283 = vcmp.ge.f32.partialorder %v219, 0.0
  %vm284 = vcmp.ge.f32.partialorder %v220, 0.0
  %vm285 = vcmp.ge.f32.partialorder %v221, 0.0
  %vm286 = vcmp.ge.f32.partialorder %v222, 0.0
  %vm287 = vcmp.ge.f32.partialorder %v223, 0.0
  %vm288 = vcmp.ge.f32.partialorder %v224, 0.0
  %vm289 = vcmp.ge.f32.partialorder %v225, 0.0
  %vm290 = vcmp.ge.f32.partialorder %v226, 0.0
  %vm291 = vcmp.ge.f32.partialorder %v227, 0.0
  %vm292 = vcmp.ge.f32.partialorder %v228, 0.0
  %vm293 = vcmp.ge.f32.partialorder %v229, 0.0
  %vm294 = vcmp.ge.f32.partialorder %v230, 0.0
  %vm295 = vcmp.ge.f32.partialorder %v231, 0.0
  %vm296 = vcmp.ge.f32.partialorder %v232, 0.0
  %vm297 = vcmp.ge.f32.partialorder %v233, 0.0
  %vm298 = vcmp.ge.f32.partialorder %v234, 0.0
  %vm299 = vcmp.ge.f32.partialorder %v235, 0.0
  %vm300 = vcmp.ge.f32.partialorder %v236, 0.0
  %vm301 = vcmp.ge.f32.partialorder %v237, 0.0
  %vm302 = vcmp.ge.f32.partialorder %v238, 0.0
  %vm303 = vcmp.ge.f32.partialorder %v239, 0.0
  %vm304 = vcmp.ge.f32.partialorder %v240, 0.0
  %vm305 = vcmp.ge.f32.partialorder %v241, 0.0
  %vm306 = vcmp.ge.f32.partialorder %v242, 0.0
  %vm307 = vcmp.ge.f32.partialorder %v243, 0.0
  %vm308 = vcmp.ge.f32.partialorder %v244, 0.0
  %vm309 = vcmp.ge.f32.partialorder %v245, 0.0
  %vm310 = vcmp.ge.f32.partialorder %v246, 0.0
  %vm311 = vcmp.ge.f32.partialorder %v247, 0.0
  %vm312 = vcmp.ge.f32.partialorder %v248, 0.0
  %vm313 = vcmp.ge.f32.partialorder %v249, 0.0
  %vm314 = vcmp.ge.f32.partialorder %v250, 0.0
  %vm315 = vcmp.ge.f32.partialorder %v251, 0.0
  %vm316 = vcmp.ge.f32.partialorder %v252, 0.0
  %vm317 = vcmp.ge.f32.partialorder %v253, 0.0
  %vm318 = vcmp.ge.f32.partialorder %v254, 0.0
  %vm319 = vcmp.ge.f32.partialorder %v255, 0.0
  %vm320 = vcmp.ge.f32.partialorder %v256, 0.0
  %vm321 = vcmp.ge.f32.partialorder %v257, 0.0
  %vm322 = vcmp.ge.f32.partialorder %v258, 0.0
  %vm323 = vcmp.ge.f32.partialorder %v259, 0.0
  %vm324 = vcmp.ge.f32.partialorder %v260, 0.0
  %vm325 = vcmp.ge.f32.partialorder %v261, 0.0
  %vm326 = vcmp.ge.f32.partialorder %v262, 0.0
  %vm327 = vcmp.ge.f32.partialorder %v263, 0.0
  %vm328 = vcmp.ge.f32.partialorder %v264, 0.0
  %vm329 = vcmp.ge.f32.partialorder %v265, 0.0
  %vm330 = vcmp.ge.f32.partialorder %v266, 0.0
  %vm331 = vcmp.ge.f32.partialorder %v267, 0.0
  %vm332 = vcmp.ge.f32.partialorder %v268, 0.0
  %vm333 = vcmp.ge.f32.partialorder %v269, 0.0
  %vm334 = vcmp.ge.f32.partialorder %v270, 0.0
  %vm335 = vcmp.ge.f32.partialorder %v271, 0.0
  %vm336 = vcmp.ge.f32.partialorder %v272, 0.0
  %vm337 = vcmp.ge.f32.partialorder %v273, 0.0
  %vm338 = vcmp.ge.f32.partialorder %v274, 0.0
  %vm339 = vcmp.ge.f32.partialorder %v275, 0.0
  %vm340 = vcmp.ge.f32.partialorder %v276, 0.0
  %vm341 = vcmp.ge.f32.partialorder %v277, 0.0
  %v342 = vmul.f32 %v214, 0.2
  %v343 = vmul.f32 %v215, 0.2
  %v344 = vmul.f32 %v216, 0.2
  %v345 = vmul.f32 %v217, 0.2
  %v346 = vmul.f32 %v218, 0.2
  %v347 = vmul.f32 %v219, 0.2
  %v348 = vmul.f32 %v220, 0.2
  %v349 = vmul.f32 %v221, 0.2
  %v350 = vmul.f32 %v222, 0.2
  %v351 = vmul.f32 %v223, 0.2
  %v352 = vmul.f32 %v224, 0.2
  %v353 = vmul.f32 %v225, 0.2
  %v354 = vmul.f32 %v226, 0.2
  %v355 = vmul.f32 %v227, 0.2
  %v356 = vmul.f32 %v228, 0.2
  %v357 = vmul.f32 %v229, 0.2
  %v358 = vmul.f32 %v230, 0.2
  %v359 = vmul.f32 %v231, 0.2
  %v360 = vmul.f32 %v232, 0.2
  %v361 = vmul.f32 %v233, 0.2
  %v362 = vmul.f32 %v234, 0.2
  %v363 = vmul.f32 %v235, 0.2
  %v364 = vmul.f32 %v236, 0.2
  %v365 = vmul.f32 %v237, 0.2
  %v366 = vmul.f32 %v238, 0.2
  %v367 = vmul.f32 %v239, 0.2
  %v368 = vmul.f32 %v240, 0.2
  %v369 = vmul.f32 %v241, 0.2
  %v370 = vmul.f32 %v242, 0.2
  %v371 = vmul.f32 %v243, 0.2
  %v372 = vmul.f32 %v244, 0.2
  %v373 = vmul.f32 %v245, 0.2
  %v374 = vmul.f32 %v246, 0.2
  %v375 = vmul.f32 %v247, 0.2
  %v376 = vmul.f32 %v248, 0.2
  %v377 = vmul.f32 %v249, 0.2
  %v378 = vmul.f32 %v250, 0.2
  %v379 = vmul.f32 %v251, 0.2
  %v380 = vmul.f32 %v252, 0.2
  %v381 = vmul.f32 %v253, 0.2
  %v382 = vmul.f32 %v254, 0.2
  %v383 = vmul.f32 %v255, 0.2
  %v384 = vmul.f32 %v256, 0.2
  %v385 = vmul.f32 %v257, 0.2
  %v386 = vmul.f32 %v258, 0.2
  %v387 = vmul.f32 %v259, 0.2
  %v388 = vmul.f32 %v260, 0.2
  %v389 = vmul.f32 %v261, 0.2
  %v390 = vmul.f32 %v262, 0.2
  %v391 = vmul.f32 %v263, 0.2
  %v392 = vmul.f32 %v264, 0.2
  %v393 = vmul.f32 %v265, 0.2
  %v394 = vmul.f32 %v266, 0.2
  %v395 = vmul.f32 %v267, 0.2
  %v396 = vmul.f32 %v268, 0.2
  %v397 = vmul.f32 %v269, 0.2
  %v398 = vmul.f32 %v270, 0.2
  %v399 = vmul.f32 %v271, 0.2
  %v400 = vmul.f32 %v272, 0.2
  %v401 = vmul.f32 %v273, 0.2
  %v402 = vmul.f32 %v274, 0.2
  %v403 = vmul.f32 %v275, 0.2
  %v404 = vmul.f32 %v276, 0.2
  %v405 = vmul.f32 %v277, 0.2
  %v406 = vsel %vm278, %v214, %v342
  %v407 = vsel %vm279, %v215, %v343
  %v408 = vsel %vm280, %v216, %v344
  %v409 = vsel %vm281, %v217, %v345
  %v410 = vsel %vm282, %v218, %v346
  %v411 = vsel %vm283, %v219, %v347
  %v412 = vsel %vm284, %v220, %v348
  %v413 = vsel %vm285, %v221, %v349
  %v414 = vsel %vm286, %v222, %v350
  %v415 = vsel %vm287, %v223, %v351
  %v416 = vsel %vm288, %v224, %v352
  %v417 = vsel %vm289, %v225, %v353
  %v418 = vsel %vm290, %v226, %v354
  %v419 = vsel %vm291, %v227, %v355
  %v420 = vsel %vm292, %v228, %v356
  %v421 = vsel %vm293, %v229, %v357
  %v422 = vsel %vm294, %v230, %v358
  %v423 = vsel %vm295, %v231, %v359
  %v424 = vsel %vm296, %v232, %v360
  %v425 = vsel %vm297, %v233, %v361
  %v426 = vsel %vm298, %v234, %v362
  %v427 = vsel %vm299, %v235, %v363
  %v428 = vsel %vm300, %v236, %v364
  %v429 = vsel %vm301, %v237, %v365
  %v430 = vsel %vm302, %v238, %v366
  %v431 = vsel %vm303, %v239, %v367
  %v432 = vsel %vm304, %v240, %v368
  %v433 = vsel %vm305, %v241, %v369
  %v434 = vsel %vm306, %v242, %v370
  %v435 = vsel %vm307, %v243, %v371
  %v436 = vsel %vm308, %v244, %v372
  %v437 = vsel %vm309, %v245, %v373
  %v438 = vsel %vm310, %v246, %v374
  %v439 = vsel %vm311, %v247, %v375
  %v440 = vsel %vm312, %v248, %v376
  %v441 = vsel %vm313, %v249, %v377
  %v442 = vsel %vm314, %v250, %v378
  %v443 = vsel %vm315, %v251, %v379
  %v444 = vsel %vm316, %v252, %v380
  %v445 = vsel %vm317, %v253, %v381
  %v446 = vsel %vm318, %v254, %v382
  %v447 = vsel %vm319, %v255, %v383
  %v448 = vsel %vm320, %v256, %v384
  %v449 = vsel %vm321, %v257, %v385
  %v450 = vsel %vm322, %v258, %v386
  %v451 = vsel %vm323, %v259, %v387
  %v452 = vsel %vm324, %v260, %v388
  %v453 = vsel %vm325, %v261, %v389
  %v454 = vsel %vm326, %v262, %v390
  %v455 = vsel %vm327, %v263, %v391
  %v456 = vsel %vm328, %v264, %v392
  %v457 = vsel %vm329, %v265, %v393
  %v458 = vsel %vm330, %v266, %v394
  %v459 = vsel %vm331, %v267, %v395
  %v460 = vsel %vm332, %v268, %v396
  %v461 = vsel %vm333, %v269, %v397
  %v462 = vsel %vm334, %v270, %v398
  %v463 = vsel %vm335, %v271, %v399
  %v464 = vsel %vm336, %v272, %v400
  %v465 = vsel %vm337, %v273, %v401
  %v466 = vsel %vm338, %v274, %v402
  %v467 = vsel %vm339, %v275, %v403
  %v468 = vsel %vm340, %v276, %v404
  %v469 = vsel %vm341, %v277, %v405
  %v470 = vpack.c.bf16 %v406, %v406
  %v471 = vpack.c.bf16 %v407, %v407
  %v472 = vpack.c.bf16 %v408, %v408
  %v473 = vpack.c.bf16 %v409, %v409
  %v474 = vpack.c.bf16 %v410, %v410
  %v475 = vpack.c.bf16 %v411, %v411
  %v476 = vpack.c.bf16 %v412, %v412
  %v477 = vpack.c.bf16 %v413, %v413
  %v478 = vpack.c.bf16 %v414, %v414
  %v479 = vpack.c.bf16 %v415, %v415
  %v480 = vpack.c.bf16 %v416, %v416
  %v481 = vpack.c.bf16 %v417, %v417
  %v482 = vpack.c.bf16 %v418, %v418
  %v483 = vpack.c.bf16 %v419, %v419
  %v484 = vpack.c.bf16 %v420, %v420
  %v485 = vpack.c.bf16 %v421, %v421
  %v486 = vpack.c.bf16 %v422, %v422
  %v487 = vpack.c.bf16 %v423, %v423
  %v488 = vpack.c.bf16 %v424, %v424
  %v489 = vpack.c.bf16 %v425, %v425
  %v490 = vpack.c.bf16 %v426, %v426
  %v491 = vpack.c.bf16 %v427, %v427
  %v492 = vpack.c.bf16 %v428, %v428
  %v493 = vpack.c.bf16 %v429, %v429
  %v494 = vpack.c.bf16 %v430, %v430
  %v495 = vpack.c.bf16 %v431, %v431
  %v496 = vpack.c.bf16 %v432, %v432
  %v497 = vpack.c.bf16 %v433, %v433
  %v498 = vpack.c.bf16 %v434, %v434
  %v499 = vpack.c.bf16 %v435, %v435
  %v500 = vpack.c.bf16 %v436, %v436
  %v501 = vpack.c.bf16 %v437, %v437
  %v502 = vpack.c.bf16 %v438, %v438
  %v503 = vpack.c.bf16 %v439, %v439
  %v504 = vpack.c.bf16 %v440, %v440
  %v505 = vpack.c.bf16 %v441, %v441
  %v506 = vpack.c.bf16 %v442, %v442
  %v507 = vpack.c.bf16 %v443, %v443
  %v508 = vpack.c.bf16 %v444, %v444
  %v509 = vpack.c.bf16 %v445, %v445
  %v510 = vpack.c.bf16 %v446, %v446
  %v511 = vpack.c.bf16 %v447, %v447
  %v512 = vpack.c.bf16 %v448, %v448
  %v513 = vpack.c.bf16 %v449, %v449
  %v514 = vpack.c.bf16 %v450, %v450
  %v515 = vpack.c.bf16 %v451, %v451
  %v516 = vpack.c.bf16 %v452, %v452
  %v517 = vpack.c.bf16 %v453, %v453
  %v518 = vpack.c.bf16 %v454, %v454
  %v519 = vpack.c.bf16 %v455, %v455
  %v520 = vpack.c.bf16 %v456, %v456
  %v521 = vpack.c.bf16 %v457, %v457
  %v522 = vpack.c.bf16 %v458, %v458
  %v523 = vpack.c.bf16 %v459, %v459
  %v524 = vpack.c.bf16 %v460, %v460
  %v525 = vpack.c.bf16 %v461, %v461
  %v526 = vpack.c.bf16 %v462, %v462
  %v527 = vpack.c.bf16 %v463, %v463
  %v528 = vpack.c.bf16 %v464, %v464
  %v529 = vpack.c.bf16 %v465, %v465
  %v530 = vpack.c.bf16 %v466, %v466
  %v531 = vpack.c.bf16 %v467, %v467
  %v532 = vpack.c.bf16 %v468, %v468
  %v533 = vpack.c.bf16 %v469, %v469
  %534 = vst [vmem:[%s3] sm:$0xf] %v470
  %535 = vst [vmem:[%s3 + $0x4] sm:$0xf] %v471
  %536 = vst [vmem:[%s3 + $0x8] sm:$0xf] %v472
  %537 = vst [vmem:[%s3 + $0xc] sm:$0xf] %v473
  %538 = vst [vmem:[%s3 + $0x10] sm:$0xf] %v474
  %539 = vst [vmem:[%s3 + $0x14] sm:$0xf] %v475
  %540 = vst [vmem:[%s3 + $0x18] sm:$0xf] %v476
  %541 = vst [vmem:[%s3 + $0x1c] sm:$0xf] %v477
  %542 = vst [vmem:[%s3 + $0x20] sm:$0xf] %v478
  %543 = vst [vmem:[%s3 + $0x24] sm:$0xf] %v479
  %544 = vst [vmem:[%s3 + $0x28] sm:$0xf] %v480
  %545 = vst [vmem:[%s3 + $0x2c] sm:$0xf] %v481
  %546 = vst [vmem:[%s3 + $0x30] sm:$0xf] %v482
  %547 = vst [vmem:[%s3 + $0x34] sm:$0xf] %v483
  %548 = vst [vmem:[%s3 + $0x38] sm:$0xf] %v484
  %549 = vst [vmem:[%s3 + $0x3c] sm:$0xf] %v485
  %550 = vst [vmem:[%s3 + $0x40] sm:$0xf] %v486
  %551 = vst [vmem:[%s3 + $0x44] sm:$0xf] %v487
  %552 = vst [vmem:[%s3 + $0x48] sm:$0xf] %v488
  %553 = vst [vmem:[%s3 + $0x4c] sm:$0xf] %v489
  %554 = vst [vmem:[%s3 + $0x50] sm:$0xf] %v490
  %555 = vst [vmem:[%s3 + $0x54] sm:$0xf] %v491
  %556 = vst [vmem:[%s3 + $0x58] sm:$0xf] %v492
  %557 = vst [vmem:[%s3 + $0x5c] sm:$0xf] %v493
  %558 = vst [vmem:[%s3 + $0x60] sm:$0xf] %v494
  %559 = vst [vmem:[%s3 + $0x64] sm:$0xf] %v495
  %560 = vst [vmem:[%s3 + $0x68] sm:$0xf] %v496
  %561 = vst [vmem:[%s3 + $0x6c] sm:$0xf] %v497
  %562 = vst [vmem:[%s3 + $0x70] sm:$0xf] %v498
  %563 = vst [vmem:[%s3 + $0x74] sm:$0xf] %v499
  %564 = vst [vmem:[%s3 + $0x78] sm:$0xf] %v500
  %565 = vst [vmem:[%s3 + $0x7c] sm:$0xf] %v501
  %566 = vst [vmem:[%s3 + $0x80] sm:$0xf] %v502
  %567 = vst [vmem:[%s3 + $0x84] sm:$0xf] %v503
  %568 = vst [vmem:[%s3 + $0x88] sm:$0xf] %v504
  %569 = vst [vmem:[%s3 + $0x8c] sm:$0xf] %v505
  %570 = vst [vmem:[%s3 + $0x90] sm:$0xf] %v506
  %571 = vst [vmem:[%s3 + $0x94] sm:$0xf] %v507
  %572 = vst [vmem:[%s3 + $0x98] sm:$0xf] %v508
  %573 = vst [vmem:[%s3 + $0x9c] sm:$0xf] %v509
  %574 = vst [vmem:[%s3 + $0xa0] sm:$0xf] %v510
  %575 = vst [vmem:[%s3 + $0xa4] sm:$0xf] %v511
  %576 = vst [vmem:[%s3 + $0xa8] sm:$0xf] %v512
  %577 = vst [vmem:[%s3 + $0xac] sm:$0xf] %v513
  %578 = vst [vmem:[%s3 + $0xb0] sm:$0xf] %v514
  %579 = vst [vmem:[%s3 + $0xb4] sm:$0xf] %v515
  %580 = vst [vmem:[%s3 + $0xb8] sm:$0xf] %v516
  %581 = vst [vmem:[%s3 + $0xbc] sm:$0xf] %v517
  %582 = vst [vmem:[%s3 + $0xc0] sm:$0xf] %v518
  %583 = vst [vmem:[%s3 + $0xc4] sm:$0xf] %v519
  %584 = vst [vmem:[%s3 + $0xc8] sm:$0xf] %v520
  %585 = vst [vmem:[%s3 + $0xcc] sm:$0xf] %v521
  %586 = vst [vmem:[%s3 + $0xd0] sm:$0xf] %v522
  %587 = vst [vmem:[%s3 + $0xd4] sm:$0xf] %v523
  %588 = vst [vmem:[%s3 + $0xd8] sm:$0xf] %v524
  %589 = vst [vmem:[%s3 + $0xdc] sm:$0xf] %v525
  %590 = vst [vmem:[%s3 + $0xe0] sm:$0xf] %v526
  %591 = vst [vmem:[%s3 + $0xe4] sm:$0xf] %v527
  %592 = vst [vmem:[%s3 + $0xe8] sm:$0xf] %v528
  %593 = vst [vmem:[%s3 + $0xec] sm:$0xf] %v529
  %594 = vst [vmem:[%s3 + $0xf0] sm:$0xf] %v530
  %595 = vst [vmem:[%s3 + $0xf4] sm:$0xf] %v531
  %596 = vst [vmem:[%s3 + $0xf8] sm:$0xf] %v532
  %597 = vst [vmem:[%s3 + $0xfc] sm:$0xf] %v533
  // Predicated region
  $region14: #{discriminator_forward.10} parent=0 // pred_check
    _
  $region15: #{discriminator_forward.10} parent=0 // pred_check_branch
    %599 = sbr.rel (0) target = $region17
  $region16: #{discriminator_forward.10} parent=0 // pred_region
    _
  $region17: #{discriminator_forward.10} parent=0 // pred_fallthru
    _
  // Predicated region
  $region18: #{discriminator_forward.10} parent=0 // pred_check
    _
  $region19: #{discriminator_forward.10} parent=0 // pred_check_branch
    %601 = sbr.rel (0) target = $region21
  $region20: #{discriminator_forward.10} parent=0 // pred_region
    _
  $region21: #{discriminator_forward.10} parent=0 // pred_fallthru
    _

// kernel: discriminator_forward.12
$region0: #{discriminator_forward.12}
  #allocation0 [shape = 'u32[]', space=smem, size = 0x4, offset = 0x4, fixed_abs, tag = 'smem constant byte address 0x4 - core index']
  #allocation1 [shape = 'u32[72,128]{1,0:T(1,128)}', space=vmem, size = 0x9000, scoped, tag = 'internal scratch']
  %s0 = inlined_call_operand.vmem [shape: bf16[128,128], index: 0, kind: input, shape index: {}]
  %s1 = inlined_call_operand.vmem [shape: f32[1,128], index: 1, kind: input, shape index: {}]
  %s2 = inlined_call_operand.vmem [shape: f32[1,128], index: 2, kind: input, shape index: {}]
  %s3 = inlined_call_operand.vmem [shape: bf16[128,128], index: 3, kind: output, shape index: {}]
  %s4 = sld [smem:[#allocation0]]
  $region22: #{discriminator_forward.12} parent=0
    _
  %s6 = ssub.s32 1, %s4
  %s7 = scalar_select 0, %s6, %s4
  // Predicated region
  $region2: #{discriminator_forward.12} parent=0 // pred_check
    _
  $region3: #{discriminator_forward.12} parent=0 // pred_check_branch
    %9 = sbr.rel (0) target = $region5
  $region4: #{discriminator_forward.12} parent=0 // pred_region
    _
  $region5: #{discriminator_forward.12} parent=0 // pred_fallthru
    _
  // Predicated region
  $region6: #{discriminator_forward.12} parent=0 // pred_check
    _
  $region7: #{discriminator_forward.12} parent=0 // pred_check_branch
    %11 = sbr.rel (0) target = $region9
  $region8: #{discriminator_forward.12} parent=0 // pred_region
    _
  $region9: #{discriminator_forward.12} parent=0 // pred_fallthru
    _
  // Predicated region
  $region10: #{discriminator_forward.12} parent=0 // pred_check
    _
  $region11: #{discriminator_forward.12} parent=0 // pred_check_branch
    %13 = sbr.rel (0) target = $region13
  $region12: #{discriminator_forward.12} parent=0 // pred_region
    _
  $region13: #{discriminator_forward.12} parent=0 // pred_fallthru
    _
  %v14 = vld [vmem:[%s0] sm:$0xf]
  %v15 = vld [vmem:[%s0 + $0x4] sm:$0xf]
  %v16 = vld [vmem:[%s0 + $0x8] sm:$0xf]
  %v17 = vld [vmem:[%s0 + $0xc] sm:$0xf]
  %v18 = vld [vmem:[%s0 + $0x10] sm:$0xf]
  %v19 = vld [vmem:[%s0 + $0x14] sm:$0xf]
  %v20 = vld [vmem:[%s0 + $0x18] sm:$0xf]
  %v21 = vld [vmem:[%s0 + $0x1c] sm:$0xf]
  %v22 = vld [vmem:[%s0 + $0x20] sm:$0xf]
  %v23 = vld [vmem:[%s0 + $0x24] sm:$0xf]
  %v24 = vld [vmem:[%s0 + $0x28] sm:$0xf]
  %v25 = vld [vmem:[%s0 + $0x2c] sm:$0xf]
  %v26 = vld [vmem:[%s0 + $0x30] sm:$0xf]
  %v27 = vld [vmem:[%s0 + $0x34] sm:$0xf]
  %v28 = vld [vmem:[%s0 + $0x38] sm:$0xf]
  %v29 = vld [vmem:[%s0 + $0x3c] sm:$0xf]
  %v30 = vunpack.c.l.bf16 %v14
  %v31 = vunpack.c.l.bf16 %v15
  %v32 = vunpack.c.l.bf16 %v16
  %v33 = vunpack.c.l.bf16 %v17
  %v34 = vunpack.c.l.bf16 %v18
  %v35 = vunpack.c.l.bf16 %v19
  %v36 = vunpack.c.l.bf16 %v20
  %v37 = vunpack.c.l.bf16 %v21
  %v38 = vunpack.c.l.bf16 %v22
  %v39 = vunpack.c.l.bf16 %v23
  %v40 = vunpack.c.l.bf16 %v24
  %v41 = vunpack.c.l.bf16 %v25
  %v42 = vunpack.c.l.bf16 %v26
  %v43 = vunpack.c.l.bf16 %v27
  %v44 = vunpack.c.l.bf16 %v28
  %v45 = vunpack.c.l.bf16 %v29
  %v46 = vld [vmem:[%s1] sm:$0x1]
  %v48 = vperm.slane %v46, 0
  %v50 = vmul.f32 %v30, %v48
  %v51 = vmul.f32 %v31, %v48
  %v52 = vmul.f32 %v32, %v48
  %v53 = vmul.f32 %v33, %v48
  %v54 = vmul.f32 %v34, %v48
  %v55 = vmul.f32 %v35, %v48
  %v56 = vmul.f32 %v36, %v48
  %v57 = vmul.f32 %v37, %v48
  %v58 = vmul.f32 %v38, %v48
  %v59 = vmul.f32 %v39, %v48
  %v60 = vmul.f32 %v40, %v48
  %v61 = vmul.f32 %v41, %v48
  %v62 = vmul.f32 %v42, %v48
  %v63 = vmul.f32 %v43, %v48
  %v64 = vmul.f32 %v44, %v48
  %v65 = vmul.f32 %v45, %v48
  %v66 = vld [vmem:[%s2] sm:$0x1]
  %v68 = vperm.slane %v66, 0
  %v70 = vadd.f32 %v50, %v68
  %v71 = vadd.f32 %v51, %v68
  %v72 = vadd.f32 %v52, %v68
  %v73 = vadd.f32 %v53, %v68
  %v74 = vadd.f32 %v54, %v68
  %v75 = vadd.f32 %v55, %v68
  %v76 = vadd.f32 %v56, %v68
  %v77 = vadd.f32 %v57, %v68
  %v78 = vadd.f32 %v58, %v68
  %v79 = vadd.f32 %v59, %v68
  %v80 = vadd.f32 %v60, %v68
  %v81 = vadd.f32 %v61, %v68
  %v82 = vadd.f32 %v62, %v68
  %v83 = vadd.f32 %v63, %v68
  %v84 = vadd.f32 %v64, %v68
  %v85 = vadd.f32 %v65, %v68
  %vm86 = vcmp.ge.f32.partialorder %v70, 0.0
  %vm87 = vcmp.ge.f32.partialorder %v71, 0.0
  %vm88 = vcmp.ge.f32.partialorder %v72, 0.0
  %vm89 = vcmp.ge.f32.partialorder %v73, 0.0
  %vm90 = vcmp.ge.f32.partialorder %v74, 0.0
  %vm91 = vcmp.ge.f32.partialorder %v75, 0.0
  %vm92 = vcmp.ge.f32.partialorder %v76, 0.0
  %vm93 = vcmp.ge.f32.partialorder %v77, 0.0
  %vm94 = vcmp.ge.f32.partialorder %v78, 0.0
  %vm95 = vcmp.ge.f32.partialorder %v79, 0.0
  %vm96 = vcmp.ge.f32.partialorder %v80, 0.0
  %vm97 = vcmp.ge.f32.partialorder %v81, 0.0
  %vm98 = vcmp.ge.f32.partialorder %v82, 0.0
  %vm99 = vcmp.ge.f32.partialorder %v83, 0.0
  %vm100 = vcmp.ge.f32.partialorder %v84, 0.0
  %vm101 = vcmp.ge.f32.partialorder %v85, 0.0
  %v102 = vmul.f32 %v70, 0.2
  %v103 = vmul.f32 %v71, 0.2
  %v104 = vmul.f32 %v72, 0.2
  %v105 = vmul.f32 %v73, 0.2
  %v106 = vmul.f32 %v74, 0.2
  %v107 = vmul.f32 %v75, 0.2
  %v108 = vmul.f32 %v76, 0.2
  %v109 = vmul.f32 %v77, 0.2
  %v110 = vmul.f32 %v78, 0.2
  %v111 = vmul.f32 %v79, 0.2
  %v112 = vmul.f32 %v80, 0.2
  %v113 = vmul.f32 %v81, 0.2
  %v114 = vmul.f32 %v82, 0.2
  %v115 = vmul.f32 %v83, 0.2
  %v116 = vmul.f32 %v84, 0.2
  %v117 = vmul.f32 %v85, 0.2
  %v118 = vsel %vm86, %v70, %v102
  %v119 = vsel %vm87, %v71, %v103
  %v120 = vsel %vm88, %v72, %v104
  %v121 = vsel %vm89, %v73, %v105
  %v122 = vsel %vm90, %v74, %v106
  %v123 = vsel %vm91, %v75, %v107
  %v124 = vsel %vm92, %v76, %v108
  %v125 = vsel %vm93, %v77, %v109
  %v126 = vsel %vm94, %v78, %v110
  %v127 = vsel %vm95, %v79, %v111
  %v128 = vsel %vm96, %v80, %v112
  %v129 = vsel %vm97, %v81, %v113
  %v130 = vsel %vm98, %v82, %v114
  %v131 = vsel %vm99, %v83, %v115
  %v132 = vsel %vm100, %v84, %v116
  %v133 = vsel %vm101, %v85, %v117
  %v134 = vpack.c.bf16 %v118, %v118
  %v135 = vpack.c.bf16 %v119, %v119
  %v136 = vpack.c.bf16 %v120, %v120
  %v137 = vpack.c.bf16 %v121, %v121
  %v138 = vpack.c.bf16 %v122, %v122
  %v139 = vpack.c.bf16 %v123, %v123
  %v140 = vpack.c.bf16 %v124, %v124
  %v141 = vpack.c.bf16 %v125, %v125
  %v142 = vpack.c.bf16 %v126, %v126
  %v143 = vpack.c.bf16 %v127, %v127
  %v144 = vpack.c.bf16 %v128, %v128
  %v145 = vpack.c.bf16 %v129, %v129
  %v146 = vpack.c.bf16 %v130, %v130
  %v147 = vpack.c.bf16 %v131, %v131
  %v148 = vpack.c.bf16 %v132, %v132
  %v149 = vpack.c.bf16 %v133, %v133
  %150 = vst [vmem:[%s3] sm:$0xf] %v134
  %151 = vst [vmem:[%s3 + $0x4] sm:$0xf] %v135
  %152 = vst [vmem:[%s3 + $0x8] sm:$0xf] %v136
  %153 = vst [vmem:[%s3 + $0xc] sm:$0xf] %v137
  %154 = vst [vmem:[%s3 + $0x10] sm:$0xf] %v138
  %155 = vst [vmem:[%s3 + $0x14] sm:$0xf] %v139
  %156 = vst [vmem:[%s3 + $0x18] sm:$0xf] %v140
  %157 = vst [vmem:[%s3 + $0x1c] sm:$0xf] %v141
  %158 = vst [vmem:[%s3 + $0x20] sm:$0xf] %v142
  %159 = vst [vmem:[%s3 + $0x24] sm:$0xf] %v143
  %160 = vst [vmem:[%s3 + $0x28] sm:$0xf] %v144
  %161 = vst [vmem:[%s3 + $0x2c] sm:$0xf] %v145
  %162 = vst [vmem:[%s3 + $0x30] sm:$0xf] %v146
  %163 = vst [vmem:[%s3 + $0x34] sm:$0xf] %v147
  %164 = vst [vmem:[%s3 + $0x38] sm:$0xf] %v148
  %165 = vst [vmem:[%s3 + $0x3c] sm:$0xf] %v149
  // Predicated region
  $region14: #{discriminator_forward.12} parent=0 // pred_check
    _
  $region15: #{discriminator_forward.12} parent=0 // pred_check_branch
    %167 = sbr.rel (0) target = $region17
  $region16: #{discriminator_forward.12} parent=0 // pred_region
    _
  $region17: #{discriminator_forward.12} parent=0 // pred_fallthru
    _
  // Predicated region
  $region18: #{discriminator_forward.12} parent=0 // pred_check
    _
  $region19: #{discriminator_forward.12} parent=0 // pred_check_branch
    %169 = sbr.rel (0) target = $region21
  $region20: #{discriminator_forward.12} parent=0 // pred_region
    _
  $region21: #{discriminator_forward.12} parent=0 // pred_fallthru
    _

// kernel: discriminator_forward.11
$region0: #{discriminator_forward.11}
  #allocation0 [shape = 'u32[]', space=smem, size = 0x4, offset = 0x4, fixed_abs, tag = 'smem constant byte address 0x4 - core index']
  #allocation1 [shape = 'u32[72,128]{1,0:T(1,128)}', space=vmem, size = 0x9000, scoped, tag = 'internal scratch']
  %s0 = inlined_call_operand.vmem [shape: bf16[128,2048], index: 0, kind: input, shape index: {}]
  %s1 = inlined_call_operand.vmem [shape: bf16[2048,128], index: 1, kind: input, shape index: {}]
  %s2 = inlined_call_operand.vmem [shape: bf16[128,128], index: 2, kind: output, shape index: {0}]
  %s3 = inlined_call_operand.vmem [shape: f32[1,1,128], index: 3, kind: output, shape index: {1}]
  %s4 = inlined_call_operand.vmem [shape: f32[1,1,128], index: 4, kind: output, shape index: {2}]
  %5 = xla_tuple %s2, %s3, %s4
  %s6 = sld [smem:[#allocation0]]
  $region34: #{discriminator_forward.11} parent=0
    _
  %s8 = ssub.s32 1, %s6
  %s9 = scalar_select 0, %s8, %s6
  // Predicated region
  $region2: #{discriminator_forward.11} parent=0 // pred_check
    _
  $region3: #{discriminator_forward.11} parent=0 // pred_check_branch
    %11 = sbr.rel (0) target = $region5
  $region4: #{discriminator_forward.11} parent=0 // pred_region
    _
  $region5: #{discriminator_forward.11} parent=0 // pred_fallthru
    _
  // Predicated region
  $region6: #{discriminator_forward.11} parent=0 // pred_check
    _
  $region7: #{discriminator_forward.11} parent=0 // pred_check_branch
    %13 = sbr.rel (0) target = $region9
  $region8: #{discriminator_forward.11} parent=0 // pred_region
    _
  $region9: #{discriminator_forward.11} parent=0 // pred_fallthru
    _
  %v14 = vld [vmem:[%s0] sm:$0xff]
  %v15 = vld [vmem:[%s0 + $0x8] sm:$0xff]
  %v16 = vld [vmem:[%s0 + $0x10] sm:$0xff]
  %v17 = vld [vmem:[%s0 + $0x18] sm:$0xff]
  %v18 = vld [vmem:[%s0 + $0x20] sm:$0xff]
  %v19 = vld [vmem:[%s0 + $0x28] sm:$0xff]
  %v20 = vld [vmem:[%s0 + $0x30] sm:$0xff]
  %v21 = vld [vmem:[%s0 + $0x38] sm:$0xff]
  %v22 = vld [vmem:[%s0 + $0x40] sm:$0xff]
  %v23 = vld [vmem:[%s0 + $0x48] sm:$0xff]
  %v24 = vld [vmem:[%s0 + $0x50] sm:$0xff]
  %v25 = vld [vmem:[%s0 + $0x58] sm:$0xff]
  %v26 = vld [vmem:[%s0 + $0x60] sm:$0xff]
  %v27 = vld [vmem:[%s0 + $0x68] sm:$0xff]
  %v28 = vld [vmem:[%s0 + $0x70] sm:$0xff]
  %v29 = vld [vmem:[%s0 + $0x78] sm:$0xff]
  %v30 = vld [vmem:[%s0 + $0x80] sm:$0xff]
  %v31 = vld [vmem:[%s0 + $0x88] sm:$0xff]
  %v32 = vld [vmem:[%s0 + $0x90] sm:$0xff]
  %v33 = vld [vmem:[%s0 + $0x98] sm:$0xff]
  %v34 = vld [vmem:[%s0 + $0xa0] sm:$0xff]
  %v35 = vld [vmem:[%s0 + $0xa8] sm:$0xff]
  %v36 = vld [vmem:[%s0 + $0xb0] sm:$0xff]
  %v37 = vld [vmem:[%s0 + $0xb8] sm:$0xff]
  %v38 = vld [vmem:[%s0 + $0xc0] sm:$0xff]
  %v39 = vld [vmem:[%s0 + $0xc8] sm:$0xff]
  %v40 = vld [vmem:[%s0 + $0xd0] sm:$0xff]
  %v41 = vld [vmem:[%s0 + $0xd8] sm:$0xff]
  %v42 = vld [vmem:[%s0 + $0xe0] sm:$0xff]
  %v43 = vld [vmem:[%s0 + $0xe8] sm:$0xff]
  %v44 = vld [vmem:[%s0 + $0xf0] sm:$0xff]
  %v45 = vld [vmem:[%s0 + $0xf8] sm:$0xff]
  %v46 = vld [vmem:[%s0 + $0x100] sm:$0xff]
  %v47 = vld [vmem:[%s0 + $0x108] sm:$0xff]
  %v48 = vld [vmem:[%s0 + $0x110] sm:$0xff]
  %v49 = vld [vmem:[%s0 + $0x118] sm:$0xff]
  %v50 = vld [vmem:[%s0 + $0x120] sm:$0xff]
  %v51 = vld [vmem:[%s0 + $0x128] sm:$0xff]
  %v52 = vld [vmem:[%s0 + $0x130] sm:$0xff]
  %v53 = vld [vmem:[%s0 + $0x138] sm:$0xff]
  %v54 = vld [vmem:[%s0 + $0x140] sm:$0xff]
  %v55 = vld [vmem:[%s0 + $0x148] sm:$0xff]
  %v56 = vld [vmem:[%s0 + $0x150] sm:$0xff]
  %v57 = vld [vmem:[%s0 + $0x158] sm:$0xff]
  %v58 = vld [vmem:[%s0 + $0x160] sm:$0xff]
  %v59 = vld [vmem:[%s0 + $0x168] sm:$0xff]
  %v60 = vld [vmem:[%s0 + $0x170] sm:$0xff]
  %v61 = vld [vmem:[%s0 + $0x178] sm:$0xff]
  %v62 = vld [vmem:[%s0 + $0x180] sm:$0xff]
  %v63 = vld [vmem:[%s0 + $0x188] sm:$0xff]
  %v64 = vld [vmem:[%s0 + $0x190] sm:$0xff]
  %v65 = vld [vmem:[%s0 + $0x198] sm:$0xff]
  %v66 = vld [vmem:[%s0 + $0x1a0] sm:$0xff]
  %v67 = vld [vmem:[%s0 + $0x1a8] sm:$0xff]
  %v68 = vld [vmem:[%s0 + $0x1b0] sm:$0xff]
  %v69 = vld [vmem:[%s0 + $0x1b8] sm:$0xff]
  %v70 = vld [vmem:[%s0 + $0x1c0] sm:$0xff]
  %v71 = vld [vmem:[%s0 + $0x1c8] sm:$0xff]
  %v72 = vld [vmem:[%s0 + $0x1d0] sm:$0xff]
  %v73 = vld [vmem:[%s0 + $0x1d8] sm:$0xff]
  %v74 = vld [vmem:[%s0 + $0x1e0] sm:$0xff]
  %v75 = vld [vmem:[%s0 + $0x1e8] sm:$0xff]
  %v76 = vld [vmem:[%s0 + $0x1f0] sm:$0xff]
  %v77 = vld [vmem:[%s0 + $0x1f8] sm:$0xff]
  %v78 = vld [vmem:[%s0 + $0x200] sm:$0xff]
  %v79 = vld [vmem:[%s0 + $0x208] sm:$0xff]
  %v80 = vld [vmem:[%s0 + $0x210] sm:$0xff]
  %v81 = vld [vmem:[%s0 + $0x218] sm:$0xff]
  %v82 = vld [vmem:[%s0 + $0x220] sm:$0xff]
  %v83 = vld [vmem:[%s0 + $0x228] sm:$0xff]
  %v84 = vld [vmem:[%s0 + $0x230] sm:$0xff]
  %v85 = vld [vmem:[%s0 + $0x238] sm:$0xff]
  %v86 = vld [vmem:[%s0 + $0x240] sm:$0xff]
  %v87 = vld [vmem:[%s0 + $0x248] sm:$0xff]
  %v88 = vld [vmem:[%s0 + $0x250] sm:$0xff]
  %v89 = vld [vmem:[%s0 + $0x258] sm:$0xff]
  %v90 = vld [vmem:[%s0 + $0x260] sm:$0xff]
  %v91 = vld [vmem:[%s0 + $0x268] sm:$0xff]
  %v92 = vld [vmem:[%s0 + $0x270] sm:$0xff]
  %v93 = vld [vmem:[%s0 + $0x278] sm:$0xff]
  %v94 = vld [vmem:[%s0 + $0x280] sm:$0xff]
  %v95 = vld [vmem:[%s0 + $0x288] sm:$0xff]
  %v96 = vld [vmem:[%s0 + $0x290] sm:$0xff]
  %v97 = vld [vmem:[%s0 + $0x298] sm:$0xff]
  %v98 = vld [vmem:[%s0 + $0x2a0] sm:$0xff]
  %v99 = vld [vmem:[%s0 + $0x2a8] sm:$0xff]
  %v100 = vld [vmem:[%s0 + $0x2b0] sm:$0xff]
  %v101 = vld [vmem:[%s0 + $0x2b8] sm:$0xff]
  %v102 = vld [vmem:[%s0 + $0x2c0] sm:$0xff]
  %v103 = vld [vmem:[%s0 + $0x2c8] sm:$0xff]
  %v104 = vld [vmem:[%s0 + $0x2d0] sm:$0xff]
  %v105 = vld [vmem:[%s0 + $0x2d8] sm:$0xff]
  %v106 = vld [vmem:[%s0 + $0x2e0] sm:$0xff]
  %v107 = vld [vmem:[%s0 + $0x2e8] sm:$0xff]
  %v108 = vld [vmem:[%s0 + $0x2f0] sm:$0xff]
  %v109 = vld [vmem:[%s0 + $0x2f8] sm:$0xff]
  %v110 = vld [vmem:[%s0 + $0x300] sm:$0xff]
  %v111 = vld [vmem:[%s0 + $0x308] sm:$0xff]
  %v112 = vld [vmem:[%s0 + $0x310] sm:$0xff]
  %v113 = vld [vmem:[%s0 + $0x318] sm:$0xff]
  %v114 = vld [vmem:[%s0 + $0x320] sm:$0xff]
  %v115 = vld [vmem:[%s0 + $0x328] sm:$0xff]
  %v116 = vld [vmem:[%s0 + $0x330] sm:$0xff]
  %v117 = vld [vmem:[%s0 + $0x338] sm:$0xff]
  %v118 = vld [vmem:[%s0 + $0x340] sm:$0xff]
  %v119 = vld [vmem:[%s0 + $0x348] sm:$0xff]
  %v120 = vld [vmem:[%s0 + $0x350] sm:$0xff]
  %v121 = vld [vmem:[%s0 + $0x358] sm:$0xff]
  %v122 = vld [vmem:[%s0 + $0x360] sm:$0xff]
  %v123 = vld [vmem:[%s0 + $0x368] sm:$0xff]
  %v124 = vld [vmem:[%s0 + $0x370] sm:$0xff]
  %v125 = vld [vmem:[%s0 + $0x378] sm:$0xff]
  %v126 = vld [vmem:[%s0 + $0x380] sm:$0xff]
  %v127 = vld [vmem:[%s0 + $0x388] sm:$0xff]
  %v128 = vld [vmem:[%s0 + $0x390] sm:$0xff]
  %v129 = vld [vmem:[%s0 + $0x398] sm:$0xff]
  %v130 = vld [vmem:[%s0 + $0x3a0] sm:$0xff]
  %v131 = vld [vmem:[%s0 + $0x3a8] sm:$0xff]
  %v132 = vld [vmem:[%s0 + $0x3b0] sm:$0xff]
  %v133 = vld [vmem:[%s0 + $0x3b8] sm:$0xff]
  %v134 = vld [vmem:[%s0 + $0x3c0] sm:$0xff]
  %v135 = vld [vmem:[%s0 + $0x3c8] sm:$0xff]
  %v136 = vld [vmem:[%s0 + $0x3d0] sm:$0xff]
  %v137 = vld [vmem:[%s0 + $0x3d8] sm:$0xff]
  %v138 = vld [vmem:[%s0 + $0x3e0] sm:$0xff]
  %v139 = vld [vmem:[%s0 + $0x3e8] sm:$0xff]
  %v140 = vld [vmem:[%s0 + $0x3f0] sm:$0xff]
  %v141 = vld [vmem:[%s0 + $0x3f8] sm:$0xff]
  %v142 = vld [vmem:[%s1] sm:$0xf]
  %v143 = vld [vmem:[%s1 + $0x4] sm:$0xf]
  %v144 = vld [vmem:[%s1 + $0x8] sm:$0xf]
  %v145 = vld [vmem:[%s1 + $0xc] sm:$0xf]
  %v146 = vld [vmem:[%s1 + $0x10] sm:$0xf]
  %v147 = vld [vmem:[%s1 + $0x14] sm:$0xf]
  %v148 = vld [vmem:[%s1 + $0x18] sm:$0xf]
  %v149 = vld [vmem:[%s1 + $0x1c] sm:$0xf]
  %v150 = vld [vmem:[%s1 + $0x20] sm:$0xf]
  %v151 = vld [vmem:[%s1 + $0x24] sm:$0xf]
  %v152 = vld [vmem:[%s1 + $0x28] sm:$0xf]
  %v153 = vld [vmem:[%s1 + $0x2c] sm:$0xf]
  %v154 = vld [vmem:[%s1 + $0x30] sm:$0xf]
  %v155 = vld [vmem:[%s1 + $0x34] sm:$0xf]
  %v156 = vld [vmem:[%s1 + $0x38] sm:$0xf]
  %v157 = vld [vmem:[%s1 + $0x3c] sm:$0xf]
  %v158 = vld [vmem:[%s1 + $0x40] sm:$0xf]
  %v159 = vld [vmem:[%s1 + $0x44] sm:$0xf]
  %v160 = vld [vmem:[%s1 + $0x48] sm:$0xf]
  %v161 = vld [vmem:[%s1 + $0x4c] sm:$0xf]
  %v162 = vld [vmem:[%s1 + $0x50] sm:$0xf]
  %v163 = vld [vmem:[%s1 + $0x54] sm:$0xf]
  %v164 = vld [vmem:[%s1 + $0x58] sm:$0xf]
  %v165 = vld [vmem:[%s1 + $0x5c] sm:$0xf]
  %v166 = vld [vmem:[%s1 + $0x60] sm:$0xf]
  %v167 = vld [vmem:[%s1 + $0x64] sm:$0xf]
  %v168 = vld [vmem:[%s1 + $0x68] sm:$0xf]
  %v169 = vld [vmem:[%s1 + $0x6c] sm:$0xf]
  %v170 = vld [vmem:[%s1 + $0x70] sm:$0xf]
  %v171 = vld [vmem:[%s1 + $0x74] sm:$0xf]
  %v172 = vld [vmem:[%s1 + $0x78] sm:$0xf]
  %v173 = vld [vmem:[%s1 + $0x7c] sm:$0xf]
  %v174 = vld [vmem:[%s1 + $0x80] sm:$0xf]
  %v175 = vld [vmem:[%s1 + $0x84] sm:$0xf]
  %v176 = vld [vmem:[%s1 + $0x88] sm:$0xf]
  %v177 = vld [vmem:[%s1 + $0x8c] sm:$0xf]
  %v178 = vld [vmem:[%s1 + $0x90] sm:$0xf]
  %v179 = vld [vmem:[%s1 + $0x94] sm:$0xf]
  %v180 = vld [vmem:[%s1 + $0x98] sm:$0xf]
  %v181 = vld [vmem:[%s1 + $0x9c] sm:$0xf]
  %v182 = vld [vmem:[%s1 + $0xa0] sm:$0xf]
  %v183 = vld [vmem:[%s1 + $0xa4] sm:$0xf]
  %v184 = vld [vmem:[%s1 + $0xa8] sm:$0xf]
  %v185 = vld [vmem:[%s1 + $0xac] sm:$0xf]
  %v186 = vld [vmem:[%s1 + $0xb0] sm:$0xf]
  %v187 = vld [vmem:[%s1 + $0xb4] sm:$0xf]
  %v188 = vld [vmem:[%s1 + $0xb8] sm:$0xf]
  %v189 = vld [vmem:[%s1 + $0xbc] sm:$0xf]
  %v190 = vld [vmem:[%s1 + $0xc0] sm:$0xf]
  %v191 = vld [vmem:[%s1 + $0xc4] sm:$0xf]
  %v192 = vld [vmem:[%s1 + $0xc8] sm:$0xf]
  %v193 = vld [vmem:[%s1 + $0xcc] sm:$0xf]
  %v194 = vld [vmem:[%s1 + $0xd0] sm:$0xf]
  %v195 = vld [vmem:[%s1 + $0xd4] sm:$0xf]
  %v196 = vld [vmem:[%s1 + $0xd8] sm:$0xf]
  %v197 = vld [vmem:[%s1 + $0xdc] sm:$0xf]
  %v198 = vld [vmem:[%s1 + $0xe0] sm:$0xf]
  %v199 = vld [vmem:[%s1 + $0xe4] sm:$0xf]
  %v200 = vld [vmem:[%s1 + $0xe8] sm:$0xf]
  %v201 = vld [vmem:[%s1 + $0xec] sm:$0xf]
  %v202 = vld [vmem:[%s1 + $0xf0] sm:$0xf]
  %v203 = vld [vmem:[%s1 + $0xf4] sm:$0xf]
  %v204 = vld [vmem:[%s1 + $0xf8] sm:$0xf]
  %v205 = vld [vmem:[%s1 + $0xfc] sm:$0xf]
  %v206 = vld [vmem:[%s1 + $0x100] sm:$0xf]
  %v207 = vld [vmem:[%s1 + $0x104] sm:$0xf]
  %v208 = vld [vmem:[%s1 + $0x108] sm:$0xf]
  %v209 = vld [vmem:[%s1 + $0x10c] sm:$0xf]
  %v210 = vld [vmem:[%s1 + $0x110] sm:$0xf]
  %v211 = vld [vmem:[%s1 + $0x114] sm:$0xf]
  %v212 = vld [vmem:[%s1 + $0x118] sm:$0xf]
  %v213 = vld [vmem:[%s1 + $0x11c] sm:$0xf]
  %v214 = vld [vmem:[%s1 + $0x120] sm:$0xf]
  %v215 = vld [vmem:[%s1 + $0x124] sm:$0xf]
  %v216 = vld [vmem:[%s1 + $0x128] sm:$0xf]
  %v217 = vld [vmem:[%s1 + $0x12c] sm:$0xf]
  %v218 = vld [vmem:[%s1 + $0x130] sm:$0xf]
  %v219 = vld [vmem:[%s1 + $0x134] sm:$0xf]
  %v220 = vld [vmem:[%s1 + $0x138] sm:$0xf]
  %v221 = vld [vmem:[%s1 + $0x13c] sm:$0xf]
  %v222 = vld [vmem:[%s1 + $0x140] sm:$0xf]
  %v223 = vld [vmem:[%s1 + $0x144] sm:$0xf]
  %v224 = vld [vmem:[%s1 + $0x148] sm:$0xf]
  %v225 = vld [vmem:[%s1 + $0x14c] sm:$0xf]
  %v226 = vld [vmem:[%s1 + $0x150] sm:$0xf]
  %v227 = vld [vmem:[%s1 + $0x154] sm:$0xf]
  %v228 = vld [vmem:[%s1 + $0x158] sm:$0xf]
  %v229 = vld [vmem:[%s1 + $0x15c] sm:$0xf]
  %v230 = vld [vmem:[%s1 + $0x160] sm:$0xf]
  %v231 = vld [vmem:[%s1 + $0x164] sm:$0xf]
  %v232 = vld [vmem:[%s1 + $0x168] sm:$0xf]
  %v233 = vld [vmem:[%s1 + $0x16c] sm:$0xf]
  %v234 = vld [vmem:[%s1 + $0x170] sm:$0xf]
  %v235 = vld [vmem:[%s1 + $0x174] sm:$0xf]
  %v236 = vld [vmem:[%s1 + $0x178] sm:$0xf]
  %v237 = vld [vmem:[%s1 + $0x17c] sm:$0xf]
  %v238 = vld [vmem:[%s1 + $0x180] sm:$0xf]
  %v239 = vld [vmem:[%s1 + $0x184] sm:$0xf]
  %v240 = vld [vmem:[%s1 + $0x188] sm:$0xf]
  %v241 = vld [vmem:[%s1 + $0x18c] sm:$0xf]
  %v242 = vld [vmem:[%s1 + $0x190] sm:$0xf]
  %v243 = vld [vmem:[%s1 + $0x194] sm:$0xf]
  %v244 = vld [vmem:[%s1 + $0x198] sm:$0xf]
  %v245 = vld [vmem:[%s1 + $0x19c] sm:$0xf]
  %v246 = vld [vmem:[%s1 + $0x1a0] sm:$0xf]
  %v247 = vld [vmem:[%s1 + $0x1a4] sm:$0xf]
  %v248 = vld [vmem:[%s1 + $0x1a8] sm:$0xf]
  %v249 = vld [vmem:[%s1 + $0x1ac] sm:$0xf]
  %v250 = vld [vmem:[%s1 + $0x1b0] sm:$0xf]
  %v251 = vld [vmem:[%s1 + $0x1b4] sm:$0xf]
  %v252 = vld [vmem:[%s1 + $0x1b8] sm:$0xf]
  %v253 = vld [vmem:[%s1 + $0x1bc] sm:$0xf]
  %v254 = vld [vmem:[%s1 + $0x1c0] sm:$0xf]
  %v255 = vld [vmem:[%s1 + $0x1c4] sm:$0xf]
  %v256 = vld [vmem:[%s1 + $0x1c8] sm:$0xf]
  %v257 = vld [vmem:[%s1 + $0x1cc] sm:$0xf]
  %v258 = vld [vmem:[%s1 + $0x1d0] sm:$0xf]
  %v259 = vld [vmem:[%s1 + $0x1d4] sm:$0xf]
  %v260 = vld [vmem:[%s1 + $0x1d8] sm:$0xf]
  %v261 = vld [vmem:[%s1 + $0x1dc] sm:$0xf]
  %v262 = vld [vmem:[%s1 + $0x1e0] sm:$0xf]
  %v263 = vld [vmem:[%s1 + $0x1e4] sm:$0xf]
  %v264 = vld [vmem:[%s1 + $0x1e8] sm:$0xf]
  %v265 = vld [vmem:[%s1 + $0x1ec] sm:$0xf]
  %v266 = vld [vmem:[%s1 + $0x1f0] sm:$0xf]
  %v267 = vld [vmem:[%s1 + $0x1f4] sm:$0xf]
  %v268 = vld [vmem:[%s1 + $0x1f8] sm:$0xf]
  %v269 = vld [vmem:[%s1 + $0x1fc] sm:$0xf]
  %v270 = vld [vmem:[%s1 + $0x200] sm:$0xf]
  %v271 = vld [vmem:[%s1 + $0x204] sm:$0xf]
  %v272 = vld [vmem:[%s1 + $0x208] sm:$0xf]
  %v273 = vld [vmem:[%s1 + $0x20c] sm:$0xf]
  %v274 = vld [vmem:[%s1 + $0x210] sm:$0xf]
  %v275 = vld [vmem:[%s1 + $0x214] sm:$0xf]
  %v276 = vld [vmem:[%s1 + $0x218] sm:$0xf]
  %v277 = vld [vmem:[%s1 + $0x21c] sm:$0xf]
  %v278 = vld [vmem:[%s1 + $0x220] sm:$0xf]
  %v279 = vld [vmem:[%s1 + $0x224] sm:$0xf]
  %v280 = vld [vmem:[%s1 + $0x228] sm:$0xf]
  %v281 = vld [vmem:[%s1 + $0x22c] sm:$0xf]
  %v282 = vld [vmem:[%s1 + $0x230] sm:$0xf]
  %v283 = vld [vmem:[%s1 + $0x234] sm:$0xf]
  %v284 = vld [vmem:[%s1 + $0x238] sm:$0xf]
  %v285 = vld [vmem:[%s1 + $0x23c] sm:$0xf]
  %v286 = vld [vmem:[%s1 + $0x240] sm:$0xf]
  %v287 = vld [vmem:[%s1 + $0x244] sm:$0xf]
  %v288 = vld [vmem:[%s1 + $0x248] sm:$0xf]
  %v289 = vld [vmem:[%s1 + $0x24c] sm:$0xf]
  %v290 = vld [vmem:[%s1 + $0x250] sm:$0xf]
  %v291 = vld [vmem:[%s1 + $0x254] sm:$0xf]
  %v292 = vld [vmem:[%s1 + $0x258] sm:$0xf]
  %v293 = vld [vmem:[%s1 + $0x25c] sm:$0xf]
  %v294 = vld [vmem:[%s1 + $0x260] sm:$0xf]
  %v295 = vld [vmem:[%s1 + $0x264] sm:$0xf]
  %v296 = vld [vmem:[%s1 + $0x268] sm:$0xf]
  %v297 = vld [vmem:[%s1 + $0x26c] sm:$0xf]
  %v298 = vld [vmem:[%s1 + $0x270] sm:$0xf]
  %v299 = vld [vmem:[%s1 + $0x274] sm:$0xf]
  %v300 = vld [vmem:[%s1 + $0x278] sm:$0xf]
  %v301 = vld [vmem:[%s1 + $0x27c] sm:$0xf]
  %v302 = vld [vmem:[%s1 + $0x280] sm:$0xf]
  %v303 = vld [vmem:[%s1 + $0x284] sm:$0xf]
  %v304 = vld [vmem:[%s1 + $0x288] sm:$0xf]
  %v305 = vld [vmem:[%s1 + $0x28c] sm:$0xf]
  %v306 = vld [vmem:[%s1 + $0x290] sm:$0xf]
  %v307 = vld [vmem:[%s1 + $0x294] sm:$0xf]
  %v308 = vld [vmem:[%s1 + $0x298] sm:$0xf]
  %v309 = vld [vmem:[%s1 + $0x29c] sm:$0xf]
  %v310 = vld [vmem:[%s1 + $0x2a0] sm:$0xf]
  %v311 = vld [vmem:[%s1 + $0x2a4] sm:$0xf]
  %v312 = vld [vmem:[%s1 + $0x2a8] sm:$0xf]
  %v313 = vld [vmem:[%s1 + $0x2ac] sm:$0xf]
  %v314 = vld [vmem:[%s1 + $0x2b0] sm:$0xf]
  %v315 = vld [vmem:[%s1 + $0x2b4] sm:$0xf]
  %v316 = vld [vmem:[%s1 + $0x2b8] sm:$0xf]
  %v317 = vld [vmem:[%s1 + $0x2bc] sm:$0xf]
  %v318 = vld [vmem:[%s1 + $0x2c0] sm:$0xf]
  %v319 = vld [vmem:[%s1 + $0x2c4] sm:$0xf]
  %v320 = vld [vmem:[%s1 + $0x2c8] sm:$0xf]
  %v321 = vld [vmem:[%s1 + $0x2cc] sm:$0xf]
  %v322 = vld [vmem:[%s1 + $0x2d0] sm:$0xf]
  %v323 = vld [vmem:[%s1 + $0x2d4] sm:$0xf]
  %v324 = vld [vmem:[%s1 + $0x2d8] sm:$0xf]
  %v325 = vld [vmem:[%s1 + $0x2dc] sm:$0xf]
  %v326 = vld [vmem:[%s1 + $0x2e0] sm:$0xf]
  %v327 = vld [vmem:[%s1 + $0x2e4] sm:$0xf]
  %v328 = vld [vmem:[%s1 + $0x2e8] sm:$0xf]
  %v329 = vld [vmem:[%s1 + $0x2ec] sm:$0xf]
  %v330 = vld [vmem:[%s1 + $0x2f0] sm:$0xf]
  %v331 = vld [vmem:[%s1 + $0x2f4] sm:$0xf]
  %v332 = vld [vmem:[%s1 + $0x2f8] sm:$0xf]
  %v333 = vld [vmem:[%s1 + $0x2fc] sm:$0xf]
  %v334 = vld [vmem:[%s1 + $0x300] sm:$0xf]
  %v335 = vld [vmem:[%s1 + $0x304] sm:$0xf]
  %v336 = vld [vmem:[%s1 + $0x308] sm:$0xf]
  %v337 = vld [vmem:[%s1 + $0x30c] sm:$0xf]
  %v338 = vld [vmem:[%s1 + $0x310] sm:$0xf]
  %v339 = vld [vmem:[%s1 + $0x314] sm:$0xf]
  %v340 = vld [vmem:[%s1 + $0x318] sm:$0xf]
  %v341 = vld [vmem:[%s1 + $0x31c] sm:$0xf]
  %v342 = vld [vmem:[%s1 + $0x320] sm:$0xf]
  %v343 = vld [vmem:[%s1 + $0x324] sm:$0xf]
  %v344 = vld [vmem:[%s1 + $0x328] sm:$0xf]
  %v345 = vld [vmem:[%s1 + $0x32c] sm:$0xf]
  %v346 = vld [vmem:[%s1 + $0x330] sm:$0xf]
  %v347 = vld [vmem:[%s1 + $0x334] sm:$0xf]
  %v348 = vld [vmem:[%s1 + $0x338] sm:$0xf]
  %v349 = vld [vmem:[%s1 + $0x33c] sm:$0xf]
  %v350 = vld [vmem:[%s1 + $0x340] sm:$0xf]
  %v351 = vld [vmem:[%s1 + $0x344] sm:$0xf]
  %v352 = vld [vmem:[%s1 + $0x348] sm:$0xf]
  %v353 = vld [vmem:[%s1 + $0x34c] sm:$0xf]
  %v354 = vld [vmem:[%s1 + $0x350] sm:$0xf]
  %v355 = vld [vmem:[%s1 + $0x354] sm:$0xf]
  %v356 = vld [vmem:[%s1 + $0x358] sm:$0xf]
  %v357 = vld [vmem:[%s1 + $0x35c] sm:$0xf]
  %v358 = vld [vmem:[%s1 + $0x360] sm:$0xf]
  %v359 = vld [vmem:[%s1 + $0x364] sm:$0xf]
  %v360 = vld [vmem:[%s1 + $0x368] sm:$0xf]
  %v361 = vld [vmem:[%s1 + $0x36c] sm:$0xf]
  %v362 = vld [vmem:[%s1 + $0x370] sm:$0xf]
  %v363 = vld [vmem:[%s1 + $0x374] sm:$0xf]
  %v364 = vld [vmem:[%s1 + $0x378] sm:$0xf]
  %v365 = vld [vmem:[%s1 + $0x37c] sm:$0xf]
  %v366 = vld [vmem:[%s1 + $0x380] sm:$0xf]
  %v367 = vld [vmem:[%s1 + $0x384] sm:$0xf]
  %v368 = vld [vmem:[%s1 + $0x388] sm:$0xf]
  %v369 = vld [vmem:[%s1 + $0x38c] sm:$0xf]
  %v370 = vld [vmem:[%s1 + $0x390] sm:$0xf]
  %v371 = vld [vmem:[%s1 + $0x394] sm:$0xf]
  %v372 = vld [vmem:[%s1 + $0x398] sm:$0xf]
  %v373 = vld [vmem:[%s1 + $0x39c] sm:$0xf]
  %v374 = vld [vmem:[%s1 + $0x3a0] sm:$0xf]
  %v375 = vld [vmem:[%s1 + $0x3a4] sm:$0xf]
  %v376 = vld [vmem:[%s1 + $0x3a8] sm:$0xf]
  %v377 = vld [vmem:[%s1 + $0x3ac] sm:$0xf]
  %v378 = vld [vmem:[%s1 + $0x3b0] sm:$0xf]
  %v379 = vld [vmem:[%s1 + $0x3b4] sm:$0xf]
  %v380 = vld [vmem:[%s1 + $0x3b8] sm:$0xf]
  %v381 = vld [vmem:[%s1 + $0x3bc] sm:$0xf]
  %v382 = vld [vmem:[%s1 + $0x3c0] sm:$0xf]
  %v383 = vld [vmem:[%s1 + $0x3c4] sm:$0xf]
  %v384 = vld [vmem:[%s1 + $0x3c8] sm:$0xf]
  %v385 = vld [vmem:[%s1 + $0x3cc] sm:$0xf]
  %v386 = vld [vmem:[%s1 + $0x3d0] sm:$0xf]
  %v387 = vld [vmem:[%s1 + $0x3d4] sm:$0xf]
  %v388 = vld [vmem:[%s1 + $0x3d8] sm:$0xf]
  %v389 = vld [vmem:[%s1 + $0x3dc] sm:$0xf]
  %v390 = vld [vmem:[%s1 + $0x3e0] sm:$0xf]
  %v391 = vld [vmem:[%s1 + $0x3e4] sm:$0xf]
  %v392 = vld [vmem:[%s1 + $0x3e8] sm:$0xf]
  %v393 = vld [vmem:[%s1 + $0x3ec] sm:$0xf]
  %v394 = vld [vmem:[%s1 + $0x3f0] sm:$0xf]
  %v395 = vld [vmem:[%s1 + $0x3f4] sm:$0xf]
  %v396 = vld [vmem:[%s1 + $0x3f8] sm:$0xf]
  %v397 = vld [vmem:[%s1 + $0x3fc] sm:$0xf]
  %v526 = vunpack.c.l.b16 %v14
  %v527 = vunpack.c.h.b16 %v14
  %v528 = vunpack.c.l.b16 %v15
  %v529 = vunpack.c.h.b16 %v15
  %v530 = vunpack.c.l.b16 %v16
  %v531 = vunpack.c.h.b16 %v16
  %v532 = vunpack.c.l.b16 %v17
  %v533 = vunpack.c.h.b16 %v17
  %v534 = vunpack.c.l.b16 %v18
  %v535 = vunpack.c.h.b16 %v18
  %v536 = vunpack.c.l.b16 %v19
  %v537 = vunpack.c.h.b16 %v19
  %v538 = vunpack.c.l.b16 %v20
  %v539 = vunpack.c.h.b16 %v20
  %v540 = vunpack.c.l.b16 %v21
  %v541 = vunpack.c.h.b16 %v21
  %v542 = vunpack.c.l.b16 %v22
  %v543 = vunpack.c.h.b16 %v22
  %v544 = vunpack.c.l.b16 %v23
  %v545 = vunpack.c.h.b16 %v23
  %v546 = vunpack.c.l.b16 %v24
  %v547 = vunpack.c.h.b16 %v24
  %v548 = vunpack.c.l.b16 %v25
  %v549 = vunpack.c.h.b16 %v25
  %v550 = vunpack.c.l.b16 %v26
  %v551 = vunpack.c.h.b16 %v26
  %v552 = vunpack.c.l.b16 %v27
  %v553 = vunpack.c.h.b16 %v27
  %v554 = vunpack.c.l.b16 %v28
  %v555 = vunpack.c.h.b16 %v28
  %v556 = vunpack.c.l.b16 %v29
  %v557 = vunpack.c.h.b16 %v29
  %v558 = vunpack.c.l.b16 %v30
  %v559 = vunpack.c.h.b16 %v30
  %v560 = vunpack.c.l.b16 %v31
  %v561 = vunpack.c.h.b16 %v31
  %v562 = vunpack.c.l.b16 %v32
  %v563 = vunpack.c.h.b16 %v32
  %v564 = vunpack.c.l.b16 %v33
  %v565 = vunpack.c.h.b16 %v33
  %v566 = vunpack.c.l.b16 %v34
  %v567 = vunpack.c.h.b16 %v34
  %v568 = vunpack.c.l.b16 %v35
  %v569 = vunpack.c.h.b16 %v35
  %v570 = vunpack.c.l.b16 %v36
  %v571 = vunpack.c.h.b16 %v36
  %v572 = vunpack.c.l.b16 %v37
  %v573 = vunpack.c.h.b16 %v37
  %v574 = vunpack.c.l.b16 %v38
  %v575 = vunpack.c.h.b16 %v38
  %v576 = vunpack.c.l.b16 %v39
  %v577 = vunpack.c.h.b16 %v39
  %v578 = vunpack.c.l.b16 %v40
  %v579 = vunpack.c.h.b16 %v40
  %v580 = vunpack.c.l.b16 %v41
  %v581 = vunpack.c.h.b16 %v41
  %v582 = vunpack.c.l.b16 %v42
  %v583 = vunpack.c.h.b16 %v42
  %v584 = vunpack.c.l.b16 %v43
  %v585 = vunpack.c.h.b16 %v43
  %v586 = vunpack.c.l.b16 %v44
  %v587 = vunpack.c.h.b16 %v44
  %v588 = vunpack.c.l.b16 %v45
  %v589 = vunpack.c.h.b16 %v45
  %v590 = vunpack.c.l.b16 %v46
  %v591 = vunpack.c.h.b16 %v46
  %v592 = vunpack.c.l.b16 %v47
  %v593 = vunpack.c.h.b16 %v47
  %v594 = vunpack.c.l.b16 %v48
  %v595 = vunpack.c.h.b16 %v48
  %v596 = vunpack.c.l.b16 %v49
  %v597 = vunpack.c.h.b16 %v49
  %v598 = vunpack.c.l.b16 %v50
  %v599 = vunpack.c.h.b16 %v50
  %v600 = vunpack.c.l.b16 %v51
  %v601 = vunpack.c.h.b16 %v51
  %v602 = vunpack.c.l.b16 %v52
  %v603 = vunpack.c.h.b16 %v52
  %v604 = vunpack.c.l.b16 %v53
  %v605 = vunpack.c.h.b16 %v53
  %v606 = vunpack.c.l.b16 %v54
  %v607 = vunpack.c.h.b16 %v54
  %v608 = vunpack.c.l.b16 %v55
  %v609 = vunpack.c.h.b16 %v55
  %v610 = vunpack.c.l.b16 %v56
  %v611 = vunpack.c.h.b16 %v56
  %v612 = vunpack.c.l.b16 %v57
  %v613 = vunpack.c.h.b16 %v57
  %v614 = vunpack.c.l.b16 %v58
  %v615 = vunpack.c.h.b16 %v58
  %v616 = vunpack.c.l.b16 %v59
  %v617 = vunpack.c.h.b16 %v59
  %v618 = vunpack.c.l.b16 %v60
  %v619 = vunpack.c.h.b16 %v60
  %v620 = vunpack.c.l.b16 %v61
  %v621 = vunpack.c.h.b16 %v61
  %v622 = vunpack.c.l.b16 %v62
  %v623 = vunpack.c.h.b16 %v62
  %v624 = vunpack.c.l.b16 %v63
  %v625 = vunpack.c.h.b16 %v63
  %v626 = vunpack.c.l.b16 %v64
  %v627 = vunpack.c.h.b16 %v64
  %v628 = vunpack.c.l.b16 %v65
  %v629 = vunpack.c.h.b16 %v65
  %v630 = vunpack.c.l.b16 %v66
  %v631 = vunpack.c.h.b16 %v66
  %v632 = vunpack.c.l.b16 %v67
  %v633 = vunpack.c.h.b16 %v67
  %v634 = vunpack.c.l.b16 %v68
  %v635 = vunpack.c.h.b16 %v68
  %v636 = vunpack.c.l.b16 %v69
  %v637 = vunpack.c.h.b16 %v69
  %v638 = vunpack.c.l.b16 %v70
  %v639 = vunpack.c.h.b16 %v70
  %v640 = vunpack.c.l.b16 %v71
  %v641 = vunpack.c.h.b16 %v71
  %v642 = vunpack.c.l.b16 %v72
  %v643 = vunpack.c.h.b16 %v72
  %v644 = vunpack.c.l.b16 %v73
  %v645 = vunpack.c.h.b16 %v73
  %v646 = vunpack.c.l.b16 %v74
  %v647 = vunpack.c.h.b16 %v74
  %v648 = vunpack.c.l.b16 %v75
  %v649 = vunpack.c.h.b16 %v75
  %v650 = vunpack.c.l.b16 %v76
  %v651 = vunpack.c.h.b16 %v76
  %v652 = vunpack.c.l.b16 %v77
  %v653 = vunpack.c.h.b16 %v77
  %v654 = vunpack.c.l.b16 %v78
  %v655 = vunpack.c.h.b16 %v78
  %v656 = vunpack.c.l.b16 %v79
  %v657 = vunpack.c.h.b16 %v79
  %v658 = vunpack.c.l.b16 %v80
  %v659 = vunpack.c.h.b16 %v80
  %v660 = vunpack.c.l.b16 %v81
  %v661 = vunpack.c.h.b16 %v81
  %v662 = vunpack.c.l.b16 %v82
  %v663 = vunpack.c.h.b16 %v82
  %v664 = vunpack.c.l.b16 %v83
  %v665 = vunpack.c.h.b16 %v83
  %v666 = vunpack.c.l.b16 %v84
  %v667 = vunpack.c.h.b16 %v84
  %v668 = vunpack.c.l.b16 %v85
  %v669 = vunpack.c.h.b16 %v85
  %v670 = vunpack.c.l.b16 %v86
  %v671 = vunpack.c.h.b16 %v86
  %v672 = vunpack.c.l.b16 %v87
  %v673 = vunpack.c.h.b16 %v87
  %v674 = vunpack.c.l.b16 %v88
  %v675 = vunpack.c.h.b16 %v88
  %v676 = vunpack.c.l.b16 %v89
  %v677 = vunpack.c.h.b16 %v89
  %v678 = vunpack.c.l.b16 %v90
  %v679 = vunpack.c.h.b16 %v90
  %v680 = vunpack.c.l.b16 %v91
  %v681 = vunpack.c.h.b16 %v91
  %v682 = vunpack.c.l.b16 %v92
  %v683 = vunpack.c.h.b16 %v92
  %v684 = vunpack.c.l.b16 %v93
  %v685 = vunpack.c.h.b16 %v93
  %v686 = vunpack.c.l.b16 %v94
  %v687 = vunpack.c.h.b16 %v94
  %v688 = vunpack.c.l.b16 %v95
  %v689 = vunpack.c.h.b16 %v95
  %v690 = vunpack.c.l.b16 %v96
  %v691 = vunpack.c.h.b16 %v96
  %v692 = vunpack.c.l.b16 %v97
  %v693 = vunpack.c.h.b16 %v97
  %v694 = vunpack.c.l.b16 %v98
  %v695 = vunpack.c.h.b16 %v98
  %v696 = vunpack.c.l.b16 %v99
  %v697 = vunpack.c.h.b16 %v99
  %v698 = vunpack.c.l.b16 %v100
  %v699 = vunpack.c.h.b16 %v100
  %v700 = vunpack.c.l.b16 %v101
  %v701 = vunpack.c.h.b16 %v101
  %v702 = vunpack.c.l.b16 %v102
  %v703 = vunpack.c.h.b16 %v102
  %v704 = vunpack.c.l.b16 %v103
  %v705 = vunpack.c.h.b16 %v103
  %v706 = vunpack.c.l.b16 %v104
  %v707 = vunpack.c.h.b16 %v104
  %v708 = vunpack.c.l.b16 %v105
  %v709 = vunpack.c.h.b16 %v105
  %v710 = vunpack.c.l.b16 %v106
  %v711 = vunpack.c.h.b16 %v106
  %v712 = vunpack.c.l.b16 %v107
  %v713 = vunpack.c.h.b16 %v107
  %v714 = vunpack.c.l.b16 %v108
  %v715 = vunpack.c.h.b16 %v108
  %v716 = vunpack.c.l.b16 %v109
  %v717 = vunpack.c.h.b16 %v109
  %v718 = vunpack.c.l.b16 %v110
  %v719 = vunpack.c.h.b16 %v110
  %v720 = vunpack.c.l.b16 %v111
  %v721 = vunpack.c.h.b16 %v111
  %v722 = vunpack.c.l.b16 %v112
  %v723 = vunpack.c.h.b16 %v112
  %v724 = vunpack.c.l.b16 %v113
  %v725 = vunpack.c.h.b16 %v113
  %v726 = vunpack.c.l.b16 %v114
  %v727 = vunpack.c.h.b16 %v114
  %v728 = vunpack.c.l.b16 %v115
  %v729 = vunpack.c.h.b16 %v115
  %v730 = vunpack.c.l.b16 %v116
  %v731 = vunpack.c.h.b16 %v116
  %v732 = vunpack.c.l.b16 %v117
  %v733 = vunpack.c.h.b16 %v117
  %v734 = vunpack.c.l.b16 %v118
  %v735 = vunpack.c.h.b16 %v118
  %v736 = vunpack.c.l.b16 %v119
  %v737 = vunpack.c.h.b16 %v119
  %v738 = vunpack.c.l.b16 %v120
  %v739 = vunpack.c.h.b16 %v120
  %v740 = vunpack.c.l.b16 %v121
  %v741 = vunpack.c.h.b16 %v121
  %v742 = vunpack.c.l.b16 %v122
  %v743 = vunpack.c.h.b16 %v122
  %v744 = vunpack.c.l.b16 %v123
  %v745 = vunpack.c.h.b16 %v123
  %v746 = vunpack.c.l.b16 %v124
  %v747 = vunpack.c.h.b16 %v124
  %v748 = vunpack.c.l.b16 %v125
  %v749 = vunpack.c.h.b16 %v125
  %v750 = vunpack.c.l.b16 %v126
  %v751 = vunpack.c.h.b16 %v126
  %v752 = vunpack.c.l.b16 %v127
  %v753 = vunpack.c.h.b16 %v127
  %v754 = vunpack.c.l.b16 %v128
  %v755 = vunpack.c.h.b16 %v128
  %v756 = vunpack.c.l.b16 %v129
  %v757 = vunpack.c.h.b16 %v129
  %v758 = vunpack.c.l.b16 %v130
  %v759 = vunpack.c.h.b16 %v130
  %v760 = vunpack.c.l.b16 %v131
  %v761 = vunpack.c.h.b16 %v131
  %v762 = vunpack.c.l.b16 %v132
  %v763 = vunpack.c.h.b16 %v132
  %v764 = vunpack.c.l.b16 %v133
  %v765 = vunpack.c.h.b16 %v133
  %v766 = vunpack.c.l.b16 %v134
  %v767 = vunpack.c.h.b16 %v134
  %v768 = vunpack.c.l.b16 %v135
  %v769 = vunpack.c.h.b16 %v135
  %v770 = vunpack.c.l.b16 %v136
  %v771 = vunpack.c.h.b16 %v136
  %v772 = vunpack.c.l.b16 %v137
  %v773 = vunpack.c.h.b16 %v137
  %v774 = vunpack.c.l.b16 %v138
  %v775 = vunpack.c.h.b16 %v138
  %v776 = vunpack.c.l.b16 %v139
  %v777 = vunpack.c.h.b16 %v139
  %v778 = vunpack.c.l.b16 %v140
  %v779 = vunpack.c.h.b16 %v140
  %v780 = vunpack.c.l.b16 %v141
  %v781 = vunpack.c.h.b16 %v141
  %v782 = vpack.c.b16 %v542, %v526
  %v783 = vpack.c.b16 %v543, %v527
  %v784 = vpack.c.b16 %v544, %v528
  %v785 = vpack.c.b16 %v545, %v529
  %v786 = vpack.c.b16 %v546, %v530
  %v787 = vpack.c.b16 %v547, %v531
  %v788 = vpack.c.b16 %v548, %v532
  %v789 = vpack.c.b16 %v549, %v533
  %v790 = vpack.c.b16 %v550, %v534
  %v791 = vpack.c.b16 %v551, %v535
  %v792 = vpack.c.b16 %v552, %v536
  %v793 = vpack.c.b16 %v553, %v537
  %v794 = vpack.c.b16 %v554, %v538
  %v795 = vpack.c.b16 %v555, %v539
  %v796 = vpack.c.b16 %v556, %v540
  %v797 = vpack.c.b16 %v557, %v541
  %v798 = vpack.c.b16 %v574, %v558
  %v799 = vpack.c.b16 %v575, %v559
  %v800 = vpack.c.b16 %v576, %v560
  %v801 = vpack.c.b16 %v577, %v561
  %v802 = vpack.c.b16 %v578, %v562
  %v803 = vpack.c.b16 %v579, %v563
  %v804 = vpack.c.b16 %v580, %v564
  %v805 = vpack.c.b16 %v581, %v565
  %v806 = vpack.c.b16 %v582, %v566
  %v807 = vpack.c.b16 %v583, %v567
  %v808 = vpack.c.b16 %v584, %v568
  %v809 = vpack.c.b16 %v585, %v569
  %v810 = vpack.c.b16 %v586, %v570
  %v811 = vpack.c.b16 %v587, %v571
  %v812 = vpack.c.b16 %v588, %v572
  %v813 = vpack.c.b16 %v589, %v573
  %v814 = vpack.c.b16 %v606, %v590
  %v815 = vpack.c.b16 %v607, %v591
  %v816 = vpack.c.b16 %v608, %v592
  %v817 = vpack.c.b16 %v609, %v593
  %v818 = vpack.c.b16 %v610, %v594
  %v819 = vpack.c.b16 %v611, %v595
  %v820 = vpack.c.b16 %v612, %v596
  %v821 = vpack.c.b16 %v613, %v597
  %v822 = vpack.c.b16 %v614, %v598
  %v823 = vpack.c.b16 %v615, %v599
  %v824 = vpack.c.b16 %v616, %v600
  %v825 = vpack.c.b16 %v617, %v601
  %v826 = vpack.c.b16 %v618, %v602
  %v827 = vpack.c.b16 %v619, %v603
  %v828 = vpack.c.b16 %v620, %v604
  %v829 = vpack.c.b16 %v621, %v605
  %v830 = vpack.c.b16 %v638, %v622
  %v831 = vpack.c.b16 %v639, %v623
  %v832 = vpack.c.b16 %v640, %v624
  %v833 = vpack.c.b16 %v641, %v625
  %v834 = vpack.c.b16 %v642, %v626
  %v835 = vpack.c.b16 %v643, %v627
  %v836 = vpack.c.b16 %v644, %v628
  %v837 = vpack.c.b16 %v645, %v629
  %v838 = vpack.c.b16 %v646, %v630
  %v839 = vpack.c.b16 %v647, %v631
  %v840 = vpack.c.b16 %v648, %v632
  %v841 = vpack.c.b16 %v649, %v633
  %v842 = vpack.c.b16 %v650, %v634
  %v843 = vpack.c.b16 %v651, %v635
  %v844 = vpack.c.b16 %v652, %v636
  %v845 = vpack.c.b16 %v653, %v637
  %v846 = vpack.c.b16 %v670, %v654
  %v847 = vpack.c.b16 %v671, %v655
  %v848 = vpack.c.b16 %v672, %v656
  %v849 = vpack.c.b16 %v673, %v657
  %v850 = vpack.c.b16 %v674, %v658
  %v851 = vpack.c.b16 %v675, %v659
  %v852 = vpack.c.b16 %v676, %v660
  %v853 = vpack.c.b16 %v677, %v661
  %v854 = vpack.c.b16 %v678, %v662
  %v855 = vpack.c.b16 %v679, %v663
  %v856 = vpack.c.b16 %v680, %v664
  %v857 = vpack.c.b16 %v681, %v665
  %v858 = vpack.c.b16 %v682, %v666
  %v859 = vpack.c.b16 %v683, %v667
  %v860 = vpack.c.b16 %v684, %v668
  %v861 = vpack.c.b16 %v685, %v669
  %v862 = vpack.c.b16 %v702, %v686
  %v863 = vpack.c.b16 %v703, %v687
  %v864 = vpack.c.b16 %v704, %v688
  %v865 = vpack.c.b16 %v705, %v689
  %v866 = vpack.c.b16 %v706, %v690
  %v867 = vpack.c.b16 %v707, %v691
  %v868 = vpack.c.b16 %v708, %v692
  %v869 = vpack.c.b16 %v709, %v693
  %v870 = vpack.c.b16 %v710, %v694
  %v871 = vpack.c.b16 %v711, %v695
  %v872 = vpack.c.b16 %v712, %v696
  %v873 = vpack.c.b16 %v713, %v697
  %v874 = vpack.c.b16 %v714, %v698
  %v875 = vpack.c.b16 %v715, %v699
  %v876 = vpack.c.b16 %v716, %v700
  %v877 = vpack.c.b16 %v717, %v701
  %v878 = vpack.c.b16 %v734, %v718
  %v879 = vpack.c.b16 %v735, %v719
  %v880 = vpack.c.b16 %v736, %v720
  %v881 = vpack.c.b16 %v737, %v721
  %v882 = vpack.c.b16 %v738, %v722
  %v883 = vpack.c.b16 %v739, %v723
  %v884 = vpack.c.b16 %v740, %v724
  %v885 = vpack.c.b16 %v741, %v725
  %v886 = vpack.c.b16 %v742, %v726
  %v887 = vpack.c.b16 %v743, %v727
  %v888 = vpack.c.b16 %v744, %v728
  %v889 = vpack.c.b16 %v745, %v729
  %v890 = vpack.c.b16 %v746, %v730
  %v891 = vpack.c.b16 %v747, %v731
  %v892 = vpack.c.b16 %v748, %v732
  %v893 = vpack.c.b16 %v749, %v733
  %v894 = vpack.c.b16 %v766, %v750
  %v895 = vpack.c.b16 %v767, %v751
  %v896 = vpack.c.b16 %v768, %v752
  %v897 = vpack.c.b16 %v769, %v753
  %v898 = vpack.c.b16 %v770, %v754
  %v899 = vpack.c.b16 %v771, %v755
  %v900 = vpack.c.b16 %v772, %v756
  %v901 = vpack.c.b16 %v773, %v757
  %v902 = vpack.c.b16 %v774, %v758
  %v903 = vpack.c.b16 %v775, %v759
  %v904 = vpack.c.b16 %v776, %v760
  %v905 = vpack.c.b16 %v777, %v761
  %v906 = vpack.c.b16 %v778, %v762
  %v907 = vpack.c.b16 %v779, %v763
  %v908 = vpack.c.b16 %v780, %v764
  %v909 = vpack.c.b16 %v781, %v765
  %v1294 = vunpack.c.l.b16 %v142
  %v1295 = vunpack.c.l.b16 %v143
  %v1296 = vunpack.c.l.b16 %v144
  %v1297 = vunpack.c.l.b16 %v145
  %v1298 = vunpack.c.l.b16 %v146
  %v1299 = vunpack.c.l.b16 %v147
  %v1300 = vunpack.c.l.b16 %v148
  %v1301 = vunpack.c.l.b16 %v149
  %v1302 = vunpack.c.l.b16 %v150
  %v1303 = vunpack.c.l.b16 %v151
  %v1304 = vunpack.c.l.b16 %v152
  %v1305 = vunpack.c.l.b16 %v153
  %v1306 = vunpack.c.l.b16 %v154
  %v1307 = vunpack.c.l.b16 %v155
  %v1308 = vunpack.c.l.b16 %v156
  %v1309 = vunpack.c.l.b16 %v157
  %v1310 = vunpack.c.l.b16 %v158
  %v1311 = vunpack.c.l.b16 %v159
  %v1312 = vunpack.c.l.b16 %v160
  %v1313 = vunpack.c.l.b16 %v161
  %v1314 = vunpack.c.l.b16 %v162
  %v1315 = vunpack.c.l.b16 %v163
  %v1316 = vunpack.c.l.b16 %v164
  %v1317 = vunpack.c.l.b16 %v165
  %v1318 = vunpack.c.l.b16 %v166
  %v1319 = vunpack.c.l.b16 %v167
  %v1320 = vunpack.c.l.b16 %v168
  %v1321 = vunpack.c.l.b16 %v169
  %v1322 = vunpack.c.l.b16 %v170
  %v1323 = vunpack.c.l.b16 %v171
  %v1324 = vunpack.c.l.b16 %v172
  %v1325 = vunpack.c.l.b16 %v173
  %v1326 = vunpack.c.l.b16 %v174
  %v1327 = vunpack.c.l.b16 %v175
  %v1328 = vunpack.c.l.b16 %v176
  %v1329 = vunpack.c.l.b16 %v177
  %v1330 = vunpack.c.l.b16 %v178
  %v1331 = vunpack.c.l.b16 %v179
  %v1332 = vunpack.c.l.b16 %v180
  %v1333 = vunpack.c.l.b16 %v181
  %v1334 = vunpack.c.l.b16 %v182
  %v1335 = vunpack.c.l.b16 %v183
  %v1336 = vunpack.c.l.b16 %v184
  %v1337 = vunpack.c.l.b16 %v185
  %v1338 = vunpack.c.l.b16 %v186
  %v1339 = vunpack.c.l.b16 %v187
  %v1340 = vunpack.c.l.b16 %v188
  %v1341 = vunpack.c.l.b16 %v189
  %v1342 = vunpack.c.l.b16 %v190
  %v1343 = vunpack.c.l.b16 %v191
  %v1344 = vunpack.c.l.b16 %v192
  %v1345 = vunpack.c.l.b16 %v193
  %v1346 = vunpack.c.l.b16 %v194
  %v1347 = vunpack.c.l.b16 %v195
  %v1348 = vunpack.c.l.b16 %v196
  %v1349 = vunpack.c.l.b16 %v197
  %v1350 = vunpack.c.l.b16 %v198
  %v1351 = vunpack.c.l.b16 %v199
  %v1352 = vunpack.c.l.b16 %v200
  %v1353 = vunpack.c.l.b16 %v201
  %v1354 = vunpack.c.l.b16 %v202
  %v1355 = vunpack.c.l.b16 %v203
  %v1356 = vunpack.c.l.b16 %v204
  %v1357 = vunpack.c.l.b16 %v205
  %v1358 = vunpack.c.l.b16 %v206
  %v1359 = vunpack.c.l.b16 %v207
  %v1360 = vunpack.c.l.b16 %v208
  %v1361 = vunpack.c.l.b16 %v209
  %v1362 = vunpack.c.l.b16 %v210
  %v1363 = vunpack.c.l.b16 %v211
  %v1364 = vunpack.c.l.b16 %v212
  %v1365 = vunpack.c.l.b16 %v213
  %v1366 = vunpack.c.l.b16 %v214
  %v1367 = vunpack.c.l.b16 %v215
  %v1368 = vunpack.c.l.b16 %v216
  %v1369 = vunpack.c.l.b16 %v217
  %v1370 = vunpack.c.l.b16 %v218
  %v1371 = vunpack.c.l.b16 %v219
  %v1372 = vunpack.c.l.b16 %v220
  %v1373 = vunpack.c.l.b16 %v221
  %v1374 = vunpack.c.l.b16 %v222
  %v1375 = vunpack.c.l.b16 %v223
  %v1376 = vunpack.c.l.b16 %v224
  %v1377 = vunpack.c.l.b16 %v225
  %v1378 = vunpack.c.l.b16 %v226
  %v1379 = vunpack.c.l.b16 %v227
  %v1380 = vunpack.c.l.b16 %v228
  %v1381 = vunpack.c.l.b16 %v229
  %v1382 = vunpack.c.l.b16 %v230
  %v1383 = vunpack.c.l.b16 %v231
  %v1384 = vunpack.c.l.b16 %v232
  %v1385 = vunpack.c.l.b16 %v233
  %v1386 = vunpack.c.l.b16 %v234
  %v1387 = vunpack.c.l.b16 %v235
  %v1388 = vunpack.c.l.b16 %v236
  %v1389 = vunpack.c.l.b16 %v237
  %v1390 = vunpack.c.l.b16 %v238
  %v1391 = vunpack.c.l.b16 %v239
  %v1392 = vunpack.c.l.b16 %v240
  %v1393 = vunpack.c.l.b16 %v241
  %v1394 = vunpack.c.l.b16 %v242
  %v1395 = vunpack.c.l.b16 %v243
  %v1396 = vunpack.c.l.b16 %v244
  %v1397 = vunpack.c.l.b16 %v245
  %v1398 = vunpack.c.l.b16 %v246
  %v1399 = vunpack.c.l.b16 %v247
  %v1400 = vunpack.c.l.b16 %v248
  %v1401 = vunpack.c.l.b16 %v249
  %v1402 = vunpack.c.l.b16 %v250
  %v1403 = vunpack.c.l.b16 %v251
  %v1404 = vunpack.c.l.b16 %v252
  %v1405 = vunpack.c.l.b16 %v253
  %v1406 = vunpack.c.l.b16 %v254
  %v1407 = vunpack.c.l.b16 %v255
  %v1408 = vunpack.c.l.b16 %v256
  %v1409 = vunpack.c.l.b16 %v257
  %v1410 = vunpack.c.l.b16 %v258
  %v1411 = vunpack.c.l.b16 %v259
  %v1412 = vunpack.c.l.b16 %v260
  %v1413 = vunpack.c.l.b16 %v261
  %v1414 = vunpack.c.l.b16 %v262
  %v1415 = vunpack.c.l.b16 %v263
  %v1416 = vunpack.c.l.b16 %v264
  %v1417 = vunpack.c.l.b16 %v265
  %v1418 = vunpack.c.l.b16 %v266
  %v1419 = vunpack.c.l.b16 %v267
  %v1420 = vunpack.c.l.b16 %v268
  %v1421 = vunpack.c.l.b16 %v269
  %v1422 = vunpack.c.l.b16 %v270
  %v1423 = vunpack.c.l.b16 %v271
  %v1424 = vunpack.c.l.b16 %v272
  %v1425 = vunpack.c.l.b16 %v273
  %v1426 = vunpack.c.l.b16 %v274
  %v1427 = vunpack.c.l.b16 %v275
  %v1428 = vunpack.c.l.b16 %v276
  %v1429 = vunpack.c.l.b16 %v277
  %v1430 = vunpack.c.l.b16 %v278
  %v1431 = vunpack.c.l.b16 %v279
  %v1432 = vunpack.c.l.b16 %v280
  %v1433 = vunpack.c.l.b16 %v281
  %v1434 = vunpack.c.l.b16 %v282
  %v1435 = vunpack.c.l.b16 %v283
  %v1436 = vunpack.c.l.b16 %v284
  %v1437 = vunpack.c.l.b16 %v285
  %v1438 = vunpack.c.l.b16 %v286
  %v1439 = vunpack.c.l.b16 %v287
  %v1440 = vunpack.c.l.b16 %v288
  %v1441 = vunpack.c.l.b16 %v289
  %v1442 = vunpack.c.l.b16 %v290
  %v1443 = vunpack.c.l.b16 %v291
  %v1444 = vunpack.c.l.b16 %v292
  %v1445 = vunpack.c.l.b16 %v293
  %v1446 = vunpack.c.l.b16 %v294
  %v1447 = vunpack.c.l.b16 %v295
  %v1448 = vunpack.c.l.b16 %v296
  %v1449 = vunpack.c.l.b16 %v297
  %v1450 = vunpack.c.l.b16 %v298
  %v1451 = vunpack.c.l.b16 %v299
  %v1452 = vunpack.c.l.b16 %v300
  %v1453 = vunpack.c.l.b16 %v301
  %v1454 = vunpack.c.l.b16 %v302
  %v1455 = vunpack.c.l.b16 %v303
  %v1456 = vunpack.c.l.b16 %v304
  %v1457 = vunpack.c.l.b16 %v305
  %v1458 = vunpack.c.l.b16 %v306
  %v1459 = vunpack.c.l.b16 %v307
  %v1460 = vunpack.c.l.b16 %v308
  %v1461 = vunpack.c.l.b16 %v309
  %v1462 = vunpack.c.l.b16 %v310
  %v1463 = vunpack.c.l.b16 %v311
  %v1464 = vunpack.c.l.b16 %v312
  %v1465 = vunpack.c.l.b16 %v313
  %v1466 = vunpack.c.l.b16 %v314
  %v1467 = vunpack.c.l.b16 %v315
  %v1468 = vunpack.c.l.b16 %v316
  %v1469 = vunpack.c.l.b16 %v317
  %v1470 = vunpack.c.l.b16 %v318
  %v1471 = vunpack.c.l.b16 %v319
  %v1472 = vunpack.c.l.b16 %v320
  %v1473 = vunpack.c.l.b16 %v321
  %v1474 = vunpack.c.l.b16 %v322
  %v1475 = vunpack.c.l.b16 %v323
  %v1476 = vunpack.c.l.b16 %v324
  %v1477 = vunpack.c.l.b16 %v325
  %v1478 = vunpack.c.l.b16 %v326
  %v1479 = vunpack.c.l.b16 %v327
  %v1480 = vunpack.c.l.b16 %v328
  %v1481 = vunpack.c.l.b16 %v329
  %v1482 = vunpack.c.l.b16 %v330
  %v1483 = vunpack.c.l.b16 %v331
  %v1484 = vunpack.c.l.b16 %v332
  %v1485 = vunpack.c.l.b16 %v333
  %v1486 = vunpack.c.l.b16 %v334
  %v1487 = vunpack.c.l.b16 %v335
  %v1488 = vunpack.c.l.b16 %v336
  %v1489 = vunpack.c.l.b16 %v337
  %v1490 = vunpack.c.l.b16 %v338
  %v1491 = vunpack.c.l.b16 %v339
  %v1492 = vunpack.c.l.b16 %v340
  %v1493 = vunpack.c.l.b16 %v341
  %v1494 = vunpack.c.l.b16 %v342
  %v1495 = vunpack.c.l.b16 %v343
  %v1496 = vunpack.c.l.b16 %v344
  %v1497 = vunpack.c.l.b16 %v345
  %v1498 = vunpack.c.l.b16 %v346
  %v1499 = vunpack.c.l.b16 %v347
  %v1500 = vunpack.c.l.b16 %v348
  %v1501 = vunpack.c.l.b16 %v349
  %v1502 = vunpack.c.l.b16 %v350
  %v1503 = vunpack.c.l.b16 %v351
  %v1504 = vunpack.c.l.b16 %v352
  %v1505 = vunpack.c.l.b16 %v353
  %v1506 = vunpack.c.l.b16 %v354
  %v1507 = vunpack.c.l.b16 %v355
  %v1508 = vunpack.c.l.b16 %v356
  %v1509 = vunpack.c.l.b16 %v357
  %v1510 = vunpack.c.l.b16 %v358
  %v1511 = vunpack.c.l.b16 %v359
  %v1512 = vunpack.c.l.b16 %v360
  %v1513 = vunpack.c.l.b16 %v361
  %v1514 = vunpack.c.l.b16 %v362
  %v1515 = vunpack.c.l.b16 %v363
  %v1516 = vunpack.c.l.b16 %v364
  %v1517 = vunpack.c.l.b16 %v365
  %v1518 = vunpack.c.l.b16 %v366
  %v1519 = vunpack.c.l.b16 %v367
  %v1520 = vunpack.c.l.b16 %v368
  %v1521 = vunpack.c.l.b16 %v369
  %v1522 = vunpack.c.l.b16 %v370
  %v1523 = vunpack.c.l.b16 %v371
  %v1524 = vunpack.c.l.b16 %v372
  %v1525 = vunpack.c.l.b16 %v373
  %v1526 = vunpack.c.l.b16 %v374
  %v1527 = vunpack.c.l.b16 %v375
  %v1528 = vunpack.c.l.b16 %v376
  %v1529 = vunpack.c.l.b16 %v377
  %v1530 = vunpack.c.l.b16 %v378
  %v1531 = vunpack.c.l.b16 %v379
  %v1532 = vunpack.c.l.b16 %v380
  %v1533 = vunpack.c.l.b16 %v381
  %v1534 = vunpack.c.l.b16 %v382
  %v1535 = vunpack.c.l.b16 %v383
  %v1536 = vunpack.c.l.b16 %v384
  %v1537 = vunpack.c.l.b16 %v385
  %v1538 = vunpack.c.l.b16 %v386
  %v1539 = vunpack.c.l.b16 %v387
  %v1540 = vunpack.c.l.b16 %v388
  %v1541 = vunpack.c.l.b16 %v389
  %v1542 = vunpack.c.l.b16 %v390
  %v1543 = vunpack.c.l.b16 %v391
  %v1544 = vunpack.c.l.b16 %v392
  %v1545 = vunpack.c.l.b16 %v393
  %v1546 = vunpack.c.l.b16 %v394
  %v1547 = vunpack.c.l.b16 %v395
  %v1548 = vunpack.c.l.b16 %v396
  %v1549 = vunpack.c.l.b16 %v397
  %v1550 = vpack.c.b16 %v1295, %v1294
  %v1551 = vpack.c.b16 %v1297, %v1296
  %v1552 = vpack.c.b16 %v1299, %v1298
  %v1553 = vpack.c.b16 %v1301, %v1300
  %v1554 = vpack.c.b16 %v1303, %v1302
  %v1555 = vpack.c.b16 %v1305, %v1304
  %v1556 = vpack.c.b16 %v1307, %v1306
  %v1557 = vpack.c.b16 %v1309, %v1308
  %v1558 = vpack.c.b16 %v1311, %v1310
  %v1559 = vpack.c.b16 %v1313, %v1312
  %v1560 = vpack.c.b16 %v1315, %v1314
  %v1561 = vpack.c.b16 %v1317, %v1316
  %v1562 = vpack.c.b16 %v1319, %v1318
  %v1563 = vpack.c.b16 %v1321, %v1320
  %v1564 = vpack.c.b16 %v1323, %v1322
  %v1565 = vpack.c.b16 %v1325, %v1324
  %v1566 = vpack.c.b16 %v1327, %v1326
  %v1567 = vpack.c.b16 %v1329, %v1328
  %v1568 = vpack.c.b16 %v1331, %v1330
  %v1569 = vpack.c.b16 %v1333, %v1332
  %v1570 = vpack.c.b16 %v1335, %v1334
  %v1571 = vpack.c.b16 %v1337, %v1336
  %v1572 = vpack.c.b16 %v1339, %v1338
  %v1573 = vpack.c.b16 %v1341, %v1340
  %v1574 = vpack.c.b16 %v1343, %v1342
  %v1575 = vpack.c.b16 %v1345, %v1344
  %v1576 = vpack.c.b16 %v1347, %v1346
  %v1577 = vpack.c.b16 %v1349, %v1348
  %v1578 = vpack.c.b16 %v1351, %v1350
  %v1579 = vpack.c.b16 %v1353, %v1352
  %v1580 = vpack.c.b16 %v1355, %v1354
  %v1581 = vpack.c.b16 %v1357, %v1356
  %v1582 = vpack.c.b16 %v1359, %v1358
  %v1583 = vpack.c.b16 %v1361, %v1360
  %v1584 = vpack.c.b16 %v1363, %v1362
  %v1585 = vpack.c.b16 %v1365, %v1364
  %v1586 = vpack.c.b16 %v1367, %v1366
  %v1587 = vpack.c.b16 %v1369, %v1368
  %v1588 = vpack.c.b16 %v1371, %v1370
  %v1589 = vpack.c.b16 %v1373, %v1372
  %v1590 = vpack.c.b16 %v1375, %v1374
  %v1591 = vpack.c.b16 %v1377, %v1376
  %v1592 = vpack.c.b16 %v1379, %v1378
  %v1593 = vpack.c.b16 %v1381, %v1380
  %v1594 = vpack.c.b16 %v1383, %v1382
  %v1595 = vpack.c.b16 %v1385, %v1384
  %v1596 = vpack.c.b16 %v1387, %v1386
  %v1597 = vpack.c.b16 %v1389, %v1388
  %v1598 = vpack.c.b16 %v1391, %v1390
  %v1599 = vpack.c.b16 %v1393, %v1392
  %v1600 = vpack.c.b16 %v1395, %v1394
  %v1601 = vpack.c.b16 %v1397, %v1396
  %v1602 = vpack.c.b16 %v1399, %v1398
  %v1603 = vpack.c.b16 %v1401, %v1400
  %v1604 = vpack.c.b16 %v1403, %v1402
  %v1605 = vpack.c.b16 %v1405, %v1404
  %v1606 = vpack.c.b16 %v1407, %v1406
  %v1607 = vpack.c.b16 %v1409, %v1408
  %v1608 = vpack.c.b16 %v1411, %v1410
  %v1609 = vpack.c.b16 %v1413, %v1412
  %v1610 = vpack.c.b16 %v1415, %v1414
  %v1611 = vpack.c.b16 %v1417, %v1416
  %v1612 = vpack.c.b16 %v1419, %v1418
  %v1613 = vpack.c.b16 %v1421, %v1420
  %v1614 = vpack.c.b16 %v1423, %v1422
  %v1615 = vpack.c.b16 %v1425, %v1424
  %v1616 = vpack.c.b16 %v1427, %v1426
  %v1617 = vpack.c.b16 %v1429, %v1428
  %v1618 = vpack.c.b16 %v1431, %v1430
  %v1619 = vpack.c.b16 %v1433, %v1432
  %v1620 = vpack.c.b16 %v1435, %v1434
  %v1621 = vpack.c.b16 %v1437, %v1436
  %v1622 = vpack.c.b16 %v1439, %v1438
  %v1623 = vpack.c.b16 %v1441, %v1440
  %v1624 = vpack.c.b16 %v1443, %v1442
  %v1625 = vpack.c.b16 %v1445, %v1444
  %v1626 = vpack.c.b16 %v1447, %v1446
  %v1627 = vpack.c.b16 %v1449, %v1448
  %v1628 = vpack.c.b16 %v1451, %v1450
  %v1629 = vpack.c.b16 %v1453, %v1452
  %v1630 = vpack.c.b16 %v1455, %v1454
  %v1631 = vpack.c.b16 %v1457, %v1456
  %v1632 = vpack.c.b16 %v1459, %v1458
  %v1633 = vpack.c.b16 %v1461, %v1460
  %v1634 = vpack.c.b16 %v1463, %v1462
  %v1635 = vpack.c.b16 %v1465, %v1464
  %v1636 = vpack.c.b16 %v1467, %v1466
  %v1637 = vpack.c.b16 %v1469, %v1468
  %v1638 = vpack.c.b16 %v1471, %v1470
  %v1639 = vpack.c.b16 %v1473, %v1472
  %v1640 = vpack.c.b16 %v1475, %v1474
  %v1641 = vpack.c.b16 %v1477, %v1476
  %v1642 = vpack.c.b16 %v1479, %v1478
  %v1643 = vpack.c.b16 %v1481, %v1480
  %v1644 = vpack.c.b16 %v1483, %v1482
  %v1645 = vpack.c.b16 %v1485, %v1484
  %v1646 = vpack.c.b16 %v1487, %v1486
  %v1647 = vpack.c.b16 %v1489, %v1488
  %v1648 = vpack.c.b16 %v1491, %v1490
  %v1649 = vpack.c.b16 %v1493, %v1492
  %v1650 = vpack.c.b16 %v1495, %v1494
  %v1651 = vpack.c.b16 %v1497, %v1496
  %v1652 = vpack.c.b16 %v1499, %v1498
  %v1653 = vpack.c.b16 %v1501, %v1500
  %v1654 = vpack.c.b16 %v1503, %v1502
  %v1655 = vpack.c.b16 %v1505, %v1504
  %v1656 = vpack.c.b16 %v1507, %v1506
  %v1657 = vpack.c.b16 %v1509, %v1508
  %v1658 = vpack.c.b16 %v1511, %v1510
  %v1659 = vpack.c.b16 %v1513, %v1512
  %v1660 = vpack.c.b16 %v1515, %v1514
  %v1661 = vpack.c.b16 %v1517, %v1516
  %v1662 = vpack.c.b16 %v1519, %v1518
  %v1663 = vpack.c.b16 %v1521, %v1520
  %v1664 = vpack.c.b16 %v1523, %v1522
  %v1665 = vpack.c.b16 %v1525, %v1524
  %v1666 = vpack.c.b16 %v1527, %v1526
  %v1667 = vpack.c.b16 %v1529, %v1528
  %v1668 = vpack.c.b16 %v1531, %v1530
  %v1669 = vpack.c.b16 %v1533, %v1532
  %v1670 = vpack.c.b16 %v1535, %v1534
  %v1671 = vpack.c.b16 %v1537, %v1536
  %v1672 = vpack.c.b16 %v1539, %v1538
  %v1673 = vpack.c.b16 %v1541, %v1540
  %v1674 = vpack.c.b16 %v1543, %v1542
  %v1675 = vpack.c.b16 %v1545, %v1544
  %v1676 = vpack.c.b16 %v1547, %v1546
  %v1677 = vpack.c.b16 %v1549, %v1548
  %1806 = vmatpush.bf16.msra.mxu0 %v1557
  %1807 = vmatpush.bf16.msra.mxu0 %v1556
  %1808 = vmatpush.bf16.msra.mxu0 %v1555
  %1809 = vmatpush.bf16.msra.mxu0 %v1554
  %1810 = vmatpush.bf16.msra.mxu0 %v1553
  %1811 = vmatpush.bf16.msra.mxu0 %v1552
  %1812 = vmatpush.bf16.msra.mxu0 %v1551
  %1813 = vmatpush.bf16.msra.mxu0 %v1550
  %1814 = vmatmul.bf16.gmra.mxu0 %v782
  %v1815 = vpop.f32.mrf.mxu0
  %v1816 = vadd.f32 0.0, %v1815
  %v1817 = vpop.f32.mrf.mxu0
  %v1818 = vadd.f32 0.0, %v1817
  %1819 = vmatmul.bf16.gmra.mxu0 %v798
  %v1820 = vpop.f32.mrf.mxu0
  %v1821 = vadd.f32 0.0, %v1820
  %v1822 = vpop.f32.mrf.mxu0
  %v1823 = vadd.f32 0.0, %v1822
  %1824 = vmatmul.bf16.gmra.mxu0 %v814
  %v1825 = vpop.f32.mrf.mxu0
  %v1826 = vadd.f32 0.0, %v1825
  %v1827 = vpop.f32.mrf.mxu0
  %v1828 = vadd.f32 0.0, %v1827
  %1829 = vmatmul.bf16.gmra.mxu0 %v830
  %v1830 = vpop.f32.mrf.mxu0
  %v1831 = vadd.f32 0.0, %v1830
  %v1832 = vpop.f32.mrf.mxu0
  %v1833 = vadd.f32 0.0, %v1832
  %1834 = vmatmul.bf16.gmra.mxu0 %v846
  %v1835 = vpop.f32.mrf.mxu0
  %v1836 = vadd.f32 0.0, %v1835
  %v1837 = vpop.f32.mrf.mxu0
  %v1838 = vadd.f32 0.0, %v1837
  %1839 = vmatmul.bf16.gmra.mxu0 %v862
  %v1840 = vpop.f32.mrf.mxu0
  %v1841 = vadd.f32 0.0, %v1840
  %v1842 = vpop.f32.mrf.mxu0
  %v1843 = vadd.f32 0.0, %v1842
  %1844 = vmatmul.bf16.gmra.mxu0 %v878
  %v1845 = vpop.f32.mrf.mxu0
  %v1846 = vadd.f32 0.0, %v1845
  %v1847 = vpop.f32.mrf.mxu0
  %v1848 = vadd.f32 0.0, %v1847
  %1849 = vmatmul.bf16.gmra.mxu0 %v894
  %v1850 = vpop.f32.mrf.mxu0
  %v1851 = vadd.f32 0.0, %v1850
  %v1852 = vpop.f32.mrf.mxu0
  %v1853 = vadd.f32 0.0, %v1852
  %1854 = vdwg.mxu0
  %1855 = vmatpush.bf16.msra.mxu0 %v1565
  %1856 = vmatpush.bf16.msra.mxu0 %v1564
  %1857 = vmatpush.bf16.msra.mxu0 %v1563
  %1858 = vmatpush.bf16.msra.mxu0 %v1562
  %1859 = vmatpush.bf16.msra.mxu0 %v1561
  %1860 = vmatpush.bf16.msra.mxu0 %v1560
  %1861 = vmatpush.bf16.msra.mxu0 %v1559
  %1862 = vmatpush.bf16.msra.mxu0 %v1558
  %1863 = vmatmul.bf16.gmra.mxu0 %v783
  %v1864 = vpop.f32.mrf.mxu0
  %v1865 = vadd.f32 %v1816, %v1864
  %v1866 = vpop.f32.mrf.mxu0
  %v1867 = vadd.f32 %v1818, %v1866
  %1868 = vmatmul.bf16.gmra.mxu0 %v799
  %v1869 = vpop.f32.mrf.mxu0
  %v1870 = vadd.f32 %v1821, %v1869
  %v1871 = vpop.f32.mrf.mxu0
  %v1872 = vadd.f32 %v1823, %v1871
  %1873 = vmatmul.bf16.gmra.mxu0 %v815
  %v1874 = vpop.f32.mrf.mxu0
  %v1875 = vadd.f32 %v1826, %v1874
  %v1876 = vpop.f32.mrf.mxu0
  %v1877 = vadd.f32 %v1828, %v1876
  %1878 = vmatmul.bf16.gmra.mxu0 %v831
  %v1879 = vpop.f32.mrf.mxu0
  %v1880 = vadd.f32 %v1831, %v1879
  %v1881 = vpop.f32.mrf.mxu0
  %v1882 = vadd.f32 %v1833, %v1881
  %1883 = vmatmul.bf16.gmra.mxu0 %v847
  %v1884 = vpop.f32.mrf.mxu0
  %v1885 = vadd.f32 %v1836, %v1884
  %v1886 = vpop.f32.mrf.mxu0
  %v1887 = vadd.f32 %v1838, %v1886
  %1888 = vmatmul.bf16.gmra.mxu0 %v863
  %v1889 = vpop.f32.mrf.mxu0
  %v1890 = vadd.f32 %v1841, %v1889
  %v1891 = vpop.f32.mrf.mxu0
  %v1892 = vadd.f32 %v1843, %v1891
  %1893 = vmatmul.bf16.gmra.mxu0 %v879
  %v1894 = vpop.f32.mrf.mxu0
  %v1895 = vadd.f32 %v1846, %v1894
  %v1896 = vpop.f32.mrf.mxu0
  %v1897 = vadd.f32 %v1848, %v1896
  %1898 = vmatmul.bf16.gmra.mxu0 %v895
  %v1899 = vpop.f32.mrf.mxu0
  %v1900 = vadd.f32 %v1851, %v1899
  %v1901 = vpop.f32.mrf.mxu0
  %v1902 = vadd.f32 %v1853, %v1901
  %1903 = vdwg.mxu0
  %1904 = vmatpush.bf16.msra.mxu0 %v1573
  %1905 = vmatpush.bf16.msra.mxu0 %v1572
  %1906 = vmatpush.bf16.msra.mxu0 %v1571
  %1907 = vmatpush.bf16.msra.mxu0 %v1570
  %1908 = vmatpush.bf16.msra.mxu0 %v1569
  %1909 = vmatpush.bf16.msra.mxu0 %v1568
  %1910 = vmatpush.bf16.msra.mxu0 %v1567
  %1911 = vmatpush.bf16.msra.mxu0 %v1566
  %1912 = vmatmul.bf16.gmra.mxu0 %v784
  %v1913 = vpop.f32.mrf.mxu0
  %v1914 = vadd.f32 %v1865, %v1913
  %v1915 = vpop.f32.mrf.mxu0
  %v1916 = vadd.f32 %v1867, %v1915
  %1917 = vmatmul.bf16.gmra.mxu0 %v800
  %v1918 = vpop.f32.mrf.mxu0
  %v1919 = vadd.f32 %v1870, %v1918
  %v1920 = vpop.f32.mrf.mxu0
  %v1921 = vadd.f32 %v1872, %v1920
  %1922 = vmatmul.bf16.gmra.mxu0 %v816
  %v1923 = vpop.f32.mrf.mxu0
  %v1924 = vadd.f32 %v1875, %v1923
  %v1925 = vpop.f32.mrf.mxu0
  %v1926 = vadd.f32 %v1877, %v1925
  %1927 = vmatmul.bf16.gmra.mxu0 %v832
  %v1928 = vpop.f32.mrf.mxu0
  %v1929 = vadd.f32 %v1880, %v1928
  %v1930 = vpop.f32.mrf.mxu0
  %v1931 = vadd.f32 %v1882, %v1930
  %1932 = vmatmul.bf16.gmra.mxu0 %v848
  %v1933 = vpop.f32.mrf.mxu0
  %v1934 = vadd.f32 %v1885, %v1933
  %v1935 = vpop.f32.mrf.mxu0
  %v1936 = vadd.f32 %v1887, %v1935
  %1937 = vmatmul.bf16.gmra.mxu0 %v864
  %v1938 = vpop.f32.mrf.mxu0
  %v1939 = vadd.f32 %v1890, %v1938
  %v1940 = vpop.f32.mrf.mxu0
  %v1941 = vadd.f32 %v1892, %v1940
  %1942 = vmatmul.bf16.gmra.mxu0 %v880
  %v1943 = vpop.f32.mrf.mxu0
  %v1944 = vadd.f32 %v1895, %v1943
  %v1945 = vpop.f32.mrf.mxu0
  %v1946 = vadd.f32 %v1897, %v1945
  %1947 = vmatmul.bf16.gmra.mxu0 %v896
  %v1948 = vpop.f32.mrf.mxu0
  %v1949 = vadd.f32 %v1900, %v1948
  %v1950 = vpop.f32.mrf.mxu0
  %v1951 = vadd.f32 %v1902, %v1950
  %1952 = vdwg.mxu0
  %1953 = vmatpush.bf16.msra.mxu0 %v1581
  %1954 = vmatpush.bf16.msra.mxu0 %v1580
  %1955 = vmatpush.bf16.msra.mxu0 %v1579
  %1956 = vmatpush.bf16.msra.mxu0 %v1578
  %1957 = vmatpush.bf16.msra.mxu0 %v1577
  %1958 = vmatpush.bf16.msra.mxu0 %v1576
  %1959 = vmatpush.bf16.msra.mxu0 %v1575
  %1960 = vmatpush.bf16.msra.mxu0 %v1574
  %1961 = vmatmul.bf16.gmra.mxu0 %v785
  %v1962 = vpop.f32.mrf.mxu0
  %v1963 = vadd.f32 %v1914, %v1962
  %v1964 = vpop.f32.mrf.mxu0
  %v1965 = vadd.f32 %v1916, %v1964
  %1966 = vmatmul.bf16.gmra.mxu0 %v801
  %v1967 = vpop.f32.mrf.mxu0
  %v1968 = vadd.f32 %v1919, %v1967
  %v1969 = vpop.f32.mrf.mxu0
  %v1970 = vadd.f32 %v1921, %v1969
  %1971 = vmatmul.bf16.gmra.mxu0 %v817
  %v1972 = vpop.f32.mrf.mxu0
  %v1973 = vadd.f32 %v1924, %v1972
  %v1974 = vpop.f32.mrf.mxu0
  %v1975 = vadd.f32 %v1926, %v1974
  %1976 = vmatmul.bf16.gmra.mxu0 %v833
  %v1977 = vpop.f32.mrf.mxu0
  %v1978 = vadd.f32 %v1929, %v1977
  %v1979 = vpop.f32.mrf.mxu0
  %v1980 = vadd.f32 %v1931, %v1979
  %1981 = vmatmul.bf16.gmra.mxu0 %v849
  %v1982 = vpop.f32.mrf.mxu0
  %v1983 = vadd.f32 %v1934, %v1982
  %v1984 = vpop.f32.mrf.mxu0
  %v1985 = vadd.f32 %v1936, %v1984
  %1986 = vmatmul.bf16.gmra.mxu0 %v865
  %v1987 = vpop.f32.mrf.mxu0
  %v1988 = vadd.f32 %v1939, %v1987
  %v1989 = vpop.f32.mrf.mxu0
  %v1990 = vadd.f32 %v1941, %v1989
  %1991 = vmatmul.bf16.gmra.mxu0 %v881
  %v1992 = vpop.f32.mrf.mxu0
  %v1993 = vadd.f32 %v1944, %v1992
  %v1994 = vpop.f32.mrf.mxu0
  %v1995 = vadd.f32 %v1946, %v1994
  %1996 = vmatmul.bf16.gmra.mxu0 %v897
  %v1997 = vpop.f32.mrf.mxu0
  %v1998 = vadd.f32 %v1949, %v1997
  %v1999 = vpop.f32.mrf.mxu0
  %v2000 = vadd.f32 %v1951, %v1999
  %2001 = vdwg.mxu0
  %2002 = vmatpush.bf16.msra.mxu0 %v1589
  %2003 = vmatpush.bf16.msra.mxu0 %v1588
  %2004 = vmatpush.bf16.msra.mxu0 %v1587
  %2005 = vmatpush.bf16.msra.mxu0 %v1586
  %2006 = vmatpush.bf16.msra.mxu0 %v1585
  %2007 = vmatpush.bf16.msra.mxu0 %v1584
  %2008 = vmatpush.bf16.msra.mxu0 %v1583
  %2009 = vmatpush.bf16.msra.mxu0 %v1582
  %2010 = vmatmul.bf16.gmra.mxu0 %v786
  %v2011 = vpop.f32.mrf.mxu0
  %v2012 = vadd.f32 %v1963, %v2011
  %v2013 = vpop.f32.mrf.mxu0
  %v2014 = vadd.f32 %v1965, %v2013
  %2015 = vmatmul.bf16.gmra.mxu0 %v802
  %v2016 = vpop.f32.mrf.mxu0
  %v2017 = vadd.f32 %v1968, %v2016
  %v2018 = vpop.f32.mrf.mxu0
  %v2019 = vadd.f32 %v1970, %v2018
  %2020 = vmatmul.bf16.gmra.mxu0 %v818
  %v2021 = vpop.f32.mrf.mxu0
  %v2022 = vadd.f32 %v1973, %v2021
  %v2023 = vpop.f32.mrf.mxu0
  %v2024 = vadd.f32 %v1975, %v2023
  %2025 = vmatmul.bf16.gmra.mxu0 %v834
  %v2026 = vpop.f32.mrf.mxu0
  %v2027 = vadd.f32 %v1978, %v2026
  %v2028 = vpop.f32.mrf.mxu0
  %v2029 = vadd.f32 %v1980, %v2028
  %2030 = vmatmul.bf16.gmra.mxu0 %v850
  %v2031 = vpop.f32.mrf.mxu0
  %v2032 = vadd.f32 %v1983, %v2031
  %v2033 = vpop.f32.mrf.mxu0
  %v2034 = vadd.f32 %v1985, %v2033
  %2035 = vmatmul.bf16.gmra.mxu0 %v866
  %v2036 = vpop.f32.mrf.mxu0
  %v2037 = vadd.f32 %v1988, %v2036
  %v2038 = vpop.f32.mrf.mxu0
  %v2039 = vadd.f32 %v1990, %v2038
  %2040 = vmatmul.bf16.gmra.mxu0 %v882
  %v2041 = vpop.f32.mrf.mxu0
  %v2042 = vadd.f32 %v1993, %v2041
  %v2043 = vpop.f32.mrf.mxu0
  %v2044 = vadd.f32 %v1995, %v2043
  %2045 = vmatmul.bf16.gmra.mxu0 %v898
  %v2046 = vpop.f32.mrf.mxu0
  %v2047 = vadd.f32 %v1998, %v2046
  %v2048 = vpop.f32.mrf.mxu0
  %v2049 = vadd.f32 %v2000, %v2048
  %2050 = vdwg.mxu0
  %2051 = vmatpush.bf16.msra.mxu0 %v1597
  %2052 = vmatpush.bf16.msra.mxu0 %v1596
  %2053 = vmatpush.bf16.msra.mxu0 %v1595
  %2054 = vmatpush.bf16.msra.mxu0 %v1594
  %2055 = vmatpush.bf16.msra.mxu0 %v1593
  %2056 = vmatpush.bf16.msra.mxu0 %v1592
  %2057 = vmatpush.bf16.msra.mxu0 %v1591
  %2058 = vmatpush.bf16.msra.mxu0 %v1590
  %2059 = vmatmul.bf16.gmra.mxu0 %v787
  %v2060 = vpop.f32.mrf.mxu0
  %v2061 = vadd.f32 %v2012, %v2060
  %v2062 = vpop.f32.mrf.mxu0
  %v2063 = vadd.f32 %v2014, %v2062
  %2064 = vmatmul.bf16.gmra.mxu0 %v803
  %v2065 = vpop.f32.mrf.mxu0
  %v2066 = vadd.f32 %v2017, %v2065
  %v2067 = vpop.f32.mrf.mxu0
  %v2068 = vadd.f32 %v2019, %v2067
  %2069 = vmatmul.bf16.gmra.mxu0 %v819
  %v2070 = vpop.f32.mrf.mxu0
  %v2071 = vadd.f32 %v2022, %v2070
  %v2072 = vpop.f32.mrf.mxu0
  %v2073 = vadd.f32 %v2024, %v2072
  %2074 = vmatmul.bf16.gmra.mxu0 %v835
  %v2075 = vpop.f32.mrf.mxu0
  %v2076 = vadd.f32 %v2027, %v2075
  %v2077 = vpop.f32.mrf.mxu0
  %v2078 = vadd.f32 %v2029, %v2077
  %2079 = vmatmul.bf16.gmra.mxu0 %v851
  %v2080 = vpop.f32.mrf.mxu0
  %v2081 = vadd.f32 %v2032, %v2080
  %v2082 = vpop.f32.mrf.mxu0
  %v2083 = vadd.f32 %v2034, %v2082
  %2084 = vmatmul.bf16.gmra.mxu0 %v867
  %v2085 = vpop.f32.mrf.mxu0
  %v2086 = vadd.f32 %v2037, %v2085
  %v2087 = vpop.f32.mrf.mxu0
  %v2088 = vadd.f32 %v2039, %v2087
  %2089 = vmatmul.bf16.gmra.mxu0 %v883
  %v2090 = vpop.f32.mrf.mxu0
  %v2091 = vadd.f32 %v2042, %v2090
  %v2092 = vpop.f32.mrf.mxu0
  %v2093 = vadd.f32 %v2044, %v2092
  %2094 = vmatmul.bf16.gmra.mxu0 %v899
  %v2095 = vpop.f32.mrf.mxu0
  %v2096 = vadd.f32 %v2047, %v2095
  %v2097 = vpop.f32.mrf.mxu0
  %v2098 = vadd.f32 %v2049, %v2097
  %2099 = vdwg.mxu0
  %2100 = vmatpush.bf16.msra.mxu0 %v1605
  %2101 = vmatpush.bf16.msra.mxu0 %v1604
  %2102 = vmatpush.bf16.msra.mxu0 %v1603
  %2103 = vmatpush.bf16.msra.mxu0 %v1602
  %2104 = vmatpush.bf16.msra.mxu0 %v1601
  %2105 = vmatpush.bf16.msra.mxu0 %v1600
  %2106 = vmatpush.bf16.msra.mxu0 %v1599
  %2107 = vmatpush.bf16.msra.mxu0 %v1598
  %2108 = vmatmul.bf16.gmra.mxu0 %v788
  %v2109 = vpop.f32.mrf.mxu0
  %v2110 = vadd.f32 %v2061, %v2109
  %v2111 = vpop.f32.mrf.mxu0
  %v2112 = vadd.f32 %v2063, %v2111
  %2113 = vmatmul.bf16.gmra.mxu0 %v804
  %v2114 = vpop.f32.mrf.mxu0
  %v2115 = vadd.f32 %v2066, %v2114
  %v2116 = vpop.f32.mrf.mxu0
  %v2117 = vadd.f32 %v2068, %v2116
  %2118 = vmatmul.bf16.gmra.mxu0 %v820
  %v2119 = vpop.f32.mrf.mxu0
  %v2120 = vadd.f32 %v2071, %v2119
  %v2121 = vpop.f32.mrf.mxu0
  %v2122 = vadd.f32 %v2073, %v2121
  %2123 = vmatmul.bf16.gmra.mxu0 %v836
  %v2124 = vpop.f32.mrf.mxu0
  %v2125 = vadd.f32 %v2076, %v2124
  %v2126 = vpop.f32.mrf.mxu0
  %v2127 = vadd.f32 %v2078, %v2126
  %2128 = vmatmul.bf16.gmra.mxu0 %v852
  %v2129 = vpop.f32.mrf.mxu0
  %v2130 = vadd.f32 %v2081, %v2129
  %v2131 = vpop.f32.mrf.mxu0
  %v2132 = vadd.f32 %v2083, %v2131
  %2133 = vmatmul.bf16.gmra.mxu0 %v868
  %v2134 = vpop.f32.mrf.mxu0
  %v2135 = vadd.f32 %v2086, %v2134
  %v2136 = vpop.f32.mrf.mxu0
  %v2137 = vadd.f32 %v2088, %v2136
  %2138 = vmatmul.bf16.gmra.mxu0 %v884
  %v2139 = vpop.f32.mrf.mxu0
  %v2140 = vadd.f32 %v2091, %v2139
  %v2141 = vpop.f32.mrf.mxu0
  %v2142 = vadd.f32 %v2093, %v2141
  %2143 = vmatmul.bf16.gmra.mxu0 %v900
  %v2144 = vpop.f32.mrf.mxu0
  %v2145 = vadd.f32 %v2096, %v2144
  %v2146 = vpop.f32.mrf.mxu0
  %v2147 = vadd.f32 %v2098, %v2146
  %2148 = vdwg.mxu0
  %2149 = vmatpush.bf16.msra.mxu0 %v1613
  %2150 = vmatpush.bf16.msra.mxu0 %v1612
  %2151 = vmatpush.bf16.msra.mxu0 %v1611
  %2152 = vmatpush.bf16.msra.mxu0 %v1610
  %2153 = vmatpush.bf16.msra.mxu0 %v1609
  %2154 = vmatpush.bf16.msra.mxu0 %v1608
  %2155 = vmatpush.bf16.msra.mxu0 %v1607
  %2156 = vmatpush.bf16.msra.mxu0 %v1606
  %2157 = vmatmul.bf16.gmra.mxu0 %v789
  %v2158 = vpop.f32.mrf.mxu0
  %v2159 = vadd.f32 %v2110, %v2158
  %v2160 = vpop.f32.mrf.mxu0
  %v2161 = vadd.f32 %v2112, %v2160
  %2162 = vmatmul.bf16.gmra.mxu0 %v805
  %v2163 = vpop.f32.mrf.mxu0
  %v2164 = vadd.f32 %v2115, %v2163
  %v2165 = vpop.f32.mrf.mxu0
  %v2166 = vadd.f32 %v2117, %v2165
  %2167 = vmatmul.bf16.gmra.mxu0 %v821
  %v2168 = vpop.f32.mrf.mxu0
  %v2169 = vadd.f32 %v2120, %v2168
  %v2170 = vpop.f32.mrf.mxu0
  %v2171 = vadd.f32 %v2122, %v2170
  %2172 = vmatmul.bf16.gmra.mxu0 %v837
  %v2173 = vpop.f32.mrf.mxu0
  %v2174 = vadd.f32 %v2125, %v2173
  %v2175 = vpop.f32.mrf.mxu0
  %v2176 = vadd.f32 %v2127, %v2175
  %2177 = vmatmul.bf16.gmra.mxu0 %v853
  %v2178 = vpop.f32.mrf.mxu0
  %v2179 = vadd.f32 %v2130, %v2178
  %v2180 = vpop.f32.mrf.mxu0
  %v2181 = vadd.f32 %v2132, %v2180
  %2182 = vmatmul.bf16.gmra.mxu0 %v869
  %v2183 = vpop.f32.mrf.mxu0
  %v2184 = vadd.f32 %v2135, %v2183
  %v2185 = vpop.f32.mrf.mxu0
  %v2186 = vadd.f32 %v2137, %v2185
  %2187 = vmatmul.bf16.gmra.mxu0 %v885
  %v2188 = vpop.f32.mrf.mxu0
  %v2189 = vadd.f32 %v2140, %v2188
  %v2190 = vpop.f32.mrf.mxu0
  %v2191 = vadd.f32 %v2142, %v2190
  %2192 = vmatmul.bf16.gmra.mxu0 %v901
  %v2193 = vpop.f32.mrf.mxu0
  %v2194 = vadd.f32 %v2145, %v2193
  %v2195 = vpop.f32.mrf.mxu0
  %v2196 = vadd.f32 %v2147, %v2195
  %2197 = vdwg.mxu0
  %2198 = vmatpush.bf16.msra.mxu0 %v1621
  %2199 = vmatpush.bf16.msra.mxu0 %v1620
  %2200 = vmatpush.bf16.msra.mxu0 %v1619
  %2201 = vmatpush.bf16.msra.mxu0 %v1618
  %2202 = vmatpush.bf16.msra.mxu0 %v1617
  %2203 = vmatpush.bf16.msra.mxu0 %v1616
  %2204 = vmatpush.bf16.msra.mxu0 %v1615
  %2205 = vmatpush.bf16.msra.mxu0 %v1614
  %2206 = vmatmul.bf16.gmra.mxu0 %v790
  %v2207 = vpop.f32.mrf.mxu0
  %v2208 = vadd.f32 %v2159, %v2207
  %v2209 = vpop.f32.mrf.mxu0
  %v2210 = vadd.f32 %v2161, %v2209
  %2211 = vmatmul.bf16.gmra.mxu0 %v806
  %v2212 = vpop.f32.mrf.mxu0
  %v2213 = vadd.f32 %v2164, %v2212
  %v2214 = vpop.f32.mrf.mxu0
  %v2215 = vadd.f32 %v2166, %v2214
  %2216 = vmatmul.bf16.gmra.mxu0 %v822
  %v2217 = vpop.f32.mrf.mxu0
  %v2218 = vadd.f32 %v2169, %v2217
  %v2219 = vpop.f32.mrf.mxu0
  %v2220 = vadd.f32 %v2171, %v2219
  %2221 = vmatmul.bf16.gmra.mxu0 %v838
  %v2222 = vpop.f32.mrf.mxu0
  %v2223 = vadd.f32 %v2174, %v2222
  %v2224 = vpop.f32.mrf.mxu0
  %v2225 = vadd.f32 %v2176, %v2224
  %2226 = vmatmul.bf16.gmra.mxu0 %v854
  %v2227 = vpop.f32.mrf.mxu0
  %v2228 = vadd.f32 %v2179, %v2227
  %v2229 = vpop.f32.mrf.mxu0
  %v2230 = vadd.f32 %v2181, %v2229
  %2231 = vmatmul.bf16.gmra.mxu0 %v870
  %v2232 = vpop.f32.mrf.mxu0
  %v2233 = vadd.f32 %v2184, %v2232
  %v2234 = vpop.f32.mrf.mxu0
  %v2235 = vadd.f32 %v2186, %v2234
  %2236 = vmatmul.bf16.gmra.mxu0 %v886
  %v2237 = vpop.f32.mrf.mxu0
  %v2238 = vadd.f32 %v2189, %v2237
  %v2239 = vpop.f32.mrf.mxu0
  %v2240 = vadd.f32 %v2191, %v2239
  %2241 = vmatmul.bf16.gmra.mxu0 %v902
  %v2242 = vpop.f32.mrf.mxu0
  %v2243 = vadd.f32 %v2194, %v2242
  %v2244 = vpop.f32.mrf.mxu0
  %v2245 = vadd.f32 %v2196, %v2244
  %2246 = vdwg.mxu0
  %2247 = vmatpush.bf16.msra.mxu0 %v1629
  %2248 = vmatpush.bf16.msra.mxu0 %v1628
  %2249 = vmatpush.bf16.msra.mxu0 %v1627
  %2250 = vmatpush.bf16.msra.mxu0 %v1626
  %2251 = vmatpush.bf16.msra.mxu0 %v1625
  %2252 = vmatpush.bf16.msra.mxu0 %v1624
  %2253 = vmatpush.bf16.msra.mxu0 %v1623
  %2254 = vmatpush.bf16.msra.mxu0 %v1622
  %2255 = vmatmul.bf16.gmra.mxu0 %v791
  %v2256 = vpop.f32.mrf.mxu0
  %v2257 = vadd.f32 %v2208, %v2256
  %v2258 = vpop.f32.mrf.mxu0
  %v2259 = vadd.f32 %v2210, %v2258
  %2260 = vmatmul.bf16.gmra.mxu0 %v807
  %v2261 = vpop.f32.mrf.mxu0
  %v2262 = vadd.f32 %v2213, %v2261
  %v2263 = vpop.f32.mrf.mxu0
  %v2264 = vadd.f32 %v2215, %v2263
  %2265 = vmatmul.bf16.gmra.mxu0 %v823
  %v2266 = vpop.f32.mrf.mxu0
  %v2267 = vadd.f32 %v2218, %v2266
  %v2268 = vpop.f32.mrf.mxu0
  %v2269 = vadd.f32 %v2220, %v2268
  %2270 = vmatmul.bf16.gmra.mxu0 %v839
  %v2271 = vpop.f32.mrf.mxu0
  %v2272 = vadd.f32 %v2223, %v2271
  %v2273 = vpop.f32.mrf.mxu0
  %v2274 = vadd.f32 %v2225, %v2273
  %2275 = vmatmul.bf16.gmra.mxu0 %v855
  %v2276 = vpop.f32.mrf.mxu0
  %v2277 = vadd.f32 %v2228, %v2276
  %v2278 = vpop.f32.mrf.mxu0
  %v2279 = vadd.f32 %v2230, %v2278
  %2280 = vmatmul.bf16.gmra.mxu0 %v871
  %v2281 = vpop.f32.mrf.mxu0
  %v2282 = vadd.f32 %v2233, %v2281
  %v2283 = vpop.f32.mrf.mxu0
  %v2284 = vadd.f32 %v2235, %v2283
  %2285 = vmatmul.bf16.gmra.mxu0 %v887
  %v2286 = vpop.f32.mrf.mxu0
  %v2287 = vadd.f32 %v2238, %v2286
  %v2288 = vpop.f32.mrf.mxu0
  %v2289 = vadd.f32 %v2240, %v2288
  %2290 = vmatmul.bf16.gmra.mxu0 %v903
  %v2291 = vpop.f32.mrf.mxu0
  %v2292 = vadd.f32 %v2243, %v2291
  %v2293 = vpop.f32.mrf.mxu0
  %v2294 = vadd.f32 %v2245, %v2293
  %2295 = vdwg.mxu0
  %2296 = vmatpush.bf16.msra.mxu0 %v1637
  %2297 = vmatpush.bf16.msra.mxu0 %v1636
  %2298 = vmatpush.bf16.msra.mxu0 %v1635
  %2299 = vmatpush.bf16.msra.mxu0 %v1634
  %2300 = vmatpush.bf16.msra.mxu0 %v1633
  %2301 = vmatpush.bf16.msra.mxu0 %v1632
  %2302 = vmatpush.bf16.msra.mxu0 %v1631
  %2303 = vmatpush.bf16.msra.mxu0 %v1630
  %2304 = vmatmul.bf16.gmra.mxu0 %v792
  %v2305 = vpop.f32.mrf.mxu0
  %v2306 = vadd.f32 %v2257, %v2305
  %v2307 = vpop.f32.mrf.mxu0
  %v2308 = vadd.f32 %v2259, %v2307
  %2309 = vmatmul.bf16.gmra.mxu0 %v808
  %v2310 = vpop.f32.mrf.mxu0
  %v2311 = vadd.f32 %v2262, %v2310
  %v2312 = vpop.f32.mrf.mxu0
  %v2313 = vadd.f32 %v2264, %v2312
  %2314 = vmatmul.bf16.gmra.mxu0 %v824
  %v2315 = vpop.f32.mrf.mxu0
  %v2316 = vadd.f32 %v2267, %v2315
  %v2317 = vpop.f32.mrf.mxu0
  %v2318 = vadd.f32 %v2269, %v2317
  %2319 = vmatmul.bf16.gmra.mxu0 %v840
  %v2320 = vpop.f32.mrf.mxu0
  %v2321 = vadd.f32 %v2272, %v2320
  %v2322 = vpop.f32.mrf.mxu0
  %v2323 = vadd.f32 %v2274, %v2322
  %2324 = vmatmul.bf16.gmra.mxu0 %v856
  %v2325 = vpop.f32.mrf.mxu0
  %v2326 = vadd.f32 %v2277, %v2325
  %v2327 = vpop.f32.mrf.mxu0
  %v2328 = vadd.f32 %v2279, %v2327
  %2329 = vmatmul.bf16.gmra.mxu0 %v872
  %v2330 = vpop.f32.mrf.mxu0
  %v2331 = vadd.f32 %v2282, %v2330
  %v2332 = vpop.f32.mrf.mxu0
  %v2333 = vadd.f32 %v2284, %v2332
  %2334 = vmatmul.bf16.gmra.mxu0 %v888
  %v2335 = vpop.f32.mrf.mxu0
  %v2336 = vadd.f32 %v2287, %v2335
  %v2337 = vpop.f32.mrf.mxu0
  %v2338 = vadd.f32 %v2289, %v2337
  %2339 = vmatmul.bf16.gmra.mxu0 %v904
  %v2340 = vpop.f32.mrf.mxu0
  %v2341 = vadd.f32 %v2292, %v2340
  %v2342 = vpop.f32.mrf.mxu0
  %v2343 = vadd.f32 %v2294, %v2342
  %2344 = vdwg.mxu0
  %2345 = vmatpush.bf16.msra.mxu0 %v1645
  %2346 = vmatpush.bf16.msra.mxu0 %v1644
  %2347 = vmatpush.bf16.msra.mxu0 %v1643
  %2348 = vmatpush.bf16.msra.mxu0 %v1642
  %2349 = vmatpush.bf16.msra.mxu0 %v1641
  %2350 = vmatpush.bf16.msra.mxu0 %v1640
  %2351 = vmatpush.bf16.msra.mxu0 %v1639
  %2352 = vmatpush.bf16.msra.mxu0 %v1638
  %2353 = vmatmul.bf16.gmra.mxu0 %v793
  %v2354 = vpop.f32.mrf.mxu0
  %v2355 = vadd.f32 %v2306, %v2354
  %v2356 = vpop.f32.mrf.mxu0
  %v2357 = vadd.f32 %v2308, %v2356
  %2358 = vmatmul.bf16.gmra.mxu0 %v809
  %v2359 = vpop.f32.mrf.mxu0
  %v2360 = vadd.f32 %v2311, %v2359
  %v2361 = vpop.f32.mrf.mxu0
  %v2362 = vadd.f32 %v2313, %v2361
  %2363 = vmatmul.bf16.gmra.mxu0 %v825
  %v2364 = vpop.f32.mrf.mxu0
  %v2365 = vadd.f32 %v2316, %v2364
  %v2366 = vpop.f32.mrf.mxu0
  %v2367 = vadd.f32 %v2318, %v2366
  %2368 = vmatmul.bf16.gmra.mxu0 %v841
  %v2369 = vpop.f32.mrf.mxu0
  %v2370 = vadd.f32 %v2321, %v2369
  %v2371 = vpop.f32.mrf.mxu0
  %v2372 = vadd.f32 %v2323, %v2371
  %2373 = vmatmul.bf16.gmra.mxu0 %v857
  %v2374 = vpop.f32.mrf.mxu0
  %v2375 = vadd.f32 %v2326, %v2374
  %v2376 = vpop.f32.mrf.mxu0
  %v2377 = vadd.f32 %v2328, %v2376
  %2378 = vmatmul.bf16.gmra.mxu0 %v873
  %v2379 = vpop.f32.mrf.mxu0
  %v2380 = vadd.f32 %v2331, %v2379
  %v2381 = vpop.f32.mrf.mxu0
  %v2382 = vadd.f32 %v2333, %v2381
  %2383 = vmatmul.bf16.gmra.mxu0 %v889
  %v2384 = vpop.f32.mrf.mxu0
  %v2385 = vadd.f32 %v2336, %v2384
  %v2386 = vpop.f32.mrf.mxu0
  %v2387 = vadd.f32 %v2338, %v2386
  %2388 = vmatmul.bf16.gmra.mxu0 %v905
  %v2389 = vpop.f32.mrf.mxu0
  %v2390 = vadd.f32 %v2341, %v2389
  %v2391 = vpop.f32.mrf.mxu0
  %v2392 = vadd.f32 %v2343, %v2391
  %2393 = vdwg.mxu0
  %2394 = vmatpush.bf16.msra.mxu0 %v1653
  %2395 = vmatpush.bf16.msra.mxu0 %v1652
  %2396 = vmatpush.bf16.msra.mxu0 %v1651
  %2397 = vmatpush.bf16.msra.mxu0 %v1650
  %2398 = vmatpush.bf16.msra.mxu0 %v1649
  %2399 = vmatpush.bf16.msra.mxu0 %v1648
  %2400 = vmatpush.bf16.msra.mxu0 %v1647
  %2401 = vmatpush.bf16.msra.mxu0 %v1646
  %2402 = vmatmul.bf16.gmra.mxu0 %v794
  %v2403 = vpop.f32.mrf.mxu0
  %v2404 = vadd.f32 %v2355, %v2403
  %v2405 = vpop.f32.mrf.mxu0
  %v2406 = vadd.f32 %v2357, %v2405
  %2407 = vmatmul.bf16.gmra.mxu0 %v810
  %v2408 = vpop.f32.mrf.mxu0
  %v2409 = vadd.f32 %v2360, %v2408
  %v2410 = vpop.f32.mrf.mxu0
  %v2411 = vadd.f32 %v2362, %v2410
  %2412 = vmatmul.bf16.gmra.mxu0 %v826
  %v2413 = vpop.f32.mrf.mxu0
  %v2414 = vadd.f32 %v2365, %v2413
  %v2415 = vpop.f32.mrf.mxu0
  %v2416 = vadd.f32 %v2367, %v2415
  %2417 = vmatmul.bf16.gmra.mxu0 %v842
  %v2418 = vpop.f32.mrf.mxu0
  %v2419 = vadd.f32 %v2370, %v2418
  %v2420 = vpop.f32.mrf.mxu0
  %v2421 = vadd.f32 %v2372, %v2420
  %2422 = vmatmul.bf16.gmra.mxu0 %v858
  %v2423 = vpop.f32.mrf.mxu0
  %v2424 = vadd.f32 %v2375, %v2423
  %v2425 = vpop.f32.mrf.mxu0
  %v2426 = vadd.f32 %v2377, %v2425
  %2427 = vmatmul.bf16.gmra.mxu0 %v874
  %v2428 = vpop.f32.mrf.mxu0
  %v2429 = vadd.f32 %v2380, %v2428
  %v2430 = vpop.f32.mrf.mxu0
  %v2431 = vadd.f32 %v2382, %v2430
  %2432 = vmatmul.bf16.gmra.mxu0 %v890
  %v2433 = vpop.f32.mrf.mxu0
  %v2434 = vadd.f32 %v2385, %v2433
  %v2435 = vpop.f32.mrf.mxu0
  %v2436 = vadd.f32 %v2387, %v2435
  %2437 = vmatmul.bf16.gmra.mxu0 %v906
  %v2438 = vpop.f32.mrf.mxu0
  %v2439 = vadd.f32 %v2390, %v2438
  %v2440 = vpop.f32.mrf.mxu0
  %v2441 = vadd.f32 %v2392, %v2440
  %2442 = vdwg.mxu0
  %2443 = vmatpush.bf16.msra.mxu0 %v1661
  %2444 = vmatpush.bf16.msra.mxu0 %v1660
  %2445 = vmatpush.bf16.msra.mxu0 %v1659
  %2446 = vmatpush.bf16.msra.mxu0 %v1658
  %2447 = vmatpush.bf16.msra.mxu0 %v1657
  %2448 = vmatpush.bf16.msra.mxu0 %v1656
  %2449 = vmatpush.bf16.msra.mxu0 %v1655
  %2450 = vmatpush.bf16.msra.mxu0 %v1654
  %2451 = vmatmul.bf16.gmra.mxu0 %v795
  %v2452 = vpop.f32.mrf.mxu0
  %v2453 = vadd.f32 %v2404, %v2452
  %v2454 = vpop.f32.mrf.mxu0
  %v2455 = vadd.f32 %v2406, %v2454
  %2456 = vmatmul.bf16.gmra.mxu0 %v811
  %v2457 = vpop.f32.mrf.mxu0
  %v2458 = vadd.f32 %v2409, %v2457
  %v2459 = vpop.f32.mrf.mxu0
  %v2460 = vadd.f32 %v2411, %v2459
  %2461 = vmatmul.bf16.gmra.mxu0 %v827
  %v2462 = vpop.f32.mrf.mxu0
  %v2463 = vadd.f32 %v2414, %v2462
  %v2464 = vpop.f32.mrf.mxu0
  %v2465 = vadd.f32 %v2416, %v2464
  %2466 = vmatmul.bf16.gmra.mxu0 %v843
  %v2467 = vpop.f32.mrf.mxu0
  %v2468 = vadd.f32 %v2419, %v2467
  %v2469 = vpop.f32.mrf.mxu0
  %v2470 = vadd.f32 %v2421, %v2469
  %2471 = vmatmul.bf16.gmra.mxu0 %v859
  %v2472 = vpop.f32.mrf.mxu0
  %v2473 = vadd.f32 %v2424, %v2472
  %v2474 = vpop.f32.mrf.mxu0
  %v2475 = vadd.f32 %v2426, %v2474
  %2476 = vmatmul.bf16.gmra.mxu0 %v875
  %v2477 = vpop.f32.mrf.mxu0
  %v2478 = vadd.f32 %v2429, %v2477
  %v2479 = vpop.f32.mrf.mxu0
  %v2480 = vadd.f32 %v2431, %v2479
  %2481 = vmatmul.bf16.gmra.mxu0 %v891
  %v2482 = vpop.f32.mrf.mxu0
  %v2483 = vadd.f32 %v2434, %v2482
  %v2484 = vpop.f32.mrf.mxu0
  %v2485 = vadd.f32 %v2436, %v2484
  %2486 = vmatmul.bf16.gmra.mxu0 %v907
  %v2487 = vpop.f32.mrf.mxu0
  %v2488 = vadd.f32 %v2439, %v2487
  %v2489 = vpop.f32.mrf.mxu0
  %v2490 = vadd.f32 %v2441, %v2489
  %2491 = vdwg.mxu0
  %2492 = vmatpush.bf16.msra.mxu0 %v1669
  %2493 = vmatpush.bf16.msra.mxu0 %v1668
  %2494 = vmatpush.bf16.msra.mxu0 %v1667
  %2495 = vmatpush.bf16.msra.mxu0 %v1666
  %2496 = vmatpush.bf16.msra.mxu0 %v1665
  %2497 = vmatpush.bf16.msra.mxu0 %v1664
  %2498 = vmatpush.bf16.msra.mxu0 %v1663
  %2499 = vmatpush.bf16.msra.mxu0 %v1662
  %2500 = vmatmul.bf16.gmra.mxu0 %v796
  %v2501 = vpop.f32.mrf.mxu0
  %v2502 = vadd.f32 %v2453, %v2501
  %v2503 = vpop.f32.mrf.mxu0
  %v2504 = vadd.f32 %v2455, %v2503
  %2505 = vmatmul.bf16.gmra.mxu0 %v812
  %v2506 = vpop.f32.mrf.mxu0
  %v2507 = vadd.f32 %v2458, %v2506
  %v2508 = vpop.f32.mrf.mxu0
  %v2509 = vadd.f32 %v2460, %v2508
  %2510 = vmatmul.bf16.gmra.mxu0 %v828
  %v2511 = vpop.f32.mrf.mxu0
  %v2512 = vadd.f32 %v2463, %v2511
  %v2513 = vpop.f32.mrf.mxu0
  %v2514 = vadd.f32 %v2465, %v2513
  %2515 = vmatmul.bf16.gmra.mxu0 %v844
  %v2516 = vpop.f32.mrf.mxu0
  %v2517 = vadd.f32 %v2468, %v2516
  %v2518 = vpop.f32.mrf.mxu0
  %v2519 = vadd.f32 %v2470, %v2518
  %2520 = vmatmul.bf16.gmra.mxu0 %v860
  %v2521 = vpop.f32.mrf.mxu0
  %v2522 = vadd.f32 %v2473, %v2521
  %v2523 = vpop.f32.mrf.mxu0
  %v2524 = vadd.f32 %v2475, %v2523
  %2525 = vmatmul.bf16.gmra.mxu0 %v876
  %v2526 = vpop.f32.mrf.mxu0
  %v2527 = vadd.f32 %v2478, %v2526
  %v2528 = vpop.f32.mrf.mxu0
  %v2529 = vadd.f32 %v2480, %v2528
  %2530 = vmatmul.bf16.gmra.mxu0 %v892
  %v2531 = vpop.f32.mrf.mxu0
  %v2532 = vadd.f32 %v2483, %v2531
  %v2533 = vpop.f32.mrf.mxu0
  %v2534 = vadd.f32 %v2485, %v2533
  %2535 = vmatmul.bf16.gmra.mxu0 %v908
  %v2536 = vpop.f32.mrf.mxu0
  %v2537 = vadd.f32 %v2488, %v2536
  %v2538 = vpop.f32.mrf.mxu0
  %v2539 = vadd.f32 %v2490, %v2538
  %2540 = vdwg.mxu0
  %2541 = vmatpush.bf16.msra.mxu0 %v1677
  %2542 = vmatpush.bf16.msra.mxu0 %v1676
  %2543 = vmatpush.bf16.msra.mxu0 %v1675
  %2544 = vmatpush.bf16.msra.mxu0 %v1674
  %2545 = vmatpush.bf16.msra.mxu0 %v1673
  %2546 = vmatpush.bf16.msra.mxu0 %v1672
  %2547 = vmatpush.bf16.msra.mxu0 %v1671
  %2548 = vmatpush.bf16.msra.mxu0 %v1670
  %2549 = vmatmul.bf16.gmra.mxu0 %v797
  %v2550 = vpop.f32.mrf.mxu0
  %v2551 = vadd.f32 %v2502, %v2550
  %v2552 = vpop.f32.mrf.mxu0
  %v2553 = vadd.f32 %v2504, %v2552
  %2554 = vmatmul.bf16.gmra.mxu0 %v813
  %v2555 = vpop.f32.mrf.mxu0
  %v2556 = vadd.f32 %v2507, %v2555
  %v2557 = vpop.f32.mrf.mxu0
  %v2558 = vadd.f32 %v2509, %v2557
  %2559 = vmatmul.bf16.gmra.mxu0 %v829
  %v2560 = vpop.f32.mrf.mxu0
  %v2561 = vadd.f32 %v2512, %v2560
  %v2562 = vpop.f32.mrf.mxu0
  %v2563 = vadd.f32 %v2514, %v2562
  %2564 = vmatmul.bf16.gmra.mxu0 %v845
  %v2565 = vpop.f32.mrf.mxu0
  %v2566 = vadd.f32 %v2517, %v2565
  %v2567 = vpop.f32.mrf.mxu0
  %v2568 = vadd.f32 %v2519, %v2567
  %2569 = vmatmul.bf16.gmra.mxu0 %v861
  %v2570 = vpop.f32.mrf.mxu0
  %v2571 = vadd.f32 %v2522, %v2570
  %v2572 = vpop.f32.mrf.mxu0
  %v2573 = vadd.f32 %v2524, %v2572
  %2574 = vmatmul.bf16.gmra.mxu0 %v877
  %v2575 = vpop.f32.mrf.mxu0
  %v2576 = vadd.f32 %v2527, %v2575
  %v2577 = vpop.f32.mrf.mxu0
  %v2578 = vadd.f32 %v2529, %v2577
  %2579 = vmatmul.bf16.gmra.mxu0 %v893
  %v2580 = vpop.f32.mrf.mxu0
  %v2581 = vadd.f32 %v2532, %v2580
  %v2582 = vpop.f32.mrf.mxu0
  %v2583 = vadd.f32 %v2534, %v2582
  %2584 = vmatmul.bf16.gmra.mxu0 %v909
  %v2585 = vpop.f32.mrf.mxu0
  %v2586 = vadd.f32 %v2537, %v2585
  %v2587 = vpop.f32.mrf.mxu0
  %v2588 = vadd.f32 %v2539, %v2587
  %2589 = vdwg.mxu0
  %v2590 = vpack.c.bf16 %v2551, %v2551
  %v2591 = vpack.c.bf16 %v2553, %v2553
  %v2592 = vpack.c.bf16 %v2556, %v2556
  %v2593 = vpack.c.bf16 %v2558, %v2558
  %v2594 = vpack.c.bf16 %v2561, %v2561
  %v2595 = vpack.c.bf16 %v2563, %v2563
  %v2596 = vpack.c.bf16 %v2566, %v2566
  %v2597 = vpack.c.bf16 %v2568, %v2568
  %v2598 = vpack.c.bf16 %v2571, %v2571
  %v2599 = vpack.c.bf16 %v2573, %v2573
  %v2600 = vpack.c.bf16 %v2576, %v2576
  %v2601 = vpack.c.bf16 %v2578, %v2578
  %v2602 = vpack.c.bf16 %v2581, %v2581
  %v2603 = vpack.c.bf16 %v2583, %v2583
  %v2604 = vpack.c.bf16 %v2586, %v2586
  %v2605 = vpack.c.bf16 %v2588, %v2588
  %2606 = vst [vmem:[%s2] sm:$0xf] %v2590
  %2607 = vst [vmem:[%s2 + $0x4] sm:$0xf] %v2591
  %2608 = vst [vmem:[%s2 + $0x8] sm:$0xf] %v2592
  %2609 = vst [vmem:[%s2 + $0xc] sm:$0xf] %v2593
  %2610 = vst [vmem:[%s2 + $0x10] sm:$0xf] %v2594
  %2611 = vst [vmem:[%s2 + $0x14] sm:$0xf] %v2595
  %2612 = vst [vmem:[%s2 + $0x18] sm:$0xf] %v2596
  %2613 = vst [vmem:[%s2 + $0x1c] sm:$0xf] %v2597
  %2614 = vst [vmem:[%s2 + $0x20] sm:$0xf] %v2598
  %2615 = vst [vmem:[%s2 + $0x24] sm:$0xf] %v2599
  %2616 = vst [vmem:[%s2 + $0x28] sm:$0xf] %v2600
  %2617 = vst [vmem:[%s2 + $0x2c] sm:$0xf] %v2601
  %2618 = vst [vmem:[%s2 + $0x30] sm:$0xf] %v2602
  %2619 = vst [vmem:[%s2 + $0x34] sm:$0xf] %v2603
  %2620 = vst [vmem:[%s2 + $0x38] sm:$0xf] %v2604
  %2621 = vst [vmem:[%s2 + $0x3c] sm:$0xf] %v2605
  %v2622 = vadd.f32 %v2551, %v2553
  %v2623 = vadd.f32 %v2622, %v2556
  %v2624 = vadd.f32 %v2623, %v2558
  %v2625 = vadd.f32 %v2624, %v2561
  %v2626 = vadd.f32 %v2625, %v2563
  %v2627 = vadd.f32 %v2626, %v2566
  %v2628 = vadd.f32 %v2627, %v2568
  %v2629 = vadd.f32 %v2628, %v2571
  %v2630 = vadd.f32 %v2629, %v2573
  %v2631 = vadd.f32 %v2630, %v2576
  %v2632 = vadd.f32 %v2631, %v2578
  %v2633 = vadd.f32 %v2632, %v2581
  %v2634 = vadd.f32 %v2633, %v2583
  %v2635 = vadd.f32 %v2634, %v2586
  %v2636 = vadd.f32 %v2635, %v2588
  %v2637 = vrot.slane %v2636, 4
  %v2638 = vadd.f32 %v2636, %v2637
  %v2639 = vrot.slane %v2638, 2
  %v2640 = vadd.f32 %v2638, %v2639
  %v2641 = vrot.slane %v2640, 1
  %v2642 = vadd.f32 %v2640, %v2641
  %2643 = vst [vmem:[%s3] sm:$0x1] %v2642
  %v2644 = vmul.f32 %v2551, %v2551
  %v2645 = vmul.f32 %v2553, %v2553
  %v2646 = vmul.f32 %v2556, %v2556
  %v2647 = vmul.f32 %v2558, %v2558
  %v2648 = vmul.f32 %v2561, %v2561
  %v2649 = vmul.f32 %v2563, %v2563
  %v2650 = vmul.f32 %v2566, %v2566
  %v2651 = vmul.f32 %v2568, %v2568
  %v2652 = vmul.f32 %v2571, %v2571
  %v2653 = vmul.f32 %v2573, %v2573
  %v2654 = vmul.f32 %v2576, %v2576
  %v2655 = vmul.f32 %v2578, %v2578
  %v2656 = vmul.f32 %v2581, %v2581
  %v2657 = vmul.f32 %v2583, %v2583
  %v2658 = vmul.f32 %v2586, %v2586
  %v2659 = vmul.f32 %v2588, %v2588
  %v2660 = vadd.f32 %v2644, %v2645
  %v2661 = vadd.f32 %v2660, %v2646
  %v2662 = vadd.f32 %v2661, %v2647
  %v2663 = vadd.f32 %v2662, %v2648
  %v2664 = vadd.f32 %v2663, %v2649
  %v2665 = vadd.f32 %v2664, %v2650
  %v2666 = vadd.f32 %v2665, %v2651
  %v2667 = vadd.f32 %v2666, %v2652
  %v2668 = vadd.f32 %v2667, %v2653
  %v2669 = vadd.f32 %v2668, %v2654
  %v2670 = vadd.f32 %v2669, %v2655
  %v2671 = vadd.f32 %v2670, %v2656
  %v2672 = vadd.f32 %v2671, %v2657
  %v2673 = vadd.f32 %v2672, %v2658
  %v2674 = vadd.f32 %v2673, %v2659
  %v2675 = vrot.slane %v2674, 4
  %v2676 = vadd.f32 %v2674, %v2675
  %v2677 = vrot.slane %v2676, 2
  %v2678 = vadd.f32 %v2676, %v2677
  %v2679 = vrot.slane %v2678, 1
  %v2680 = vadd.f32 %v2678, %v2679
  %2681 = vst [vmem:[%s4] sm:$0x1] %v2680
  // Predicated region
  $region10: #{discriminator_forward.11} parent=0 // pred_check
    _
  $region11: #{discriminator_forward.11} parent=0 // pred_check_branch
    %2683 = sbr.rel (0) target = $region13
  $region12: #{discriminator_forward.11} parent=0 // pred_region
    _
  $region13: #{discriminator_forward.11} parent=0 // pred_fallthru
    _
  // Predicated region
  $region14: #{discriminator_forward.11} parent=0 // pred_check
    _
  $region15: #{discriminator_forward.11} parent=0 // pred_check_branch
    %2685 = sbr.rel (0) target = $region17
  $region16: #{discriminator_forward.11} parent=0 // pred_region
    _
  $region17: #{discriminator_forward.11} parent=0 // pred_fallthru
    _
  // Predicated region
  $region18: #{discriminator_forward.11} parent=0 // pred_check
    _
  $region19: #{discriminator_forward.11} parent=0 // pred_check_branch
    %2687 = sbr.rel (0) target = $region21
  $region20: #{discriminator_forward.11} parent=0 // pred_region
    _
  $region21: #{discriminator_forward.11} parent=0 // pred_fallthru
    _
  // Predicated region
  $region22: #{discriminator_forward.11} parent=0 // pred_check
    _
  $region23: #{discriminator_forward.11} parent=0 // pred_check_branch
    %2689 = sbr.rel (0) target = $region25
  $region24: #{discriminator_forward.11} parent=0 // pred_region
    _
  $region25: #{discriminator_forward.11} parent=0 // pred_fallthru
    _
  // Predicated region
  $region26: #{discriminator_forward.11} parent=0 // pred_check
    _
  $region27: #{discriminator_forward.11} parent=0 // pred_check_branch
    %2691 = sbr.rel (0) target = $region29
  $region28: #{discriminator_forward.11} parent=0 // pred_region
    _
  $region29: #{discriminator_forward.11} parent=0 // pred_fallthru
    _
  // Predicated region
  $region30: #{discriminator_forward.11} parent=0 // pred_check
    _
  $region31: #{discriminator_forward.11} parent=0 // pred_check_branch
    %2693 = sbr.rel (0) target = $region33
  $region32: #{discriminator_forward.11} parent=0 // pred_region
    _
  $region33: #{discriminator_forward.11} parent=0 // pred_fallthru
    _

// kernel: discriminator_forward.14
$region0: #{discriminator_forward.14}
  #allocation0 [shape = 'u32[]', space=smem, size = 0x4, offset = 0x4, fixed_abs, tag = 'smem constant byte address 0x4 - core index']
  #allocation1 [shape = 'u32[72,128]{1,0:T(1,128)}', space=vmem, size = 0x9000, scoped, tag = 'internal scratch']
  %s0 = inlined_call_operand.vmem [shape: bf16[32,128], index: 0, kind: input, shape index: {}]
  %s1 = inlined_call_operand.vmem [shape: f32[1,128], index: 1, kind: input, shape index: {}]
  %s2 = inlined_call_operand.vmem [shape: f32[1,128], index: 2, kind: input, shape index: {}]
  %s3 = inlined_call_operand.vmem [shape: bf16[32,128], index: 3, kind: output, shape index: {}]
  %s4 = sld [smem:[#allocation0]]
  $region22: #{discriminator_forward.14} parent=0
    _
  %s6 = ssub.s32 1, %s4
  %s7 = scalar_select 0, %s6, %s4
  // Predicated region
  $region2: #{discriminator_forward.14} parent=0 // pred_check
    _
  $region3: #{discriminator_forward.14} parent=0 // pred_check_branch
    %9 = sbr.rel (0) target = $region5
  $region4: #{discriminator_forward.14} parent=0 // pred_region
    _
  $region5: #{discriminator_forward.14} parent=0 // pred_fallthru
    _
  // Predicated region
  $region6: #{discriminator_forward.14} parent=0 // pred_check
    _
  $region7: #{discriminator_forward.14} parent=0 // pred_check_branch
    %11 = sbr.rel (0) target = $region9
  $region8: #{discriminator_forward.14} parent=0 // pred_region
    _
  $region9: #{discriminator_forward.14} parent=0 // pred_fallthru
    _
  // Predicated region
  $region10: #{discriminator_forward.14} parent=0 // pred_check
    _
  $region11: #{discriminator_forward.14} parent=0 // pred_check_branch
    %13 = sbr.rel (0) target = $region13
  $region12: #{discriminator_forward.14} parent=0 // pred_region
    _
  $region13: #{discriminator_forward.14} parent=0 // pred_fallthru
    _
  %v14 = vld [vmem:[%s0] sm:$0xf]
  %v15 = vld [vmem:[%s0 + $0x4] sm:$0xf]
  %v16 = vld [vmem:[%s0 + $0x8] sm:$0xf]
  %v17 = vld [vmem:[%s0 + $0xc] sm:$0xf]
  %v18 = vunpack.c.l.bf16 %v14
  %v19 = vunpack.c.l.bf16 %v15
  %v20 = vunpack.c.l.bf16 %v16
  %v21 = vunpack.c.l.bf16 %v17
  %v22 = vld [vmem:[%s1] sm:$0x1]
  %v24 = vperm.slane %v22, 0
  %v26 = vmul.f32 %v18, %v24
  %v27 = vmul.f32 %v19, %v24
  %v28 = vmul.f32 %v20, %v24
  %v29 = vmul.f32 %v21, %v24
  %v30 = vld [vmem:[%s2] sm:$0x1]
  %v32 = vperm.slane %v30, 0
  %v34 = vadd.f32 %v26, %v32
  %v35 = vadd.f32 %v27, %v32
  %v36 = vadd.f32 %v28, %v32
  %v37 = vadd.f32 %v29, %v32
  %vm38 = vcmp.ge.f32.partialorder %v34, 0.0
  %vm39 = vcmp.ge.f32.partialorder %v35, 0.0
  %vm40 = vcmp.ge.f32.partialorder %v36, 0.0
  %vm41 = vcmp.ge.f32.partialorder %v37, 0.0
  %v42 = vmul.f32 %v34, 0.2
  %v43 = vmul.f32 %v35, 0.2
  %v44 = vmul.f32 %v36, 0.2
  %v45 = vmul.f32 %v37, 0.2
  %v46 = vsel %vm38, %v34, %v42
  %v47 = vsel %vm39, %v35, %v43
  %v48 = vsel %vm40, %v36, %v44
  %v49 = vsel %vm41, %v37, %v45
  %v50 = vpack.c.bf16 %v46, %v46
  %v51 = vpack.c.bf16 %v47, %v47
  %v52 = vpack.c.bf16 %v48, %v48
  %v53 = vpack.c.bf16 %v49, %v49
  %54 = vst [vmem:[%s3] sm:$0xf] %v50
  %55 = vst [vmem:[%s3 + $0x4] sm:$0xf] %v51
  %56 = vst [vmem:[%s3 + $0x8] sm:$0xf] %v52
  %57 = vst [vmem:[%s3 + $0xc] sm:$0xf] %v53
  // Predicated region
  $region14: #{discriminator_forward.14} parent=0 // pred_check
    _
  $region15: #{discriminator_forward.14} parent=0 // pred_check_branch
    %59 = sbr.rel (0) target = $region17
  $region16: #{discriminator_forward.14} parent=0 // pred_region
    _
  $region17: #{discriminator_forward.14} parent=0 // pred_fallthru
    _
  // Predicated region
  $region18: #{discriminator_forward.14} parent=0 // pred_check
    _
  $region19: #{discriminator_forward.14} parent=0 // pred_check_branch
    %61 = sbr.rel (0) target = $region21
  $region20: #{discriminator_forward.14} parent=0 // pred_region
    _
  $region21: #{discriminator_forward.14} parent=0 // pred_fallthru
    _

// kernel: discriminator_forward.13
$region0: #{discriminator_forward.13}
  #allocation0 [shape = 'u32[]', space=smem, size = 0x4, offset = 0x4, fixed_abs, tag = 'smem constant byte address 0x4 - core index']
  #allocation1 [shape = 'u32[72,128]{1,0:T(1,128)}', space=vmem, size = 0x9000, scoped, tag = 'internal scratch']
  %s0 = inlined_call_operand.vmem [shape: bf16[32,2048], index: 0, kind: input, shape index: {}]
  %s1 = inlined_call_operand.vmem [shape: bf16[2048,128], index: 1, kind: input, shape index: {}]
  %s2 = inlined_call_operand.vmem [shape: bf16[32,128], index: 2, kind: output, shape index: {0}]
  %s3 = inlined_call_operand.vmem [shape: f32[1,1,128], index: 3, kind: output, shape index: {1}]
  %s4 = inlined_call_operand.vmem [shape: f32[1,1,128], index: 4, kind: output, shape index: {2}]
  %5 = xla_tuple %s2, %s3, %s4
  %s6 = sld [smem:[#allocation0]]
  $region34: #{discriminator_forward.13} parent=0
    _
  %s8 = ssub.s32 1, %s6
  %s9 = scalar_select 0, %s8, %s6
  // Predicated region
  $region2: #{discriminator_forward.13} parent=0 // pred_check
    _
  $region3: #{discriminator_forward.13} parent=0 // pred_check_branch
    %11 = sbr.rel (0) target = $region5
  $region4: #{discriminator_forward.13} parent=0 // pred_region
    _
  $region5: #{discriminator_forward.13} parent=0 // pred_fallthru
    _
  // Predicated region
  $region6: #{discriminator_forward.13} parent=0 // pred_check
    _
  $region7: #{discriminator_forward.13} parent=0 // pred_check_branch
    %13 = sbr.rel (0) target = $region9
  $region8: #{discriminator_forward.13} parent=0 // pred_region
    _
  $region9: #{discriminator_forward.13} parent=0 // pred_fallthru
    _
  %v14 = vld [vmem:[%s0] sm:$0xff]
  %v15 = vld [vmem:[%s0 + $0x8] sm:$0xff]
  %v16 = vld [vmem:[%s0 + $0x10] sm:$0xff]
  %v17 = vld [vmem:[%s0 + $0x18] sm:$0xff]
  %v18 = vld [vmem:[%s0 + $0x20] sm:$0xff]
  %v19 = vld [vmem:[%s0 + $0x28] sm:$0xff]
  %v20 = vld [vmem:[%s0 + $0x30] sm:$0xff]
  %v21 = vld [vmem:[%s0 + $0x38] sm:$0xff]
  %v22 = vld [vmem:[%s0 + $0x40] sm:$0xff]
  %v23 = vld [vmem:[%s0 + $0x48] sm:$0xff]
  %v24 = vld [vmem:[%s0 + $0x50] sm:$0xff]
  %v25 = vld [vmem:[%s0 + $0x58] sm:$0xff]
  %v26 = vld [vmem:[%s0 + $0x60] sm:$0xff]
  %v27 = vld [vmem:[%s0 + $0x68] sm:$0xff]
  %v28 = vld [vmem:[%s0 + $0x70] sm:$0xff]
  %v29 = vld [vmem:[%s0 + $0x78] sm:$0xff]
  %v30 = vld [vmem:[%s0 + $0x80] sm:$0xff]
  %v31 = vld [vmem:[%s0 + $0x88] sm:$0xff]
  %v32 = vld [vmem:[%s0 + $0x90] sm:$0xff]
  %v33 = vld [vmem:[%s0 + $0x98] sm:$0xff]
  %v34 = vld [vmem:[%s0 + $0xa0] sm:$0xff]
  %v35 = vld [vmem:[%s0 + $0xa8] sm:$0xff]
  %v36 = vld [vmem:[%s0 + $0xb0] sm:$0xff]
  %v37 = vld [vmem:[%s0 + $0xb8] sm:$0xff]
  %v38 = vld [vmem:[%s0 + $0xc0] sm:$0xff]
  %v39 = vld [vmem:[%s0 + $0xc8] sm:$0xff]
  %v40 = vld [vmem:[%s0 + $0xd0] sm:$0xff]
  %v41 = vld [vmem:[%s0 + $0xd8] sm:$0xff]
  %v42 = vld [vmem:[%s0 + $0xe0] sm:$0xff]
  %v43 = vld [vmem:[%s0 + $0xe8] sm:$0xff]
  %v44 = vld [vmem:[%s0 + $0xf0] sm:$0xff]
  %v45 = vld [vmem:[%s0 + $0xf8] sm:$0xff]
  %v46 = vld [vmem:[%s1] sm:$0xf]
  %v47 = vld [vmem:[%s1 + $0x4] sm:$0xf]
  %v48 = vld [vmem:[%s1 + $0x8] sm:$0xf]
  %v49 = vld [vmem:[%s1 + $0xc] sm:$0xf]
  %v50 = vld [vmem:[%s1 + $0x10] sm:$0xf]
  %v51 = vld [vmem:[%s1 + $0x14] sm:$0xf]
  %v52 = vld [vmem:[%s1 + $0x18] sm:$0xf]
  %v53 = vld [vmem:[%s1 + $0x1c] sm:$0xf]
  %v54 = vld [vmem:[%s1 + $0x20] sm:$0xf]
  %v55 = vld [vmem:[%s1 + $0x24] sm:$0xf]
  %v56 = vld [vmem:[%s1 + $0x28] sm:$0xf]
  %v57 = vld [vmem:[%s1 + $0x2c] sm:$0xf]
  %v58 = vld [vmem:[%s1 + $0x30] sm:$0xf]
  %v59 = vld [vmem:[%s1 + $0x34] sm:$0xf]
  %v60 = vld [vmem:[%s1 + $0x38] sm:$0xf]
  %v61 = vld [vmem:[%s1 + $0x3c] sm:$0xf]
  %v62 = vld [vmem:[%s1 + $0x40] sm:$0xf]
  %v63 = vld [vmem:[%s1 + $0x44] sm:$0xf]
  %v64 = vld [vmem:[%s1 + $0x48] sm:$0xf]
  %v65 = vld [vmem:[%s1 + $0x4c] sm:$0xf]
  %v66 = vld [vmem:[%s1 + $0x50] sm:$0xf]
  %v67 = vld [vmem:[%s1 + $0x54] sm:$0xf]
  %v68 = vld [vmem:[%s1 + $0x58] sm:$0xf]
  %v69 = vld [vmem:[%s1 + $0x5c] sm:$0xf]
  %v70 = vld [vmem:[%s1 + $0x60] sm:$0xf]
  %v71 = vld [vmem:[%s1 + $0x64] sm:$0xf]
  %v72 = vld [vmem:[%s1 + $0x68] sm:$0xf]
  %v73 = vld [vmem:[%s1 + $0x6c] sm:$0xf]
  %v74 = vld [vmem:[%s1 + $0x70] sm:$0xf]
  %v75 = vld [vmem:[%s1 + $0x74] sm:$0xf]
  %v76 = vld [vmem:[%s1 + $0x78] sm:$0xf]
  %v77 = vld [vmem:[%s1 + $0x7c] sm:$0xf]
  %v78 = vld [vmem:[%s1 + $0x80] sm:$0xf]
  %v79 = vld [vmem:[%s1 + $0x84] sm:$0xf]
  %v80 = vld [vmem:[%s1 + $0x88] sm:$0xf]
  %v81 = vld [vmem:[%s1 + $0x8c] sm:$0xf]
  %v82 = vld [vmem:[%s1 + $0x90] sm:$0xf]
  %v83 = vld [vmem:[%s1 + $0x94] sm:$0xf]
  %v84 = vld [vmem:[%s1 + $0x98] sm:$0xf]
  %v85 = vld [vmem:[%s1 + $0x9c] sm:$0xf]
  %v86 = vld [vmem:[%s1 + $0xa0] sm:$0xf]
  %v87 = vld [vmem:[%s1 + $0xa4] sm:$0xf]
  %v88 = vld [vmem:[%s1 + $0xa8] sm:$0xf]
  %v89 = vld [vmem:[%s1 + $0xac] sm:$0xf]
  %v90 = vld [vmem:[%s1 + $0xb0] sm:$0xf]
  %v91 = vld [vmem:[%s1 + $0xb4] sm:$0xf]
  %v92 = vld [vmem:[%s1 + $0xb8] sm:$0xf]
  %v93 = vld [vmem:[%s1 + $0xbc] sm:$0xf]
  %v94 = vld [vmem:[%s1 + $0xc0] sm:$0xf]
  %v95 = vld [vmem:[%s1 + $0xc4] sm:$0xf]
  %v96 = vld [vmem:[%s1 + $0xc8] sm:$0xf]
  %v97 = vld [vmem:[%s1 + $0xcc] sm:$0xf]
  %v98 = vld [vmem:[%s1 + $0xd0] sm:$0xf]
  %v99 = vld [vmem:[%s1 + $0xd4] sm:$0xf]
  %v100 = vld [vmem:[%s1 + $0xd8] sm:$0xf]
  %v101 = vld [vmem:[%s1 + $0xdc] sm:$0xf]
  %v102 = vld [vmem:[%s1 + $0xe0] sm:$0xf]
  %v103 = vld [vmem:[%s1 + $0xe4] sm:$0xf]
  %v104 = vld [vmem:[%s1 + $0xe8] sm:$0xf]
  %v105 = vld [vmem:[%s1 + $0xec] sm:$0xf]
  %v106 = vld [vmem:[%s1 + $0xf0] sm:$0xf]
  %v107 = vld [vmem:[%s1 + $0xf4] sm:$0xf]
  %v108 = vld [vmem:[%s1 + $0xf8] sm:$0xf]
  %v109 = vld [vmem:[%s1 + $0xfc] sm:$0xf]
  %v110 = vld [vmem:[%s1 + $0x100] sm:$0xf]
  %v111 = vld [vmem:[%s1 + $0x104] sm:$0xf]
  %v112 = vld [vmem:[%s1 + $0x108] sm:$0xf]
  %v113 = vld [vmem:[%s1 + $0x10c] sm:$0xf]
  %v114 = vld [vmem:[%s1 + $0x110] sm:$0xf]
  %v115 = vld [vmem:[%s1 + $0x114] sm:$0xf]
  %v116 = vld [vmem:[%s1 + $0x118] sm:$0xf]
  %v117 = vld [vmem:[%s1 + $0x11c] sm:$0xf]
  %v118 = vld [vmem:[%s1 + $0x120] sm:$0xf]
  %v119 = vld [vmem:[%s1 + $0x124] sm:$0xf]
  %v120 = vld [vmem:[%s1 + $0x128] sm:$0xf]
  %v121 = vld [vmem:[%s1 + $0x12c] sm:$0xf]
  %v122 = vld [vmem:[%s1 + $0x130] sm:$0xf]
  %v123 = vld [vmem:[%s1 + $0x134] sm:$0xf]
  %v124 = vld [vmem:[%s1 + $0x138] sm:$0xf]
  %v125 = vld [vmem:[%s1 + $0x13c] sm:$0xf]
  %v126 = vld [vmem:[%s1 + $0x140] sm:$0xf]
  %v127 = vld [vmem:[%s1 + $0x144] sm:$0xf]
  %v128 = vld [vmem:[%s1 + $0x148] sm:$0xf]
  %v129 = vld [vmem:[%s1 + $0x14c] sm:$0xf]
  %v130 = vld [vmem:[%s1 + $0x150] sm:$0xf]
  %v131 = vld [vmem:[%s1 + $0x154] sm:$0xf]
  %v132 = vld [vmem:[%s1 + $0x158] sm:$0xf]
  %v133 = vld [vmem:[%s1 + $0x15c] sm:$0xf]
  %v134 = vld [vmem:[%s1 + $0x160] sm:$0xf]
  %v135 = vld [vmem:[%s1 + $0x164] sm:$0xf]
  %v136 = vld [vmem:[%s1 + $0x168] sm:$0xf]
  %v137 = vld [vmem:[%s1 + $0x16c] sm:$0xf]
  %v138 = vld [vmem:[%s1 + $0x170] sm:$0xf]
  %v139 = vld [vmem:[%s1 + $0x174] sm:$0xf]
  %v140 = vld [vmem:[%s1 + $0x178] sm:$0xf]
  %v141 = vld [vmem:[%s1 + $0x17c] sm:$0xf]
  %v142 = vld [vmem:[%s1 + $0x180] sm:$0xf]
  %v143 = vld [vmem:[%s1 + $0x184] sm:$0xf]
  %v144 = vld [vmem:[%s1 + $0x188] sm:$0xf]
  %v145 = vld [vmem:[%s1 + $0x18c] sm:$0xf]
  %v146 = vld [vmem:[%s1 + $0x190] sm:$0xf]
  %v147 = vld [vmem:[%s1 + $0x194] sm:$0xf]
  %v148 = vld [vmem:[%s1 + $0x198] sm:$0xf]
  %v149 = vld [vmem:[%s1 + $0x19c] sm:$0xf]
  %v150 = vld [vmem:[%s1 + $0x1a0] sm:$0xf]
  %v151 = vld [vmem:[%s1 + $0x1a4] sm:$0xf]
  %v152 = vld [vmem:[%s1 + $0x1a8] sm:$0xf]
  %v153 = vld [vmem:[%s1 + $0x1ac] sm:$0xf]
  %v154 = vld [vmem:[%s1 + $0x1b0] sm:$0xf]
  %v155 = vld [vmem:[%s1 + $0x1b4] sm:$0xf]
  %v156 = vld [vmem:[%s1 + $0x1b8] sm:$0xf]
  %v157 = vld [vmem:[%s1 + $0x1bc] sm:$0xf]
  %v158 = vld [vmem:[%s1 + $0x1c0] sm:$0xf]
  %v159 = vld [vmem:[%s1 + $0x1c4] sm:$0xf]
  %v160 = vld [vmem:[%s1 + $0x1c8] sm:$0xf]
  %v161 = vld [vmem:[%s1 + $0x1cc] sm:$0xf]
  %v162 = vld [vmem:[%s1 + $0x1d0] sm:$0xf]
  %v163 = vld [vmem:[%s1 + $0x1d4] sm:$0xf]
  %v164 = vld [vmem:[%s1 + $0x1d8] sm:$0xf]
  %v165 = vld [vmem:[%s1 + $0x1dc] sm:$0xf]
  %v166 = vld [vmem:[%s1 + $0x1e0] sm:$0xf]
  %v167 = vld [vmem:[%s1 + $0x1e4] sm:$0xf]
  %v168 = vld [vmem:[%s1 + $0x1e8] sm:$0xf]
  %v169 = vld [vmem:[%s1 + $0x1ec] sm:$0xf]
  %v170 = vld [vmem:[%s1 + $0x1f0] sm:$0xf]
  %v171 = vld [vmem:[%s1 + $0x1f4] sm:$0xf]
  %v172 = vld [vmem:[%s1 + $0x1f8] sm:$0xf]
  %v173 = vld [vmem:[%s1 + $0x1fc] sm:$0xf]
  %v174 = vld [vmem:[%s1 + $0x200] sm:$0xf]
  %v175 = vld [vmem:[%s1 + $0x204] sm:$0xf]
  %v176 = vld [vmem:[%s1 + $0x208] sm:$0xf]
  %v177 = vld [vmem:[%s1 + $0x20c] sm:$0xf]
  %v178 = vld [vmem:[%s1 + $0x210] sm:$0xf]
  %v179 = vld [vmem:[%s1 + $0x214] sm:$0xf]
  %v180 = vld [vmem:[%s1 + $0x218] sm:$0xf]
  %v181 = vld [vmem:[%s1 + $0x21c] sm:$0xf]
  %v182 = vld [vmem:[%s1 + $0x220] sm:$0xf]
  %v183 = vld [vmem:[%s1 + $0x224] sm:$0xf]
  %v184 = vld [vmem:[%s1 + $0x228] sm:$0xf]
  %v185 = vld [vmem:[%s1 + $0x22c] sm:$0xf]
  %v186 = vld [vmem:[%s1 + $0x230] sm:$0xf]
  %v187 = vld [vmem:[%s1 + $0x234] sm:$0xf]
  %v188 = vld [vmem:[%s1 + $0x238] sm:$0xf]
  %v189 = vld [vmem:[%s1 + $0x23c] sm:$0xf]
  %v190 = vld [vmem:[%s1 + $0x240] sm:$0xf]
  %v191 = vld [vmem:[%s1 + $0x244] sm:$0xf]
  %v192 = vld [vmem:[%s1 + $0x248] sm:$0xf]
  %v193 = vld [vmem:[%s1 + $0x24c] sm:$0xf]
  %v194 = vld [vmem:[%s1 + $0x250] sm:$0xf]
  %v195 = vld [vmem:[%s1 + $0x254] sm:$0xf]
  %v196 = vld [vmem:[%s1 + $0x258] sm:$0xf]
  %v197 = vld [vmem:[%s1 + $0x25c] sm:$0xf]
  %v198 = vld [vmem:[%s1 + $0x260] sm:$0xf]
  %v199 = vld [vmem:[%s1 + $0x264] sm:$0xf]
  %v200 = vld [vmem:[%s1 + $0x268] sm:$0xf]
  %v201 = vld [vmem:[%s1 + $0x26c] sm:$0xf]
  %v202 = vld [vmem:[%s1 + $0x270] sm:$0xf]
  %v203 = vld [vmem:[%s1 + $0x274] sm:$0xf]
  %v204 = vld [vmem:[%s1 + $0x278] sm:$0xf]
  %v205 = vld [vmem:[%s1 + $0x27c] sm:$0xf]
  %v206 = vld [vmem:[%s1 + $0x280] sm:$0xf]
  %v207 = vld [vmem:[%s1 + $0x284] sm:$0xf]
  %v208 = vld [vmem:[%s1 + $0x288] sm:$0xf]
  %v209 = vld [vmem:[%s1 + $0x28c] sm:$0xf]
  %v210 = vld [vmem:[%s1 + $0x290] sm:$0xf]
  %v211 = vld [vmem:[%s1 + $0x294] sm:$0xf]
  %v212 = vld [vmem:[%s1 + $0x298] sm:$0xf]
  %v213 = vld [vmem:[%s1 + $0x29c] sm:$0xf]
  %v214 = vld [vmem:[%s1 + $0x2a0] sm:$0xf]
  %v215 = vld [vmem:[%s1 + $0x2a4] sm:$0xf]
  %v216 = vld [vmem:[%s1 + $0x2a8] sm:$0xf]
  %v217 = vld [vmem:[%s1 + $0x2ac] sm:$0xf]
  %v218 = vld [vmem:[%s1 + $0x2b0] sm:$0xf]
  %v219 = vld [vmem:[%s1 + $0x2b4] sm:$0xf]
  %v220 = vld [vmem:[%s1 + $0x2b8] sm:$0xf]
  %v221 = vld [vmem:[%s1 + $0x2bc] sm:$0xf]
  %v222 = vld [vmem:[%s1 + $0x2c0] sm:$0xf]
  %v223 = vld [vmem:[%s1 + $0x2c4] sm:$0xf]
  %v224 = vld [vmem:[%s1 + $0x2c8] sm:$0xf]
  %v225 = vld [vmem:[%s1 + $0x2cc] sm:$0xf]
  %v226 = vld [vmem:[%s1 + $0x2d0] sm:$0xf]
  %v227 = vld [vmem:[%s1 + $0x2d4] sm:$0xf]
  %v228 = vld [vmem:[%s1 + $0x2d8] sm:$0xf]
  %v229 = vld [vmem:[%s1 + $0x2dc] sm:$0xf]
  %v230 = vld [vmem:[%s1 + $0x2e0] sm:$0xf]
  %v231 = vld [vmem:[%s1 + $0x2e4] sm:$0xf]
  %v232 = vld [vmem:[%s1 + $0x2e8] sm:$0xf]
  %v233 = vld [vmem:[%s1 + $0x2ec] sm:$0xf]
  %v234 = vld [vmem:[%s1 + $0x2f0] sm:$0xf]
  %v235 = vld [vmem:[%s1 + $0x2f4] sm:$0xf]
  %v236 = vld [vmem:[%s1 + $0x2f8] sm:$0xf]
  %v237 = vld [vmem:[%s1 + $0x2fc] sm:$0xf]
  %v238 = vld [vmem:[%s1 + $0x300] sm:$0xf]
  %v239 = vld [vmem:[%s1 + $0x304] sm:$0xf]
  %v240 = vld [vmem:[%s1 + $0x308] sm:$0xf]
  %v241 = vld [vmem:[%s1 + $0x30c] sm:$0xf]
  %v242 = vld [vmem:[%s1 + $0x310] sm:$0xf]
  %v243 = vld [vmem:[%s1 + $0x314] sm:$0xf]
  %v244 = vld [vmem:[%s1 + $0x318] sm:$0xf]
  %v245 = vld [vmem:[%s1 + $0x31c] sm:$0xf]
  %v246 = vld [vmem:[%s1 + $0x320] sm:$0xf]
  %v247 = vld [vmem:[%s1 + $0x324] sm:$0xf]
  %v248 = vld [vmem:[%s1 + $0x328] sm:$0xf]
  %v249 = vld [vmem:[%s1 + $0x32c] sm:$0xf]
  %v250 = vld [vmem:[%s1 + $0x330] sm:$0xf]
  %v251 = vld [vmem:[%s1 + $0x334] sm:$0xf]
  %v252 = vld [vmem:[%s1 + $0x338] sm:$0xf]
  %v253 = vld [vmem:[%s1 + $0x33c] sm:$0xf]
  %v254 = vld [vmem:[%s1 + $0x340] sm:$0xf]
  %v255 = vld [vmem:[%s1 + $0x344] sm:$0xf]
  %v256 = vld [vmem:[%s1 + $0x348] sm:$0xf]
  %v257 = vld [vmem:[%s1 + $0x34c] sm:$0xf]
  %v258 = vld [vmem:[%s1 + $0x350] sm:$0xf]
  %v259 = vld [vmem:[%s1 + $0x354] sm:$0xf]
  %v260 = vld [vmem:[%s1 + $0x358] sm:$0xf]
  %v261 = vld [vmem:[%s1 + $0x35c] sm:$0xf]
  %v262 = vld [vmem:[%s1 + $0x360] sm:$0xf]
  %v263 = vld [vmem:[%s1 + $0x364] sm:$0xf]
  %v264 = vld [vmem:[%s1 + $0x368] sm:$0xf]
  %v265 = vld [vmem:[%s1 + $0x36c] sm:$0xf]
  %v266 = vld [vmem:[%s1 + $0x370] sm:$0xf]
  %v267 = vld [vmem:[%s1 + $0x374] sm:$0xf]
  %v268 = vld [vmem:[%s1 + $0x378] sm:$0xf]
  %v269 = vld [vmem:[%s1 + $0x37c] sm:$0xf]
  %v270 = vld [vmem:[%s1 + $0x380] sm:$0xf]
  %v271 = vld [vmem:[%s1 + $0x384] sm:$0xf]
  %v272 = vld [vmem:[%s1 + $0x388] sm:$0xf]
  %v273 = vld [vmem:[%s1 + $0x38c] sm:$0xf]
  %v274 = vld [vmem:[%s1 + $0x390] sm:$0xf]
  %v275 = vld [vmem:[%s1 + $0x394] sm:$0xf]
  %v276 = vld [vmem:[%s1 + $0x398] sm:$0xf]
  %v277 = vld [vmem:[%s1 + $0x39c] sm:$0xf]
  %v278 = vld [vmem:[%s1 + $0x3a0] sm:$0xf]
  %v279 = vld [vmem:[%s1 + $0x3a4] sm:$0xf]
  %v280 = vld [vmem:[%s1 + $0x3a8] sm:$0xf]
  %v281 = vld [vmem:[%s1 + $0x3ac] sm:$0xf]
  %v282 = vld [vmem:[%s1 + $0x3b0] sm:$0xf]
  %v283 = vld [vmem:[%s1 + $0x3b4] sm:$0xf]
  %v284 = vld [vmem:[%s1 + $0x3b8] sm:$0xf]
  %v285 = vld [vmem:[%s1 + $0x3bc] sm:$0xf]
  %v286 = vld [vmem:[%s1 + $0x3c0] sm:$0xf]
  %v287 = vld [vmem:[%s1 + $0x3c4] sm:$0xf]
  %v288 = vld [vmem:[%s1 + $0x3c8] sm:$0xf]
  %v289 = vld [vmem:[%s1 + $0x3cc] sm:$0xf]
  %v290 = vld [vmem:[%s1 + $0x3d0] sm:$0xf]
  %v291 = vld [vmem:[%s1 + $0x3d4] sm:$0xf]
  %v292 = vld [vmem:[%s1 + $0x3d8] sm:$0xf]
  %v293 = vld [vmem:[%s1 + $0x3dc] sm:$0xf]
  %v294 = vld [vmem:[%s1 + $0x3e0] sm:$0xf]
  %v295 = vld [vmem:[%s1 + $0x3e4] sm:$0xf]
  %v296 = vld [vmem:[%s1 + $0x3e8] sm:$0xf]
  %v297 = vld [vmem:[%s1 + $0x3ec] sm:$0xf]
  %v298 = vld [vmem:[%s1 + $0x3f0] sm:$0xf]
  %v299 = vld [vmem:[%s1 + $0x3f4] sm:$0xf]
  %v300 = vld [vmem:[%s1 + $0x3f8] sm:$0xf]
  %v301 = vld [vmem:[%s1 + $0x3fc] sm:$0xf]
  %v334 = vunpack.c.l.b16 %v14
  %v335 = vunpack.c.h.b16 %v14
  %v336 = vunpack.c.l.b16 %v15
  %v337 = vunpack.c.h.b16 %v15
  %v338 = vunpack.c.l.b16 %v16
  %v339 = vunpack.c.h.b16 %v16
  %v340 = vunpack.c.l.b16 %v17
  %v341 = vunpack.c.h.b16 %v17
  %v342 = vunpack.c.l.b16 %v18
  %v343 = vunpack.c.h.b16 %v18
  %v344 = vunpack.c.l.b16 %v19
  %v345 = vunpack.c.h.b16 %v19
  %v346 = vunpack.c.l.b16 %v20
  %v347 = vunpack.c.h.b16 %v20
  %v348 = vunpack.c.l.b16 %v21
  %v349 = vunpack.c.h.b16 %v21
  %v350 = vunpack.c.l.b16 %v22
  %v351 = vunpack.c.h.b16 %v22
  %v352 = vunpack.c.l.b16 %v23
  %v353 = vunpack.c.h.b16 %v23
  %v354 = vunpack.c.l.b16 %v24
  %v355 = vunpack.c.h.b16 %v24
  %v356 = vunpack.c.l.b16 %v25
  %v357 = vunpack.c.h.b16 %v25
  %v358 = vunpack.c.l.b16 %v26
  %v359 = vunpack.c.h.b16 %v26
  %v360 = vunpack.c.l.b16 %v27
  %v361 = vunpack.c.h.b16 %v27
  %v362 = vunpack.c.l.b16 %v28
  %v363 = vunpack.c.h.b16 %v28
  %v364 = vunpack.c.l.b16 %v29
  %v365 = vunpack.c.h.b16 %v29
  %v366 = vunpack.c.l.b16 %v30
  %v367 = vunpack.c.h.b16 %v30
  %v368 = vunpack.c.l.b16 %v31
  %v369 = vunpack.c.h.b16 %v31
  %v370 = vunpack.c.l.b16 %v32
  %v371 = vunpack.c.h.b16 %v32
  %v372 = vunpack.c.l.b16 %v33
  %v373 = vunpack.c.h.b16 %v33
  %v374 = vunpack.c.l.b16 %v34
  %v375 = vunpack.c.h.b16 %v34
  %v376 = vunpack.c.l.b16 %v35
  %v377 = vunpack.c.h.b16 %v35
  %v378 = vunpack.c.l.b16 %v36
  %v379 = vunpack.c.h.b16 %v36
  %v380 = vunpack.c.l.b16 %v37
  %v381 = vunpack.c.h.b16 %v37
  %v382 = vunpack.c.l.b16 %v38
  %v383 = vunpack.c.h.b16 %v38
  %v384 = vunpack.c.l.b16 %v39
  %v385 = vunpack.c.h.b16 %v39
  %v386 = vunpack.c.l.b16 %v40
  %v387 = vunpack.c.h.b16 %v40
  %v388 = vunpack.c.l.b16 %v41
  %v389 = vunpack.c.h.b16 %v41
  %v390 = vunpack.c.l.b16 %v42
  %v391 = vunpack.c.h.b16 %v42
  %v392 = vunpack.c.l.b16 %v43
  %v393 = vunpack.c.h.b16 %v43
  %v394 = vunpack.c.l.b16 %v44
  %v395 = vunpack.c.h.b16 %v44
  %v396 = vunpack.c.l.b16 %v45
  %v397 = vunpack.c.h.b16 %v45
  %v398 = vpack.c.b16 %v350, %v334
  %v399 = vpack.c.b16 %v351, %v335
  %v400 = vpack.c.b16 %v352, %v336
  %v401 = vpack.c.b16 %v353, %v337
  %v402 = vpack.c.b16 %v354, %v338
  %v403 = vpack.c.b16 %v355, %v339
  %v404 = vpack.c.b16 %v356, %v340
  %v405 = vpack.c.b16 %v357, %v341
  %v406 = vpack.c.b16 %v358, %v342
  %v407 = vpack.c.b16 %v359, %v343
  %v408 = vpack.c.b16 %v360, %v344
  %v409 = vpack.c.b16 %v361, %v345
  %v410 = vpack.c.b16 %v362, %v346
  %v411 = vpack.c.b16 %v363, %v347
  %v412 = vpack.c.b16 %v364, %v348
  %v413 = vpack.c.b16 %v365, %v349
  %v414 = vpack.c.b16 %v382, %v366
  %v415 = vpack.c.b16 %v383, %v367
  %v416 = vpack.c.b16 %v384, %v368
  %v417 = vpack.c.b16 %v385, %v369
  %v418 = vpack.c.b16 %v386, %v370
  %v419 = vpack.c.b16 %v387, %v371
  %v420 = vpack.c.b16 %v388, %v372
  %v421 = vpack.c.b16 %v389, %v373
  %v422 = vpack.c.b16 %v390, %v374
  %v423 = vpack.c.b16 %v391, %v375
  %v424 = vpack.c.b16 %v392, %v376
  %v425 = vpack.c.b16 %v393, %v377
  %v426 = vpack.c.b16 %v394, %v378
  %v427 = vpack.c.b16 %v395, %v379
  %v428 = vpack.c.b16 %v396, %v380
  %v429 = vpack.c.b16 %v397, %v381
  %v718 = vunpack.c.l.b16 %v46
  %v719 = vunpack.c.l.b16 %v47
  %v720 = vunpack.c.l.b16 %v48
  %v721 = vunpack.c.l.b16 %v49
  %v722 = vunpack.c.l.b16 %v50
  %v723 = vunpack.c.l.b16 %v51
  %v724 = vunpack.c.l.b16 %v52
  %v725 = vunpack.c.l.b16 %v53
  %v726 = vunpack.c.l.b16 %v54
  %v727 = vunpack.c.l.b16 %v55
  %v728 = vunpack.c.l.b16 %v56
  %v729 = vunpack.c.l.b16 %v57
  %v730 = vunpack.c.l.b16 %v58
  %v731 = vunpack.c.l.b16 %v59
  %v732 = vunpack.c.l.b16 %v60
  %v733 = vunpack.c.l.b16 %v61
  %v734 = vunpack.c.l.b16 %v62
  %v735 = vunpack.c.l.b16 %v63
  %v736 = vunpack.c.l.b16 %v64
  %v737 = vunpack.c.l.b16 %v65
  %v738 = vunpack.c.l.b16 %v66
  %v739 = vunpack.c.l.b16 %v67
  %v740 = vunpack.c.l.b16 %v68
  %v741 = vunpack.c.l.b16 %v69
  %v742 = vunpack.c.l.b16 %v70
  %v743 = vunpack.c.l.b16 %v71
  %v744 = vunpack.c.l.b16 %v72
  %v745 = vunpack.c.l.b16 %v73
  %v746 = vunpack.c.l.b16 %v74
  %v747 = vunpack.c.l.b16 %v75
  %v748 = vunpack.c.l.b16 %v76
  %v749 = vunpack.c.l.b16 %v77
  %v750 = vunpack.c.l.b16 %v78
  %v751 = vunpack.c.l.b16 %v79
  %v752 = vunpack.c.l.b16 %v80
  %v753 = vunpack.c.l.b16 %v81
  %v754 = vunpack.c.l.b16 %v82
  %v755 = vunpack.c.l.b16 %v83
  %v756 = vunpack.c.l.b16 %v84
  %v757 = vunpack.c.l.b16 %v85
  %v758 = vunpack.c.l.b16 %v86
  %v759 = vunpack.c.l.b16 %v87
  %v760 = vunpack.c.l.b16 %v88
  %v761 = vunpack.c.l.b16 %v89
  %v762 = vunpack.c.l.b16 %v90
  %v763 = vunpack.c.l.b16 %v91
  %v764 = vunpack.c.l.b16 %v92
  %v765 = vunpack.c.l.b16 %v93
  %v766 = vunpack.c.l.b16 %v94
  %v767 = vunpack.c.l.b16 %v95
  %v768 = vunpack.c.l.b16 %v96
  %v769 = vunpack.c.l.b16 %v97
  %v770 = vunpack.c.l.b16 %v98
  %v771 = vunpack.c.l.b16 %v99
  %v772 = vunpack.c.l.b16 %v100
  %v773 = vunpack.c.l.b16 %v101
  %v774 = vunpack.c.l.b16 %v102
  %v775 = vunpack.c.l.b16 %v103
  %v776 = vunpack.c.l.b16 %v104
  %v777 = vunpack.c.l.b16 %v105
  %v778 = vunpack.c.l.b16 %v106
  %v779 = vunpack.c.l.b16 %v107
  %v780 = vunpack.c.l.b16 %v108
  %v781 = vunpack.c.l.b16 %v109
  %v782 = vunpack.c.l.b16 %v110
  %v783 = vunpack.c.l.b16 %v111
  %v784 = vunpack.c.l.b16 %v112
  %v785 = vunpack.c.l.b16 %v113
  %v786 = vunpack.c.l.b16 %v114
  %v787 = vunpack.c.l.b16 %v115
  %v788 = vunpack.c.l.b16 %v116
  %v789 = vunpack.c.l.b16 %v117
  %v790 = vunpack.c.l.b16 %v118
  %v791 = vunpack.c.l.b16 %v119
  %v792 = vunpack.c.l.b16 %v120
  %v793 = vunpack.c.l.b16 %v121
  %v794 = vunpack.c.l.b16 %v122
  %v795 = vunpack.c.l.b16 %v123
  %v796 = vunpack.c.l.b16 %v124
  %v797 = vunpack.c.l.b16 %v125
  %v798 = vunpack.c.l.b16 %v126
  %v799 = vunpack.c.l.b16 %v127
  %v800 = vunpack.c.l.b16 %v128
  %v801 = vunpack.c.l.b16 %v129
  %v802 = vunpack.c.l.b16 %v130
  %v803 = vunpack.c.l.b16 %v131
  %v804 = vunpack.c.l.b16 %v132
  %v805 = vunpack.c.l.b16 %v133
  %v806 = vunpack.c.l.b16 %v134
  %v807 = vunpack.c.l.b16 %v135
  %v808 = vunpack.c.l.b16 %v136
  %v809 = vunpack.c.l.b16 %v137
  %v810 = vunpack.c.l.b16 %v138
  %v811 = vunpack.c.l.b16 %v139
  %v812 = vunpack.c.l.b16 %v140
  %v813 = vunpack.c.l.b16 %v141
  %v814 = vunpack.c.l.b16 %v142
  %v815 = vunpack.c.l.b16 %v143
  %v816 = vunpack.c.l.b16 %v144
  %v817 = vunpack.c.l.b16 %v145
  %v818 = vunpack.c.l.b16 %v146
  %v819 = vunpack.c.l.b16 %v147
  %v820 = vunpack.c.l.b16 %v148
  %v821 = vunpack.c.l.b16 %v149
  %v822 = vunpack.c.l.b16 %v150
  %v823 = vunpack.c.l.b16 %v151
  %v824 = vunpack.c.l.b16 %v152
  %v825 = vunpack.c.l.b16 %v153
  %v826 = vunpack.c.l.b16 %v154
  %v827 = vunpack.c.l.b16 %v155
  %v828 = vunpack.c.l.b16 %v156
  %v829 = vunpack.c.l.b16 %v157
  %v830 = vunpack.c.l.b16 %v158
  %v831 = vunpack.c.l.b16 %v159
  %v832 = vunpack.c.l.b16 %v160
  %v833 = vunpack.c.l.b16 %v161
  %v834 = vunpack.c.l.b16 %v162
  %v835 = vunpack.c.l.b16 %v163
  %v836 = vunpack.c.l.b16 %v164
  %v837 = vunpack.c.l.b16 %v165
  %v838 = vunpack.c.l.b16 %v166
  %v839 = vunpack.c.l.b16 %v167
  %v840 = vunpack.c.l.b16 %v168
  %v841 = vunpack.c.l.b16 %v169
  %v842 = vunpack.c.l.b16 %v170
  %v843 = vunpack.c.l.b16 %v171
  %v844 = vunpack.c.l.b16 %v172
  %v845 = vunpack.c.l.b16 %v173
  %v846 = vunpack.c.l.b16 %v174
  %v847 = vunpack.c.l.b16 %v175
  %v848 = vunpack.c.l.b16 %v176
  %v849 = vunpack.c.l.b16 %v177
  %v850 = vunpack.c.l.b16 %v178
  %v851 = vunpack.c.l.b16 %v179
  %v852 = vunpack.c.l.b16 %v180
  %v853 = vunpack.c.l.b16 %v181
  %v854 = vunpack.c.l.b16 %v182
  %v855 = vunpack.c.l.b16 %v183
  %v856 = vunpack.c.l.b16 %v184
  %v857 = vunpack.c.l.b16 %v185
  %v858 = vunpack.c.l.b16 %v186
  %v859 = vunpack.c.l.b16 %v187
  %v860 = vunpack.c.l.b16 %v188
  %v861 = vunpack.c.l.b16 %v189
  %v862 = vunpack.c.l.b16 %v190
  %v863 = vunpack.c.l.b16 %v191
  %v864 = vunpack.c.l.b16 %v192
  %v865 = vunpack.c.l.b16 %v193
  %v866 = vunpack.c.l.b16 %v194
  %v867 = vunpack.c.l.b16 %v195
  %v868 = vunpack.c.l.b16 %v196
  %v869 = vunpack.c.l.b16 %v197
  %v870 = vunpack.c.l.b16 %v198
  %v871 = vunpack.c.l.b16 %v199
  %v872 = vunpack.c.l.b16 %v200
  %v873 = vunpack.c.l.b16 %v201
  %v874 = vunpack.c.l.b16 %v202
  %v875 = vunpack.c.l.b16 %v203
  %v876 = vunpack.c.l.b16 %v204
  %v877 = vunpack.c.l.b16 %v205
  %v878 = vunpack.c.l.b16 %v206
  %v879 = vunpack.c.l.b16 %v207
  %v880 = vunpack.c.l.b16 %v208
  %v881 = vunpack.c.l.b16 %v209
  %v882 = vunpack.c.l.b16 %v210
  %v883 = vunpack.c.l.b16 %v211
  %v884 = vunpack.c.l.b16 %v212
  %v885 = vunpack.c.l.b16 %v213
  %v886 = vunpack.c.l.b16 %v214
  %v887 = vunpack.c.l.b16 %v215
  %v888 = vunpack.c.l.b16 %v216
  %v889 = vunpack.c.l.b16 %v217
  %v890 = vunpack.c.l.b16 %v218
  %v891 = vunpack.c.l.b16 %v219
  %v892 = vunpack.c.l.b16 %v220
  %v893 = vunpack.c.l.b16 %v221
  %v894 = vunpack.c.l.b16 %v222
  %v895 = vunpack.c.l.b16 %v223
  %v896 = vunpack.c.l.b16 %v224
  %v897 = vunpack.c.l.b16 %v225
  %v898 = vunpack.c.l.b16 %v226
  %v899 = vunpack.c.l.b16 %v227
  %v900 = vunpack.c.l.b16 %v228
  %v901 = vunpack.c.l.b16 %v229
  %v902 = vunpack.c.l.b16 %v230
  %v903 = vunpack.c.l.b16 %v231
  %v904 = vunpack.c.l.b16 %v232
  %v905 = vunpack.c.l.b16 %v233
  %v906 = vunpack.c.l.b16 %v234
  %v907 = vunpack.c.l.b16 %v235
  %v908 = vunpack.c.l.b16 %v236
  %v909 = vunpack.c.l.b16 %v237
  %v910 = vunpack.c.l.b16 %v238
  %v911 = vunpack.c.l.b16 %v239
  %v912 = vunpack.c.l.b16 %v240
  %v913 = vunpack.c.l.b16 %v241
  %v914 = vunpack.c.l.b16 %v242
  %v915 = vunpack.c.l.b16 %v243
  %v916 = vunpack.c.l.b16 %v244
  %v917 = vunpack.c.l.b16 %v245
  %v918 = vunpack.c.l.b16 %v246
  %v919 = vunpack.c.l.b16 %v247
  %v920 = vunpack.c.l.b16 %v248
  %v921 = vunpack.c.l.b16 %v249
  %v922 = vunpack.c.l.b16 %v250
  %v923 = vunpack.c.l.b16 %v251
  %v924 = vunpack.c.l.b16 %v252
  %v925 = vunpack.c.l.b16 %v253
  %v926 = vunpack.c.l.b16 %v254
  %v927 = vunpack.c.l.b16 %v255
  %v928 = vunpack.c.l.b16 %v256
  %v929 = vunpack.c.l.b16 %v257
  %v930 = vunpack.c.l.b16 %v258
  %v931 = vunpack.c.l.b16 %v259
  %v932 = vunpack.c.l.b16 %v260
  %v933 = vunpack.c.l.b16 %v261
  %v934 = vunpack.c.l.b16 %v262
  %v935 = vunpack.c.l.b16 %v263
  %v936 = vunpack.c.l.b16 %v264
  %v937 = vunpack.c.l.b16 %v265
  %v938 = vunpack.c.l.b16 %v266
  %v939 = vunpack.c.l.b16 %v267
  %v940 = vunpack.c.l.b16 %v268
  %v941 = vunpack.c.l.b16 %v269
  %v942 = vunpack.c.l.b16 %v270
  %v943 = vunpack.c.l.b16 %v271
  %v944 = vunpack.c.l.b16 %v272
  %v945 = vunpack.c.l.b16 %v273
  %v946 = vunpack.c.l.b16 %v274
  %v947 = vunpack.c.l.b16 %v275
  %v948 = vunpack.c.l.b16 %v276
  %v949 = vunpack.c.l.b16 %v277
  %v950 = vunpack.c.l.b16 %v278
  %v951 = vunpack.c.l.b16 %v279
  %v952 = vunpack.c.l.b16 %v280
  %v953 = vunpack.c.l.b16 %v281
  %v954 = vunpack.c.l.b16 %v282
  %v955 = vunpack.c.l.b16 %v283
  %v956 = vunpack.c.l.b16 %v284
  %v957 = vunpack.c.l.b16 %v285
  %v958 = vunpack.c.l.b16 %v286
  %v959 = vunpack.c.l.b16 %v287
  %v960 = vunpack.c.l.b16 %v288
  %v961 = vunpack.c.l.b16 %v289
  %v962 = vunpack.c.l.b16 %v290
  %v963 = vunpack.c.l.b16 %v291
  %v964 = vunpack.c.l.b16 %v292
  %v965 = vunpack.c.l.b16 %v293
  %v966 = vunpack.c.l.b16 %v294
  %v967 = vunpack.c.l.b16 %v295
  %v968 = vunpack.c.l.b16 %v296
  %v969 = vunpack.c.l.b16 %v297
  %v970 = vunpack.c.l.b16 %v298
  %v971 = vunpack.c.l.b16 %v299
  %v972 = vunpack.c.l.b16 %v300
  %v973 = vunpack.c.l.b16 %v301
  %v974 = vpack.c.b16 %v719, %v718
  %v975 = vpack.c.b16 %v721, %v720
  %v976 = vpack.c.b16 %v723, %v722
  %v977 = vpack.c.b16 %v725, %v724
  %v978 = vpack.c.b16 %v727, %v726
  %v979 = vpack.c.b16 %v729, %v728
  %v980 = vpack.c.b16 %v731, %v730
  %v981 = vpack.c.b16 %v733, %v732
  %v982 = vpack.c.b16 %v735, %v734
  %v983 = vpack.c.b16 %v737, %v736
  %v984 = vpack.c.b16 %v739, %v738
  %v985 = vpack.c.b16 %v741, %v740
  %v986 = vpack.c.b16 %v743, %v742
  %v987 = vpack.c.b16 %v745, %v744
  %v988 = vpack.c.b16 %v747, %v746
  %v989 = vpack.c.b16 %v749, %v748
  %v990 = vpack.c.b16 %v751, %v750
  %v991 = vpack.c.b16 %v753, %v752
  %v992 = vpack.c.b16 %v755, %v754
  %v993 = vpack.c.b16 %v757, %v756
  %v994 = vpack.c.b16 %v759, %v758
  %v995 = vpack.c.b16 %v761, %v760
  %v996 = vpack.c.b16 %v763, %v762
  %v997 = vpack.c.b16 %v765, %v764
  %v998 = vpack.c.b16 %v767, %v766
  %v999 = vpack.c.b16 %v769, %v768
  %v1000 = vpack.c.b16 %v771, %v770
  %v1001 = vpack.c.b16 %v773, %v772
  %v1002 = vpack.c.b16 %v775, %v774
  %v1003 = vpack.c.b16 %v777, %v776
  %v1004 = vpack.c.b16 %v779, %v778
  %v1005 = vpack.c.b16 %v781, %v780
  %v1006 = vpack.c.b16 %v783, %v782
  %v1007 = vpack.c.b16 %v785, %v784
  %v1008 = vpack.c.b16 %v787, %v786
  %v1009 = vpack.c.b16 %v789, %v788
  %v1010 = vpack.c.b16 %v791, %v790
  %v1011 = vpack.c.b16 %v793, %v792
  %v1012 = vpack.c.b16 %v795, %v794
  %v1013 = vpack.c.b16 %v797, %v796
  %v1014 = vpack.c.b16 %v799, %v798
  %v1015 = vpack.c.b16 %v801, %v800
  %v1016 = vpack.c.b16 %v803, %v802
  %v1017 = vpack.c.b16 %v805, %v804
  %v1018 = vpack.c.b16 %v807, %v806
  %v1019 = vpack.c.b16 %v809, %v808
  %v1020 = vpack.c.b16 %v811, %v810
  %v1021 = vpack.c.b16 %v813, %v812
  %v1022 = vpack.c.b16 %v815, %v814
  %v1023 = vpack.c.b16 %v817, %v816
  %v1024 = vpack.c.b16 %v819, %v818
  %v1025 = vpack.c.b16 %v821, %v820
  %v1026 = vpack.c.b16 %v823, %v822
  %v1027 = vpack.c.b16 %v825, %v824
  %v1028 = vpack.c.b16 %v827, %v826
  %v1029 = vpack.c.b16 %v829, %v828
  %v1030 = vpack.c.b16 %v831, %v830
  %v1031 = vpack.c.b16 %v833, %v832
  %v1032 = vpack.c.b16 %v835, %v834
  %v1033 = vpack.c.b16 %v837, %v836
  %v1034 = vpack.c.b16 %v839, %v838
  %v1035 = vpack.c.b16 %v841, %v840
  %v1036 = vpack.c.b16 %v843, %v842
  %v1037 = vpack.c.b16 %v845, %v844
  %v1038 = vpack.c.b16 %v847, %v846
  %v1039 = vpack.c.b16 %v849, %v848
  %v1040 = vpack.c.b16 %v851, %v850
  %v1041 = vpack.c.b16 %v853, %v852
  %v1042 = vpack.c.b16 %v855, %v854
  %v1043 = vpack.c.b16 %v857, %v856
  %v1044 = vpack.c.b16 %v859, %v858
  %v1045 = vpack.c.b16 %v861, %v860
  %v1046 = vpack.c.b16 %v863, %v862
  %v1047 = vpack.c.b16 %v865, %v864
  %v1048 = vpack.c.b16 %v867, %v866
  %v1049 = vpack.c.b16 %v869, %v868
  %v1050 = vpack.c.b16 %v871, %v870
  %v1051 = vpack.c.b16 %v873, %v872
  %v1052 = vpack.c.b16 %v875, %v874
  %v1053 = vpack.c.b16 %v877, %v876
  %v1054 = vpack.c.b16 %v879, %v878
  %v1055 = vpack.c.b16 %v881, %v880
  %v1056 = vpack.c.b16 %v883, %v882
  %v1057 = vpack.c.b16 %v885, %v884
  %v1058 = vpack.c.b16 %v887, %v886
  %v1059 = vpack.c.b16 %v889, %v888
  %v1060 = vpack.c.b16 %v891, %v890
  %v1061 = vpack.c.b16 %v893, %v892
  %v1062 = vpack.c.b16 %v895, %v894
  %v1063 = vpack.c.b16 %v897, %v896
  %v1064 = vpack.c.b16 %v899, %v898
  %v1065 = vpack.c.b16 %v901, %v900
  %v1066 = vpack.c.b16 %v903, %v902
  %v1067 = vpack.c.b16 %v905, %v904
  %v1068 = vpack.c.b16 %v907, %v906
  %v1069 = vpack.c.b16 %v909, %v908
  %v1070 = vpack.c.b16 %v911, %v910
  %v1071 = vpack.c.b16 %v913, %v912
  %v1072 = vpack.c.b16 %v915, %v914
  %v1073 = vpack.c.b16 %v917, %v916
  %v1074 = vpack.c.b16 %v919, %v918
  %v1075 = vpack.c.b16 %v921, %v920
  %v1076 = vpack.c.b16 %v923, %v922
  %v1077 = vpack.c.b16 %v925, %v924
  %v1078 = vpack.c.b16 %v927, %v926
  %v1079 = vpack.c.b16 %v929, %v928
  %v1080 = vpack.c.b16 %v931, %v930
  %v1081 = vpack.c.b16 %v933, %v932
  %v1082 = vpack.c.b16 %v935, %v934
  %v1083 = vpack.c.b16 %v937, %v936
  %v1084 = vpack.c.b16 %v939, %v938
  %v1085 = vpack.c.b16 %v941, %v940
  %v1086 = vpack.c.b16 %v943, %v942
  %v1087 = vpack.c.b16 %v945, %v944
  %v1088 = vpack.c.b16 %v947, %v946
  %v1089 = vpack.c.b16 %v949, %v948
  %v1090 = vpack.c.b16 %v951, %v950
  %v1091 = vpack.c.b16 %v953, %v952
  %v1092 = vpack.c.b16 %v955, %v954
  %v1093 = vpack.c.b16 %v957, %v956
  %v1094 = vpack.c.b16 %v959, %v958
  %v1095 = vpack.c.b16 %v961, %v960
  %v1096 = vpack.c.b16 %v963, %v962
  %v1097 = vpack.c.b16 %v965, %v964
  %v1098 = vpack.c.b16 %v967, %v966
  %v1099 = vpack.c.b16 %v969, %v968
  %v1100 = vpack.c.b16 %v971, %v970
  %v1101 = vpack.c.b16 %v973, %v972
  %1230 = vmatpush.bf16.msra.mxu0 %v981
  %1231 = vmatpush.bf16.msra.mxu0 %v980
  %1232 = vmatpush.bf16.msra.mxu0 %v979
  %1233 = vmatpush.bf16.msra.mxu0 %v978
  %1234 = vmatpush.bf16.msra.mxu0 %v977
  %1235 = vmatpush.bf16.msra.mxu0 %v976
  %1236 = vmatpush.bf16.msra.mxu0 %v975
  %1237 = vmatpush.bf16.msra.mxu0 %v974
  %1238 = vmatmul.bf16.gmra.mxu0 %v398
  %v1239 = vpop.f32.mrf.mxu0
  %v1240 = vadd.f32 0.0, %v1239
  %v1241 = vpop.f32.mrf.mxu0
  %v1242 = vadd.f32 0.0, %v1241
  %1243 = vmatmul.bf16.gmra.mxu0 %v414
  %v1244 = vpop.f32.mrf.mxu0
  %v1245 = vadd.f32 0.0, %v1244
  %v1246 = vpop.f32.mrf.mxu0
  %v1247 = vadd.f32 0.0, %v1246
  %1248 = vdwg.mxu0
  %1249 = vmatpush.bf16.msra.mxu0 %v989
  %1250 = vmatpush.bf16.msra.mxu0 %v988
  %1251 = vmatpush.bf16.msra.mxu0 %v987
  %1252 = vmatpush.bf16.msra.mxu0 %v986
  %1253 = vmatpush.bf16.msra.mxu0 %v985
  %1254 = vmatpush.bf16.msra.mxu0 %v984
  %1255 = vmatpush.bf16.msra.mxu0 %v983
  %1256 = vmatpush.bf16.msra.mxu0 %v982
  %1257 = vmatmul.bf16.gmra.mxu0 %v399
  %v1258 = vpop.f32.mrf.mxu0
  %v1259 = vadd.f32 %v1240, %v1258
  %v1260 = vpop.f32.mrf.mxu0
  %v1261 = vadd.f32 %v1242, %v1260
  %1262 = vmatmul.bf16.gmra.mxu0 %v415
  %v1263 = vpop.f32.mrf.mxu0
  %v1264 = vadd.f32 %v1245, %v1263
  %v1265 = vpop.f32.mrf.mxu0
  %v1266 = vadd.f32 %v1247, %v1265
  %1267 = vdwg.mxu0
  %1268 = vmatpush.bf16.msra.mxu0 %v997
  %1269 = vmatpush.bf16.msra.mxu0 %v996
  %1270 = vmatpush.bf16.msra.mxu0 %v995
  %1271 = vmatpush.bf16.msra.mxu0 %v994
  %1272 = vmatpush.bf16.msra.mxu0 %v993
  %1273 = vmatpush.bf16.msra.mxu0 %v992
  %1274 = vmatpush.bf16.msra.mxu0 %v991
  %1275 = vmatpush.bf16.msra.mxu0 %v990
  %1276 = vmatmul.bf16.gmra.mxu0 %v400
  %v1277 = vpop.f32.mrf.mxu0
  %v1278 = vadd.f32 %v1259, %v1277
  %v1279 = vpop.f32.mrf.mxu0
  %v1280 = vadd.f32 %v1261, %v1279
  %1281 = vmatmul.bf16.gmra.mxu0 %v416
  %v1282 = vpop.f32.mrf.mxu0
  %v1283 = vadd.f32 %v1264, %v1282
  %v1284 = vpop.f32.mrf.mxu0
  %v1285 = vadd.f32 %v1266, %v1284
  %1286 = vdwg.mxu0
  %1287 = vmatpush.bf16.msra.mxu0 %v1005
  %1288 = vmatpush.bf16.msra.mxu0 %v1004
  %1289 = vmatpush.bf16.msra.mxu0 %v1003
  %1290 = vmatpush.bf16.msra.mxu0 %v1002
  %1291 = vmatpush.bf16.msra.mxu0 %v1001
  %1292 = vmatpush.bf16.msra.mxu0 %v1000
  %1293 = vmatpush.bf16.msra.mxu0 %v999
  %1294 = vmatpush.bf16.msra.mxu0 %v998
  %1295 = vmatmul.bf16.gmra.mxu0 %v401
  %v1296 = vpop.f32.mrf.mxu0
  %v1297 = vadd.f32 %v1278, %v1296
  %v1298 = vpop.f32.mrf.mxu0
  %v1299 = vadd.f32 %v1280, %v1298
  %1300 = vmatmul.bf16.gmra.mxu0 %v417
  %v1301 = vpop.f32.mrf.mxu0
  %v1302 = vadd.f32 %v1283, %v1301
  %v1303 = vpop.f32.mrf.mxu0
  %v1304 = vadd.f32 %v1285, %v1303
  %1305 = vdwg.mxu0
  %1306 = vmatpush.bf16.msra.mxu0 %v1013
  %1307 = vmatpush.bf16.msra.mxu0 %v1012
  %1308 = vmatpush.bf16.msra.mxu0 %v1011
  %1309 = vmatpush.bf16.msra.mxu0 %v1010
  %1310 = vmatpush.bf16.msra.mxu0 %v1009
  %1311 = vmatpush.bf16.msra.mxu0 %v1008
  %1312 = vmatpush.bf16.msra.mxu0 %v1007
  %1313 = vmatpush.bf16.msra.mxu0 %v1006
  %1314 = vmatmul.bf16.gmra.mxu0 %v402
  %v1315 = vpop.f32.mrf.mxu0
  %v1316 = vadd.f32 %v1297, %v1315
  %v1317 = vpop.f32.mrf.mxu0
  %v1318 = vadd.f32 %v1299, %v1317
  %1319 = vmatmul.bf16.gmra.mxu0 %v418
  %v1320 = vpop.f32.mrf.mxu0
  %v1321 = vadd.f32 %v1302, %v1320
  %v1322 = vpop.f32.mrf.mxu0
  %v1323 = vadd.f32 %v1304, %v1322
  %1324 = vdwg.mxu0
  %1325 = vmatpush.bf16.msra.mxu0 %v1021
  %1326 = vmatpush.bf16.msra.mxu0 %v1020
  %1327 = vmatpush.bf16.msra.mxu0 %v1019
  %1328 = vmatpush.bf16.msra.mxu0 %v1018
  %1329 = vmatpush.bf16.msra.mxu0 %v1017
  %1330 = vmatpush.bf16.msra.mxu0 %v1016
  %1331 = vmatpush.bf16.msra.mxu0 %v1015
  %1332 = vmatpush.bf16.msra.mxu0 %v1014
  %1333 = vmatmul.bf16.gmra.mxu0 %v403
  %v1334 = vpop.f32.mrf.mxu0
  %v1335 = vadd.f32 %v1316, %v1334
  %v1336 = vpop.f32.mrf.mxu0
  %v1337 = vadd.f32 %v1318, %v1336
  %1338 = vmatmul.bf16.gmra.mxu0 %v419
  %v1339 = vpop.f32.mrf.mxu0
  %v1340 = vadd.f32 %v1321, %v1339
  %v1341 = vpop.f32.mrf.mxu0
  %v1342 = vadd.f32 %v1323, %v1341
  %1343 = vdwg.mxu0
  %1344 = vmatpush.bf16.msra.mxu0 %v1029
  %1345 = vmatpush.bf16.msra.mxu0 %v1028
  %1346 = vmatpush.bf16.msra.mxu0 %v1027
  %1347 = vmatpush.bf16.msra.mxu0 %v1026
  %1348 = vmatpush.bf16.msra.mxu0 %v1025
  %1349 = vmatpush.bf16.msra.mxu0 %v1024
  %1350 = vmatpush.bf16.msra.mxu0 %v1023
  %1351 = vmatpush.bf16.msra.mxu0 %v1022
  %1352 = vmatmul.bf16.gmra.mxu0 %v404
  %v1353 = vpop.f32.mrf.mxu0
  %v1354 = vadd.f32 %v1335, %v1353
  %v1355 = vpop.f32.mrf.mxu0
  %v1356 = vadd.f32 %v1337, %v1355
  %1357 = vmatmul.bf16.gmra.mxu0 %v420
  %v1358 = vpop.f32.mrf.mxu0
  %v1359 = vadd.f32 %v1340, %v1358
  %v1360 = vpop.f32.mrf.mxu0
  %v1361 = vadd.f32 %v1342, %v1360
  %1362 = vdwg.mxu0
  %1363 = vmatpush.bf16.msra.mxu0 %v1037
  %1364 = vmatpush.bf16.msra.mxu0 %v1036
  %1365 = vmatpush.bf16.msra.mxu0 %v1035
  %1366 = vmatpush.bf16.msra.mxu0 %v1034
  %1367 = vmatpush.bf16.msra.mxu0 %v1033
  %1368 = vmatpush.bf16.msra.mxu0 %v1032
  %1369 = vmatpush.bf16.msra.mxu0 %v1031
  %1370 = vmatpush.bf16.msra.mxu0 %v1030
  %1371 = vmatmul.bf16.gmra.mxu0 %v405
  %v1372 = vpop.f32.mrf.mxu0
  %v1373 = vadd.f32 %v1354, %v1372
  %v1374 = vpop.f32.mrf.mxu0
  %v1375 = vadd.f32 %v1356, %v1374
  %1376 = vmatmul.bf16.gmra.mxu0 %v421
  %v1377 = vpop.f32.mrf.mxu0
  %v1378 = vadd.f32 %v1359, %v1377
  %v1379 = vpop.f32.mrf.mxu0
  %v1380 = vadd.f32 %v1361, %v1379
  %1381 = vdwg.mxu0
  %1382 = vmatpush.bf16.msra.mxu0 %v1045
  %1383 = vmatpush.bf16.msra.mxu0 %v1044
  %1384 = vmatpush.bf16.msra.mxu0 %v1043
  %1385 = vmatpush.bf16.msra.mxu0 %v1042
  %1386 = vmatpush.bf16.msra.mxu0 %v1041
  %1387 = vmatpush.bf16.msra.mxu0 %v1040
  %1388 = vmatpush.bf16.msra.mxu0 %v1039
  %1389 = vmatpush.bf16.msra.mxu0 %v1038
  %1390 = vmatmul.bf16.gmra.mxu0 %v406
  %v1391 = vpop.f32.mrf.mxu0
  %v1392 = vadd.f32 %v1373, %v1391
  %v1393 = vpop.f32.mrf.mxu0
  %v1394 = vadd.f32 %v1375, %v1393
  %1395 = vmatmul.bf16.gmra.mxu0 %v422
  %v1396 = vpop.f32.mrf.mxu0
  %v1397 = vadd.f32 %v1378, %v1396
  %v1398 = vpop.f32.mrf.mxu0
  %v1399 = vadd.f32 %v1380, %v1398
  %1400 = vdwg.mxu0
  %1401 = vmatpush.bf16.msra.mxu0 %v1053
  %1402 = vmatpush.bf16.msra.mxu0 %v1052
  %1403 = vmatpush.bf16.msra.mxu0 %v1051
  %1404 = vmatpush.bf16.msra.mxu0 %v1050
  %1405 = vmatpush.bf16.msra.mxu0 %v1049
  %1406 = vmatpush.bf16.msra.mxu0 %v1048
  %1407 = vmatpush.bf16.msra.mxu0 %v1047
  %1408 = vmatpush.bf16.msra.mxu0 %v1046
  %1409 = vmatmul.bf16.gmra.mxu0 %v407
  %v1410 = vpop.f32.mrf.mxu0
  %v1411 = vadd.f32 %v1392, %v1410
  %v1412 = vpop.f32.mrf.mxu0
  %v1413 = vadd.f32 %v1394, %v1412
  %1414 = vmatmul.bf16.gmra.mxu0 %v423
  %v1415 = vpop.f32.mrf.mxu0
  %v1416 = vadd.f32 %v1397, %v1415
  %v1417 = vpop.f32.mrf.mxu0
  %v1418 = vadd.f32 %v1399, %v1417
  %1419 = vdwg.mxu0
  %1420 = vmatpush.bf16.msra.mxu0 %v1061
  %1421 = vmatpush.bf16.msra.mxu0 %v1060
  %1422 = vmatpush.bf16.msra.mxu0 %v1059
  %1423 = vmatpush.bf16.msra.mxu0 %v1058
  %1424 = vmatpush.bf16.msra.mxu0 %v1057
  %1425 = vmatpush.bf16.msra.mxu0 %v1056
  %1426 = vmatpush.bf16.msra.mxu0 %v1055
  %1427 = vmatpush.bf16.msra.mxu0 %v1054
  %1428 = vmatmul.bf16.gmra.mxu0 %v408
  %v1429 = vpop.f32.mrf.mxu0
  %v1430 = vadd.f32 %v1411, %v1429
  %v1431 = vpop.f32.mrf.mxu0
  %v1432 = vadd.f32 %v1413, %v1431
  %1433 = vmatmul.bf16.gmra.mxu0 %v424
  %v1434 = vpop.f32.mrf.mxu0
  %v1435 = vadd.f32 %v1416, %v1434
  %v1436 = vpop.f32.mrf.mxu0
  %v1437 = vadd.f32 %v1418, %v1436
  %1438 = vdwg.mxu0
  %1439 = vmatpush.bf16.msra.mxu0 %v1069
  %1440 = vmatpush.bf16.msra.mxu0 %v1068
  %1441 = vmatpush.bf16.msra.mxu0 %v1067
  %1442 = vmatpush.bf16.msra.mxu0 %v1066
  %1443 = vmatpush.bf16.msra.mxu0 %v1065
  %1444 = vmatpush.bf16.msra.mxu0 %v1064
  %1445 = vmatpush.bf16.msra.mxu0 %v1063
  %1446 = vmatpush.bf16.msra.mxu0 %v1062
  %1447 = vmatmul.bf16.gmra.mxu0 %v409
  %v1448 = vpop.f32.mrf.mxu0
  %v1449 = vadd.f32 %v1430, %v1448
  %v1450 = vpop.f32.mrf.mxu0
  %v1451 = vadd.f32 %v1432, %v1450
  %1452 = vmatmul.bf16.gmra.mxu0 %v425
  %v1453 = vpop.f32.mrf.mxu0
  %v1454 = vadd.f32 %v1435, %v1453
  %v1455 = vpop.f32.mrf.mxu0
  %v1456 = vadd.f32 %v1437, %v1455
  %1457 = vdwg.mxu0
  %1458 = vmatpush.bf16.msra.mxu0 %v1077
  %1459 = vmatpush.bf16.msra.mxu0 %v1076
  %1460 = vmatpush.bf16.msra.mxu0 %v1075
  %1461 = vmatpush.bf16.msra.mxu0 %v1074
  %1462 = vmatpush.bf16.msra.mxu0 %v1073
  %1463 = vmatpush.bf16.msra.mxu0 %v1072
  %1464 = vmatpush.bf16.msra.mxu0 %v1071
  %1465 = vmatpush.bf16.msra.mxu0 %v1070
  %1466 = vmatmul.bf16.gmra.mxu0 %v410
  %v1467 = vpop.f32.mrf.mxu0
  %v1468 = vadd.f32 %v1449, %v1467
  %v1469 = vpop.f32.mrf.mxu0
  %v1470 = vadd.f32 %v1451, %v1469
  %1471 = vmatmul.bf16.gmra.mxu0 %v426
  %v1472 = vpop.f32.mrf.mxu0
  %v1473 = vadd.f32 %v1454, %v1472
  %v1474 = vpop.f32.mrf.mxu0
  %v1475 = vadd.f32 %v1456, %v1474
  %1476 = vdwg.mxu0
  %1477 = vmatpush.bf16.msra.mxu0 %v1085
  %1478 = vmatpush.bf16.msra.mxu0 %v1084
  %1479 = vmatpush.bf16.msra.mxu0 %v1083
  %1480 = vmatpush.bf16.msra.mxu0 %v1082
  %1481 = vmatpush.bf16.msra.mxu0 %v1081
  %1482 = vmatpush.bf16.msra.mxu0 %v1080
  %1483 = vmatpush.bf16.msra.mxu0 %v1079
  %1484 = vmatpush.bf16.msra.mxu0 %v1078
  %1485 = vmatmul.bf16.gmra.mxu0 %v411
  %v1486 = vpop.f32.mrf.mxu0
  %v1487 = vadd.f32 %v1468, %v1486
  %v1488 = vpop.f32.mrf.mxu0
  %v1489 = vadd.f32 %v1470, %v1488
  %1490 = vmatmul.bf16.gmra.mxu0 %v427
  %v1491 = vpop.f32.mrf.mxu0
  %v1492 = vadd.f32 %v1473, %v1491
  %v1493 = vpop.f32.mrf.mxu0
  %v1494 = vadd.f32 %v1475, %v1493
  %1495 = vdwg.mxu0
  %1496 = vmatpush.bf16.msra.mxu0 %v1093
  %1497 = vmatpush.bf16.msra.mxu0 %v1092
  %1498 = vmatpush.bf16.msra.mxu0 %v1091
  %1499 = vmatpush.bf16.msra.mxu0 %v1090
  %1500 = vmatpush.bf16.msra.mxu0 %v1089
  %1501 = vmatpush.bf16.msra.mxu0 %v1088
  %1502 = vmatpush.bf16.msra.mxu0 %v1087
  %1503 = vmatpush.bf16.msra.mxu0 %v1086
  %1504 = vmatmul.bf16.gmra.mxu0 %v412
  %v1505 = vpop.f32.mrf.mxu0
  %v1506 = vadd.f32 %v1487, %v1505
  %v1507 = vpop.f32.mrf.mxu0
  %v1508 = vadd.f32 %v1489, %v1507
  %1509 = vmatmul.bf16.gmra.mxu0 %v428
  %v1510 = vpop.f32.mrf.mxu0
  %v1511 = vadd.f32 %v1492, %v1510
  %v1512 = vpop.f32.mrf.mxu0
  %v1513 = vadd.f32 %v1494, %v1512
  %1514 = vdwg.mxu0
  %1515 = vmatpush.bf16.msra.mxu0 %v1101
  %1516 = vmatpush.bf16.msra.mxu0 %v1100
  %1517 = vmatpush.bf16.msra.mxu0 %v1099
  %1518 = vmatpush.bf16.msra.mxu0 %v1098
  %1519 = vmatpush.bf16.msra.mxu0 %v1097
  %1520 = vmatpush.bf16.msra.mxu0 %v1096
  %1521 = vmatpush.bf16.msra.mxu0 %v1095
  %1522 = vmatpush.bf16.msra.mxu0 %v1094
  %1523 = vmatmul.bf16.gmra.mxu0 %v413
  %v1524 = vpop.f32.mrf.mxu0
  %v1525 = vadd.f32 %v1506, %v1524
  %v1526 = vpop.f32.mrf.mxu0
  %v1527 = vadd.f32 %v1508, %v1526
  %1528 = vmatmul.bf16.gmra.mxu0 %v429
  %v1529 = vpop.f32.mrf.mxu0
  %v1530 = vadd.f32 %v1511, %v1529
  %v1531 = vpop.f32.mrf.mxu0
  %v1532 = vadd.f32 %v1513, %v1531
  %1533 = vdwg.mxu0
  %v1534 = vpack.c.bf16 %v1525, %v1525
  %v1535 = vpack.c.bf16 %v1527, %v1527
  %v1536 = vpack.c.bf16 %v1530, %v1530
  %v1537 = vpack.c.bf16 %v1532, %v1532
  %1538 = vst [vmem:[%s2] sm:$0xf] %v1534
  %1539 = vst [vmem:[%s2 + $0x4] sm:$0xf] %v1535
  %1540 = vst [vmem:[%s2 + $0x8] sm:$0xf] %v1536
  %1541 = vst [vmem:[%s2 + $0xc] sm:$0xf] %v1537
  %v1542 = vadd.f32 %v1525, %v1527
  %v1543 = vadd.f32 %v1542, %v1530
  %v1544 = vadd.f32 %v1543, %v1532
  %v1545 = vrot.slane %v1544, 4
  %v1546 = vadd.f32 %v1544, %v1545
  %v1547 = vrot.slane %v1546, 2
  %v1548 = vadd.f32 %v1546, %v1547
  %v1549 = vrot.slane %v1548, 1
  %v1550 = vadd.f32 %v1548, %v1549
  %1551 = vst [vmem:[%s3] sm:$0x1] %v1550
  %v1552 = vmul.f32 %v1525, %v1525
  %v1553 = vmul.f32 %v1527, %v1527
  %v1554 = vmul.f32 %v1530, %v1530
  %v1555 = vmul.f32 %v1532, %v1532
  %v1556 = vadd.f32 %v1552, %v1553
  %v1557 = vadd.f32 %v1556, %v1554
  %v1558 = vadd.f32 %v1557, %v1555
  %v1559 = vrot.slane %v1558, 4
  %v1560 = vadd.f32 %v1558, %v1559
  %v1561 = vrot.slane %v1560, 2
  %v1562 = vadd.f32 %v1560, %v1561
  %v1563 = vrot.slane %v1562, 1
  %v1564 = vadd.f32 %v1562, %v1563
  %1565 = vst [vmem:[%s4] sm:$0x1] %v1564
  // Predicated region
  $region10: #{discriminator_forward.13} parent=0 // pred_check
    _
  $region11: #{discriminator_forward.13} parent=0 // pred_check_branch
    %1567 = sbr.rel (0) target = $region13
  $region12: #{discriminator_forward.13} parent=0 // pred_region
    _
  $region13: #{discriminator_forward.13} parent=0 // pred_fallthru
    _
  // Predicated region
  $region14: #{discriminator_forward.13} parent=0 // pred_check
    _
  $region15: #{discriminator_forward.13} parent=0 // pred_check_branch
    %1569 = sbr.rel (0) target = $region17
  $region16: #{discriminator_forward.13} parent=0 // pred_region
    _
  $region17: #{discriminator_forward.13} parent=0 // pred_fallthru
    _
  // Predicated region
  $region18: #{discriminator_forward.13} parent=0 // pred_check
    _
  $region19: #{discriminator_forward.13} parent=0 // pred_check_branch
    %1571 = sbr.rel (0) target = $region21
  $region20: #{discriminator_forward.13} parent=0 // pred_region
    _
  $region21: #{discriminator_forward.13} parent=0 // pred_fallthru
    _
  // Predicated region
  $region22: #{discriminator_forward.13} parent=0 // pred_check
    _
  $region23: #{discriminator_forward.13} parent=0 // pred_check_branch
    %1573 = sbr.rel (0) target = $region25
  $region24: #{discriminator_forward.13} parent=0 // pred_region
    _
  $region25: #{discriminator_forward.13} parent=0 // pred_fallthru
    _
  // Predicated region
  $region26: #{discriminator_forward.13} parent=0 // pred_check
    _
  $region27: #{discriminator_forward.13} parent=0 // pred_check_branch
    %1575 = sbr.rel (0) target = $region29
  $region28: #{discriminator_forward.13} parent=0 // pred_region
    _
  $region29: #{discriminator_forward.13} parent=0 // pred_fallthru
    _
  // Predicated region
  $region30: #{discriminator_forward.13} parent=0 // pred_check
    _
  $region31: #{discriminator_forward.13} parent=0 // pred_check_branch
    %1577 = sbr.rel (0) target = $region33
  $region32: #{discriminator_forward.13} parent=0 // pred_region
    _
  $region33: #{discriminator_forward.13} parent=0 // pred_fallthru
    _

// kernel: discriminator_forward.15
$region0: #{discriminator_forward.15}
  #allocation0 [shape = 'u32[]', space=smem, size = 0x4, offset = 0x4, fixed_abs, tag = 'smem constant byte address 0x4 - core index']
  #allocation1 [shape = 'u32[72,128]{1,0:T(1,128)}', space=vmem, size = 0x9000, scoped, tag = 'internal scratch']
  %s0 = inlined_call_operand.vmem [shape: bf16[2,2048], index: 0, kind: input, shape index: {}]
  %s1 = inlined_call_operand.vmem [shape: bf16[2048,128], index: 1, kind: input, shape index: {}]
  %s2 = inlined_call_operand.vmem [shape: f32[2,128], index: 2, kind: output, shape index: {}]
  %s3 = sld [smem:[#allocation0]]
  $region18: #{discriminator_forward.15} parent=0
    _
  %s5 = ssub.s32 1, %s3
  %s6 = scalar_select 0, %s5, %s3
  // Predicated region
  $region2: #{discriminator_forward.15} parent=0 // pred_check
    _
  $region3: #{discriminator_forward.15} parent=0 // pred_check_branch
    %8 = sbr.rel (0) target = $region5
  $region4: #{discriminator_forward.15} parent=0 // pred_region
    _
  $region5: #{discriminator_forward.15} parent=0 // pred_fallthru
    _
  // Predicated region
  $region6: #{discriminator_forward.15} parent=0 // pred_check
    _
  $region7: #{discriminator_forward.15} parent=0 // pred_check_branch
    %10 = sbr.rel (0) target = $region9
  $region8: #{discriminator_forward.15} parent=0 // pred_region
    _
  $region9: #{discriminator_forward.15} parent=0 // pred_fallthru
    _
  %v11 = vld [vmem:[%s0] sm:$0xff]
  %v12 = vld [vmem:[%s0 + $0x8] sm:$0xff]
  %v13 = vld [vmem:[%s1] sm:$0xf]
  %v14 = vld [vmem:[%s1 + $0x4] sm:$0xf]
  %v15 = vld [vmem:[%s1 + $0x8] sm:$0xf]
  %v16 = vld [vmem:[%s1 + $0xc] sm:$0xf]
  %v17 = vld [vmem:[%s1 + $0x10] sm:$0xf]
  %v18 = vld [vmem:[%s1 + $0x14] sm:$0xf]
  %v19 = vld [vmem:[%s1 + $0x18] sm:$0xf]
  %v20 = vld [vmem:[%s1 + $0x1c] sm:$0xf]
  %v21 = vld [vmem:[%s1 + $0x20] sm:$0xf]
  %v22 = vld [vmem:[%s1 + $0x24] sm:$0xf]
  %v23 = vld [vmem:[%s1 + $0x28] sm:$0xf]
  %v24 = vld [vmem:[%s1 + $0x2c] sm:$0xf]
  %v25 = vld [vmem:[%s1 + $0x30] sm:$0xf]
  %v26 = vld [vmem:[%s1 + $0x34] sm:$0xf]
  %v27 = vld [vmem:[%s1 + $0x38] sm:$0xf]
  %v28 = vld [vmem:[%s1 + $0x3c] sm:$0xf]
  %v29 = vld [vmem:[%s1 + $0x40] sm:$0xf]
  %v30 = vld [vmem:[%s1 + $0x44] sm:$0xf]
  %v31 = vld [vmem:[%s1 + $0x48] sm:$0xf]
  %v32 = vld [vmem:[%s1 + $0x4c] sm:$0xf]
  %v33 = vld [vmem:[%s1 + $0x50] sm:$0xf]
  %v34 = vld [vmem:[%s1 + $0x54] sm:$0xf]
  %v35 = vld [vmem:[%s1 + $0x58] sm:$0xf]
  %v36 = vld [vmem:[%s1 + $0x5c] sm:$0xf]
  %v37 = vld [vmem:[%s1 + $0x60] sm:$0xf]
  %v38 = vld [vmem:[%s1 + $0x64] sm:$0xf]
  %v39 = vld [vmem:[%s1 + $0x68] sm:$0xf]
  %v40 = vld [vmem:[%s1 + $0x6c] sm:$0xf]
  %v41 = vld [vmem:[%s1 + $0x70] sm:$0xf]
  %v42 = vld [vmem:[%s1 + $0x74] sm:$0xf]
  %v43 = vld [vmem:[%s1 + $0x78] sm:$0xf]
  %v44 = vld [vmem:[%s1 + $0x7c] sm:$0xf]
  %v45 = vld [vmem:[%s1 + $0x80] sm:$0xf]
  %v46 = vld [vmem:[%s1 + $0x84] sm:$0xf]
  %v47 = vld [vmem:[%s1 + $0x88] sm:$0xf]
  %v48 = vld [vmem:[%s1 + $0x8c] sm:$0xf]
  %v49 = vld [vmem:[%s1 + $0x90] sm:$0xf]
  %v50 = vld [vmem:[%s1 + $0x94] sm:$0xf]
  %v51 = vld [vmem:[%s1 + $0x98] sm:$0xf]
  %v52 = vld [vmem:[%s1 + $0x9c] sm:$0xf]
  %v53 = vld [vmem:[%s1 + $0xa0] sm:$0xf]
  %v54 = vld [vmem:[%s1 + $0xa4] sm:$0xf]
  %v55 = vld [vmem:[%s1 + $0xa8] sm:$0xf]
  %v56 = vld [vmem:[%s1 + $0xac] sm:$0xf]
  %v57 = vld [vmem:[%s1 + $0xb0] sm:$0xf]
  %v58 = vld [vmem:[%s1 + $0xb4] sm:$0xf]
  %v59 = vld [vmem:[%s1 + $0xb8] sm:$0xf]
  %v60 = vld [vmem:[%s1 + $0xbc] sm:$0xf]
  %v61 = vld [vmem:[%s1 + $0xc0] sm:$0xf]
  %v62 = vld [vmem:[%s1 + $0xc4] sm:$0xf]
  %v63 = vld [vmem:[%s1 + $0xc8] sm:$0xf]
  %v64 = vld [vmem:[%s1 + $0xcc] sm:$0xf]
  %v65 = vld [vmem:[%s1 + $0xd0] sm:$0xf]
  %v66 = vld [vmem:[%s1 + $0xd4] sm:$0xf]
  %v67 = vld [vmem:[%s1 + $0xd8] sm:$0xf]
  %v68 = vld [vmem:[%s1 + $0xdc] sm:$0xf]
  %v69 = vld [vmem:[%s1 + $0xe0] sm:$0xf]
  %v70 = vld [vmem:[%s1 + $0xe4] sm:$0xf]
  %v71 = vld [vmem:[%s1 + $0xe8] sm:$0xf]
  %v72 = vld [vmem:[%s1 + $0xec] sm:$0xf]
  %v73 = vld [vmem:[%s1 + $0xf0] sm:$0xf]
  %v74 = vld [vmem:[%s1 + $0xf4] sm:$0xf]
  %v75 = vld [vmem:[%s1 + $0xf8] sm:$0xf]
  %v76 = vld [vmem:[%s1 + $0xfc] sm:$0xf]
  %v77 = vld [vmem:[%s1 + $0x100] sm:$0xf]
  %v78 = vld [vmem:[%s1 + $0x104] sm:$0xf]
  %v79 = vld [vmem:[%s1 + $0x108] sm:$0xf]
  %v80 = vld [vmem:[%s1 + $0x10c] sm:$0xf]
  %v81 = vld [vmem:[%s1 + $0x110] sm:$0xf]
  %v82 = vld [vmem:[%s1 + $0x114] sm:$0xf]
  %v83 = vld [vmem:[%s1 + $0x118] sm:$0xf]
  %v84 = vld [vmem:[%s1 + $0x11c] sm:$0xf]
  %v85 = vld [vmem:[%s1 + $0x120] sm:$0xf]
  %v86 = vld [vmem:[%s1 + $0x124] sm:$0xf]
  %v87 = vld [vmem:[%s1 + $0x128] sm:$0xf]
  %v88 = vld [vmem:[%s1 + $0x12c] sm:$0xf]
  %v89 = vld [vmem:[%s1 + $0x130] sm:$0xf]
  %v90 = vld [vmem:[%s1 + $0x134] sm:$0xf]
  %v91 = vld [vmem:[%s1 + $0x138] sm:$0xf]
  %v92 = vld [vmem:[%s1 + $0x13c] sm:$0xf]
  %v93 = vld [vmem:[%s1 + $0x140] sm:$0xf]
  %v94 = vld [vmem:[%s1 + $0x144] sm:$0xf]
  %v95 = vld [vmem:[%s1 + $0x148] sm:$0xf]
  %v96 = vld [vmem:[%s1 + $0x14c] sm:$0xf]
  %v97 = vld [vmem:[%s1 + $0x150] sm:$0xf]
  %v98 = vld [vmem:[%s1 + $0x154] sm:$0xf]
  %v99 = vld [vmem:[%s1 + $0x158] sm:$0xf]
  %v100 = vld [vmem:[%s1 + $0x15c] sm:$0xf]
  %v101 = vld [vmem:[%s1 + $0x160] sm:$0xf]
  %v102 = vld [vmem:[%s1 + $0x164] sm:$0xf]
  %v103 = vld [vmem:[%s1 + $0x168] sm:$0xf]
  %v104 = vld [vmem:[%s1 + $0x16c] sm:$0xf]
  %v105 = vld [vmem:[%s1 + $0x170] sm:$0xf]
  %v106 = vld [vmem:[%s1 + $0x174] sm:$0xf]
  %v107 = vld [vmem:[%s1 + $0x178] sm:$0xf]
  %v108 = vld [vmem:[%s1 + $0x17c] sm:$0xf]
  %v109 = vld [vmem:[%s1 + $0x180] sm:$0xf]
  %v110 = vld [vmem:[%s1 + $0x184] sm:$0xf]
  %v111 = vld [vmem:[%s1 + $0x188] sm:$0xf]
  %v112 = vld [vmem:[%s1 + $0x18c] sm:$0xf]
  %v113 = vld [vmem:[%s1 + $0x190] sm:$0xf]
  %v114 = vld [vmem:[%s1 + $0x194] sm:$0xf]
  %v115 = vld [vmem:[%s1 + $0x198] sm:$0xf]
  %v116 = vld [vmem:[%s1 + $0x19c] sm:$0xf]
  %v117 = vld [vmem:[%s1 + $0x1a0] sm:$0xf]
  %v118 = vld [vmem:[%s1 + $0x1a4] sm:$0xf]
  %v119 = vld [vmem:[%s1 + $0x1a8] sm:$0xf]
  %v120 = vld [vmem:[%s1 + $0x1ac] sm:$0xf]
  %v121 = vld [vmem:[%s1 + $0x1b0] sm:$0xf]
  %v122 = vld [vmem:[%s1 + $0x1b4] sm:$0xf]
  %v123 = vld [vmem:[%s1 + $0x1b8] sm:$0xf]
  %v124 = vld [vmem:[%s1 + $0x1bc] sm:$0xf]
  %v125 = vld [vmem:[%s1 + $0x1c0] sm:$0xf]
  %v126 = vld [vmem:[%s1 + $0x1c4] sm:$0xf]
  %v127 = vld [vmem:[%s1 + $0x1c8] sm:$0xf]
  %v128 = vld [vmem:[%s1 + $0x1cc] sm:$0xf]
  %v129 = vld [vmem:[%s1 + $0x1d0] sm:$0xf]
  %v130 = vld [vmem:[%s1 + $0x1d4] sm:$0xf]
  %v131 = vld [vmem:[%s1 + $0x1d8] sm:$0xf]
  %v132 = vld [vmem:[%s1 + $0x1dc] sm:$0xf]
  %v133 = vld [vmem:[%s1 + $0x1e0] sm:$0xf]
  %v134 = vld [vmem:[%s1 + $0x1e4] sm:$0xf]
  %v135 = vld [vmem:[%s1 + $0x1e8] sm:$0xf]
  %v136 = vld [vmem:[%s1 + $0x1ec] sm:$0xf]
  %v137 = vld [vmem:[%s1 + $0x1f0] sm:$0xf]
  %v138 = vld [vmem:[%s1 + $0x1f4] sm:$0xf]
  %v139 = vld [vmem:[%s1 + $0x1f8] sm:$0xf]
  %v140 = vld [vmem:[%s1 + $0x1fc] sm:$0xf]
  %v141 = vld [vmem:[%s1 + $0x200] sm:$0xf]
  %v142 = vld [vmem:[%s1 + $0x204] sm:$0xf]
  %v143 = vld [vmem:[%s1 + $0x208] sm:$0xf]
  %v144 = vld [vmem:[%s1 + $0x20c] sm:$0xf]
  %v145 = vld [vmem:[%s1 + $0x210] sm:$0xf]
  %v146 = vld [vmem:[%s1 + $0x214] sm:$0xf]
  %v147 = vld [vmem:[%s1 + $0x218] sm:$0xf]
  %v148 = vld [vmem:[%s1 + $0x21c] sm:$0xf]
  %v149 = vld [vmem:[%s1 + $0x220] sm:$0xf]
  %v150 = vld [vmem:[%s1 + $0x224] sm:$0xf]
  %v151 = vld [vmem:[%s1 + $0x228] sm:$0xf]
  %v152 = vld [vmem:[%s1 + $0x22c] sm:$0xf]
  %v153 = vld [vmem:[%s1 + $0x230] sm:$0xf]
  %v154 = vld [vmem:[%s1 + $0x234] sm:$0xf]
  %v155 = vld [vmem:[%s1 + $0x238] sm:$0xf]
  %v156 = vld [vmem:[%s1 + $0x23c] sm:$0xf]
  %v157 = vld [vmem:[%s1 + $0x240] sm:$0xf]
  %v158 = vld [vmem:[%s1 + $0x244] sm:$0xf]
  %v159 = vld [vmem:[%s1 + $0x248] sm:$0xf]
  %v160 = vld [vmem:[%s1 + $0x24c] sm:$0xf]
  %v161 = vld [vmem:[%s1 + $0x250] sm:$0xf]
  %v162 = vld [vmem:[%s1 + $0x254] sm:$0xf]
  %v163 = vld [vmem:[%s1 + $0x258] sm:$0xf]
  %v164 = vld [vmem:[%s1 + $0x25c] sm:$0xf]
  %v165 = vld [vmem:[%s1 + $0x260] sm:$0xf]
  %v166 = vld [vmem:[%s1 + $0x264] sm:$0xf]
  %v167 = vld [vmem:[%s1 + $0x268] sm:$0xf]
  %v168 = vld [vmem:[%s1 + $0x26c] sm:$0xf]
  %v169 = vld [vmem:[%s1 + $0x270] sm:$0xf]
  %v170 = vld [vmem:[%s1 + $0x274] sm:$0xf]
  %v171 = vld [vmem:[%s1 + $0x278] sm:$0xf]
  %v172 = vld [vmem:[%s1 + $0x27c] sm:$0xf]
  %v173 = vld [vmem:[%s1 + $0x280] sm:$0xf]
  %v174 = vld [vmem:[%s1 + $0x284] sm:$0xf]
  %v175 = vld [vmem:[%s1 + $0x288] sm:$0xf]
  %v176 = vld [vmem:[%s1 + $0x28c] sm:$0xf]
  %v177 = vld [vmem:[%s1 + $0x290] sm:$0xf]
  %v178 = vld [vmem:[%s1 + $0x294] sm:$0xf]
  %v179 = vld [vmem:[%s1 + $0x298] sm:$0xf]
  %v180 = vld [vmem:[%s1 + $0x29c] sm:$0xf]
  %v181 = vld [vmem:[%s1 + $0x2a0] sm:$0xf]
  %v182 = vld [vmem:[%s1 + $0x2a4] sm:$0xf]
  %v183 = vld [vmem:[%s1 + $0x2a8] sm:$0xf]
  %v184 = vld [vmem:[%s1 + $0x2ac] sm:$0xf]
  %v185 = vld [vmem:[%s1 + $0x2b0] sm:$0xf]
  %v186 = vld [vmem:[%s1 + $0x2b4] sm:$0xf]
  %v187 = vld [vmem:[%s1 + $0x2b8] sm:$0xf]
  %v188 = vld [vmem:[%s1 + $0x2bc] sm:$0xf]
  %v189 = vld [vmem:[%s1 + $0x2c0] sm:$0xf]
  %v190 = vld [vmem:[%s1 + $0x2c4] sm:$0xf]
  %v191 = vld [vmem:[%s1 + $0x2c8] sm:$0xf]
  %v192 = vld [vmem:[%s1 + $0x2cc] sm:$0xf]
  %v193 = vld [vmem:[%s1 + $0x2d0] sm:$0xf]
  %v194 = vld [vmem:[%s1 + $0x2d4] sm:$0xf]
  %v195 = vld [vmem:[%s1 + $0x2d8] sm:$0xf]
  %v196 = vld [vmem:[%s1 + $0x2dc] sm:$0xf]
  %v197 = vld [vmem:[%s1 + $0x2e0] sm:$0xf]
  %v198 = vld [vmem:[%s1 + $0x2e4] sm:$0xf]
  %v199 = vld [vmem:[%s1 + $0x2e8] sm:$0xf]
  %v200 = vld [vmem:[%s1 + $0x2ec] sm:$0xf]
  %v201 = vld [vmem:[%s1 + $0x2f0] sm:$0xf]
  %v202 = vld [vmem:[%s1 + $0x2f4] sm:$0xf]
  %v203 = vld [vmem:[%s1 + $0x2f8] sm:$0xf]
  %v204 = vld [vmem:[%s1 + $0x2fc] sm:$0xf]
  %v205 = vld [vmem:[%s1 + $0x300] sm:$0xf]
  %v206 = vld [vmem:[%s1 + $0x304] sm:$0xf]
  %v207 = vld [vmem:[%s1 + $0x308] sm:$0xf]
  %v208 = vld [vmem:[%s1 + $0x30c] sm:$0xf]
  %v209 = vld [vmem:[%s1 + $0x310] sm:$0xf]
  %v210 = vld [vmem:[%s1 + $0x314] sm:$0xf]
  %v211 = vld [vmem:[%s1 + $0x318] sm:$0xf]
  %v212 = vld [vmem:[%s1 + $0x31c] sm:$0xf]
  %v213 = vld [vmem:[%s1 + $0x320] sm:$0xf]
  %v214 = vld [vmem:[%s1 + $0x324] sm:$0xf]
  %v215 = vld [vmem:[%s1 + $0x328] sm:$0xf]
  %v216 = vld [vmem:[%s1 + $0x32c] sm:$0xf]
  %v217 = vld [vmem:[%s1 + $0x330] sm:$0xf]
  %v218 = vld [vmem:[%s1 + $0x334] sm:$0xf]
  %v219 = vld [vmem:[%s1 + $0x338] sm:$0xf]
  %v220 = vld [vmem:[%s1 + $0x33c] sm:$0xf]
  %v221 = vld [vmem:[%s1 + $0x340] sm:$0xf]
  %v222 = vld [vmem:[%s1 + $0x344] sm:$0xf]
  %v223 = vld [vmem:[%s1 + $0x348] sm:$0xf]
  %v224 = vld [vmem:[%s1 + $0x34c] sm:$0xf]
  %v225 = vld [vmem:[%s1 + $0x350] sm:$0xf]
  %v226 = vld [vmem:[%s1 + $0x354] sm:$0xf]
  %v227 = vld [vmem:[%s1 + $0x358] sm:$0xf]
  %v228 = vld [vmem:[%s1 + $0x35c] sm:$0xf]
  %v229 = vld [vmem:[%s1 + $0x360] sm:$0xf]
  %v230 = vld [vmem:[%s1 + $0x364] sm:$0xf]
  %v231 = vld [vmem:[%s1 + $0x368] sm:$0xf]
  %v232 = vld [vmem:[%s1 + $0x36c] sm:$0xf]
  %v233 = vld [vmem:[%s1 + $0x370] sm:$0xf]
  %v234 = vld [vmem:[%s1 + $0x374] sm:$0xf]
  %v235 = vld [vmem:[%s1 + $0x378] sm:$0xf]
  %v236 = vld [vmem:[%s1 + $0x37c] sm:$0xf]
  %v237 = vld [vmem:[%s1 + $0x380] sm:$0xf]
  %v238 = vld [vmem:[%s1 + $0x384] sm:$0xf]
  %v239 = vld [vmem:[%s1 + $0x388] sm:$0xf]
  %v240 = vld [vmem:[%s1 + $0x38c] sm:$0xf]
  %v241 = vld [vmem:[%s1 + $0x390] sm:$0xf]
  %v242 = vld [vmem:[%s1 + $0x394] sm:$0xf]
  %v243 = vld [vmem:[%s1 + $0x398] sm:$0xf]
  %v244 = vld [vmem:[%s1 + $0x39c] sm:$0xf]
  %v245 = vld [vmem:[%s1 + $0x3a0] sm:$0xf]
  %v246 = vld [vmem:[%s1 + $0x3a4] sm:$0xf]
  %v247 = vld [vmem:[%s1 + $0x3a8] sm:$0xf]
  %v248 = vld [vmem:[%s1 + $0x3ac] sm:$0xf]
  %v249 = vld [vmem:[%s1 + $0x3b0] sm:$0xf]
  %v250 = vld [vmem:[%s1 + $0x3b4] sm:$0xf]
  %v251 = vld [vmem:[%s1 + $0x3b8] sm:$0xf]
  %v252 = vld [vmem:[%s1 + $0x3bc] sm:$0xf]
  %v253 = vld [vmem:[%s1 + $0x3c0] sm:$0xf]
  %v254 = vld [vmem:[%s1 + $0x3c4] sm:$0xf]
  %v255 = vld [vmem:[%s1 + $0x3c8] sm:$0xf]
  %v256 = vld [vmem:[%s1 + $0x3cc] sm:$0xf]
  %v257 = vld [vmem:[%s1 + $0x3d0] sm:$0xf]
  %v258 = vld [vmem:[%s1 + $0x3d4] sm:$0xf]
  %v259 = vld [vmem:[%s1 + $0x3d8] sm:$0xf]
  %v260 = vld [vmem:[%s1 + $0x3dc] sm:$0xf]
  %v261 = vld [vmem:[%s1 + $0x3e0] sm:$0xf]
  %v262 = vld [vmem:[%s1 + $0x3e4] sm:$0xf]
  %v263 = vld [vmem:[%s1 + $0x3e8] sm:$0xf]
  %v264 = vld [vmem:[%s1 + $0x3ec] sm:$0xf]
  %v265 = vld [vmem:[%s1 + $0x3f0] sm:$0xf]
  %v266 = vld [vmem:[%s1 + $0x3f4] sm:$0xf]
  %v267 = vld [vmem:[%s1 + $0x3f8] sm:$0xf]
  %v268 = vld [vmem:[%s1 + $0x3fc] sm:$0xf]
  %270 = vst [vmem:[#allocation1] ss:$9 sm:$0xff] %v11
  %v271 = vld [vmem:[#allocation1] sm:$0xff]
  %v272 = vld [vmem:[#allocation1 + $0x9] sm:$0xff]
  %v273 = vld [vmem:[#allocation1 + $0x12] sm:$0xff]
  %v274 = vld [vmem:[#allocation1 + $0x1b] sm:$0xff]
  %v275 = vld [vmem:[#allocation1 + $0x24] sm:$0xff]
  %v276 = vld [vmem:[#allocation1 + $0x2d] sm:$0xff]
  %v277 = vld [vmem:[#allocation1 + $0x36] sm:$0xff]
  %v278 = vld [vmem:[#allocation1 + $0x3f] sm:$0xff]
  %280 = vst [vmem:[#allocation1] ss:$9 sm:$0xff] %v12
  %v281 = vld [vmem:[#allocation1] sm:$0xff]
  %v282 = vld [vmem:[#allocation1 + $0x9] sm:$0xff]
  %v283 = vld [vmem:[#allocation1 + $0x12] sm:$0xff]
  %v284 = vld [vmem:[#allocation1 + $0x1b] sm:$0xff]
  %v285 = vld [vmem:[#allocation1 + $0x24] sm:$0xff]
  %v286 = vld [vmem:[#allocation1 + $0x2d] sm:$0xff]
  %v287 = vld [vmem:[#allocation1 + $0x36] sm:$0xff]
  %v288 = vld [vmem:[#allocation1 + $0x3f] sm:$0xff]
  %v561 = vunpack.c.l.b16 %v13
  %v562 = vunpack.c.l.b16 %v14
  %v563 = vunpack.c.l.b16 %v15
  %v564 = vunpack.c.l.b16 %v16
  %v565 = vunpack.c.l.b16 %v17
  %v566 = vunpack.c.l.b16 %v18
  %v567 = vunpack.c.l.b16 %v19
  %v568 = vunpack.c.l.b16 %v20
  %v569 = vunpack.c.l.b16 %v21
  %v570 = vunpack.c.l.b16 %v22
  %v571 = vunpack.c.l.b16 %v23
  %v572 = vunpack.c.l.b16 %v24
  %v573 = vunpack.c.l.b16 %v25
  %v574 = vunpack.c.l.b16 %v26
  %v575 = vunpack.c.l.b16 %v27
  %v576 = vunpack.c.l.b16 %v28
  %v577 = vunpack.c.l.b16 %v29
  %v578 = vunpack.c.l.b16 %v30
  %v579 = vunpack.c.l.b16 %v31
  %v580 = vunpack.c.l.b16 %v32
  %v581 = vunpack.c.l.b16 %v33
  %v582 = vunpack.c.l.b16 %v34
  %v583 = vunpack.c.l.b16 %v35
  %v584 = vunpack.c.l.b16 %v36
  %v585 = vunpack.c.l.b16 %v37
  %v586 = vunpack.c.l.b16 %v38
  %v587 = vunpack.c.l.b16 %v39
  %v588 = vunpack.c.l.b16 %v40
  %v589 = vunpack.c.l.b16 %v41
  %v590 = vunpack.c.l.b16 %v42
  %v591 = vunpack.c.l.b16 %v43
  %v592 = vunpack.c.l.b16 %v44
  %v593 = vunpack.c.l.b16 %v45
  %v594 = vunpack.c.l.b16 %v46
  %v595 = vunpack.c.l.b16 %v47
  %v596 = vunpack.c.l.b16 %v48
  %v597 = vunpack.c.l.b16 %v49
  %v598 = vunpack.c.l.b16 %v50
  %v599 = vunpack.c.l.b16 %v51
  %v600 = vunpack.c.l.b16 %v52
  %v601 = vunpack.c.l.b16 %v53
  %v602 = vunpack.c.l.b16 %v54
  %v603 = vunpack.c.l.b16 %v55
  %v604 = vunpack.c.l.b16 %v56
  %v605 = vunpack.c.l.b16 %v57
  %v606 = vunpack.c.l.b16 %v58
  %v607 = vunpack.c.l.b16 %v59
  %v608 = vunpack.c.l.b16 %v60
  %v609 = vunpack.c.l.b16 %v61
  %v610 = vunpack.c.l.b16 %v62
  %v611 = vunpack.c.l.b16 %v63
  %v612 = vunpack.c.l.b16 %v64
  %v613 = vunpack.c.l.b16 %v65
  %v614 = vunpack.c.l.b16 %v66
  %v615 = vunpack.c.l.b16 %v67
  %v616 = vunpack.c.l.b16 %v68
  %v617 = vunpack.c.l.b16 %v69
  %v618 = vunpack.c.l.b16 %v70
  %v619 = vunpack.c.l.b16 %v71
  %v620 = vunpack.c.l.b16 %v72
  %v621 = vunpack.c.l.b16 %v73
  %v622 = vunpack.c.l.b16 %v74
  %v623 = vunpack.c.l.b16 %v75
  %v624 = vunpack.c.l.b16 %v76
  %v625 = vunpack.c.l.b16 %v77
  %v626 = vunpack.c.l.b16 %v78
  %v627 = vunpack.c.l.b16 %v79
  %v628 = vunpack.c.l.b16 %v80
  %v629 = vunpack.c.l.b16 %v81
  %v630 = vunpack.c.l.b16 %v82
  %v631 = vunpack.c.l.b16 %v83
  %v632 = vunpack.c.l.b16 %v84
  %v633 = vunpack.c.l.b16 %v85
  %v634 = vunpack.c.l.b16 %v86
  %v635 = vunpack.c.l.b16 %v87
  %v636 = vunpack.c.l.b16 %v88
  %v637 = vunpack.c.l.b16 %v89
  %v638 = vunpack.c.l.b16 %v90
  %v639 = vunpack.c.l.b16 %v91
  %v640 = vunpack.c.l.b16 %v92
  %v641 = vunpack.c.l.b16 %v93
  %v642 = vunpack.c.l.b16 %v94
  %v643 = vunpack.c.l.b16 %v95
  %v644 = vunpack.c.l.b16 %v96
  %v645 = vunpack.c.l.b16 %v97
  %v646 = vunpack.c.l.b16 %v98
  %v647 = vunpack.c.l.b16 %v99
  %v648 = vunpack.c.l.b16 %v100
  %v649 = vunpack.c.l.b16 %v101
  %v650 = vunpack.c.l.b16 %v102
  %v651 = vunpack.c.l.b16 %v103
  %v652 = vunpack.c.l.b16 %v104
  %v653 = vunpack.c.l.b16 %v105
  %v654 = vunpack.c.l.b16 %v106
  %v655 = vunpack.c.l.b16 %v107
  %v656 = vunpack.c.l.b16 %v108
  %v657 = vunpack.c.l.b16 %v109
  %v658 = vunpack.c.l.b16 %v110
  %v659 = vunpack.c.l.b16 %v111
  %v660 = vunpack.c.l.b16 %v112
  %v661 = vunpack.c.l.b16 %v113
  %v662 = vunpack.c.l.b16 %v114
  %v663 = vunpack.c.l.b16 %v115
  %v664 = vunpack.c.l.b16 %v116
  %v665 = vunpack.c.l.b16 %v117
  %v666 = vunpack.c.l.b16 %v118
  %v667 = vunpack.c.l.b16 %v119
  %v668 = vunpack.c.l.b16 %v120
  %v669 = vunpack.c.l.b16 %v121
  %v670 = vunpack.c.l.b16 %v122
  %v671 = vunpack.c.l.b16 %v123
  %v672 = vunpack.c.l.b16 %v124
  %v673 = vunpack.c.l.b16 %v125
  %v674 = vunpack.c.l.b16 %v126
  %v675 = vunpack.c.l.b16 %v127
  %v676 = vunpack.c.l.b16 %v128
  %v677 = vunpack.c.l.b16 %v129
  %v678 = vunpack.c.l.b16 %v130
  %v679 = vunpack.c.l.b16 %v131
  %v680 = vunpack.c.l.b16 %v132
  %v681 = vunpack.c.l.b16 %v133
  %v682 = vunpack.c.l.b16 %v134
  %v683 = vunpack.c.l.b16 %v135
  %v684 = vunpack.c.l.b16 %v136
  %v685 = vunpack.c.l.b16 %v137
  %v686 = vunpack.c.l.b16 %v138
  %v687 = vunpack.c.l.b16 %v139
  %v688 = vunpack.c.l.b16 %v140
  %v689 = vunpack.c.l.b16 %v141
  %v690 = vunpack.c.l.b16 %v142
  %v691 = vunpack.c.l.b16 %v143
  %v692 = vunpack.c.l.b16 %v144
  %v693 = vunpack.c.l.b16 %v145
  %v694 = vunpack.c.l.b16 %v146
  %v695 = vunpack.c.l.b16 %v147
  %v696 = vunpack.c.l.b16 %v148
  %v697 = vunpack.c.l.b16 %v149
  %v698 = vunpack.c.l.b16 %v150
  %v699 = vunpack.c.l.b16 %v151
  %v700 = vunpack.c.l.b16 %v152
  %v701 = vunpack.c.l.b16 %v153
  %v702 = vunpack.c.l.b16 %v154
  %v703 = vunpack.c.l.b16 %v155
  %v704 = vunpack.c.l.b16 %v156
  %v705 = vunpack.c.l.b16 %v157
  %v706 = vunpack.c.l.b16 %v158
  %v707 = vunpack.c.l.b16 %v159
  %v708 = vunpack.c.l.b16 %v160
  %v709 = vunpack.c.l.b16 %v161
  %v710 = vunpack.c.l.b16 %v162
  %v711 = vunpack.c.l.b16 %v163
  %v712 = vunpack.c.l.b16 %v164
  %v713 = vunpack.c.l.b16 %v165
  %v714 = vunpack.c.l.b16 %v166
  %v715 = vunpack.c.l.b16 %v167
  %v716 = vunpack.c.l.b16 %v168
  %v717 = vunpack.c.l.b16 %v169
  %v718 = vunpack.c.l.b16 %v170
  %v719 = vunpack.c.l.b16 %v171
  %v720 = vunpack.c.l.b16 %v172
  %v721 = vunpack.c.l.b16 %v173
  %v722 = vunpack.c.l.b16 %v174
  %v723 = vunpack.c.l.b16 %v175
  %v724 = vunpack.c.l.b16 %v176
  %v725 = vunpack.c.l.b16 %v177
  %v726 = vunpack.c.l.b16 %v178
  %v727 = vunpack.c.l.b16 %v179
  %v728 = vunpack.c.l.b16 %v180
  %v729 = vunpack.c.l.b16 %v181
  %v730 = vunpack.c.l.b16 %v182
  %v731 = vunpack.c.l.b16 %v183
  %v732 = vunpack.c.l.b16 %v184
  %v733 = vunpack.c.l.b16 %v185
  %v734 = vunpack.c.l.b16 %v186
  %v735 = vunpack.c.l.b16 %v187
  %v736 = vunpack.c.l.b16 %v188
  %v737 = vunpack.c.l.b16 %v189
  %v738 = vunpack.c.l.b16 %v190
  %v739 = vunpack.c.l.b16 %v191
  %v740 = vunpack.c.l.b16 %v192
  %v741 = vunpack.c.l.b16 %v193
  %v742 = vunpack.c.l.b16 %v194
  %v743 = vunpack.c.l.b16 %v195
  %v744 = vunpack.c.l.b16 %v196
  %v745 = vunpack.c.l.b16 %v197
  %v746 = vunpack.c.l.b16 %v198
  %v747 = vunpack.c.l.b16 %v199
  %v748 = vunpack.c.l.b16 %v200
  %v749 = vunpack.c.l.b16 %v201
  %v750 = vunpack.c.l.b16 %v202
  %v751 = vunpack.c.l.b16 %v203
  %v752 = vunpack.c.l.b16 %v204
  %v753 = vunpack.c.l.b16 %v205
  %v754 = vunpack.c.l.b16 %v206
  %v755 = vunpack.c.l.b16 %v207
  %v756 = vunpack.c.l.b16 %v208
  %v757 = vunpack.c.l.b16 %v209
  %v758 = vunpack.c.l.b16 %v210
  %v759 = vunpack.c.l.b16 %v211
  %v760 = vunpack.c.l.b16 %v212
  %v761 = vunpack.c.l.b16 %v213
  %v762 = vunpack.c.l.b16 %v214
  %v763 = vunpack.c.l.b16 %v215
  %v764 = vunpack.c.l.b16 %v216
  %v765 = vunpack.c.l.b16 %v217
  %v766 = vunpack.c.l.b16 %v218
  %v767 = vunpack.c.l.b16 %v219
  %v768 = vunpack.c.l.b16 %v220
  %v769 = vunpack.c.l.b16 %v221
  %v770 = vunpack.c.l.b16 %v222
  %v771 = vunpack.c.l.b16 %v223
  %v772 = vunpack.c.l.b16 %v224
  %v773 = vunpack.c.l.b16 %v225
  %v774 = vunpack.c.l.b16 %v226
  %v775 = vunpack.c.l.b16 %v227
  %v776 = vunpack.c.l.b16 %v228
  %v777 = vunpack.c.l.b16 %v229
  %v778 = vunpack.c.l.b16 %v230
  %v779 = vunpack.c.l.b16 %v231
  %v780 = vunpack.c.l.b16 %v232
  %v781 = vunpack.c.l.b16 %v233
  %v782 = vunpack.c.l.b16 %v234
  %v783 = vunpack.c.l.b16 %v235
  %v784 = vunpack.c.l.b16 %v236
  %v785 = vunpack.c.l.b16 %v237
  %v786 = vunpack.c.l.b16 %v238
  %v787 = vunpack.c.l.b16 %v239
  %v788 = vunpack.c.l.b16 %v240
  %v789 = vunpack.c.l.b16 %v241
  %v790 = vunpack.c.l.b16 %v242
  %v791 = vunpack.c.l.b16 %v243
  %v792 = vunpack.c.l.b16 %v244
  %v793 = vunpack.c.l.b16 %v245
  %v794 = vunpack.c.l.b16 %v246
  %v795 = vunpack.c.l.b16 %v247
  %v796 = vunpack.c.l.b16 %v248
  %v797 = vunpack.c.l.b16 %v249
  %v798 = vunpack.c.l.b16 %v250
  %v799 = vunpack.c.l.b16 %v251
  %v800 = vunpack.c.l.b16 %v252
  %v801 = vunpack.c.l.b16 %v253
  %v802 = vunpack.c.l.b16 %v254
  %v803 = vunpack.c.l.b16 %v255
  %v804 = vunpack.c.l.b16 %v256
  %v805 = vunpack.c.l.b16 %v257
  %v806 = vunpack.c.l.b16 %v258
  %v807 = vunpack.c.l.b16 %v259
  %v808 = vunpack.c.l.b16 %v260
  %v809 = vunpack.c.l.b16 %v261
  %v810 = vunpack.c.l.b16 %v262
  %v811 = vunpack.c.l.b16 %v263
  %v812 = vunpack.c.l.b16 %v264
  %v813 = vunpack.c.l.b16 %v265
  %v814 = vunpack.c.l.b16 %v266
  %v815 = vunpack.c.l.b16 %v267
  %v816 = vunpack.c.l.b16 %v268
  %v817 = vpack.c.b16 %v562, %v561
  %v818 = vpack.c.b16 %v564, %v563
  %v819 = vpack.c.b16 %v566, %v565
  %v820 = vpack.c.b16 %v568, %v567
  %v821 = vpack.c.b16 %v570, %v569
  %v822 = vpack.c.b16 %v572, %v571
  %v823 = vpack.c.b16 %v574, %v573
  %v824 = vpack.c.b16 %v576, %v575
  %v825 = vpack.c.b16 %v578, %v577
  %v826 = vpack.c.b16 %v580, %v579
  %v827 = vpack.c.b16 %v582, %v581
  %v828 = vpack.c.b16 %v584, %v583
  %v829 = vpack.c.b16 %v586, %v585
  %v830 = vpack.c.b16 %v588, %v587
  %v831 = vpack.c.b16 %v590, %v589
  %v832 = vpack.c.b16 %v592, %v591
  %v833 = vpack.c.b16 %v594, %v593
  %v834 = vpack.c.b16 %v596, %v595
  %v835 = vpack.c.b16 %v598, %v597
  %v836 = vpack.c.b16 %v600, %v599
  %v837 = vpack.c.b16 %v602, %v601
  %v838 = vpack.c.b16 %v604, %v603
  %v839 = vpack.c.b16 %v606, %v605
  %v840 = vpack.c.b16 %v608, %v607
  %v841 = vpack.c.b16 %v610, %v609
  %v842 = vpack.c.b16 %v612, %v611
  %v843 = vpack.c.b16 %v614, %v613
  %v844 = vpack.c.b16 %v616, %v615
  %v845 = vpack.c.b16 %v618, %v617
  %v846 = vpack.c.b16 %v620, %v619
  %v847 = vpack.c.b16 %v622, %v621
  %v848 = vpack.c.b16 %v624, %v623
  %v849 = vpack.c.b16 %v626, %v625
  %v850 = vpack.c.b16 %v628, %v627
  %v851 = vpack.c.b16 %v630, %v629
  %v852 = vpack.c.b16 %v632, %v631
  %v853 = vpack.c.b16 %v634, %v633
  %v854 = vpack.c.b16 %v636, %v635
  %v855 = vpack.c.b16 %v638, %v637
  %v856 = vpack.c.b16 %v640, %v639
  %v857 = vpack.c.b16 %v642, %v641
  %v858 = vpack.c.b16 %v644, %v643
  %v859 = vpack.c.b16 %v646, %v645
  %v860 = vpack.c.b16 %v648, %v647
  %v861 = vpack.c.b16 %v650, %v649
  %v862 = vpack.c.b16 %v652, %v651
  %v863 = vpack.c.b16 %v654, %v653
  %v864 = vpack.c.b16 %v656, %v655
  %v865 = vpack.c.b16 %v658, %v657
  %v866 = vpack.c.b16 %v660, %v659
  %v867 = vpack.c.b16 %v662, %v661
  %v868 = vpack.c.b16 %v664, %v663
  %v869 = vpack.c.b16 %v666, %v665
  %v870 = vpack.c.b16 %v668, %v667
  %v871 = vpack.c.b16 %v670, %v669
  %v872 = vpack.c.b16 %v672, %v671
  %v873 = vpack.c.b16 %v674, %v673
  %v874 = vpack.c.b16 %v676, %v675
  %v875 = vpack.c.b16 %v678, %v677
  %v876 = vpack.c.b16 %v680, %v679
  %v877 = vpack.c.b16 %v682, %v681
  %v878 = vpack.c.b16 %v684, %v683
  %v879 = vpack.c.b16 %v686, %v685
  %v880 = vpack.c.b16 %v688, %v687
  %v881 = vpack.c.b16 %v690, %v689
  %v882 = vpack.c.b16 %v692, %v691
  %v883 = vpack.c.b16 %v694, %v693
  %v884 = vpack.c.b16 %v696, %v695
  %v885 = vpack.c.b16 %v698, %v697
  %v886 = vpack.c.b16 %v700, %v699
  %v887 = vpack.c.b16 %v702, %v701
  %v888 = vpack.c.b16 %v704, %v703
  %v889 = vpack.c.b16 %v706, %v705
  %v890 = vpack.c.b16 %v708, %v707
  %v891 = vpack.c.b16 %v710, %v709
  %v892 = vpack.c.b16 %v712, %v711
  %v893 = vpack.c.b16 %v714, %v713
  %v894 = vpack.c.b16 %v716, %v715
  %v895 = vpack.c.b16 %v718, %v717
  %v896 = vpack.c.b16 %v720, %v719
  %v897 = vpack.c.b16 %v722, %v721
  %v898 = vpack.c.b16 %v724, %v723
  %v899 = vpack.c.b16 %v726, %v725
  %v900 = vpack.c.b16 %v728, %v727
  %v901 = vpack.c.b16 %v730, %v729
  %v902 = vpack.c.b16 %v732, %v731
  %v903 = vpack.c.b16 %v734, %v733
  %v904 = vpack.c.b16 %v736, %v735
  %v905 = vpack.c.b16 %v738, %v737
  %v906 = vpack.c.b16 %v740, %v739
  %v907 = vpack.c.b16 %v742, %v741
  %v908 = vpack.c.b16 %v744, %v743
  %v909 = vpack.c.b16 %v746, %v745
  %v910 = vpack.c.b16 %v748, %v747
  %v911 = vpack.c.b16 %v750, %v749
  %v912 = vpack.c.b16 %v752, %v751
  %v913 = vpack.c.b16 %v754, %v753
  %v914 = vpack.c.b16 %v756, %v755
  %v915 = vpack.c.b16 %v758, %v757
  %v916 = vpack.c.b16 %v760, %v759
  %v917 = vpack.c.b16 %v762, %v761
  %v918 = vpack.c.b16 %v764, %v763
  %v919 = vpack.c.b16 %v766, %v765
  %v920 = vpack.c.b16 %v768, %v767
  %v921 = vpack.c.b16 %v770, %v769
  %v922 = vpack.c.b16 %v772, %v771
  %v923 = vpack.c.b16 %v774, %v773
  %v924 = vpack.c.b16 %v776, %v775
  %v925 = vpack.c.b16 %v778, %v777
  %v926 = vpack.c.b16 %v780, %v779
  %v927 = vpack.c.b16 %v782, %v781
  %v928 = vpack.c.b16 %v784, %v783
  %v929 = vpack.c.b16 %v786, %v785
  %v930 = vpack.c.b16 %v788, %v787
  %v931 = vpack.c.b16 %v790, %v789
  %v932 = vpack.c.b16 %v792, %v791
  %v933 = vpack.c.b16 %v794, %v793
  %v934 = vpack.c.b16 %v796, %v795
  %v935 = vpack.c.b16 %v798, %v797
  %v936 = vpack.c.b16 %v800, %v799
  %v937 = vpack.c.b16 %v802, %v801
  %v938 = vpack.c.b16 %v804, %v803
  %v939 = vpack.c.b16 %v806, %v805
  %v940 = vpack.c.b16 %v808, %v807
  %v941 = vpack.c.b16 %v810, %v809
  %v942 = vpack.c.b16 %v812, %v811
  %v943 = vpack.c.b16 %v814, %v813
  %v944 = vpack.c.b16 %v816, %v815
  %1073 = vmatpush.bf16.msra.mxu0 %v824
  %1074 = vmatpush.bf16.msra.mxu0 %v823
  %1075 = vmatpush.bf16.msra.mxu0 %v822
  %1076 = vmatpush.bf16.msra.mxu0 %v821
  %1077 = vmatpush.bf16.msra.mxu0 %v820
  %1078 = vmatpush.bf16.msra.mxu0 %v819
  %1079 = vmatpush.bf16.msra.mxu0 %v818
  %1080 = vmatpush.bf16.msra.mxu0 %v817
  %1081 = vmatmul.bf16.gmra.mxu0 %v271
  %v1082 = vpop.f32.mrf.mxu0
  %v1083 = vadd.f32 0.0, %v1082
  %v1084 = vpop.f32.mrf.mxu0
  %1085 = vdwg.mxu0
  %1086 = vmatpush.bf16.msra.mxu0 %v832
  %1087 = vmatpush.bf16.msra.mxu0 %v831
  %1088 = vmatpush.bf16.msra.mxu0 %v830
  %1089 = vmatpush.bf16.msra.mxu0 %v829
  %1090 = vmatpush.bf16.msra.mxu0 %v828
  %1091 = vmatpush.bf16.msra.mxu0 %v827
  %1092 = vmatpush.bf16.msra.mxu0 %v826
  %1093 = vmatpush.bf16.msra.mxu0 %v825
  %1094 = vmatmul.bf16.gmra.mxu0 %v272
  %v1095 = vpop.f32.mrf.mxu0
  %v1096 = vadd.f32 %v1083, %v1095
  %v1097 = vpop.f32.mrf.mxu0
  %1098 = vdwg.mxu0
  %1099 = vmatpush.bf16.msra.mxu0 %v840
  %1100 = vmatpush.bf16.msra.mxu0 %v839
  %1101 = vmatpush.bf16.msra.mxu0 %v838
  %1102 = vmatpush.bf16.msra.mxu0 %v837
  %1103 = vmatpush.bf16.msra.mxu0 %v836
  %1104 = vmatpush.bf16.msra.mxu0 %v835
  %1105 = vmatpush.bf16.msra.mxu0 %v834
  %1106 = vmatpush.bf16.msra.mxu0 %v833
  %1107 = vmatmul.bf16.gmra.mxu0 %v273
  %v1108 = vpop.f32.mrf.mxu0
  %v1109 = vadd.f32 %v1096, %v1108
  %v1110 = vpop.f32.mrf.mxu0
  %1111 = vdwg.mxu0
  %1112 = vmatpush.bf16.msra.mxu0 %v848
  %1113 = vmatpush.bf16.msra.mxu0 %v847
  %1114 = vmatpush.bf16.msra.mxu0 %v846
  %1115 = vmatpush.bf16.msra.mxu0 %v845
  %1116 = vmatpush.bf16.msra.mxu0 %v844
  %1117 = vmatpush.bf16.msra.mxu0 %v843
  %1118 = vmatpush.bf16.msra.mxu0 %v842
  %1119 = vmatpush.bf16.msra.mxu0 %v841
  %1120 = vmatmul.bf16.gmra.mxu0 %v274
  %v1121 = vpop.f32.mrf.mxu0
  %v1122 = vadd.f32 %v1109, %v1121
  %v1123 = vpop.f32.mrf.mxu0
  %1124 = vdwg.mxu0
  %1125 = vmatpush.bf16.msra.mxu0 %v856
  %1126 = vmatpush.bf16.msra.mxu0 %v855
  %1127 = vmatpush.bf16.msra.mxu0 %v854
  %1128 = vmatpush.bf16.msra.mxu0 %v853
  %1129 = vmatpush.bf16.msra.mxu0 %v852
  %1130 = vmatpush.bf16.msra.mxu0 %v851
  %1131 = vmatpush.bf16.msra.mxu0 %v850
  %1132 = vmatpush.bf16.msra.mxu0 %v849
  %1133 = vmatmul.bf16.gmra.mxu0 %v275
  %v1134 = vpop.f32.mrf.mxu0
  %v1135 = vadd.f32 %v1122, %v1134
  %v1136 = vpop.f32.mrf.mxu0
  %1137 = vdwg.mxu0
  %1138 = vmatpush.bf16.msra.mxu0 %v864
  %1139 = vmatpush.bf16.msra.mxu0 %v863
  %1140 = vmatpush.bf16.msra.mxu0 %v862
  %1141 = vmatpush.bf16.msra.mxu0 %v861
  %1142 = vmatpush.bf16.msra.mxu0 %v860
  %1143 = vmatpush.bf16.msra.mxu0 %v859
  %1144 = vmatpush.bf16.msra.mxu0 %v858
  %1145 = vmatpush.bf16.msra.mxu0 %v857
  %1146 = vmatmul.bf16.gmra.mxu0 %v276
  %v1147 = vpop.f32.mrf.mxu0
  %v1148 = vadd.f32 %v1135, %v1147
  %v1149 = vpop.f32.mrf.mxu0
  %1150 = vdwg.mxu0
  %1151 = vmatpush.bf16.msra.mxu0 %v872
  %1152 = vmatpush.bf16.msra.mxu0 %v871
  %1153 = vmatpush.bf16.msra.mxu0 %v870
  %1154 = vmatpush.bf16.msra.mxu0 %v869
  %1155 = vmatpush.bf16.msra.mxu0 %v868
  %1156 = vmatpush.bf16.msra.mxu0 %v867
  %1157 = vmatpush.bf16.msra.mxu0 %v866
  %1158 = vmatpush.bf16.msra.mxu0 %v865
  %1159 = vmatmul.bf16.gmra.mxu0 %v277
  %v1160 = vpop.f32.mrf.mxu0
  %v1161 = vadd.f32 %v1148, %v1160
  %v1162 = vpop.f32.mrf.mxu0
  %1163 = vdwg.mxu0
  %1164 = vmatpush.bf16.msra.mxu0 %v880
  %1165 = vmatpush.bf16.msra.mxu0 %v879
  %1166 = vmatpush.bf16.msra.mxu0 %v878
  %1167 = vmatpush.bf16.msra.mxu0 %v877
  %1168 = vmatpush.bf16.msra.mxu0 %v876
  %1169 = vmatpush.bf16.msra.mxu0 %v875
  %1170 = vmatpush.bf16.msra.mxu0 %v874
  %1171 = vmatpush.bf16.msra.mxu0 %v873
  %1172 = vmatmul.bf16.gmra.mxu0 %v278
  %v1173 = vpop.f32.mrf.mxu0
  %v1174 = vadd.f32 %v1161, %v1173
  %v1175 = vpop.f32.mrf.mxu0
  %1176 = vdwg.mxu0
  %1177 = vmatpush.bf16.msra.mxu0 %v888
  %1178 = vmatpush.bf16.msra.mxu0 %v887
  %1179 = vmatpush.bf16.msra.mxu0 %v886
  %1180 = vmatpush.bf16.msra.mxu0 %v885
  %1181 = vmatpush.bf16.msra.mxu0 %v884
  %1182 = vmatpush.bf16.msra.mxu0 %v883
  %1183 = vmatpush.bf16.msra.mxu0 %v882
  %1184 = vmatpush.bf16.msra.mxu0 %v881
  %1185 = vmatmul.bf16.gmra.mxu0 %v281
  %v1186 = vpop.f32.mrf.mxu0
  %v1187 = vadd.f32 %v1174, %v1186
  %v1188 = vpop.f32.mrf.mxu0
  %1189 = vdwg.mxu0
  %1190 = vmatpush.bf16.msra.mxu0 %v896
  %1191 = vmatpush.bf16.msra.mxu0 %v895
  %1192 = vmatpush.bf16.msra.mxu0 %v894
  %1193 = vmatpush.bf16.msra.mxu0 %v893
  %1194 = vmatpush.bf16.msra.mxu0 %v892
  %1195 = vmatpush.bf16.msra.mxu0 %v891
  %1196 = vmatpush.bf16.msra.mxu0 %v890
  %1197 = vmatpush.bf16.msra.mxu0 %v889
  %1198 = vmatmul.bf16.gmra.mxu0 %v282
  %v1199 = vpop.f32.mrf.mxu0
  %v1200 = vadd.f32 %v1187, %v1199
  %v1201 = vpop.f32.mrf.mxu0
  %1202 = vdwg.mxu0
  %1203 = vmatpush.bf16.msra.mxu0 %v904
  %1204 = vmatpush.bf16.msra.mxu0 %v903
  %1205 = vmatpush.bf16.msra.mxu0 %v902
  %1206 = vmatpush.bf16.msra.mxu0 %v901
  %1207 = vmatpush.bf16.msra.mxu0 %v900
  %1208 = vmatpush.bf16.msra.mxu0 %v899
  %1209 = vmatpush.bf16.msra.mxu0 %v898
  %1210 = vmatpush.bf16.msra.mxu0 %v897
  %1211 = vmatmul.bf16.gmra.mxu0 %v283
  %v1212 = vpop.f32.mrf.mxu0
  %v1213 = vadd.f32 %v1200, %v1212
  %v1214 = vpop.f32.mrf.mxu0
  %1215 = vdwg.mxu0
  %1216 = vmatpush.bf16.msra.mxu0 %v912
  %1217 = vmatpush.bf16.msra.mxu0 %v911
  %1218 = vmatpush.bf16.msra.mxu0 %v910
  %1219 = vmatpush.bf16.msra.mxu0 %v909
  %1220 = vmatpush.bf16.msra.mxu0 %v908
  %1221 = vmatpush.bf16.msra.mxu0 %v907
  %1222 = vmatpush.bf16.msra.mxu0 %v906
  %1223 = vmatpush.bf16.msra.mxu0 %v905
  %1224 = vmatmul.bf16.gmra.mxu0 %v284
  %v1225 = vpop.f32.mrf.mxu0
  %v1226 = vadd.f32 %v1213, %v1225
  %v1227 = vpop.f32.mrf.mxu0
  %1228 = vdwg.mxu0
  %1229 = vmatpush.bf16.msra.mxu0 %v920
  %1230 = vmatpush.bf16.msra.mxu0 %v919
  %1231 = vmatpush.bf16.msra.mxu0 %v918
  %1232 = vmatpush.bf16.msra.mxu0 %v917
  %1233 = vmatpush.bf16.msra.mxu0 %v916
  %1234 = vmatpush.bf16.msra.mxu0 %v915
  %1235 = vmatpush.bf16.msra.mxu0 %v914
  %1236 = vmatpush.bf16.msra.mxu0 %v913
  %1237 = vmatmul.bf16.gmra.mxu0 %v285
  %v1238 = vpop.f32.mrf.mxu0
  %v1239 = vadd.f32 %v1226, %v1238
  %v1240 = vpop.f32.mrf.mxu0
  %1241 = vdwg.mxu0
  %1242 = vmatpush.bf16.msra.mxu0 %v928
  %1243 = vmatpush.bf16.msra.mxu0 %v927
  %1244 = vmatpush.bf16.msra.mxu0 %v926
  %1245 = vmatpush.bf16.msra.mxu0 %v925
  %1246 = vmatpush.bf16.msra.mxu0 %v924
  %1247 = vmatpush.bf16.msra.mxu0 %v923
  %1248 = vmatpush.bf16.msra.mxu0 %v922
  %1249 = vmatpush.bf16.msra.mxu0 %v921
  %1250 = vmatmul.bf16.gmra.mxu0 %v286
  %v1251 = vpop.f32.mrf.mxu0
  %v1252 = vadd.f32 %v1239, %v1251
  %v1253 = vpop.f32.mrf.mxu0
  %1254 = vdwg.mxu0
  %1255 = vmatpush.bf16.msra.mxu0 %v936
  %1256 = vmatpush.bf16.msra.mxu0 %v935
  %1257 = vmatpush.bf16.msra.mxu0 %v934
  %1258 = vmatpush.bf16.msra.mxu0 %v933
  %1259 = vmatpush.bf16.msra.mxu0 %v932
  %1260 = vmatpush.bf16.msra.mxu0 %v931
  %1261 = vmatpush.bf16.msra.mxu0 %v930
  %1262 = vmatpush.bf16.msra.mxu0 %v929
  %1263 = vmatmul.bf16.gmra.mxu0 %v287
  %v1264 = vpop.f32.mrf.mxu0
  %v1265 = vadd.f32 %v1252, %v1264
  %v1266 = vpop.f32.mrf.mxu0
  %1267 = vdwg.mxu0
  %1268 = vmatpush.bf16.msra.mxu0 %v944
  %1269 = vmatpush.bf16.msra.mxu0 %v943
  %1270 = vmatpush.bf16.msra.mxu0 %v942
  %1271 = vmatpush.bf16.msra.mxu0 %v941
  %1272 = vmatpush.bf16.msra.mxu0 %v940
  %1273 = vmatpush.bf16.msra.mxu0 %v939
  %1274 = vmatpush.bf16.msra.mxu0 %v938
  %1275 = vmatpush.bf16.msra.mxu0 %v937
  %1276 = vmatmul.bf16.gmra.mxu0 %v288
  %v1277 = vpop.f32.mrf.mxu0
  %v1278 = vadd.f32 %v1265, %v1277
  %v1279 = vpop.f32.mrf.mxu0
  %1280 = vdwg.mxu0
  %v1281 = vxor.u32 %v1278, 2147483648
  %v1282 = vmul.f32 %v1281, 1.442695
  %v1283 = vpow.pop %v1282
  %v1284 = vadd.f32 %v1283, 1.0
  %v1285 = vrcp.pop %v1284
  %v1286 = vmul.f32 %v1284, %v1285
  %v1287 = vsub.f32 1.0, %v1286
  %v1288 = vmul.f32 %v1285, %v1287
  %v1289 = vadd.f32 %v1285, %v1288
  %vm1290 = vweird.f32 %v1284
  %vm1291 = vweird.f32 %v1285
  %vm1292 = vmor %vm1290, %vm1291
  %v1293 = vsel %vm1292, %v1285, %v1289
  %v1294 = vand.u32 2147483647, %v1284
  %vm1295 = vcmp.eq.f32.partialorder %v1294, 8.507059e+37
  %v1296 = vand.u32 %v1284, 2147483648
  %v1297 = vor.u32 1.1754944e-38, %v1296
  %v1298 = vsel %vm1295, %v1297, %v1293
  %v1299 = vmul.f32 1.0, %v1298
  %1300 = vst [vmem:[%s2] sm:$0x3] %v1299
  // Predicated region
  $region10: #{discriminator_forward.15} parent=0 // pred_check
    _
  $region11: #{discriminator_forward.15} parent=0 // pred_check_branch
    %1302 = sbr.rel (0) target = $region13
  $region12: #{discriminator_forward.15} parent=0 // pred_region
    _
  $region13: #{discriminator_forward.15} parent=0 // pred_fallthru
    _
  // Predicated region
  $region14: #{discriminator_forward.15} parent=0 // pred_check
    _
  $region15: #{discriminator_forward.15} parent=0 // pred_check_branch
    %1304 = sbr.rel (0) target = $region17
  $region16: #{discriminator_forward.15} parent=0 // pred_region
    _
  $region17: #{discriminator_forward.15} parent=0 // pred_fallthru
    _

</llo_original>
